<compile_context>
chip_gen: v7x
topology: tpu7x:2x2x1
jax: 0.10.0
libtpu: 0.0.40
codegen_flags: <defaults>
</compile_context>

<pallas_src>
import jax
import jax.numpy as jnp
from jax.experimental import pallas as pl
from jax.experimental.pallas import tpu as pltpu

IN_FEATURES = 12288   # 3 * 64 * 64
H1 = 84
H2 = 50
OUT = 2

# Lane-aligned padded widths (zero padding is exact: ReLU(0)=0 and the padded
# rows/cols of the next layer's weights are zero).
H1_PAD = 128
H2_PAD = 128
OUT_PAD = 128


def _round_up(x, m):
    return (x + m - 1) // m * m


def simplenet_kernel(x_ref, w1_ref, b1_ref, w2_ref, b2_ref, w3d_ref, b3d_ref,
                     o_ref):
    # fc1 + relu. x arrives as f32 (no wrapper-side cast pass over HBM); cast
    # to bf16 here so the MXU runs the native bf16 path with f32 accumulation.
    x = x_ref[...].astype(jnp.bfloat16)
    h1 = jnp.dot(x, w1_ref[...], preferred_element_type=jnp.float32)
    h1 = jnp.maximum(h1 + b1_ref[...], 0.0)

    # fc2 + relu
    h2 = jnp.dot(h1.astype(jnp.bfloat16), w2_ref[...],
                 preferred_element_type=jnp.float32)
    h2 = jnp.maximum(h2 + b2_ref[...], 0.0)

    # fc3 folded into the 2-class softmax:
    #   d  = l1 - l0 = h2 @ (w3[1]-w3[0]) + (b3[1]-b3[0])   (VPU mul + row-sum)
    #   p0 = 1 / (1 + exp(d)),  p1 = 1 - p0                  (EUP exp + recip)
    # No third MXU pass and no per-lane logit extracts; p0 + p1 == 1.
    d = jnp.sum(h2 * w3d_ref[...], axis=-1, keepdims=True) + b3d_ref[...]
    p0 = pl.reciprocal(1.0 + jnp.exp(d), approx=True)
    p1 = 1.0 - p0

    # Lane-dense (TM, 128) store: class probs in lanes 0..1, zeros elsewhere.
    lane = jax.lax.broadcasted_iota(jnp.int32, o_ref.shape, dimension=1)
    o_ref[...] = jnp.where(lane == 0, p0, jnp.where(lane == 1, p1, 0.0))


def prepare_params(params):
    """One-time: (out,in)->(in,out) transpose, zero-pad to lane-aligned
    widths, cast matmul weights to bf16 (biases stay f32). fc3 is folded into
    a single logit-difference row (2-class softmax == sigmoid of l1 - l0)."""
    w1, b1, w2, b2, w3, b3 = params
    w1t = jnp.zeros((IN_FEATURES, H1_PAD), jnp.float32).at[:, :H1].set(w1.T)
    w2t = jnp.zeros((H1_PAD, H2_PAD), jnp.float32).at[:H1, :H2].set(w2.T)
    b1p = jnp.zeros((1, H1_PAD), jnp.float32).at[0, :H1].set(b1)
    b2p = jnp.zeros((1, H2_PAD), jnp.float32).at[0, :H2].set(b2)
    w3d = jnp.zeros((1, H2_PAD), jnp.float32).at[0, :H2].set(w3[1] - w3[0])
    b3d = (b3[1] - b3[0]).reshape(1, 1).astype(jnp.float32)
    return (w1t.astype(jnp.bfloat16), b1p,
            w2t.astype(jnp.bfloat16), b2p,
            w3d, b3d)


def _select_tiling():
    """Generation-aware batch tile / VMEM budget for f32 x tiles."""
    try:
        vmem_cap = pltpu.get_tpu_info().vmem_capacity_bytes
    except Exception:
        vmem_cap = 64 * 1024 * 1024          # conservative (v7x-sized) default
    if vmem_cap >= 96 * 1024 * 1024:         # v5e / v6e: 128 MiB VMEM
        return 512, 96 * 1024 * 1024
    return 256, 48 * 1024 * 1024             # v7x: 64 MiB per TensorCore


def simplenet_forward(x_nchw, prepared):
    """x_nchw: (N, 3, 64, 64) float32. Returns (N, 2) softmax probabilities."""
    n = x_nchw.shape[0]
    # Same row-major flatten as torch's x.view(-1, 12288). No dtype cast and
    # no batch padding here: the kernel streams f32 tiles directly from HBM.
    x2d = x_nchw.reshape(n, IN_FEATURES)

    tm_max, vmem_limit = _select_tiling()
    # Target >= 2 grid steps once the batch allows it (v7x megacore split),
    # keep the tile a multiple of 8 sublanes (f32), cap at the VMEM budget.
    tm = min(tm_max, _round_up(pl.cdiv(n, 2), 8))
    grid = (pl.cdiv(n, tm),)

    w1t, b1p, w2t, b2p, w3d, b3d = prepared

    flops = 2 * n * (IN_FEATURES * H1_PAD + H1_PAD * H2_PAD + H2_PAD)
    bytes_accessed = (n * IN_FEATURES * 4 + n * OUT_PAD * 4
                      + IN_FEATURES * H1_PAD * 2 + H1_PAD * H2_PAD * 2
                      + 3 * H1_PAD * 4)

    out = pl.pallas_call(
        simplenet_kernel,
        out_shape=jax.ShapeDtypeStruct((n, OUT_PAD), jnp.float32),
        grid=grid,
        in_specs=[
            # x: one batch tile per grid step (double-buffered by Pallas);
            # the last block may be ragged -- rows past n are dropped below.
            pl.BlockSpec((tm, IN_FEATURES), lambda i: (i, 0)),
            # weights / biases: constant block index -> resident, no re-DMA.
            pl.BlockSpec((IN_FEATURES, H1_PAD), lambda i: (0, 0)),
            pl.BlockSpec((1, H1_PAD), lambda i: (0, 0)),
            pl.BlockSpec((H1_PAD, H2_PAD), lambda i: (0, 0)),
            pl.BlockSpec((1, H2_PAD), lambda i: (0, 0)),
            pl.BlockSpec((1, H2_PAD), lambda i: (0, 0)),
            pl.BlockSpec((1, 1), lambda i: (0, 0)),
        ],
        out_specs=pl.BlockSpec((tm, OUT_PAD), lambda i: (i, 0)),
        compiler_params=pltpu.CompilerParams(
            dimension_semantics=("parallel",),   # megacore batch split on v7x
            vmem_limit_bytes=vmem_limit,
        ),
        cost_estimate=pl.CostEstimate(
            flops=flops,
            transcendentals=n,
            bytes_accessed=bytes_accessed,
        ),
    )(x2d, w1t, b1p, w2t, b2p, w3d, b3d)

    # Drop the lane padding of the output block (and any ragged-tile rows).
    return out[:n, :OUT]


def init_params(key):
    """Deterministic init mimicking PyTorch Linear's U(-1/sqrt(fan_in), ...)"""
    ks = jax.random.split(key, 6)

    def lin(kw, kb, fan_in, fan_out):
        bound = 1.0 / jnp.sqrt(fan_in)
        w = jax.random.uniform(kw, (fan_out, fan_in), jnp.float32,
                               -bound, bound)
        b = jax.random.uniform(kb, (fan_out,), jnp.float32, -bound, bound)
        return w, b

    w1, b1 = lin(ks[0], ks[1], IN_FEATURES, H1)
    w2, b2 = lin(ks[2], ks[3], H1, H2)
    w3, b3 = lin(ks[4], ks[5], H2, OUT)
    return (w1, b1, w2, b2, w3, b3)


if __name__ == "__main__":
    key = jax.random.PRNGKey(0)
    k_x, k_p = jax.random.split(key)

    # Small batch; 3x64x64 image flattens to exactly 12288 features.
    x = jax.random.normal(k_x, (2, 3, 64, 64), dtype=jnp.float32)
    params = init_params(k_p)
    prepared = prepare_params(params)   # one-time transpose/pad/fold/bf16 cast

    out = simplenet_forward(x, prepared)
    out = jax.block_until_ready(out)

    # Sanity: correct shape, rows sum to 1 (softmax), probs in [0, 1].
    assert out.shape == (2, OUT)
    assert jnp.allclose(jnp.sum(out, axis=-1), 1.0, atol=1e-5)
    assert bool(jnp.all((out >= 0.0) & (out <= 1.0)))

    # Reference check vs a pure-JAX f32 forward; loose tolerance accounts for
    # bf16 MXU operands and the approximate EUP reciprocal.
    w1, b1, w2, b2, w3, b3 = params
    xf = x.reshape(-1, IN_FEATURES)
    h1 = jnp.maximum(xf @ w1.T + b1, 0.0)
    h2 = jnp.maximum(h1 @ w2.T + b2, 0.0)
    ref = jax.nn.softmax(h2 @ w3.T + b3, axis=-1)
    assert jnp.allclose(out, ref, atol=2e-2)

    print("KERNEL_OK")
</pallas_src>

<mosaic_0001>
module attributes {stable_mosaic.version = 11 : i64} {
  func.func @simplenet_kernel(%arg0: i32, %arg1: memref<8x12288xf32, #tpu.memory_space<vmem>>, %arg2: memref<12288x128xbf16, #tpu.memory_space<vmem>>, %arg3: memref<1x128xf32, #tpu.memory_space<vmem>>, %arg4: memref<128x128xbf16, #tpu.memory_space<vmem>>, %arg5: memref<1x128xf32, #tpu.memory_space<vmem>>, %arg6: memref<1x128xf32, #tpu.memory_space<vmem>>, %arg7: memref<1x1xf32, #tpu.memory_space<vmem>>, %arg8: memref<8x128xf32, #tpu.memory_space<vmem>>) attributes {dimension_semantics = [#tpu.dimension_semantics<parallel>], iteration_bounds = array<i64: 1>, scalar_prefetch = 0 : i64, scratch_operands = 0 : i64, tpu.core_type = #tpu.core_type<tc>, window_params = [{transform_indices = @transform_0, window_bounds = array<i64: 8, 12288>}, {pipeline_mode = #tpu.pipeline_mode<synchronous>, transform_indices = @transform_1, window_bounds = array<i64: 12288, 128>}, {pipeline_mode = #tpu.pipeline_mode<synchronous>, transform_indices = @transform_2, window_bounds = array<i64: 1, 128>}, {pipeline_mode = #tpu.pipeline_mode<synchronous>, transform_indices = @transform_3, window_bounds = array<i64: 128, 128>}, {pipeline_mode = #tpu.pipeline_mode<synchronous>, transform_indices = @transform_4, window_bounds = array<i64: 1, 128>}, {pipeline_mode = #tpu.pipeline_mode<synchronous>, transform_indices = @transform_5, window_bounds = array<i64: 1, 128>}, {pipeline_mode = #tpu.pipeline_mode<synchronous>, transform_indices = @transform_6, window_bounds = array<i64: 1, 1>}, {transform_indices = @transform_7, window_bounds = array<i64: 8, 128>}]} {
    %c0 = arith.constant 0 : index
    %c0_0 = arith.constant 0 : index
    %0 = vector.load %arg1[%c0, %c0_0] : memref<8x12288xf32, #tpu.memory_space<vmem>>, vector<8x12288xf32>
    %1 = arith.truncf %0 : vector<8x12288xf32> to vector<8x12288xbf16>
    %c0_1 = arith.constant 0 : index
    %c0_2 = arith.constant 0 : index
    %2 = vector.load %arg2[%c0_1, %c0_2] : memref<12288x128xbf16, #tpu.memory_space<vmem>>, vector<12288x128xbf16>
    %cst = arith.constant dense<0.000000e+00> : vector<8x128xf32>
    %3 = tpu.matmul %1, %2, %cst {dimension_numbers = #tpu.dot_dimension_numbers<[1], [0], [0], [1], [0, 0, 1, 1], [], []>} : vector<8x12288xbf16>, vector<12288x128xbf16>, vector<8x128xf32> -> vector<8x128xf32>
    %c0_3 = arith.constant 0 : index
    %c0_4 = arith.constant 0 : index
    %4 = vector.load %arg3[%c0_3, %c0_4] : memref<1x128xf32, #tpu.memory_space<vmem>>, vector<1x128xf32>
    %5 = vector.broadcast %4 : vector<1x128xf32> to vector<8x128xf32>
    %6 = arith.addf %3, %5 : vector<8x128xf32>
    %cst_5 = arith.constant 0.000000e+00 : f32
    %7 = vector.broadcast %cst_5 : f32 to vector<8x128xf32>
    %8 = arith.maximumf %6, %7 : vector<8x128xf32>
    %9 = arith.truncf %8 : vector<8x128xf32> to vector<8x128xbf16>
    %c0_6 = arith.constant 0 : index
    %c0_7 = arith.constant 0 : index
    %10 = vector.load %arg4[%c0_6, %c0_7] : memref<128x128xbf16, #tpu.memory_space<vmem>>, vector<128x128xbf16>
    %cst_8 = arith.constant dense<0.000000e+00> : vector<8x128xf32>
    %11 = tpu.matmul %9, %10, %cst_8 {dimension_numbers = #tpu.dot_dimension_numbers<[1], [0], [0], [1], [0, 0, 1, 1], [], []>} : vector<8x128xbf16>, vector<128x128xbf16>, vector<8x128xf32> -> vector<8x128xf32>
    %c0_9 = arith.constant 0 : index
    %c0_10 = arith.constant 0 : index
    %12 = vector.load %arg5[%c0_9, %c0_10] : memref<1x128xf32, #tpu.memory_space<vmem>>, vector<1x128xf32>
    %13 = vector.broadcast %12 : vector<1x128xf32> to vector<8x128xf32>
    %14 = arith.addf %11, %13 : vector<8x128xf32>
    %cst_11 = arith.constant 0.000000e+00 : f32
    %15 = vector.broadcast %cst_11 : f32 to vector<8x128xf32>
    %16 = arith.maximumf %14, %15 : vector<8x128xf32>
    %c0_12 = arith.constant 0 : index
    %c0_13 = arith.constant 0 : index
    %17 = vector.load %arg6[%c0_12, %c0_13] : memref<1x128xf32, #tpu.memory_space<vmem>>, vector<1x128xf32>
    %18 = vector.broadcast %17 : vector<1x128xf32> to vector<8x128xf32>
    %19 = arith.mulf %16, %18 : vector<8x128xf32>
    %cst_14 = arith.constant dense<0.000000e+00> : vector<8xf32>
    %20 = vector.multi_reduction <add>, %19, %cst_14 [1] : vector<8x128xf32> to vector<8xf32>
    %21 = vector.shape_cast %20 : vector<8xf32> to vector<8x1xf32>
    %c0_15 = arith.constant 0 : index
    %c0_16 = arith.constant 0 : index
    %22 = vector.load %arg7[%c0_15, %c0_16] : memref<1x1xf32, #tpu.memory_space<vmem>>, vector<1x1xf32>
    %23 = vector.broadcast %22 : vector<1x1xf32> to vector<8x1xf32>
    %24 = arith.addf %21, %23 : vector<8x1xf32>
    %25 = math.exp %24 : vector<8x1xf32>
    %cst_17 = arith.constant 1.000000e+00 : f32
    %26 = vector.broadcast %cst_17 : f32 to vector<8x1xf32>
    %27 = arith.addf %26, %25 : vector<8x1xf32>
    %28 = tpu.reciprocal %27 {approx = true} : vector<8x1xf32> -> vector<8x1xf32>
    %cst_18 = arith.constant 1.000000e+00 : f32
    %29 = vector.broadcast %cst_18 : f32 to vector<8x1xf32>
    %30 = arith.subf %29, %28 : vector<8x1xf32>
    %31 = tpu.iota {dimensions = array<i32: 1>} : vector<8x128xi32>
    %c0_i32 = arith.constant 0 : i32
    %32 = vector.broadcast %c0_i32 : i32 to vector<8x128xi32>
    %33 = arith.cmpi eq, %31, %32 : vector<8x128xi32>
    %c1_i32 = arith.constant 1 : i32
    %34 = vector.broadcast %c1_i32 : i32 to vector<8x128xi32>
    %35 = arith.cmpi eq, %31, %34 : vector<8x128xi32>
    %cst_19 = arith.constant 0.000000e+00 : f32
    %36 = vector.shape_cast %30 : vector<8x1xf32> to vector<8x1xf32>
    %37 = vector.broadcast %36 : vector<8x1xf32> to vector<8x128xf32>
    %38 = vector.broadcast %cst_19 : f32 to vector<8x128xf32>
    %39 = arith.select %35, %37, %38 : vector<8x128xi1>, vector<8x128xf32>
    %40 = vector.shape_cast %28 : vector<8x1xf32> to vector<8x1xf32>
    %41 = vector.broadcast %40 : vector<8x1xf32> to vector<8x128xf32>
    %42 = arith.select %33, %41, %39 : vector<8x128xi1>, vector<8x128xf32>
    %c0_20 = arith.constant 0 : index
    %c0_21 = arith.constant 0 : index
    %43 = vector.load %arg8[%c0_20, %c0_21] : memref<8x128xf32, #tpu.memory_space<vmem>>, vector<8x128xf32>
    tpu.vector_store %arg8[%c0_20, %c0_21], %42 {strides = array<i32>} : memref<8x128xf32, #tpu.memory_space<vmem>>, vector<8x128xf32>,
    return
  }
  func.func @transform_0(%arg0: i32) -> (i32, i32) {
    %c0_i32 = arith.constant 0 : i32
    %c0_i32_0 = arith.constant 0 : i32
    return %arg0, %c0_i32 : i32, i32
  }
  func.func @transform_1(%arg0: i32) -> (i32, i32) {
    %c0_i32 = arith.constant 0 : i32
    %c0_i32_0 = arith.constant 0 : i32
    %c0_i32_1 = arith.constant 0 : i32
    return %c0_i32, %c0_i32_0 : i32, i32
  }
  func.func @transform_2(%arg0: i32) -> (i32, i32) {
    %c0_i32 = arith.constant 0 : i32
    %c0_i32_0 = arith.constant 0 : i32
    %c0_i32_1 = arith.constant 0 : i32
    return %c0_i32, %c0_i32_0 : i32, i32
  }
  func.func @transform_3(%arg0: i32) -> (i32, i32) {
    %c0_i32 = arith.constant 0 : i32
    %c0_i32_0 = arith.constant 0 : i32
    %c0_i32_1 = arith.constant 0 : i32
    return %c0_i32, %c0_i32_0 : i32, i32
  }
  func.func @transform_4(%arg0: i32) -> (i32, i32) {
    %c0_i32 = arith.constant 0 : i32
    %c0_i32_0 = arith.constant 0 : i32
    %c0_i32_1 = arith.constant 0 : i32
    return %c0_i32, %c0_i32_0 : i32, i32
  }
  func.func @transform_5(%arg0: i32) -> (i32, i32) {
    %c0_i32 = arith.constant 0 : i32
    %c0_i32_0 = arith.constant 0 : i32
    %c0_i32_1 = arith.constant 0 : i32
    return %c0_i32, %c0_i32_0 : i32, i32
  }
  func.func @transform_6(%arg0: i32) -> (i32, i32) {
    %c0_i32 = arith.constant 0 : i32
    %c0_i32_0 = arith.constant 0 : i32
    %c0_i32_1 = arith.constant 0 : i32
    return %c0_i32, %c0_i32_0 : i32, i32
  }
  func.func @transform_7(%arg0: i32) -> (i32, i32) {
    %c0_i32 = arith.constant 0 : i32
    %c0_i32_0 = arith.constant 0 : i32
    return %arg0, %c0_i32 : i32, i32
  }
}

</mosaic_0001>

<llo_original>
// kernel: tpu_custom_call.1
$region0: #{tpu_custom_call.1}
  #allocation0 [shape = 'u32[]', space=smem, size = 0x4, offset = 0x4, fixed_abs, tag = 'smem constant byte address 0x4 - core index']
  #allocation1 [shape = 'u32[144,128]{1,0:T(1,128)}', space=vmem, size = 0x12000, scoped, tag = 'internal scratch']
  #allocation2 [shape = 'f32[1,1]{1,0:T(1,128)S(1)}', space=vmem, size = 0x200, scoped, tag = 'scoped memory for tpu_custom_call.1']
  %s0 = inlined_call_operand.hbm [shape: f32[2,12288], index: 0, kind: input, shape index: {}]
  %s1 = inlined_call_operand.hbm [shape: bf16[12288,128], index: 1, kind: input, shape index: {}]
  %s2 = inlined_call_operand.hbm [shape: f32[1,128], index: 2, kind: input, shape index: {}]
  %s3 = inlined_call_operand.hbm [shape: bf16[128,128], index: 3, kind: input, shape index: {}]
  %s4 = inlined_call_operand.hbm [shape: f32[1,128], index: 4, kind: input, shape index: {}]
  %s5 = inlined_call_operand.hbm [shape: f32[1,128], index: 5, kind: input, shape index: {}]
  %s6 = inlined_call_operand.<no memory space> [shape: f32[1,1], index: 6, kind: input, shape index: {}]
  %s7 = inlined_call_operand.hbm [shape: f32[2,128], index: 7, kind: output, shape index: {}]
  %s8 = sld [smem:[#allocation0]]
  $region62: #{tpu_custom_call.1} parent=0
    _
  %s10 = ssub.s32 1, %s8
  %s11 = scalar_select 0, %s10, %s8
  %v12 = vstv %s6
  %13 = vst [vmem:[#allocation2] sm:$0x1] %v12
  $region1: #{tpu_custom_call.1} parent=0
    #allocation3 [shape = 'u8[393216]{0}', space=vmem, size = 0x60000, scoped, tag = 'input window, operand 0, single buffered']
    #allocation4 [shape = 's32[1]{0}', space=sflag, size = 0x4, scoped, tag = 'scoped memory for tpu_custom_call.1']
    #allocation5 [shape = 's32[1]{0}', space=sflag, size = 0x4, scoped, tag = 'scoped memory for tpu_custom_call.1']
    #allocation6 [shape = 'u8[3145728]{0}', space=vmem, size = 0x300000, scoped, tag = 'input window, operand 1, single buffered']
    #allocation7 [shape = 's32[1]{0}', space=sflag, size = 0x4, scoped, tag = 'scoped memory for tpu_custom_call.1']
    #allocation8 [shape = 'u8[512]{0}', space=vmem, size = 0x400, scoped, tag = 'input window, operand 2, single buffered']
    #allocation9 [shape = 'u8[32768]{0}', space=vmem, size = 0x8000, scoped, tag = 'input window, operand 3, single buffered']
    #allocation10 [shape = 's32[1]{0}', space=sflag, size = 0x4, scoped, tag = 'scoped memory for tpu_custom_call.1']
    #allocation11 [shape = 'u8[512]{0}', space=vmem, size = 0x400, scoped, tag = 'input window, operand 4, single buffered']
    #allocation12 [shape = 'u8[512]{0}', space=vmem, size = 0x400, scoped, tag = 'input window, operand 5, single buffered']
    #allocation13 [shape = 's32[1]{0}', space=sflag, size = 0x4, scoped, tag = 'scoped memory for tpu_custom_call.1']
    #allocation14 [shape = 'u8[4096]{0}', space=vmem, size = 0x1000, scoped, tag = 'output window, operand 0, single buffered']
    %14 = vsyncpa [#allocation4], 0
    %15 = vsyncpa [#allocation7], 0
    %16 = vsyncpa [#allocation10], 0
    %17 = vsyncpa [#allocation13], 0
    %18 = vsyncpa [#allocation5], 0
    // Predicated region
    $region2: #{tpu_custom_call.1} parent=1 // pred_check
      _
    $region3: #{tpu_custom_call.1} parent=1 // pred_check_branch
      %20 = sbr.rel (0) target = $region5
    $region4: #{tpu_custom_call.1} parent=1 // pred_region
      %s22 = ssub.s32 12288, 3072
      %23 = vsyncadd [#allocation4], %s22
      %s24 = sshll.u32 [#allocation3], 4
      %s25 = int_to_ptr.vmem [resolvable:$true] %s24
      %30 = dma.hbm_to_vmem [thread:$0]  %s0, 3072, %s25, [#allocation4], 3072, 3072, 192
    $region5: #{tpu_custom_call.1} parent=1 // pred_fallthru
      _
    // Predicated region
    $region6: #{tpu_custom_call.1} parent=1 // pred_check
      _
    $region7: #{tpu_custom_call.1} parent=1 // pred_check_branch
      %32 = sbr.rel (0) target = $region9
    $region8: #{tpu_custom_call.1} parent=1 // pred_region
      %s34 = ssub.s32 98304, 98304
      %35 = vsyncadd [#allocation7], %s34
      %s36 = sshll.u32 [#allocation6], 4
      %s37 = int_to_ptr.vmem [resolvable:$true] %s36
      %42 = dma.hbm_to_vmem [thread:$0]  %s1, 98304, %s37, [#allocation7], 64, 64, 4
    $region9: #{tpu_custom_call.1} parent=1 // pred_fallthru
      _
    // Predicated region
    $region10: #{tpu_custom_call.1} parent=1 // pred_check
      _
    $region11: #{tpu_custom_call.1} parent=1 // pred_check_branch
      %44 = sbr.rel (0) target = $region13
    $region12: #{tpu_custom_call.1} parent=1 // pred_region
      %s46 = ssub.s32 16, 16
      %47 = vsyncadd [#allocation7], %s46
      %s49 = sshll.u32 [#allocation8], 4
      %s50 = int_to_ptr.vmem [resolvable:$true] %s49
      %52 = dma.hbm_to_vmem [thread:$0]  %s2, 16, %s50, [#allocation7]
    $region13: #{tpu_custom_call.1} parent=1 // pred_fallthru
      _
    // Predicated region
    $region14: #{tpu_custom_call.1} parent=1 // pred_check
      _
    $region15: #{tpu_custom_call.1} parent=1 // pred_check_branch
      %54 = sbr.rel (0) target = $region17
    $region16: #{tpu_custom_call.1} parent=1 // pred_region
      %s56 = ssub.s32 1024, 1024
      %57 = vsyncadd [#allocation10], %s56
      %s58 = sshll.u32 [#allocation9], 4
      %s59 = int_to_ptr.vmem [resolvable:$true] %s58
      %64 = dma.hbm_to_vmem [thread:$0]  %s3, 1024, %s59, [#allocation10], 64, 64, 4
    $region17: #{tpu_custom_call.1} parent=1 // pred_fallthru
      _
    // Predicated region
    $region18: #{tpu_custom_call.1} parent=1 // pred_check
      _
    $region19: #{tpu_custom_call.1} parent=1 // pred_check_branch
      %66 = sbr.rel (0) target = $region21
    $region20: #{tpu_custom_call.1} parent=1 // pred_region
      %s68 = ssub.s32 16, 16
      %69 = vsyncadd [#allocation10], %s68
      %s71 = sshll.u32 [#allocation11], 4
      %s72 = int_to_ptr.vmem [resolvable:$true] %s71
      %74 = dma.hbm_to_vmem [thread:$0]  %s4, 16, %s72, [#allocation10]
    $region21: #{tpu_custom_call.1} parent=1 // pred_fallthru
      _
    // Predicated region
    $region22: #{tpu_custom_call.1} parent=1 // pred_check
      _
    $region23: #{tpu_custom_call.1} parent=1 // pred_check_branch
      %76 = sbr.rel (0) target = $region25
    $region24: #{tpu_custom_call.1} parent=1 // pred_region
      %s78 = ssub.s32 16, 16
      %79 = vsyncadd [#allocation13], %s78
      %s81 = sshll.u32 [#allocation12], 4
      %s82 = int_to_ptr.vmem [resolvable:$true] %s81
      %84 = dma.hbm_to_vmem [thread:$0]  %s5, 16, %s82, [#allocation13]
    $region25: #{tpu_custom_call.1} parent=1 // pred_fallthru
      _
    // Predicated region
    $region26: #{tpu_custom_call.1} parent=1 // pred_check
      _
    $region27: #{tpu_custom_call.1} parent=1 // pred_check_branch
      %86 = sbr.rel (0) target = $region29
    $region28: #{tpu_custom_call.1} parent=1 // pred_region
      _
    $region29: #{tpu_custom_call.1} parent=1 // pred_fallthru
      _
    // Predicated region
    $region30: #{tpu_custom_call.1} parent=1 // pred_check
      _
    $region31: #{tpu_custom_call.1} parent=1 // pred_check_branch
      %88 = sbr.rel (0) target = $region33
    $region32: #{tpu_custom_call.1} parent=1 // pred_region
      %89 = dma.done [#allocation4], 12288
    $region33: #{tpu_custom_call.1} parent=1 // pred_fallthru
      _
    // Predicated region
    $region34: #{tpu_custom_call.1} parent=1 // pred_check
      _
    $region35: #{tpu_custom_call.1} parent=1 // pred_check_branch
      %91 = sbr.rel (0) target = $region37
    $region36: #{tpu_custom_call.1} parent=1 // pred_region
      %92 = dma.done [#allocation7], 98304
    $region37: #{tpu_custom_call.1} parent=1 // pred_fallthru
      _
    // Predicated region
    $region38: #{tpu_custom_call.1} parent=1 // pred_check
      _
    $region39: #{tpu_custom_call.1} parent=1 // pred_check_branch
      %94 = sbr.rel (0) target = $region41
    $region40: #{tpu_custom_call.1} parent=1 // pred_region
      %95 = dma.done [#allocation7], 16
    $region41: #{tpu_custom_call.1} parent=1 // pred_fallthru
      _
    // Predicated region
    $region42: #{tpu_custom_call.1} parent=1 // pred_check
      _
    $region43: #{tpu_custom_call.1} parent=1 // pred_check_branch
      %97 = sbr.rel (0) target = $region45
    $region44: #{tpu_custom_call.1} parent=1 // pred_region
      %98 = dma.done [#allocation10], 1024
    $region45: #{tpu_custom_call.1} parent=1 // pred_fallthru
      _
    // Predicated region
    $region46: #{tpu_custom_call.1} parent=1 // pred_check
      _
    $region47: #{tpu_custom_call.1} parent=1 // pred_check_branch
      %100 = sbr.rel (0) target = $region49
    $region48: #{tpu_custom_call.1} parent=1 // pred_region
      %101 = dma.done [#allocation10], 16
    $region49: #{tpu_custom_call.1} parent=1 // pred_fallthru
      _
    // Predicated region
    $region50: #{tpu_custom_call.1} parent=1 // pred_check
      _
    $region51: #{tpu_custom_call.1} parent=1 // pred_check_branch
      %103 = sbr.rel (0) target = $region53
    $region52: #{tpu_custom_call.1} parent=1 // pred_region
      %104 = dma.done [#allocation13], 16
    $region53: #{tpu_custom_call.1} parent=1 // pred_fallthru
      _
    %v106 = vld [vmem:[#allocation3] sm:$0xff]
    %v107 = vld [vmem:[#allocation3 + $0x8] sm:$0xff]
    %v108 = vld [vmem:[#allocation3 + $0x10] sm:$0xff]
    %v109 = vld [vmem:[#allocation3 + $0x18] sm:$0xff]
    %v110 = vld [vmem:[#allocation3 + $0x20] sm:$0xff]
    %v111 = vld [vmem:[#allocation3 + $0x28] sm:$0xff]
    %v112 = vld [vmem:[#allocation3 + $0x30] sm:$0xff]
    %v113 = vld [vmem:[#allocation3 + $0x38] sm:$0xff]
    %v114 = vld [vmem:[#allocation3 + $0x40] sm:$0xff]
    %v115 = vld [vmem:[#allocation3 + $0x48] sm:$0xff]
    %v116 = vld [vmem:[#allocation3 + $0x50] sm:$0xff]
    %v117 = vld [vmem:[#allocation3 + $0x58] sm:$0xff]
    %v118 = vld [vmem:[#allocation3 + $0x60] sm:$0xff]
    %v119 = vld [vmem:[#allocation3 + $0x68] sm:$0xff]
    %v120 = vld [vmem:[#allocation3 + $0x70] sm:$0xff]
    %v121 = vld [vmem:[#allocation3 + $0x78] sm:$0xff]
    %v122 = vld [vmem:[#allocation3 + $0x80] sm:$0xff]
    %v123 = vld [vmem:[#allocation3 + $0x88] sm:$0xff]
    %v124 = vld [vmem:[#allocation3 + $0x90] sm:$0xff]
    %v125 = vld [vmem:[#allocation3 + $0x98] sm:$0xff]
    %v126 = vld [vmem:[#allocation3 + $0xa0] sm:$0xff]
    %v127 = vld [vmem:[#allocation3 + $0xa8] sm:$0xff]
    %v128 = vld [vmem:[#allocation3 + $0xb0] sm:$0xff]
    %v129 = vld [vmem:[#allocation3 + $0xb8] sm:$0xff]
    %v130 = vld [vmem:[#allocation3 + $0xc0] sm:$0xff]
    %v131 = vld [vmem:[#allocation3 + $0xc8] sm:$0xff]
    %v132 = vld [vmem:[#allocation3 + $0xd0] sm:$0xff]
    %v133 = vld [vmem:[#allocation3 + $0xd8] sm:$0xff]
    %v134 = vld [vmem:[#allocation3 + $0xe0] sm:$0xff]
    %v135 = vld [vmem:[#allocation3 + $0xe8] sm:$0xff]
    %v136 = vld [vmem:[#allocation3 + $0xf0] sm:$0xff]
    %v137 = vld [vmem:[#allocation3 + $0xf8] sm:$0xff]
    %v138 = vld [vmem:[#allocation3 + $0x100] sm:$0xff]
    %v139 = vld [vmem:[#allocation3 + $0x108] sm:$0xff]
    %v140 = vld [vmem:[#allocation3 + $0x110] sm:$0xff]
    %v141 = vld [vmem:[#allocation3 + $0x118] sm:$0xff]
    %v142 = vld [vmem:[#allocation3 + $0x120] sm:$0xff]
    %v143 = vld [vmem:[#allocation3 + $0x128] sm:$0xff]
    %v144 = vld [vmem:[#allocation3 + $0x130] sm:$0xff]
    %v145 = vld [vmem:[#allocation3 + $0x138] sm:$0xff]
    %v146 = vld [vmem:[#allocation3 + $0x140] sm:$0xff]
    %v147 = vld [vmem:[#allocation3 + $0x148] sm:$0xff]
    %v148 = vld [vmem:[#allocation3 + $0x150] sm:$0xff]
    %v149 = vld [vmem:[#allocation3 + $0x158] sm:$0xff]
    %v150 = vld [vmem:[#allocation3 + $0x160] sm:$0xff]
    %v151 = vld [vmem:[#allocation3 + $0x168] sm:$0xff]
    %v152 = vld [vmem:[#allocation3 + $0x170] sm:$0xff]
    %v153 = vld [vmem:[#allocation3 + $0x178] sm:$0xff]
    %v154 = vld [vmem:[#allocation3 + $0x180] sm:$0xff]
    %v155 = vld [vmem:[#allocation3 + $0x188] sm:$0xff]
    %v156 = vld [vmem:[#allocation3 + $0x190] sm:$0xff]
    %v157 = vld [vmem:[#allocation3 + $0x198] sm:$0xff]
    %v158 = vld [vmem:[#allocation3 + $0x1a0] sm:$0xff]
    %v159 = vld [vmem:[#allocation3 + $0x1a8] sm:$0xff]
    %v160 = vld [vmem:[#allocation3 + $0x1b0] sm:$0xff]
    %v161 = vld [vmem:[#allocation3 + $0x1b8] sm:$0xff]
    %v162 = vld [vmem:[#allocation3 + $0x1c0] sm:$0xff]
    %v163 = vld [vmem:[#allocation3 + $0x1c8] sm:$0xff]
    %v164 = vld [vmem:[#allocation3 + $0x1d0] sm:$0xff]
    %v165 = vld [vmem:[#allocation3 + $0x1d8] sm:$0xff]
    %v166 = vld [vmem:[#allocation3 + $0x1e0] sm:$0xff]
    %v167 = vld [vmem:[#allocation3 + $0x1e8] sm:$0xff]
    %v168 = vld [vmem:[#allocation3 + $0x1f0] sm:$0xff]
    %v169 = vld [vmem:[#allocation3 + $0x1f8] sm:$0xff]
    %v170 = vld [vmem:[#allocation3 + $0x200] sm:$0xff]
    %v171 = vld [vmem:[#allocation3 + $0x208] sm:$0xff]
    %v172 = vld [vmem:[#allocation3 + $0x210] sm:$0xff]
    %v173 = vld [vmem:[#allocation3 + $0x218] sm:$0xff]
    %v174 = vld [vmem:[#allocation3 + $0x220] sm:$0xff]
    %v175 = vld [vmem:[#allocation3 + $0x228] sm:$0xff]
    %v176 = vld [vmem:[#allocation3 + $0x230] sm:$0xff]
    %v177 = vld [vmem:[#allocation3 + $0x238] sm:$0xff]
    %v178 = vld [vmem:[#allocation3 + $0x240] sm:$0xff]
    %v179 = vld [vmem:[#allocation3 + $0x248] sm:$0xff]
    %v180 = vld [vmem:[#allocation3 + $0x250] sm:$0xff]
    %v181 = vld [vmem:[#allocation3 + $0x258] sm:$0xff]
    %v182 = vld [vmem:[#allocation3 + $0x260] sm:$0xff]
    %v183 = vld [vmem:[#allocation3 + $0x268] sm:$0xff]
    %v184 = vld [vmem:[#allocation3 + $0x270] sm:$0xff]
    %v185 = vld [vmem:[#allocation3 + $0x278] sm:$0xff]
    %v186 = vld [vmem:[#allocation3 + $0x280] sm:$0xff]
    %v187 = vld [vmem:[#allocation3 + $0x288] sm:$0xff]
    %v188 = vld [vmem:[#allocation3 + $0x290] sm:$0xff]
    %v189 = vld [vmem:[#allocation3 + $0x298] sm:$0xff]
    %v190 = vld [vmem:[#allocation3 + $0x2a0] sm:$0xff]
    %v191 = vld [vmem:[#allocation3 + $0x2a8] sm:$0xff]
    %v192 = vld [vmem:[#allocation3 + $0x2b0] sm:$0xff]
    %v193 = vld [vmem:[#allocation3 + $0x2b8] sm:$0xff]
    %v194 = vld [vmem:[#allocation3 + $0x2c0] sm:$0xff]
    %v195 = vld [vmem:[#allocation3 + $0x2c8] sm:$0xff]
    %v196 = vld [vmem:[#allocation3 + $0x2d0] sm:$0xff]
    %v197 = vld [vmem:[#allocation3 + $0x2d8] sm:$0xff]
    %v198 = vld [vmem:[#allocation3 + $0x2e0] sm:$0xff]
    %v199 = vld [vmem:[#allocation3 + $0x2e8] sm:$0xff]
    %v200 = vld [vmem:[#allocation3 + $0x2f0] sm:$0xff]
    %v201 = vld [vmem:[#allocation3 + $0x2f8] sm:$0xff]
    %v298 = vcombine.low %v106, %v130
    %v299 = vcombine.high %v106, %v130
    %v300 = vcombine.low %v154, %v178
    %v301 = vcombine.high %v154, %v178
    %v303 = vunpack.c.l.s4 1983009808
    %v304 = vunpack.c.0.s8 %v303
    %v305 = vlaneseq
    %v306 = vshrl.u32 %v305, 7
    %v307 = vsub.s32 %v304, %v306
    %v308 = vrot.slane %v298, %v307
    %v310 = vunpack.c.l.s4 1983009808
    %v311 = vunpack.c.0.s8 %v310
    %v312 = vlaneseq
    %v313 = vshrl.u32 %v312, 7
    %v314 = vsub.s32 %v311, %v313
    %v315 = vrot.slane %v299, %v314
    %v317 = vunpack.c.l.s4 1983009808
    %v318 = vunpack.c.0.s8 %v317
    %v319 = vlaneseq
    %v320 = vshrl.u32 %v319, 7
    %v321 = vsub.s32 %v318, %v320
    %v322 = vrot.slane %v300, %v321
    %v324 = vunpack.c.l.s4 1983009808
    %v325 = vunpack.c.0.s8 %v324
    %v326 = vlaneseq
    %v327 = vshrl.u32 %v326, 7
    %v328 = vsub.s32 %v325, %v327
    %v329 = vrot.slane %v301, %v328
    %v330 = vcombine.low %v308, %v322
    %v331 = vcombine.high %v308, %v322
    %v332 = vcombine.low %v315, %v329
    %v333 = vcombine.high %v315, %v329
    %v334 = vcombine.low %v107, %v131
    %v335 = vcombine.high %v107, %v131
    %v336 = vcombine.low %v155, %v179
    %v337 = vcombine.high %v155, %v179
    %v339 = vunpack.c.l.s4 1983009808
    %v340 = vunpack.c.0.s8 %v339
    %v341 = vlaneseq
    %v342 = vshrl.u32 %v341, 7
    %v343 = vsub.s32 %v340, %v342
    %v344 = vrot.slane %v334, %v343
    %v346 = vunpack.c.l.s4 1983009808
    %v347 = vunpack.c.0.s8 %v346
    %v348 = vlaneseq
    %v349 = vshrl.u32 %v348, 7
    %v350 = vsub.s32 %v347, %v349
    %v351 = vrot.slane %v335, %v350
    %v353 = vunpack.c.l.s4 1983009808
    %v354 = vunpack.c.0.s8 %v353
    %v355 = vlaneseq
    %v356 = vshrl.u32 %v355, 7
    %v357 = vsub.s32 %v354, %v356
    %v358 = vrot.slane %v336, %v357
    %v360 = vunpack.c.l.s4 1983009808
    %v361 = vunpack.c.0.s8 %v360
    %v362 = vlaneseq
    %v363 = vshrl.u32 %v362, 7
    %v364 = vsub.s32 %v361, %v363
    %v365 = vrot.slane %v337, %v364
    %v366 = vcombine.low %v344, %v358
    %v367 = vcombine.high %v344, %v358
    %v368 = vcombine.low %v351, %v365
    %v369 = vcombine.high %v351, %v365
    %v370 = vcombine.low %v108, %v132
    %v371 = vcombine.high %v108, %v132
    %v372 = vcombine.low %v156, %v180
    %v373 = vcombine.high %v156, %v180
    %v375 = vunpack.c.l.s4 1983009808
    %v376 = vunpack.c.0.s8 %v375
    %v377 = vlaneseq
    %v378 = vshrl.u32 %v377, 7
    %v379 = vsub.s32 %v376, %v378
    %v380 = vrot.slane %v370, %v379
    %v382 = vunpack.c.l.s4 1983009808
    %v383 = vunpack.c.0.s8 %v382
    %v384 = vlaneseq
    %v385 = vshrl.u32 %v384, 7
    %v386 = vsub.s32 %v383, %v385
    %v387 = vrot.slane %v371, %v386
    %v389 = vunpack.c.l.s4 1983009808
    %v390 = vunpack.c.0.s8 %v389
    %v391 = vlaneseq
    %v392 = vshrl.u32 %v391, 7
    %v393 = vsub.s32 %v390, %v392
    %v394 = vrot.slane %v372, %v393
    %v396 = vunpack.c.l.s4 1983009808
    %v397 = vunpack.c.0.s8 %v396
    %v398 = vlaneseq
    %v399 = vshrl.u32 %v398, 7
    %v400 = vsub.s32 %v397, %v399
    %v401 = vrot.slane %v373, %v400
    %v402 = vcombine.low %v380, %v394
    %v403 = vcombine.high %v380, %v394
    %v404 = vcombine.low %v387, %v401
    %v405 = vcombine.high %v387, %v401
    %v406 = vcombine.low %v109, %v133
    %v407 = vcombine.high %v109, %v133
    %v408 = vcombine.low %v157, %v181
    %v409 = vcombine.high %v157, %v181
    %v411 = vunpack.c.l.s4 1983009808
    %v412 = vunpack.c.0.s8 %v411
    %v413 = vlaneseq
    %v414 = vshrl.u32 %v413, 7
    %v415 = vsub.s32 %v412, %v414
    %v416 = vrot.slane %v406, %v415
    %v418 = vunpack.c.l.s4 1983009808
    %v419 = vunpack.c.0.s8 %v418
    %v420 = vlaneseq
    %v421 = vshrl.u32 %v420, 7
    %v422 = vsub.s32 %v419, %v421
    %v423 = vrot.slane %v407, %v422
    %v425 = vunpack.c.l.s4 1983009808
    %v426 = vunpack.c.0.s8 %v425
    %v427 = vlaneseq
    %v428 = vshrl.u32 %v427, 7
    %v429 = vsub.s32 %v426, %v428
    %v430 = vrot.slane %v408, %v429
    %v432 = vunpack.c.l.s4 1983009808
    %v433 = vunpack.c.0.s8 %v432
    %v434 = vlaneseq
    %v435 = vshrl.u32 %v434, 7
    %v436 = vsub.s32 %v433, %v435
    %v437 = vrot.slane %v409, %v436
    %v438 = vcombine.low %v416, %v430
    %v439 = vcombine.high %v416, %v430
    %v440 = vcombine.low %v423, %v437
    %v441 = vcombine.high %v423, %v437
    %v442 = vcombine.low %v110, %v134
    %v443 = vcombine.high %v110, %v134
    %v444 = vcombine.low %v158, %v182
    %v445 = vcombine.high %v158, %v182
    %v447 = vunpack.c.l.s4 1983009808
    %v448 = vunpack.c.0.s8 %v447
    %v449 = vlaneseq
    %v450 = vshrl.u32 %v449, 7
    %v451 = vsub.s32 %v448, %v450
    %v452 = vrot.slane %v442, %v451
    %v454 = vunpack.c.l.s4 1983009808
    %v455 = vunpack.c.0.s8 %v454
    %v456 = vlaneseq
    %v457 = vshrl.u32 %v456, 7
    %v458 = vsub.s32 %v455, %v457
    %v459 = vrot.slane %v443, %v458
    %v461 = vunpack.c.l.s4 1983009808
    %v462 = vunpack.c.0.s8 %v461
    %v463 = vlaneseq
    %v464 = vshrl.u32 %v463, 7
    %v465 = vsub.s32 %v462, %v464
    %v466 = vrot.slane %v444, %v465
    %v468 = vunpack.c.l.s4 1983009808
    %v469 = vunpack.c.0.s8 %v468
    %v470 = vlaneseq
    %v471 = vshrl.u32 %v470, 7
    %v472 = vsub.s32 %v469, %v471
    %v473 = vrot.slane %v445, %v472
    %v474 = vcombine.low %v452, %v466
    %v475 = vcombine.high %v452, %v466
    %v476 = vcombine.low %v459, %v473
    %v477 = vcombine.high %v459, %v473
    %v478 = vcombine.low %v111, %v135
    %v479 = vcombine.high %v111, %v135
    %v480 = vcombine.low %v159, %v183
    %v481 = vcombine.high %v159, %v183
    %v483 = vunpack.c.l.s4 1983009808
    %v484 = vunpack.c.0.s8 %v483
    %v485 = vlaneseq
    %v486 = vshrl.u32 %v485, 7
    %v487 = vsub.s32 %v484, %v486
    %v488 = vrot.slane %v478, %v487
    %v490 = vunpack.c.l.s4 1983009808
    %v491 = vunpack.c.0.s8 %v490
    %v492 = vlaneseq
    %v493 = vshrl.u32 %v492, 7
    %v494 = vsub.s32 %v491, %v493
    %v495 = vrot.slane %v479, %v494
    %v497 = vunpack.c.l.s4 1983009808
    %v498 = vunpack.c.0.s8 %v497
    %v499 = vlaneseq
    %v500 = vshrl.u32 %v499, 7
    %v501 = vsub.s32 %v498, %v500
    %v502 = vrot.slane %v480, %v501
    %v504 = vunpack.c.l.s4 1983009808
    %v505 = vunpack.c.0.s8 %v504
    %v506 = vlaneseq
    %v507 = vshrl.u32 %v506, 7
    %v508 = vsub.s32 %v505, %v507
    %v509 = vrot.slane %v481, %v508
    %v510 = vcombine.low %v488, %v502
    %v511 = vcombine.high %v488, %v502
    %v512 = vcombine.low %v495, %v509
    %v513 = vcombine.high %v495, %v509
    %v514 = vcombine.low %v112, %v136
    %v515 = vcombine.high %v112, %v136
    %v516 = vcombine.low %v160, %v184
    %v517 = vcombine.high %v160, %v184
    %v519 = vunpack.c.l.s4 1983009808
    %v520 = vunpack.c.0.s8 %v519
    %v521 = vlaneseq
    %v522 = vshrl.u32 %v521, 7
    %v523 = vsub.s32 %v520, %v522
    %v524 = vrot.slane %v514, %v523
    %v526 = vunpack.c.l.s4 1983009808
    %v527 = vunpack.c.0.s8 %v526
    %v528 = vlaneseq
    %v529 = vshrl.u32 %v528, 7
    %v530 = vsub.s32 %v527, %v529
    %v531 = vrot.slane %v515, %v530
    %v533 = vunpack.c.l.s4 1983009808
    %v534 = vunpack.c.0.s8 %v533
    %v535 = vlaneseq
    %v536 = vshrl.u32 %v535, 7
    %v537 = vsub.s32 %v534, %v536
    %v538 = vrot.slane %v516, %v537
    %v540 = vunpack.c.l.s4 1983009808
    %v541 = vunpack.c.0.s8 %v540
    %v542 = vlaneseq
    %v543 = vshrl.u32 %v542, 7
    %v544 = vsub.s32 %v541, %v543
    %v545 = vrot.slane %v517, %v544
    %v546 = vcombine.low %v524, %v538
    %v547 = vcombine.high %v524, %v538
    %v548 = vcombine.low %v531, %v545
    %v549 = vcombine.high %v531, %v545
    %v550 = vcombine.low %v113, %v137
    %v551 = vcombine.high %v113, %v137
    %v552 = vcombine.low %v161, %v185
    %v553 = vcombine.high %v161, %v185
    %v555 = vunpack.c.l.s4 1983009808
    %v556 = vunpack.c.0.s8 %v555
    %v557 = vlaneseq
    %v558 = vshrl.u32 %v557, 7
    %v559 = vsub.s32 %v556, %v558
    %v560 = vrot.slane %v550, %v559
    %v562 = vunpack.c.l.s4 1983009808
    %v563 = vunpack.c.0.s8 %v562
    %v564 = vlaneseq
    %v565 = vshrl.u32 %v564, 7
    %v566 = vsub.s32 %v563, %v565
    %v567 = vrot.slane %v551, %v566
    %v569 = vunpack.c.l.s4 1983009808
    %v570 = vunpack.c.0.s8 %v569
    %v571 = vlaneseq
    %v572 = vshrl.u32 %v571, 7
    %v573 = vsub.s32 %v570, %v572
    %v574 = vrot.slane %v552, %v573
    %v576 = vunpack.c.l.s4 1983009808
    %v577 = vunpack.c.0.s8 %v576
    %v578 = vlaneseq
    %v579 = vshrl.u32 %v578, 7
    %v580 = vsub.s32 %v577, %v579
    %v581 = vrot.slane %v553, %v580
    %v582 = vcombine.low %v560, %v574
    %v583 = vcombine.high %v560, %v574
    %v584 = vcombine.low %v567, %v581
    %v585 = vcombine.high %v567, %v581
    %v586 = vcombine.low %v114, %v138
    %v587 = vcombine.high %v114, %v138
    %v588 = vcombine.low %v162, %v186
    %v589 = vcombine.high %v162, %v186
    %v591 = vunpack.c.l.s4 1983009808
    %v592 = vunpack.c.0.s8 %v591
    %v593 = vlaneseq
    %v594 = vshrl.u32 %v593, 7
    %v595 = vsub.s32 %v592, %v594
    %v596 = vrot.slane %v586, %v595
    %v598 = vunpack.c.l.s4 1983009808
    %v599 = vunpack.c.0.s8 %v598
    %v600 = vlaneseq
    %v601 = vshrl.u32 %v600, 7
    %v602 = vsub.s32 %v599, %v601
    %v603 = vrot.slane %v587, %v602
    %v605 = vunpack.c.l.s4 1983009808
    %v606 = vunpack.c.0.s8 %v605
    %v607 = vlaneseq
    %v608 = vshrl.u32 %v607, 7
    %v609 = vsub.s32 %v606, %v608
    %v610 = vrot.slane %v588, %v609
    %v612 = vunpack.c.l.s4 1983009808
    %v613 = vunpack.c.0.s8 %v612
    %v614 = vlaneseq
    %v615 = vshrl.u32 %v614, 7
    %v616 = vsub.s32 %v613, %v615
    %v617 = vrot.slane %v589, %v616
    %v618 = vcombine.low %v596, %v610
    %v619 = vcombine.high %v596, %v610
    %v620 = vcombine.low %v603, %v617
    %v621 = vcombine.high %v603, %v617
    %v622 = vcombine.low %v115, %v139
    %v623 = vcombine.high %v115, %v139
    %v624 = vcombine.low %v163, %v187
    %v625 = vcombine.high %v163, %v187
    %v627 = vunpack.c.l.s4 1983009808
    %v628 = vunpack.c.0.s8 %v627
    %v629 = vlaneseq
    %v630 = vshrl.u32 %v629, 7
    %v631 = vsub.s32 %v628, %v630
    %v632 = vrot.slane %v622, %v631
    %v634 = vunpack.c.l.s4 1983009808
    %v635 = vunpack.c.0.s8 %v634
    %v636 = vlaneseq
    %v637 = vshrl.u32 %v636, 7
    %v638 = vsub.s32 %v635, %v637
    %v639 = vrot.slane %v623, %v638
    %v641 = vunpack.c.l.s4 1983009808
    %v642 = vunpack.c.0.s8 %v641
    %v643 = vlaneseq
    %v644 = vshrl.u32 %v643, 7
    %v645 = vsub.s32 %v642, %v644
    %v646 = vrot.slane %v624, %v645
    %v648 = vunpack.c.l.s4 1983009808
    %v649 = vunpack.c.0.s8 %v648
    %v650 = vlaneseq
    %v651 = vshrl.u32 %v650, 7
    %v652 = vsub.s32 %v649, %v651
    %v653 = vrot.slane %v625, %v652
    %v654 = vcombine.low %v632, %v646
    %v655 = vcombine.high %v632, %v646
    %v656 = vcombine.low %v639, %v653
    %v657 = vcombine.high %v639, %v653
    %v658 = vcombine.low %v116, %v140
    %v659 = vcombine.high %v116, %v140
    %v660 = vcombine.low %v164, %v188
    %v661 = vcombine.high %v164, %v188
    %v663 = vunpack.c.l.s4 1983009808
    %v664 = vunpack.c.0.s8 %v663
    %v665 = vlaneseq
    %v666 = vshrl.u32 %v665, 7
    %v667 = vsub.s32 %v664, %v666
    %v668 = vrot.slane %v658, %v667
    %v670 = vunpack.c.l.s4 1983009808
    %v671 = vunpack.c.0.s8 %v670
    %v672 = vlaneseq
    %v673 = vshrl.u32 %v672, 7
    %v674 = vsub.s32 %v671, %v673
    %v675 = vrot.slane %v659, %v674
    %v677 = vunpack.c.l.s4 1983009808
    %v678 = vunpack.c.0.s8 %v677
    %v679 = vlaneseq
    %v680 = vshrl.u32 %v679, 7
    %v681 = vsub.s32 %v678, %v680
    %v682 = vrot.slane %v660, %v681
    %v684 = vunpack.c.l.s4 1983009808
    %v685 = vunpack.c.0.s8 %v684
    %v686 = vlaneseq
    %v687 = vshrl.u32 %v686, 7
    %v688 = vsub.s32 %v685, %v687
    %v689 = vrot.slane %v661, %v688
    %v690 = vcombine.low %v668, %v682
    %v691 = vcombine.high %v668, %v682
    %v692 = vcombine.low %v675, %v689
    %v693 = vcombine.high %v675, %v689
    %v694 = vcombine.low %v117, %v141
    %v695 = vcombine.high %v117, %v141
    %v696 = vcombine.low %v165, %v189
    %v697 = vcombine.high %v165, %v189
    %v699 = vunpack.c.l.s4 1983009808
    %v700 = vunpack.c.0.s8 %v699
    %v701 = vlaneseq
    %v702 = vshrl.u32 %v701, 7
    %v703 = vsub.s32 %v700, %v702
    %v704 = vrot.slane %v694, %v703
    %v706 = vunpack.c.l.s4 1983009808
    %v707 = vunpack.c.0.s8 %v706
    %v708 = vlaneseq
    %v709 = vshrl.u32 %v708, 7
    %v710 = vsub.s32 %v707, %v709
    %v711 = vrot.slane %v695, %v710
    %v713 = vunpack.c.l.s4 1983009808
    %v714 = vunpack.c.0.s8 %v713
    %v715 = vlaneseq
    %v716 = vshrl.u32 %v715, 7
    %v717 = vsub.s32 %v714, %v716
    %v718 = vrot.slane %v696, %v717
    %v720 = vunpack.c.l.s4 1983009808
    %v721 = vunpack.c.0.s8 %v720
    %v722 = vlaneseq
    %v723 = vshrl.u32 %v722, 7
    %v724 = vsub.s32 %v721, %v723
    %v725 = vrot.slane %v697, %v724
    %v726 = vcombine.low %v704, %v718
    %v727 = vcombine.high %v704, %v718
    %v728 = vcombine.low %v711, %v725
    %v729 = vcombine.high %v711, %v725
    %v730 = vcombine.low %v118, %v142
    %v731 = vcombine.high %v118, %v142
    %v732 = vcombine.low %v166, %v190
    %v733 = vcombine.high %v166, %v190
    %v735 = vunpack.c.l.s4 1983009808
    %v736 = vunpack.c.0.s8 %v735
    %v737 = vlaneseq
    %v738 = vshrl.u32 %v737, 7
    %v739 = vsub.s32 %v736, %v738
    %v740 = vrot.slane %v730, %v739
    %v742 = vunpack.c.l.s4 1983009808
    %v743 = vunpack.c.0.s8 %v742
    %v744 = vlaneseq
    %v745 = vshrl.u32 %v744, 7
    %v746 = vsub.s32 %v743, %v745
    %v747 = vrot.slane %v731, %v746
    %v749 = vunpack.c.l.s4 1983009808
    %v750 = vunpack.c.0.s8 %v749
    %v751 = vlaneseq
    %v752 = vshrl.u32 %v751, 7
    %v753 = vsub.s32 %v750, %v752
    %v754 = vrot.slane %v732, %v753
    %v756 = vunpack.c.l.s4 1983009808
    %v757 = vunpack.c.0.s8 %v756
    %v758 = vlaneseq
    %v759 = vshrl.u32 %v758, 7
    %v760 = vsub.s32 %v757, %v759
    %v761 = vrot.slane %v733, %v760
    %v762 = vcombine.low %v740, %v754
    %v763 = vcombine.high %v740, %v754
    %v764 = vcombine.low %v747, %v761
    %v765 = vcombine.high %v747, %v761
    %v766 = vcombine.low %v119, %v143
    %v767 = vcombine.high %v119, %v143
    %v768 = vcombine.low %v167, %v191
    %v769 = vcombine.high %v167, %v191
    %v771 = vunpack.c.l.s4 1983009808
    %v772 = vunpack.c.0.s8 %v771
    %v773 = vlaneseq
    %v774 = vshrl.u32 %v773, 7
    %v775 = vsub.s32 %v772, %v774
    %v776 = vrot.slane %v766, %v775
    %v778 = vunpack.c.l.s4 1983009808
    %v779 = vunpack.c.0.s8 %v778
    %v780 = vlaneseq
    %v781 = vshrl.u32 %v780, 7
    %v782 = vsub.s32 %v779, %v781
    %v783 = vrot.slane %v767, %v782
    %v785 = vunpack.c.l.s4 1983009808
    %v786 = vunpack.c.0.s8 %v785
    %v787 = vlaneseq
    %v788 = vshrl.u32 %v787, 7
    %v789 = vsub.s32 %v786, %v788
    %v790 = vrot.slane %v768, %v789
    %v792 = vunpack.c.l.s4 1983009808
    %v793 = vunpack.c.0.s8 %v792
    %v794 = vlaneseq
    %v795 = vshrl.u32 %v794, 7
    %v796 = vsub.s32 %v793, %v795
    %v797 = vrot.slane %v769, %v796
    %v798 = vcombine.low %v776, %v790
    %v799 = vcombine.high %v776, %v790
    %v800 = vcombine.low %v783, %v797
    %v801 = vcombine.high %v783, %v797
    %v802 = vcombine.low %v120, %v144
    %v803 = vcombine.high %v120, %v144
    %v804 = vcombine.low %v168, %v192
    %v805 = vcombine.high %v168, %v192
    %v807 = vunpack.c.l.s4 1983009808
    %v808 = vunpack.c.0.s8 %v807
    %v809 = vlaneseq
    %v810 = vshrl.u32 %v809, 7
    %v811 = vsub.s32 %v808, %v810
    %v812 = vrot.slane %v802, %v811
    %v814 = vunpack.c.l.s4 1983009808
    %v815 = vunpack.c.0.s8 %v814
    %v816 = vlaneseq
    %v817 = vshrl.u32 %v816, 7
    %v818 = vsub.s32 %v815, %v817
    %v819 = vrot.slane %v803, %v818
    %v821 = vunpack.c.l.s4 1983009808
    %v822 = vunpack.c.0.s8 %v821
    %v823 = vlaneseq
    %v824 = vshrl.u32 %v823, 7
    %v825 = vsub.s32 %v822, %v824
    %v826 = vrot.slane %v804, %v825
    %v828 = vunpack.c.l.s4 1983009808
    %v829 = vunpack.c.0.s8 %v828
    %v830 = vlaneseq
    %v831 = vshrl.u32 %v830, 7
    %v832 = vsub.s32 %v829, %v831
    %v833 = vrot.slane %v805, %v832
    %v834 = vcombine.low %v812, %v826
    %v835 = vcombine.high %v812, %v826
    %v836 = vcombine.low %v819, %v833
    %v837 = vcombine.high %v819, %v833
    %v838 = vcombine.low %v121, %v145
    %v839 = vcombine.high %v121, %v145
    %v840 = vcombine.low %v169, %v193
    %v841 = vcombine.high %v169, %v193
    %v843 = vunpack.c.l.s4 1983009808
    %v844 = vunpack.c.0.s8 %v843
    %v845 = vlaneseq
    %v846 = vshrl.u32 %v845, 7
    %v847 = vsub.s32 %v844, %v846
    %v848 = vrot.slane %v838, %v847
    %v850 = vunpack.c.l.s4 1983009808
    %v851 = vunpack.c.0.s8 %v850
    %v852 = vlaneseq
    %v853 = vshrl.u32 %v852, 7
    %v854 = vsub.s32 %v851, %v853
    %v855 = vrot.slane %v839, %v854
    %v857 = vunpack.c.l.s4 1983009808
    %v858 = vunpack.c.0.s8 %v857
    %v859 = vlaneseq
    %v860 = vshrl.u32 %v859, 7
    %v861 = vsub.s32 %v858, %v860
    %v862 = vrot.slane %v840, %v861
    %v864 = vunpack.c.l.s4 1983009808
    %v865 = vunpack.c.0.s8 %v864
    %v866 = vlaneseq
    %v867 = vshrl.u32 %v866, 7
    %v868 = vsub.s32 %v865, %v867
    %v869 = vrot.slane %v841, %v868
    %v870 = vcombine.low %v848, %v862
    %v871 = vcombine.high %v848, %v862
    %v872 = vcombine.low %v855, %v869
    %v873 = vcombine.high %v855, %v869
    %v874 = vcombine.low %v122, %v146
    %v875 = vcombine.high %v122, %v146
    %v876 = vcombine.low %v170, %v194
    %v877 = vcombine.high %v170, %v194
    %v879 = vunpack.c.l.s4 1983009808
    %v880 = vunpack.c.0.s8 %v879
    %v881 = vlaneseq
    %v882 = vshrl.u32 %v881, 7
    %v883 = vsub.s32 %v880, %v882
    %v884 = vrot.slane %v874, %v883
    %v886 = vunpack.c.l.s4 1983009808
    %v887 = vunpack.c.0.s8 %v886
    %v888 = vlaneseq
    %v889 = vshrl.u32 %v888, 7
    %v890 = vsub.s32 %v887, %v889
    %v891 = vrot.slane %v875, %v890
    %v893 = vunpack.c.l.s4 1983009808
    %v894 = vunpack.c.0.s8 %v893
    %v895 = vlaneseq
    %v896 = vshrl.u32 %v895, 7
    %v897 = vsub.s32 %v894, %v896
    %v898 = vrot.slane %v876, %v897
    %v900 = vunpack.c.l.s4 1983009808
    %v901 = vunpack.c.0.s8 %v900
    %v902 = vlaneseq
    %v903 = vshrl.u32 %v902, 7
    %v904 = vsub.s32 %v901, %v903
    %v905 = vrot.slane %v877, %v904
    %v906 = vcombine.low %v884, %v898
    %v907 = vcombine.high %v884, %v898
    %v908 = vcombine.low %v891, %v905
    %v909 = vcombine.high %v891, %v905
    %v910 = vcombine.low %v123, %v147
    %v911 = vcombine.high %v123, %v147
    %v912 = vcombine.low %v171, %v195
    %v913 = vcombine.high %v171, %v195
    %v915 = vunpack.c.l.s4 1983009808
    %v916 = vunpack.c.0.s8 %v915
    %v917 = vlaneseq
    %v918 = vshrl.u32 %v917, 7
    %v919 = vsub.s32 %v916, %v918
    %v920 = vrot.slane %v910, %v919
    %v922 = vunpack.c.l.s4 1983009808
    %v923 = vunpack.c.0.s8 %v922
    %v924 = vlaneseq
    %v925 = vshrl.u32 %v924, 7
    %v926 = vsub.s32 %v923, %v925
    %v927 = vrot.slane %v911, %v926
    %v929 = vunpack.c.l.s4 1983009808
    %v930 = vunpack.c.0.s8 %v929
    %v931 = vlaneseq
    %v932 = vshrl.u32 %v931, 7
    %v933 = vsub.s32 %v930, %v932
    %v934 = vrot.slane %v912, %v933
    %v936 = vunpack.c.l.s4 1983009808
    %v937 = vunpack.c.0.s8 %v936
    %v938 = vlaneseq
    %v939 = vshrl.u32 %v938, 7
    %v940 = vsub.s32 %v937, %v939
    %v941 = vrot.slane %v913, %v940
    %v942 = vcombine.low %v920, %v934
    %v943 = vcombine.high %v920, %v934
    %v944 = vcombine.low %v927, %v941
    %v945 = vcombine.high %v927, %v941
    %v946 = vcombine.low %v124, %v148
    %v947 = vcombine.high %v124, %v148
    %v948 = vcombine.low %v172, %v196
    %v949 = vcombine.high %v172, %v196
    %v951 = vunpack.c.l.s4 1983009808
    %v952 = vunpack.c.0.s8 %v951
    %v953 = vlaneseq
    %v954 = vshrl.u32 %v953, 7
    %v955 = vsub.s32 %v952, %v954
    %v956 = vrot.slane %v946, %v955
    %v958 = vunpack.c.l.s4 1983009808
    %v959 = vunpack.c.0.s8 %v958
    %v960 = vlaneseq
    %v961 = vshrl.u32 %v960, 7
    %v962 = vsub.s32 %v959, %v961
    %v963 = vrot.slane %v947, %v962
    %v965 = vunpack.c.l.s4 1983009808
    %v966 = vunpack.c.0.s8 %v965
    %v967 = vlaneseq
    %v968 = vshrl.u32 %v967, 7
    %v969 = vsub.s32 %v966, %v968
    %v970 = vrot.slane %v948, %v969
    %v972 = vunpack.c.l.s4 1983009808
    %v973 = vunpack.c.0.s8 %v972
    %v974 = vlaneseq
    %v975 = vshrl.u32 %v974, 7
    %v976 = vsub.s32 %v973, %v975
    %v977 = vrot.slane %v949, %v976
    %v978 = vcombine.low %v956, %v970
    %v979 = vcombine.high %v956, %v970
    %v980 = vcombine.low %v963, %v977
    %v981 = vcombine.high %v963, %v977
    %v982 = vcombine.low %v125, %v149
    %v983 = vcombine.high %v125, %v149
    %v984 = vcombine.low %v173, %v197
    %v985 = vcombine.high %v173, %v197
    %v987 = vunpack.c.l.s4 1983009808
    %v988 = vunpack.c.0.s8 %v987
    %v989 = vlaneseq
    %v990 = vshrl.u32 %v989, 7
    %v991 = vsub.s32 %v988, %v990
    %v992 = vrot.slane %v982, %v991
    %v994 = vunpack.c.l.s4 1983009808
    %v995 = vunpack.c.0.s8 %v994
    %v996 = vlaneseq
    %v997 = vshrl.u32 %v996, 7
    %v998 = vsub.s32 %v995, %v997
    %v999 = vrot.slane %v983, %v998
    %v1001 = vunpack.c.l.s4 1983009808
    %v1002 = vunpack.c.0.s8 %v1001
    %v1003 = vlaneseq
    %v1004 = vshrl.u32 %v1003, 7
    %v1005 = vsub.s32 %v1002, %v1004
    %v1006 = vrot.slane %v984, %v1005
    %v1008 = vunpack.c.l.s4 1983009808
    %v1009 = vunpack.c.0.s8 %v1008
    %v1010 = vlaneseq
    %v1011 = vshrl.u32 %v1010, 7
    %v1012 = vsub.s32 %v1009, %v1011
    %v1013 = vrot.slane %v985, %v1012
    %v1014 = vcombine.low %v992, %v1006
    %v1015 = vcombine.high %v992, %v1006
    %v1016 = vcombine.low %v999, %v1013
    %v1017 = vcombine.high %v999, %v1013
    %v1018 = vcombine.low %v126, %v150
    %v1019 = vcombine.high %v126, %v150
    %v1020 = vcombine.low %v174, %v198
    %v1021 = vcombine.high %v174, %v198
    %v1023 = vunpack.c.l.s4 1983009808
    %v1024 = vunpack.c.0.s8 %v1023
    %v1025 = vlaneseq
    %v1026 = vshrl.u32 %v1025, 7
    %v1027 = vsub.s32 %v1024, %v1026
    %v1028 = vrot.slane %v1018, %v1027
    %v1030 = vunpack.c.l.s4 1983009808
    %v1031 = vunpack.c.0.s8 %v1030
    %v1032 = vlaneseq
    %v1033 = vshrl.u32 %v1032, 7
    %v1034 = vsub.s32 %v1031, %v1033
    %v1035 = vrot.slane %v1019, %v1034
    %v1037 = vunpack.c.l.s4 1983009808
    %v1038 = vunpack.c.0.s8 %v1037
    %v1039 = vlaneseq
    %v1040 = vshrl.u32 %v1039, 7
    %v1041 = vsub.s32 %v1038, %v1040
    %v1042 = vrot.slane %v1020, %v1041
    %v1044 = vunpack.c.l.s4 1983009808
    %v1045 = vunpack.c.0.s8 %v1044
    %v1046 = vlaneseq
    %v1047 = vshrl.u32 %v1046, 7
    %v1048 = vsub.s32 %v1045, %v1047
    %v1049 = vrot.slane %v1021, %v1048
    %v1050 = vcombine.low %v1028, %v1042
    %v1051 = vcombine.high %v1028, %v1042
    %v1052 = vcombine.low %v1035, %v1049
    %v1053 = vcombine.high %v1035, %v1049
    %v1054 = vcombine.low %v127, %v151
    %v1055 = vcombine.high %v127, %v151
    %v1056 = vcombine.low %v175, %v199
    %v1057 = vcombine.high %v175, %v199
    %v1059 = vunpack.c.l.s4 1983009808
    %v1060 = vunpack.c.0.s8 %v1059
    %v1061 = vlaneseq
    %v1062 = vshrl.u32 %v1061, 7
    %v1063 = vsub.s32 %v1060, %v1062
    %v1064 = vrot.slane %v1054, %v1063
    %v1066 = vunpack.c.l.s4 1983009808
    %v1067 = vunpack.c.0.s8 %v1066
    %v1068 = vlaneseq
    %v1069 = vshrl.u32 %v1068, 7
    %v1070 = vsub.s32 %v1067, %v1069
    %v1071 = vrot.slane %v1055, %v1070
    %v1073 = vunpack.c.l.s4 1983009808
    %v1074 = vunpack.c.0.s8 %v1073
    %v1075 = vlaneseq
    %v1076 = vshrl.u32 %v1075, 7
    %v1077 = vsub.s32 %v1074, %v1076
    %v1078 = vrot.slane %v1056, %v1077
    %v1080 = vunpack.c.l.s4 1983009808
    %v1081 = vunpack.c.0.s8 %v1080
    %v1082 = vlaneseq
    %v1083 = vshrl.u32 %v1082, 7
    %v1084 = vsub.s32 %v1081, %v1083
    %v1085 = vrot.slane %v1057, %v1084
    %v1086 = vcombine.low %v1064, %v1078
    %v1087 = vcombine.high %v1064, %v1078
    %v1088 = vcombine.low %v1071, %v1085
    %v1089 = vcombine.high %v1071, %v1085
    %v1090 = vcombine.low %v128, %v152
    %v1091 = vcombine.high %v128, %v152
    %v1092 = vcombine.low %v176, %v200
    %v1093 = vcombine.high %v176, %v200
    %v1095 = vunpack.c.l.s4 1983009808
    %v1096 = vunpack.c.0.s8 %v1095
    %v1097 = vlaneseq
    %v1098 = vshrl.u32 %v1097, 7
    %v1099 = vsub.s32 %v1096, %v1098
    %v1100 = vrot.slane %v1090, %v1099
    %v1102 = vunpack.c.l.s4 1983009808
    %v1103 = vunpack.c.0.s8 %v1102
    %v1104 = vlaneseq
    %v1105 = vshrl.u32 %v1104, 7
    %v1106 = vsub.s32 %v1103, %v1105
    %v1107 = vrot.slane %v1091, %v1106
    %v1109 = vunpack.c.l.s4 1983009808
    %v1110 = vunpack.c.0.s8 %v1109
    %v1111 = vlaneseq
    %v1112 = vshrl.u32 %v1111, 7
    %v1113 = vsub.s32 %v1110, %v1112
    %v1114 = vrot.slane %v1092, %v1113
    %v1116 = vunpack.c.l.s4 1983009808
    %v1117 = vunpack.c.0.s8 %v1116
    %v1118 = vlaneseq
    %v1119 = vshrl.u32 %v1118, 7
    %v1120 = vsub.s32 %v1117, %v1119
    %v1121 = vrot.slane %v1093, %v1120
    %v1122 = vcombine.low %v1100, %v1114
    %v1123 = vcombine.high %v1100, %v1114
    %v1124 = vcombine.low %v1107, %v1121
    %v1125 = vcombine.high %v1107, %v1121
    %v1126 = vcombine.low %v129, %v153
    %v1127 = vcombine.high %v129, %v153
    %v1128 = vcombine.low %v177, %v201
    %v1129 = vcombine.high %v177, %v201
    %v1131 = vunpack.c.l.s4 1983009808
    %v1132 = vunpack.c.0.s8 %v1131
    %v1133 = vlaneseq
    %v1134 = vshrl.u32 %v1133, 7
    %v1135 = vsub.s32 %v1132, %v1134
    %v1136 = vrot.slane %v1126, %v1135
    %v1138 = vunpack.c.l.s4 1983009808
    %v1139 = vunpack.c.0.s8 %v1138
    %v1140 = vlaneseq
    %v1141 = vshrl.u32 %v1140, 7
    %v1142 = vsub.s32 %v1139, %v1141
    %v1143 = vrot.slane %v1127, %v1142
    %v1145 = vunpack.c.l.s4 1983009808
    %v1146 = vunpack.c.0.s8 %v1145
    %v1147 = vlaneseq
    %v1148 = vshrl.u32 %v1147, 7
    %v1149 = vsub.s32 %v1146, %v1148
    %v1150 = vrot.slane %v1128, %v1149
    %v1152 = vunpack.c.l.s4 1983009808
    %v1153 = vunpack.c.0.s8 %v1152
    %v1154 = vlaneseq
    %v1155 = vshrl.u32 %v1154, 7
    %v1156 = vsub.s32 %v1153, %v1155
    %v1157 = vrot.slane %v1129, %v1156
    %v1158 = vcombine.low %v1136, %v1150
    %v1159 = vcombine.high %v1136, %v1150
    %v1160 = vcombine.low %v1143, %v1157
    %v1161 = vcombine.high %v1143, %v1157
    %v1258 = vpack.c.bf16 %v330, %v330
    %v1259 = vpack.c.bf16 %v331, %v331
    %v1260 = vpack.c.bf16 %v332, %v332
    %v1261 = vpack.c.bf16 %v333, %v333
    %v1262 = vpack.c.bf16 %v366, %v366
    %v1263 = vpack.c.bf16 %v367, %v367
    %v1264 = vpack.c.bf16 %v368, %v368
    %v1265 = vpack.c.bf16 %v369, %v369
    %v1266 = vpack.c.bf16 %v402, %v402
    %v1267 = vpack.c.bf16 %v403, %v403
    %v1268 = vpack.c.bf16 %v404, %v404
    %v1269 = vpack.c.bf16 %v405, %v405
    %v1270 = vpack.c.bf16 %v438, %v438
    %v1271 = vpack.c.bf16 %v439, %v439
    %v1272 = vpack.c.bf16 %v440, %v440
    %v1273 = vpack.c.bf16 %v441, %v441
    %v1274 = vpack.c.bf16 %v474, %v474
    %v1275 = vpack.c.bf16 %v475, %v475
    %v1276 = vpack.c.bf16 %v476, %v476
    %v1277 = vpack.c.bf16 %v477, %v477
    %v1278 = vpack.c.bf16 %v510, %v510
    %v1279 = vpack.c.bf16 %v511, %v511
    %v1280 = vpack.c.bf16 %v512, %v512
    %v1281 = vpack.c.bf16 %v513, %v513
    %v1282 = vpack.c.bf16 %v546, %v546
    %v1283 = vpack.c.bf16 %v547, %v547
    %v1284 = vpack.c.bf16 %v548, %v548
    %v1285 = vpack.c.bf16 %v549, %v549
    %v1286 = vpack.c.bf16 %v582, %v582
    %v1287 = vpack.c.bf16 %v583, %v583
    %v1288 = vpack.c.bf16 %v584, %v584
    %v1289 = vpack.c.bf16 %v585, %v585
    %v1290 = vpack.c.bf16 %v618, %v618
    %v1291 = vpack.c.bf16 %v619, %v619
    %v1292 = vpack.c.bf16 %v620, %v620
    %v1293 = vpack.c.bf16 %v621, %v621
    %v1294 = vpack.c.bf16 %v654, %v654
    %v1295 = vpack.c.bf16 %v655, %v655
    %v1296 = vpack.c.bf16 %v656, %v656
    %v1297 = vpack.c.bf16 %v657, %v657
    %v1298 = vpack.c.bf16 %v690, %v690
    %v1299 = vpack.c.bf16 %v691, %v691
    %v1300 = vpack.c.bf16 %v692, %v692
    %v1301 = vpack.c.bf16 %v693, %v693
    %v1302 = vpack.c.bf16 %v726, %v726
    %v1303 = vpack.c.bf16 %v727, %v727
    %v1304 = vpack.c.bf16 %v728, %v728
    %v1305 = vpack.c.bf16 %v729, %v729
    %v1306 = vpack.c.bf16 %v762, %v762
    %v1307 = vpack.c.bf16 %v763, %v763
    %v1308 = vpack.c.bf16 %v764, %v764
    %v1309 = vpack.c.bf16 %v765, %v765
    %v1310 = vpack.c.bf16 %v798, %v798
    %v1311 = vpack.c.bf16 %v799, %v799
    %v1312 = vpack.c.bf16 %v800, %v800
    %v1313 = vpack.c.bf16 %v801, %v801
    %v1314 = vpack.c.bf16 %v834, %v834
    %v1315 = vpack.c.bf16 %v835, %v835
    %v1316 = vpack.c.bf16 %v836, %v836
    %v1317 = vpack.c.bf16 %v837, %v837
    %v1318 = vpack.c.bf16 %v870, %v870
    %v1319 = vpack.c.bf16 %v871, %v871
    %v1320 = vpack.c.bf16 %v872, %v872
    %v1321 = vpack.c.bf16 %v873, %v873
    %v1322 = vpack.c.bf16 %v906, %v906
    %v1323 = vpack.c.bf16 %v907, %v907
    %v1324 = vpack.c.bf16 %v908, %v908
    %v1325 = vpack.c.bf16 %v909, %v909
    %v1326 = vpack.c.bf16 %v942, %v942
    %v1327 = vpack.c.bf16 %v943, %v943
    %v1328 = vpack.c.bf16 %v944, %v944
    %v1329 = vpack.c.bf16 %v945, %v945
    %v1330 = vpack.c.bf16 %v978, %v978
    %v1331 = vpack.c.bf16 %v979, %v979
    %v1332 = vpack.c.bf16 %v980, %v980
    %v1333 = vpack.c.bf16 %v981, %v981
    %v1334 = vpack.c.bf16 %v1014, %v1014
    %v1335 = vpack.c.bf16 %v1015, %v1015
    %v1336 = vpack.c.bf16 %v1016, %v1016
    %v1337 = vpack.c.bf16 %v1017, %v1017
    %v1338 = vpack.c.bf16 %v1050, %v1050
    %v1339 = vpack.c.bf16 %v1051, %v1051
    %v1340 = vpack.c.bf16 %v1052, %v1052
    %v1341 = vpack.c.bf16 %v1053, %v1053
    %v1342 = vpack.c.bf16 %v1086, %v1086
    %v1343 = vpack.c.bf16 %v1087, %v1087
    %v1344 = vpack.c.bf16 %v1088, %v1088
    %v1345 = vpack.c.bf16 %v1089, %v1089
    %v1346 = vpack.c.bf16 %v1122, %v1122
    %v1347 = vpack.c.bf16 %v1123, %v1123
    %v1348 = vpack.c.bf16 %v1124, %v1124
    %v1349 = vpack.c.bf16 %v1125, %v1125
    %v1350 = vpack.c.bf16 %v1158, %v1158
    %v1351 = vpack.c.bf16 %v1159, %v1159
    %v1352 = vpack.c.bf16 %v1160, %v1160
    %v1353 = vpack.c.bf16 %v1161, %v1161
    %v1354 = vld [vmem:[#allocation6] sm:$0xf]
    %v1355 = vld [vmem:[#allocation6 + $0x4] sm:$0xf]
    %v1356 = vld [vmem:[#allocation6 + $0x8] sm:$0xf]
    %v1357 = vld [vmem:[#allocation6 + $0xc] sm:$0xf]
    %v1358 = vld [vmem:[#allocation6 + $0x10] sm:$0xf]
    %v1359 = vld [vmem:[#allocation6 + $0x14] sm:$0xf]
    %v1360 = vld [vmem:[#allocation6 + $0x18] sm:$0xf]
    %v1361 = vld [vmem:[#allocation6 + $0x1c] sm:$0xf]
    %v1362 = vld [vmem:[#allocation6 + $0x20] sm:$0xf]
    %v1363 = vld [vmem:[#allocation6 + $0x24] sm:$0xf]
    %v1364 = vld [vmem:[#allocation6 + $0x28] sm:$0xf]
    %v1365 = vld [vmem:[#allocation6 + $0x2c] sm:$0xf]
    %v1366 = vld [vmem:[#allocation6 + $0x30] sm:$0xf]
    %v1367 = vld [vmem:[#allocation6 + $0x34] sm:$0xf]
    %v1368 = vld [vmem:[#allocation6 + $0x38] sm:$0xf]
    %v1369 = vld [vmem:[#allocation6 + $0x3c] sm:$0xf]
    %v1370 = vld [vmem:[#allocation6 + $0x40] sm:$0xf]
    %v1371 = vld [vmem:[#allocation6 + $0x44] sm:$0xf]
    %v1372 = vld [vmem:[#allocation6 + $0x48] sm:$0xf]
    %v1373 = vld [vmem:[#allocation6 + $0x4c] sm:$0xf]
    %v1374 = vld [vmem:[#allocation6 + $0x50] sm:$0xf]
    %v1375 = vld [vmem:[#allocation6 + $0x54] sm:$0xf]
    %v1376 = vld [vmem:[#allocation6 + $0x58] sm:$0xf]
    %v1377 = vld [vmem:[#allocation6 + $0x5c] sm:$0xf]
    %v1378 = vld [vmem:[#allocation6 + $0x60] sm:$0xf]
    %v1379 = vld [vmem:[#allocation6 + $0x64] sm:$0xf]
    %v1380 = vld [vmem:[#allocation6 + $0x68] sm:$0xf]
    %v1381 = vld [vmem:[#allocation6 + $0x6c] sm:$0xf]
    %v1382 = vld [vmem:[#allocation6 + $0x70] sm:$0xf]
    %v1383 = vld [vmem:[#allocation6 + $0x74] sm:$0xf]
    %v1384 = vld [vmem:[#allocation6 + $0x78] sm:$0xf]
    %v1385 = vld [vmem:[#allocation6 + $0x7c] sm:$0xf]
    %v1386 = vld [vmem:[#allocation6 + $0x80] sm:$0xf]
    %v1387 = vld [vmem:[#allocation6 + $0x84] sm:$0xf]
    %v1388 = vld [vmem:[#allocation6 + $0x88] sm:$0xf]
    %v1389 = vld [vmem:[#allocation6 + $0x8c] sm:$0xf]
    %v1390 = vld [vmem:[#allocation6 + $0x90] sm:$0xf]
    %v1391 = vld [vmem:[#allocation6 + $0x94] sm:$0xf]
    %v1392 = vld [vmem:[#allocation6 + $0x98] sm:$0xf]
    %v1393 = vld [vmem:[#allocation6 + $0x9c] sm:$0xf]
    %v1394 = vld [vmem:[#allocation6 + $0xa0] sm:$0xf]
    %v1395 = vld [vmem:[#allocation6 + $0xa4] sm:$0xf]
    %v1396 = vld [vmem:[#allocation6 + $0xa8] sm:$0xf]
    %v1397 = vld [vmem:[#allocation6 + $0xac] sm:$0xf]
    %v1398 = vld [vmem:[#allocation6 + $0xb0] sm:$0xf]
    %v1399 = vld [vmem:[#allocation6 + $0xb4] sm:$0xf]
    %v1400 = vld [vmem:[#allocation6 + $0xb8] sm:$0xf]
    %v1401 = vld [vmem:[#allocation6 + $0xbc] sm:$0xf]
    %v1402 = vld [vmem:[#allocation6 + $0xc0] sm:$0xf]
    %v1403 = vld [vmem:[#allocation6 + $0xc4] sm:$0xf]
    %v1404 = vld [vmem:[#allocation6 + $0xc8] sm:$0xf]
    %v1405 = vld [vmem:[#allocation6 + $0xcc] sm:$0xf]
    %v1406 = vld [vmem:[#allocation6 + $0xd0] sm:$0xf]
    %v1407 = vld [vmem:[#allocation6 + $0xd4] sm:$0xf]
    %v1408 = vld [vmem:[#allocation6 + $0xd8] sm:$0xf]
    %v1409 = vld [vmem:[#allocation6 + $0xdc] sm:$0xf]
    %v1410 = vld [vmem:[#allocation6 + $0xe0] sm:$0xf]
    %v1411 = vld [vmem:[#allocation6 + $0xe4] sm:$0xf]
    %v1412 = vld [vmem:[#allocation6 + $0xe8] sm:$0xf]
    %v1413 = vld [vmem:[#allocation6 + $0xec] sm:$0xf]
    %v1414 = vld [vmem:[#allocation6 + $0xf0] sm:$0xf]
    %v1415 = vld [vmem:[#allocation6 + $0xf4] sm:$0xf]
    %v1416 = vld [vmem:[#allocation6 + $0xf8] sm:$0xf]
    %v1417 = vld [vmem:[#allocation6 + $0xfc] sm:$0xf]
    %v1418 = vld [vmem:[#allocation6 + $0x100] sm:$0xf]
    %v1419 = vld [vmem:[#allocation6 + $0x104] sm:$0xf]
    %v1420 = vld [vmem:[#allocation6 + $0x108] sm:$0xf]
    %v1421 = vld [vmem:[#allocation6 + $0x10c] sm:$0xf]
    %v1422 = vld [vmem:[#allocation6 + $0x110] sm:$0xf]
    %v1423 = vld [vmem:[#allocation6 + $0x114] sm:$0xf]
    %v1424 = vld [vmem:[#allocation6 + $0x118] sm:$0xf]
    %v1425 = vld [vmem:[#allocation6 + $0x11c] sm:$0xf]
    %v1426 = vld [vmem:[#allocation6 + $0x120] sm:$0xf]
    %v1427 = vld [vmem:[#allocation6 + $0x124] sm:$0xf]
    %v1428 = vld [vmem:[#allocation6 + $0x128] sm:$0xf]
    %v1429 = vld [vmem:[#allocation6 + $0x12c] sm:$0xf]
    %v1430 = vld [vmem:[#allocation6 + $0x130] sm:$0xf]
    %v1431 = vld [vmem:[#allocation6 + $0x134] sm:$0xf]
    %v1432 = vld [vmem:[#allocation6 + $0x138] sm:$0xf]
    %v1433 = vld [vmem:[#allocation6 + $0x13c] sm:$0xf]
    %v1434 = vld [vmem:[#allocation6 + $0x140] sm:$0xf]
    %v1435 = vld [vmem:[#allocation6 + $0x144] sm:$0xf]
    %v1436 = vld [vmem:[#allocation6 + $0x148] sm:$0xf]
    %v1437 = vld [vmem:[#allocation6 + $0x14c] sm:$0xf]
    %v1438 = vld [vmem:[#allocation6 + $0x150] sm:$0xf]
    %v1439 = vld [vmem:[#allocation6 + $0x154] sm:$0xf]
    %v1440 = vld [vmem:[#allocation6 + $0x158] sm:$0xf]
    %v1441 = vld [vmem:[#allocation6 + $0x15c] sm:$0xf]
    %v1442 = vld [vmem:[#allocation6 + $0x160] sm:$0xf]
    %v1443 = vld [vmem:[#allocation6 + $0x164] sm:$0xf]
    %v1444 = vld [vmem:[#allocation6 + $0x168] sm:$0xf]
    %v1445 = vld [vmem:[#allocation6 + $0x16c] sm:$0xf]
    %v1446 = vld [vmem:[#allocation6 + $0x170] sm:$0xf]
    %v1447 = vld [vmem:[#allocation6 + $0x174] sm:$0xf]
    %v1448 = vld [vmem:[#allocation6 + $0x178] sm:$0xf]
    %v1449 = vld [vmem:[#allocation6 + $0x17c] sm:$0xf]
    %v1450 = vld [vmem:[#allocation6 + $0x180] sm:$0xf]
    %v1451 = vld [vmem:[#allocation6 + $0x184] sm:$0xf]
    %v1452 = vld [vmem:[#allocation6 + $0x188] sm:$0xf]
    %v1453 = vld [vmem:[#allocation6 + $0x18c] sm:$0xf]
    %v1454 = vld [vmem:[#allocation6 + $0x190] sm:$0xf]
    %v1455 = vld [vmem:[#allocation6 + $0x194] sm:$0xf]
    %v1456 = vld [vmem:[#allocation6 + $0x198] sm:$0xf]
    %v1457 = vld [vmem:[#allocation6 + $0x19c] sm:$0xf]
    %v1458 = vld [vmem:[#allocation6 + $0x1a0] sm:$0xf]
    %v1459 = vld [vmem:[#allocation6 + $0x1a4] sm:$0xf]
    %v1460 = vld [vmem:[#allocation6 + $0x1a8] sm:$0xf]
    %v1461 = vld [vmem:[#allocation6 + $0x1ac] sm:$0xf]
    %v1462 = vld [vmem:[#allocation6 + $0x1b0] sm:$0xf]
    %v1463 = vld [vmem:[#allocation6 + $0x1b4] sm:$0xf]
    %v1464 = vld [vmem:[#allocation6 + $0x1b8] sm:$0xf]
    %v1465 = vld [vmem:[#allocation6 + $0x1bc] sm:$0xf]
    %v1466 = vld [vmem:[#allocation6 + $0x1c0] sm:$0xf]
    %v1467 = vld [vmem:[#allocation6 + $0x1c4] sm:$0xf]
    %v1468 = vld [vmem:[#allocation6 + $0x1c8] sm:$0xf]
    %v1469 = vld [vmem:[#allocation6 + $0x1cc] sm:$0xf]
    %v1470 = vld [vmem:[#allocation6 + $0x1d0] sm:$0xf]
    %v1471 = vld [vmem:[#allocation6 + $0x1d4] sm:$0xf]
    %v1472 = vld [vmem:[#allocation6 + $0x1d8] sm:$0xf]
    %v1473 = vld [vmem:[#allocation6 + $0x1dc] sm:$0xf]
    %v1474 = vld [vmem:[#allocation6 + $0x1e0] sm:$0xf]
    %v1475 = vld [vmem:[#allocation6 + $0x1e4] sm:$0xf]
    %v1476 = vld [vmem:[#allocation6 + $0x1e8] sm:$0xf]
    %v1477 = vld [vmem:[#allocation6 + $0x1ec] sm:$0xf]
    %v1478 = vld [vmem:[#allocation6 + $0x1f0] sm:$0xf]
    %v1479 = vld [vmem:[#allocation6 + $0x1f4] sm:$0xf]
    %v1480 = vld [vmem:[#allocation6 + $0x1f8] sm:$0xf]
    %v1481 = vld [vmem:[#allocation6 + $0x1fc] sm:$0xf]
    %v1482 = vld [vmem:[#allocation6 + $0x200] sm:$0xf]
    %v1483 = vld [vmem:[#allocation6 + $0x204] sm:$0xf]
    %v1484 = vld [vmem:[#allocation6 + $0x208] sm:$0xf]
    %v1485 = vld [vmem:[#allocation6 + $0x20c] sm:$0xf]
    %v1486 = vld [vmem:[#allocation6 + $0x210] sm:$0xf]
    %v1487 = vld [vmem:[#allocation6 + $0x214] sm:$0xf]
    %v1488 = vld [vmem:[#allocation6 + $0x218] sm:$0xf]
    %v1489 = vld [vmem:[#allocation6 + $0x21c] sm:$0xf]
    %v1490 = vld [vmem:[#allocation6 + $0x220] sm:$0xf]
    %v1491 = vld [vmem:[#allocation6 + $0x224] sm:$0xf]
    %v1492 = vld [vmem:[#allocation6 + $0x228] sm:$0xf]
    %v1493 = vld [vmem:[#allocation6 + $0x22c] sm:$0xf]
    %v1494 = vld [vmem:[#allocation6 + $0x230] sm:$0xf]
    %v1495 = vld [vmem:[#allocation6 + $0x234] sm:$0xf]
    %v1496 = vld [vmem:[#allocation6 + $0x238] sm:$0xf]
    %v1497 = vld [vmem:[#allocation6 + $0x23c] sm:$0xf]
    %v1498 = vld [vmem:[#allocation6 + $0x240] sm:$0xf]
    %v1499 = vld [vmem:[#allocation6 + $0x244] sm:$0xf]
    %v1500 = vld [vmem:[#allocation6 + $0x248] sm:$0xf]
    %v1501 = vld [vmem:[#allocation6 + $0x24c] sm:$0xf]
    %v1502 = vld [vmem:[#allocation6 + $0x250] sm:$0xf]
    %v1503 = vld [vmem:[#allocation6 + $0x254] sm:$0xf]
    %v1504 = vld [vmem:[#allocation6 + $0x258] sm:$0xf]
    %v1505 = vld [vmem:[#allocation6 + $0x25c] sm:$0xf]
    %v1506 = vld [vmem:[#allocation6 + $0x260] sm:$0xf]
    %v1507 = vld [vmem:[#allocation6 + $0x264] sm:$0xf]
    %v1508 = vld [vmem:[#allocation6 + $0x268] sm:$0xf]
    %v1509 = vld [vmem:[#allocation6 + $0x26c] sm:$0xf]
    %v1510 = vld [vmem:[#allocation6 + $0x270] sm:$0xf]
    %v1511 = vld [vmem:[#allocation6 + $0x274] sm:$0xf]
    %v1512 = vld [vmem:[#allocation6 + $0x278] sm:$0xf]
    %v1513 = vld [vmem:[#allocation6 + $0x27c] sm:$0xf]
    %v1514 = vld [vmem:[#allocation6 + $0x280] sm:$0xf]
    %v1515 = vld [vmem:[#allocation6 + $0x284] sm:$0xf]
    %v1516 = vld [vmem:[#allocation6 + $0x288] sm:$0xf]
    %v1517 = vld [vmem:[#allocation6 + $0x28c] sm:$0xf]
    %v1518 = vld [vmem:[#allocation6 + $0x290] sm:$0xf]
    %v1519 = vld [vmem:[#allocation6 + $0x294] sm:$0xf]
    %v1520 = vld [vmem:[#allocation6 + $0x298] sm:$0xf]
    %v1521 = vld [vmem:[#allocation6 + $0x29c] sm:$0xf]
    %v1522 = vld [vmem:[#allocation6 + $0x2a0] sm:$0xf]
    %v1523 = vld [vmem:[#allocation6 + $0x2a4] sm:$0xf]
    %v1524 = vld [vmem:[#allocation6 + $0x2a8] sm:$0xf]
    %v1525 = vld [vmem:[#allocation6 + $0x2ac] sm:$0xf]
    %v1526 = vld [vmem:[#allocation6 + $0x2b0] sm:$0xf]
    %v1527 = vld [vmem:[#allocation6 + $0x2b4] sm:$0xf]
    %v1528 = vld [vmem:[#allocation6 + $0x2b8] sm:$0xf]
    %v1529 = vld [vmem:[#allocation6 + $0x2bc] sm:$0xf]
    %v1530 = vld [vmem:[#allocation6 + $0x2c0] sm:$0xf]
    %v1531 = vld [vmem:[#allocation6 + $0x2c4] sm:$0xf]
    %v1532 = vld [vmem:[#allocation6 + $0x2c8] sm:$0xf]
    %v1533 = vld [vmem:[#allocation6 + $0x2cc] sm:$0xf]
    %v1534 = vld [vmem:[#allocation6 + $0x2d0] sm:$0xf]
    %v1535 = vld [vmem:[#allocation6 + $0x2d4] sm:$0xf]
    %v1536 = vld [vmem:[#allocation6 + $0x2d8] sm:$0xf]
    %v1537 = vld [vmem:[#allocation6 + $0x2dc] sm:$0xf]
    %v1538 = vld [vmem:[#allocation6 + $0x2e0] sm:$0xf]
    %v1539 = vld [vmem:[#allocation6 + $0x2e4] sm:$0xf]
    %v1540 = vld [vmem:[#allocation6 + $0x2e8] sm:$0xf]
    %v1541 = vld [vmem:[#allocation6 + $0x2ec] sm:$0xf]
    %v1542 = vld [vmem:[#allocation6 + $0x2f0] sm:$0xf]
    %v1543 = vld [vmem:[#allocation6 + $0x2f4] sm:$0xf]
    %v1544 = vld [vmem:[#allocation6 + $0x2f8] sm:$0xf]
    %v1545 = vld [vmem:[#allocation6 + $0x2fc] sm:$0xf]
    %v1546 = vld [vmem:[#allocation6 + $0x300] sm:$0xf]
    %v1547 = vld [vmem:[#allocation6 + $0x304] sm:$0xf]
    %v1548 = vld [vmem:[#allocation6 + $0x308] sm:$0xf]
    %v1549 = vld [vmem:[#allocation6 + $0x30c] sm:$0xf]
    %v1550 = vld [vmem:[#allocation6 + $0x310] sm:$0xf]
    %v1551 = vld [vmem:[#allocation6 + $0x314] sm:$0xf]
    %v1552 = vld [vmem:[#allocation6 + $0x318] sm:$0xf]
    %v1553 = vld [vmem:[#allocation6 + $0x31c] sm:$0xf]
    %v1554 = vld [vmem:[#allocation6 + $0x320] sm:$0xf]
    %v1555 = vld [vmem:[#allocation6 + $0x324] sm:$0xf]
    %v1556 = vld [vmem:[#allocation6 + $0x328] sm:$0xf]
    %v1557 = vld [vmem:[#allocation6 + $0x32c] sm:$0xf]
    %v1558 = vld [vmem:[#allocation6 + $0x330] sm:$0xf]
    %v1559 = vld [vmem:[#allocation6 + $0x334] sm:$0xf]
    %v1560 = vld [vmem:[#allocation6 + $0x338] sm:$0xf]
    %v1561 = vld [vmem:[#allocation6 + $0x33c] sm:$0xf]
    %v1562 = vld [vmem:[#allocation6 + $0x340] sm:$0xf]
    %v1563 = vld [vmem:[#allocation6 + $0x344] sm:$0xf]
    %v1564 = vld [vmem:[#allocation6 + $0x348] sm:$0xf]
    %v1565 = vld [vmem:[#allocation6 + $0x34c] sm:$0xf]
    %v1566 = vld [vmem:[#allocation6 + $0x350] sm:$0xf]
    %v1567 = vld [vmem:[#allocation6 + $0x354] sm:$0xf]
    %v1568 = vld [vmem:[#allocation6 + $0x358] sm:$0xf]
    %v1569 = vld [vmem:[#allocation6 + $0x35c] sm:$0xf]
    %v1570 = vld [vmem:[#allocation6 + $0x360] sm:$0xf]
    %v1571 = vld [vmem:[#allocation6 + $0x364] sm:$0xf]
    %v1572 = vld [vmem:[#allocation6 + $0x368] sm:$0xf]
    %v1573 = vld [vmem:[#allocation6 + $0x36c] sm:$0xf]
    %v1574 = vld [vmem:[#allocation6 + $0x370] sm:$0xf]
    %v1575 = vld [vmem:[#allocation6 + $0x374] sm:$0xf]
    %v1576 = vld [vmem:[#allocation6 + $0x378] sm:$0xf]
    %v1577 = vld [vmem:[#allocation6 + $0x37c] sm:$0xf]
    %v1578 = vld [vmem:[#allocation6 + $0x380] sm:$0xf]
    %v1579 = vld [vmem:[#allocation6 + $0x384] sm:$0xf]
    %v1580 = vld [vmem:[#allocation6 + $0x388] sm:$0xf]
    %v1581 = vld [vmem:[#allocation6 + $0x38c] sm:$0xf]
    %v1582 = vld [vmem:[#allocation6 + $0x390] sm:$0xf]
    %v1583 = vld [vmem:[#allocation6 + $0x394] sm:$0xf]
    %v1584 = vld [vmem:[#allocation6 + $0x398] sm:$0xf]
    %v1585 = vld [vmem:[#allocation6 + $0x39c] sm:$0xf]
    %v1586 = vld [vmem:[#allocation6 + $0x3a0] sm:$0xf]
    %v1587 = vld [vmem:[#allocation6 + $0x3a4] sm:$0xf]
    %v1588 = vld [vmem:[#allocation6 + $0x3a8] sm:$0xf]
    %v1589 = vld [vmem:[#allocation6 + $0x3ac] sm:$0xf]
    %v1590 = vld [vmem:[#allocation6 + $0x3b0] sm:$0xf]
    %v1591 = vld [vmem:[#allocation6 + $0x3b4] sm:$0xf]
    %v1592 = vld [vmem:[#allocation6 + $0x3b8] sm:$0xf]
    %v1593 = vld [vmem:[#allocation6 + $0x3bc] sm:$0xf]
    %v1594 = vld [vmem:[#allocation6 + $0x3c0] sm:$0xf]
    %v1595 = vld [vmem:[#allocation6 + $0x3c4] sm:$0xf]
    %v1596 = vld [vmem:[#allocation6 + $0x3c8] sm:$0xf]
    %v1597 = vld [vmem:[#allocation6 + $0x3cc] sm:$0xf]
    %v1598 = vld [vmem:[#allocation6 + $0x3d0] sm:$0xf]
    %v1599 = vld [vmem:[#allocation6 + $0x3d4] sm:$0xf]
    %v1600 = vld [vmem:[#allocation6 + $0x3d8] sm:$0xf]
    %v1601 = vld [vmem:[#allocation6 + $0x3dc] sm:$0xf]
    %v1602 = vld [vmem:[#allocation6 + $0x3e0] sm:$0xf]
    %v1603 = vld [vmem:[#allocation6 + $0x3e4] sm:$0xf]
    %v1604 = vld [vmem:[#allocation6 + $0x3e8] sm:$0xf]
    %v1605 = vld [vmem:[#allocation6 + $0x3ec] sm:$0xf]
    %v1606 = vld [vmem:[#allocation6 + $0x3f0] sm:$0xf]
    %v1607 = vld [vmem:[#allocation6 + $0x3f4] sm:$0xf]
    %v1608 = vld [vmem:[#allocation6 + $0x3f8] sm:$0xf]
    %v1609 = vld [vmem:[#allocation6 + $0x3fc] sm:$0xf]
    %v1610 = vld [vmem:[#allocation6 + $0x400] sm:$0xf]
    %v1611 = vld [vmem:[#allocation6 + $0x404] sm:$0xf]
    %v1612 = vld [vmem:[#allocation6 + $0x408] sm:$0xf]
    %v1613 = vld [vmem:[#allocation6 + $0x40c] sm:$0xf]
    %v1614 = vld [vmem:[#allocation6 + $0x410] sm:$0xf]
    %v1615 = vld [vmem:[#allocation6 + $0x414] sm:$0xf]
    %v1616 = vld [vmem:[#allocation6 + $0x418] sm:$0xf]
    %v1617 = vld [vmem:[#allocation6 + $0x41c] sm:$0xf]
    %v1618 = vld [vmem:[#allocation6 + $0x420] sm:$0xf]
    %v1619 = vld [vmem:[#allocation6 + $0x424] sm:$0xf]
    %v1620 = vld [vmem:[#allocation6 + $0x428] sm:$0xf]
    %v1621 = vld [vmem:[#allocation6 + $0x42c] sm:$0xf]
    %v1622 = vld [vmem:[#allocation6 + $0x430] sm:$0xf]
    %v1623 = vld [vmem:[#allocation6 + $0x434] sm:$0xf]
    %v1624 = vld [vmem:[#allocation6 + $0x438] sm:$0xf]
    %v1625 = vld [vmem:[#allocation6 + $0x43c] sm:$0xf]
    %v1626 = vld [vmem:[#allocation6 + $0x440] sm:$0xf]
    %v1627 = vld [vmem:[#allocation6 + $0x444] sm:$0xf]
    %v1628 = vld [vmem:[#allocation6 + $0x448] sm:$0xf]
    %v1629 = vld [vmem:[#allocation6 + $0x44c] sm:$0xf]
    %v1630 = vld [vmem:[#allocation6 + $0x450] sm:$0xf]
    %v1631 = vld [vmem:[#allocation6 + $0x454] sm:$0xf]
    %v1632 = vld [vmem:[#allocation6 + $0x458] sm:$0xf]
    %v1633 = vld [vmem:[#allocation6 + $0x45c] sm:$0xf]
    %v1634 = vld [vmem:[#allocation6 + $0x460] sm:$0xf]
    %v1635 = vld [vmem:[#allocation6 + $0x464] sm:$0xf]
    %v1636 = vld [vmem:[#allocation6 + $0x468] sm:$0xf]
    %v1637 = vld [vmem:[#allocation6 + $0x46c] sm:$0xf]
    %v1638 = vld [vmem:[#allocation6 + $0x470] sm:$0xf]
    %v1639 = vld [vmem:[#allocation6 + $0x474] sm:$0xf]
    %v1640 = vld [vmem:[#allocation6 + $0x478] sm:$0xf]
    %v1641 = vld [vmem:[#allocation6 + $0x47c] sm:$0xf]
    %v1642 = vld [vmem:[#allocation6 + $0x480] sm:$0xf]
    %v1643 = vld [vmem:[#allocation6 + $0x484] sm:$0xf]
    %v1644 = vld [vmem:[#allocation6 + $0x488] sm:$0xf]
    %v1645 = vld [vmem:[#allocation6 + $0x48c] sm:$0xf]
    %v1646 = vld [vmem:[#allocation6 + $0x490] sm:$0xf]
    %v1647 = vld [vmem:[#allocation6 + $0x494] sm:$0xf]
    %v1648 = vld [vmem:[#allocation6 + $0x498] sm:$0xf]
    %v1649 = vld [vmem:[#allocation6 + $0x49c] sm:$0xf]
    %v1650 = vld [vmem:[#allocation6 + $0x4a0] sm:$0xf]
    %v1651 = vld [vmem:[#allocation6 + $0x4a4] sm:$0xf]
    %v1652 = vld [vmem:[#allocation6 + $0x4a8] sm:$0xf]
    %v1653 = vld [vmem:[#allocation6 + $0x4ac] sm:$0xf]
    %v1654 = vld [vmem:[#allocation6 + $0x4b0] sm:$0xf]
    %v1655 = vld [vmem:[#allocation6 + $0x4b4] sm:$0xf]
    %v1656 = vld [vmem:[#allocation6 + $0x4b8] sm:$0xf]
    %v1657 = vld [vmem:[#allocation6 + $0x4bc] sm:$0xf]
    %v1658 = vld [vmem:[#allocation6 + $0x4c0] sm:$0xf]
    %v1659 = vld [vmem:[#allocation6 + $0x4c4] sm:$0xf]
    %v1660 = vld [vmem:[#allocation6 + $0x4c8] sm:$0xf]
    %v1661 = vld [vmem:[#allocation6 + $0x4cc] sm:$0xf]
    %v1662 = vld [vmem:[#allocation6 + $0x4d0] sm:$0xf]
    %v1663 = vld [vmem:[#allocation6 + $0x4d4] sm:$0xf]
    %v1664 = vld [vmem:[#allocation6 + $0x4d8] sm:$0xf]
    %v1665 = vld [vmem:[#allocation6 + $0x4dc] sm:$0xf]
    %v1666 = vld [vmem:[#allocation6 + $0x4e0] sm:$0xf]
    %v1667 = vld [vmem:[#allocation6 + $0x4e4] sm:$0xf]
    %v1668 = vld [vmem:[#allocation6 + $0x4e8] sm:$0xf]
    %v1669 = vld [vmem:[#allocation6 + $0x4ec] sm:$0xf]
    %v1670 = vld [vmem:[#allocation6 + $0x4f0] sm:$0xf]
    %v1671 = vld [vmem:[#allocation6 + $0x4f4] sm:$0xf]
    %v1672 = vld [vmem:[#allocation6 + $0x4f8] sm:$0xf]
    %v1673 = vld [vmem:[#allocation6 + $0x4fc] sm:$0xf]
    %v1674 = vld [vmem:[#allocation6 + $0x500] sm:$0xf]
    %v1675 = vld [vmem:[#allocation6 + $0x504] sm:$0xf]
    %v1676 = vld [vmem:[#allocation6 + $0x508] sm:$0xf]
    %v1677 = vld [vmem:[#allocation6 + $0x50c] sm:$0xf]
    %v1678 = vld [vmem:[#allocation6 + $0x510] sm:$0xf]
    %v1679 = vld [vmem:[#allocation6 + $0x514] sm:$0xf]
    %v1680 = vld [vmem:[#allocation6 + $0x518] sm:$0xf]
    %v1681 = vld [vmem:[#allocation6 + $0x51c] sm:$0xf]
    %v1682 = vld [vmem:[#allocation6 + $0x520] sm:$0xf]
    %v1683 = vld [vmem:[#allocation6 + $0x524] sm:$0xf]
    %v1684 = vld [vmem:[#allocation6 + $0x528] sm:$0xf]
    %v1685 = vld [vmem:[#allocation6 + $0x52c] sm:$0xf]
    %v1686 = vld [vmem:[#allocation6 + $0x530] sm:$0xf]
    %v1687 = vld [vmem:[#allocation6 + $0x534] sm:$0xf]
    %v1688 = vld [vmem:[#allocation6 + $0x538] sm:$0xf]
    %v1689 = vld [vmem:[#allocation6 + $0x53c] sm:$0xf]
    %v1690 = vld [vmem:[#allocation6 + $0x540] sm:$0xf]
    %v1691 = vld [vmem:[#allocation6 + $0x544] sm:$0xf]
    %v1692 = vld [vmem:[#allocation6 + $0x548] sm:$0xf]
    %v1693 = vld [vmem:[#allocation6 + $0x54c] sm:$0xf]
    %v1694 = vld [vmem:[#allocation6 + $0x550] sm:$0xf]
    %v1695 = vld [vmem:[#allocation6 + $0x554] sm:$0xf]
    %v1696 = vld [vmem:[#allocation6 + $0x558] sm:$0xf]
    %v1697 = vld [vmem:[#allocation6 + $0x55c] sm:$0xf]
    %v1698 = vld [vmem:[#allocation6 + $0x560] sm:$0xf]
    %v1699 = vld [vmem:[#allocation6 + $0x564] sm:$0xf]
    %v1700 = vld [vmem:[#allocation6 + $0x568] sm:$0xf]
    %v1701 = vld [vmem:[#allocation6 + $0x56c] sm:$0xf]
    %v1702 = vld [vmem:[#allocation6 + $0x570] sm:$0xf]
    %v1703 = vld [vmem:[#allocation6 + $0x574] sm:$0xf]
    %v1704 = vld [vmem:[#allocation6 + $0x578] sm:$0xf]
    %v1705 = vld [vmem:[#allocation6 + $0x57c] sm:$0xf]
    %v1706 = vld [vmem:[#allocation6 + $0x580] sm:$0xf]
    %v1707 = vld [vmem:[#allocation6 + $0x584] sm:$0xf]
    %v1708 = vld [vmem:[#allocation6 + $0x588] sm:$0xf]
    %v1709 = vld [vmem:[#allocation6 + $0x58c] sm:$0xf]
    %v1710 = vld [vmem:[#allocation6 + $0x590] sm:$0xf]
    %v1711 = vld [vmem:[#allocation6 + $0x594] sm:$0xf]
    %v1712 = vld [vmem:[#allocation6 + $0x598] sm:$0xf]
    %v1713 = vld [vmem:[#allocation6 + $0x59c] sm:$0xf]
    %v1714 = vld [vmem:[#allocation6 + $0x5a0] sm:$0xf]
    %v1715 = vld [vmem:[#allocation6 + $0x5a4] sm:$0xf]
    %v1716 = vld [vmem:[#allocation6 + $0x5a8] sm:$0xf]
    %v1717 = vld [vmem:[#allocation6 + $0x5ac] sm:$0xf]
    %v1718 = vld [vmem:[#allocation6 + $0x5b0] sm:$0xf]
    %v1719 = vld [vmem:[#allocation6 + $0x5b4] sm:$0xf]
    %v1720 = vld [vmem:[#allocation6 + $0x5b8] sm:$0xf]
    %v1721 = vld [vmem:[#allocation6 + $0x5bc] sm:$0xf]
    %v1722 = vld [vmem:[#allocation6 + $0x5c0] sm:$0xf]
    %v1723 = vld [vmem:[#allocation6 + $0x5c4] sm:$0xf]
    %v1724 = vld [vmem:[#allocation6 + $0x5c8] sm:$0xf]
    %v1725 = vld [vmem:[#allocation6 + $0x5cc] sm:$0xf]
    %v1726 = vld [vmem:[#allocation6 + $0x5d0] sm:$0xf]
    %v1727 = vld [vmem:[#allocation6 + $0x5d4] sm:$0xf]
    %v1728 = vld [vmem:[#allocation6 + $0x5d8] sm:$0xf]
    %v1729 = vld [vmem:[#allocation6 + $0x5dc] sm:$0xf]
    %v1730 = vld [vmem:[#allocation6 + $0x5e0] sm:$0xf]
    %v1731 = vld [vmem:[#allocation6 + $0x5e4] sm:$0xf]
    %v1732 = vld [vmem:[#allocation6 + $0x5e8] sm:$0xf]
    %v1733 = vld [vmem:[#allocation6 + $0x5ec] sm:$0xf]
    %v1734 = vld [vmem:[#allocation6 + $0x5f0] sm:$0xf]
    %v1735 = vld [vmem:[#allocation6 + $0x5f4] sm:$0xf]
    %v1736 = vld [vmem:[#allocation6 + $0x5f8] sm:$0xf]
    %v1737 = vld [vmem:[#allocation6 + $0x5fc] sm:$0xf]
    %v1738 = vld [vmem:[#allocation6 + $0x600] sm:$0xf]
    %v1739 = vld [vmem:[#allocation6 + $0x604] sm:$0xf]
    %v1740 = vld [vmem:[#allocation6 + $0x608] sm:$0xf]
    %v1741 = vld [vmem:[#allocation6 + $0x60c] sm:$0xf]
    %v1742 = vld [vmem:[#allocation6 + $0x610] sm:$0xf]
    %v1743 = vld [vmem:[#allocation6 + $0x614] sm:$0xf]
    %v1744 = vld [vmem:[#allocation6 + $0x618] sm:$0xf]
    %v1745 = vld [vmem:[#allocation6 + $0x61c] sm:$0xf]
    %v1746 = vld [vmem:[#allocation6 + $0x620] sm:$0xf]
    %v1747 = vld [vmem:[#allocation6 + $0x624] sm:$0xf]
    %v1748 = vld [vmem:[#allocation6 + $0x628] sm:$0xf]
    %v1749 = vld [vmem:[#allocation6 + $0x62c] sm:$0xf]
    %v1750 = vld [vmem:[#allocation6 + $0x630] sm:$0xf]
    %v1751 = vld [vmem:[#allocation6 + $0x634] sm:$0xf]
    %v1752 = vld [vmem:[#allocation6 + $0x638] sm:$0xf]
    %v1753 = vld [vmem:[#allocation6 + $0x63c] sm:$0xf]
    %v1754 = vld [vmem:[#allocation6 + $0x640] sm:$0xf]
    %v1755 = vld [vmem:[#allocation6 + $0x644] sm:$0xf]
    %v1756 = vld [vmem:[#allocation6 + $0x648] sm:$0xf]
    %v1757 = vld [vmem:[#allocation6 + $0x64c] sm:$0xf]
    %v1758 = vld [vmem:[#allocation6 + $0x650] sm:$0xf]
    %v1759 = vld [vmem:[#allocation6 + $0x654] sm:$0xf]
    %v1760 = vld [vmem:[#allocation6 + $0x658] sm:$0xf]
    %v1761 = vld [vmem:[#allocation6 + $0x65c] sm:$0xf]
    %v1762 = vld [vmem:[#allocation6 + $0x660] sm:$0xf]
    %v1763 = vld [vmem:[#allocation6 + $0x664] sm:$0xf]
    %v1764 = vld [vmem:[#allocation6 + $0x668] sm:$0xf]
    %v1765 = vld [vmem:[#allocation6 + $0x66c] sm:$0xf]
    %v1766 = vld [vmem:[#allocation6 + $0x670] sm:$0xf]
    %v1767 = vld [vmem:[#allocation6 + $0x674] sm:$0xf]
    %v1768 = vld [vmem:[#allocation6 + $0x678] sm:$0xf]
    %v1769 = vld [vmem:[#allocation6 + $0x67c] sm:$0xf]
    %v1770 = vld [vmem:[#allocation6 + $0x680] sm:$0xf]
    %v1771 = vld [vmem:[#allocation6 + $0x684] sm:$0xf]
    %v1772 = vld [vmem:[#allocation6 + $0x688] sm:$0xf]
    %v1773 = vld [vmem:[#allocation6 + $0x68c] sm:$0xf]
    %v1774 = vld [vmem:[#allocation6 + $0x690] sm:$0xf]
    %v1775 = vld [vmem:[#allocation6 + $0x694] sm:$0xf]
    %v1776 = vld [vmem:[#allocation6 + $0x698] sm:$0xf]
    %v1777 = vld [vmem:[#allocation6 + $0x69c] sm:$0xf]
    %v1778 = vld [vmem:[#allocation6 + $0x6a0] sm:$0xf]
    %v1779 = vld [vmem:[#allocation6 + $0x6a4] sm:$0xf]
    %v1780 = vld [vmem:[#allocation6 + $0x6a8] sm:$0xf]
    %v1781 = vld [vmem:[#allocation6 + $0x6ac] sm:$0xf]
    %v1782 = vld [vmem:[#allocation6 + $0x6b0] sm:$0xf]
    %v1783 = vld [vmem:[#allocation6 + $0x6b4] sm:$0xf]
    %v1784 = vld [vmem:[#allocation6 + $0x6b8] sm:$0xf]
    %v1785 = vld [vmem:[#allocation6 + $0x6bc] sm:$0xf]
    %v1786 = vld [vmem:[#allocation6 + $0x6c0] sm:$0xf]
    %v1787 = vld [vmem:[#allocation6 + $0x6c4] sm:$0xf]
    %v1788 = vld [vmem:[#allocation6 + $0x6c8] sm:$0xf]
    %v1789 = vld [vmem:[#allocation6 + $0x6cc] sm:$0xf]
    %v1790 = vld [vmem:[#allocation6 + $0x6d0] sm:$0xf]
    %v1791 = vld [vmem:[#allocation6 + $0x6d4] sm:$0xf]
    %v1792 = vld [vmem:[#allocation6 + $0x6d8] sm:$0xf]
    %v1793 = vld [vmem:[#allocation6 + $0x6dc] sm:$0xf]
    %v1794 = vld [vmem:[#allocation6 + $0x6e0] sm:$0xf]
    %v1795 = vld [vmem:[#allocation6 + $0x6e4] sm:$0xf]
    %v1796 = vld [vmem:[#allocation6 + $0x6e8] sm:$0xf]
    %v1797 = vld [vmem:[#allocation6 + $0x6ec] sm:$0xf]
    %v1798 = vld [vmem:[#allocation6 + $0x6f0] sm:$0xf]
    %v1799 = vld [vmem:[#allocation6 + $0x6f4] sm:$0xf]
    %v1800 = vld [vmem:[#allocation6 + $0x6f8] sm:$0xf]
    %v1801 = vld [vmem:[#allocation6 + $0x6fc] sm:$0xf]
    %v1802 = vld [vmem:[#allocation6 + $0x700] sm:$0xf]
    %v1803 = vld [vmem:[#allocation6 + $0x704] sm:$0xf]
    %v1804 = vld [vmem:[#allocation6 + $0x708] sm:$0xf]
    %v1805 = vld [vmem:[#allocation6 + $0x70c] sm:$0xf]
    %v1806 = vld [vmem:[#allocation6 + $0x710] sm:$0xf]
    %v1807 = vld [vmem:[#allocation6 + $0x714] sm:$0xf]
    %v1808 = vld [vmem:[#allocation6 + $0x718] sm:$0xf]
    %v1809 = vld [vmem:[#allocation6 + $0x71c] sm:$0xf]
    %v1810 = vld [vmem:[#allocation6 + $0x720] sm:$0xf]
    %v1811 = vld [vmem:[#allocation6 + $0x724] sm:$0xf]
    %v1812 = vld [vmem:[#allocation6 + $0x728] sm:$0xf]
    %v1813 = vld [vmem:[#allocation6 + $0x72c] sm:$0xf]
    %v1814 = vld [vmem:[#allocation6 + $0x730] sm:$0xf]
    %v1815 = vld [vmem:[#allocation6 + $0x734] sm:$0xf]
    %v1816 = vld [vmem:[#allocation6 + $0x738] sm:$0xf]
    %v1817 = vld [vmem:[#allocation6 + $0x73c] sm:$0xf]
    %v1818 = vld [vmem:[#allocation6 + $0x740] sm:$0xf]
    %v1819 = vld [vmem:[#allocation6 + $0x744] sm:$0xf]
    %v1820 = vld [vmem:[#allocation6 + $0x748] sm:$0xf]
    %v1821 = vld [vmem:[#allocation6 + $0x74c] sm:$0xf]
    %v1822 = vld [vmem:[#allocation6 + $0x750] sm:$0xf]
    %v1823 = vld [vmem:[#allocation6 + $0x754] sm:$0xf]
    %v1824 = vld [vmem:[#allocation6 + $0x758] sm:$0xf]
    %v1825 = vld [vmem:[#allocation6 + $0x75c] sm:$0xf]
    %v1826 = vld [vmem:[#allocation6 + $0x760] sm:$0xf]
    %v1827 = vld [vmem:[#allocation6 + $0x764] sm:$0xf]
    %v1828 = vld [vmem:[#allocation6 + $0x768] sm:$0xf]
    %v1829 = vld [vmem:[#allocation6 + $0x76c] sm:$0xf]
    %v1830 = vld [vmem:[#allocation6 + $0x770] sm:$0xf]
    %v1831 = vld [vmem:[#allocation6 + $0x774] sm:$0xf]
    %v1832 = vld [vmem:[#allocation6 + $0x778] sm:$0xf]
    %v1833 = vld [vmem:[#allocation6 + $0x77c] sm:$0xf]
    %v1834 = vld [vmem:[#allocation6 + $0x780] sm:$0xf]
    %v1835 = vld [vmem:[#allocation6 + $0x784] sm:$0xf]
    %v1836 = vld [vmem:[#allocation6 + $0x788] sm:$0xf]
    %v1837 = vld [vmem:[#allocation6 + $0x78c] sm:$0xf]
    %v1838 = vld [vmem:[#allocation6 + $0x790] sm:$0xf]
    %v1839 = vld [vmem:[#allocation6 + $0x794] sm:$0xf]
    %v1840 = vld [vmem:[#allocation6 + $0x798] sm:$0xf]
    %v1841 = vld [vmem:[#allocation6 + $0x79c] sm:$0xf]
    %v1842 = vld [vmem:[#allocation6 + $0x7a0] sm:$0xf]
    %v1843 = vld [vmem:[#allocation6 + $0x7a4] sm:$0xf]
    %v1844 = vld [vmem:[#allocation6 + $0x7a8] sm:$0xf]
    %v1845 = vld [vmem:[#allocation6 + $0x7ac] sm:$0xf]
    %v1846 = vld [vmem:[#allocation6 + $0x7b0] sm:$0xf]
    %v1847 = vld [vmem:[#allocation6 + $0x7b4] sm:$0xf]
    %v1848 = vld [vmem:[#allocation6 + $0x7b8] sm:$0xf]
    %v1849 = vld [vmem:[#allocation6 + $0x7bc] sm:$0xf]
    %v1850 = vld [vmem:[#allocation6 + $0x7c0] sm:$0xf]
    %v1851 = vld [vmem:[#allocation6 + $0x7c4] sm:$0xf]
    %v1852 = vld [vmem:[#allocation6 + $0x7c8] sm:$0xf]
    %v1853 = vld [vmem:[#allocation6 + $0x7cc] sm:$0xf]
    %v1854 = vld [vmem:[#allocation6 + $0x7d0] sm:$0xf]
    %v1855 = vld [vmem:[#allocation6 + $0x7d4] sm:$0xf]
    %v1856 = vld [vmem:[#allocation6 + $0x7d8] sm:$0xf]
    %v1857 = vld [vmem:[#allocation6 + $0x7dc] sm:$0xf]
    %v1858 = vld [vmem:[#allocation6 + $0x7e0] sm:$0xf]
    %v1859 = vld [vmem:[#allocation6 + $0x7e4] sm:$0xf]
    %v1860 = vld [vmem:[#allocation6 + $0x7e8] sm:$0xf]
    %v1861 = vld [vmem:[#allocation6 + $0x7ec] sm:$0xf]
    %v1862 = vld [vmem:[#allocation6 + $0x7f0] sm:$0xf]
    %v1863 = vld [vmem:[#allocation6 + $0x7f4] sm:$0xf]
    %v1864 = vld [vmem:[#allocation6 + $0x7f8] sm:$0xf]
    %v1865 = vld [vmem:[#allocation6 + $0x7fc] sm:$0xf]
    %v1866 = vld [vmem:[#allocation6 + $0x800] sm:$0xf]
    %v1867 = vld [vmem:[#allocation6 + $0x804] sm:$0xf]
    %v1868 = vld [vmem:[#allocation6 + $0x808] sm:$0xf]
    %v1869 = vld [vmem:[#allocation6 + $0x80c] sm:$0xf]
    %v1870 = vld [vmem:[#allocation6 + $0x810] sm:$0xf]
    %v1871 = vld [vmem:[#allocation6 + $0x814] sm:$0xf]
    %v1872 = vld [vmem:[#allocation6 + $0x818] sm:$0xf]
    %v1873 = vld [vmem:[#allocation6 + $0x81c] sm:$0xf]
    %v1874 = vld [vmem:[#allocation6 + $0x820] sm:$0xf]
    %v1875 = vld [vmem:[#allocation6 + $0x824] sm:$0xf]
    %v1876 = vld [vmem:[#allocation6 + $0x828] sm:$0xf]
    %v1877 = vld [vmem:[#allocation6 + $0x82c] sm:$0xf]
    %v1878 = vld [vmem:[#allocation6 + $0x830] sm:$0xf]
    %v1879 = vld [vmem:[#allocation6 + $0x834] sm:$0xf]
    %v1880 = vld [vmem:[#allocation6 + $0x838] sm:$0xf]
    %v1881 = vld [vmem:[#allocation6 + $0x83c] sm:$0xf]
    %v1882 = vld [vmem:[#allocation6 + $0x840] sm:$0xf]
    %v1883 = vld [vmem:[#allocation6 + $0x844] sm:$0xf]
    %v1884 = vld [vmem:[#allocation6 + $0x848] sm:$0xf]
    %v1885 = vld [vmem:[#allocation6 + $0x84c] sm:$0xf]
    %v1886 = vld [vmem:[#allocation6 + $0x850] sm:$0xf]
    %v1887 = vld [vmem:[#allocation6 + $0x854] sm:$0xf]
    %v1888 = vld [vmem:[#allocation6 + $0x858] sm:$0xf]
    %v1889 = vld [vmem:[#allocation6 + $0x85c] sm:$0xf]
    %v1890 = vld [vmem:[#allocation6 + $0x860] sm:$0xf]
    %v1891 = vld [vmem:[#allocation6 + $0x864] sm:$0xf]
    %v1892 = vld [vmem:[#allocation6 + $0x868] sm:$0xf]
    %v1893 = vld [vmem:[#allocation6 + $0x86c] sm:$0xf]
    %v1894 = vld [vmem:[#allocation6 + $0x870] sm:$0xf]
    %v1895 = vld [vmem:[#allocation6 + $0x874] sm:$0xf]
    %v1896 = vld [vmem:[#allocation6 + $0x878] sm:$0xf]
    %v1897 = vld [vmem:[#allocation6 + $0x87c] sm:$0xf]
    %v1898 = vld [vmem:[#allocation6 + $0x880] sm:$0xf]
    %v1899 = vld [vmem:[#allocation6 + $0x884] sm:$0xf]
    %v1900 = vld [vmem:[#allocation6 + $0x888] sm:$0xf]
    %v1901 = vld [vmem:[#allocation6 + $0x88c] sm:$0xf]
    %v1902 = vld [vmem:[#allocation6 + $0x890] sm:$0xf]
    %v1903 = vld [vmem:[#allocation6 + $0x894] sm:$0xf]
    %v1904 = vld [vmem:[#allocation6 + $0x898] sm:$0xf]
    %v1905 = vld [vmem:[#allocation6 + $0x89c] sm:$0xf]
    %v1906 = vld [vmem:[#allocation6 + $0x8a0] sm:$0xf]
    %v1907 = vld [vmem:[#allocation6 + $0x8a4] sm:$0xf]
    %v1908 = vld [vmem:[#allocation6 + $0x8a8] sm:$0xf]
    %v1909 = vld [vmem:[#allocation6 + $0x8ac] sm:$0xf]
    %v1910 = vld [vmem:[#allocation6 + $0x8b0] sm:$0xf]
    %v1911 = vld [vmem:[#allocation6 + $0x8b4] sm:$0xf]
    %v1912 = vld [vmem:[#allocation6 + $0x8b8] sm:$0xf]
    %v1913 = vld [vmem:[#allocation6 + $0x8bc] sm:$0xf]
    %v1914 = vld [vmem:[#allocation6 + $0x8c0] sm:$0xf]
    %v1915 = vld [vmem:[#allocation6 + $0x8c4] sm:$0xf]
    %v1916 = vld [vmem:[#allocation6 + $0x8c8] sm:$0xf]
    %v1917 = vld [vmem:[#allocation6 + $0x8cc] sm:$0xf]
    %v1918 = vld [vmem:[#allocation6 + $0x8d0] sm:$0xf]
    %v1919 = vld [vmem:[#allocation6 + $0x8d4] sm:$0xf]
    %v1920 = vld [vmem:[#allocation6 + $0x8d8] sm:$0xf]
    %v1921 = vld [vmem:[#allocation6 + $0x8dc] sm:$0xf]
    %v1922 = vld [vmem:[#allocation6 + $0x8e0] sm:$0xf]
    %v1923 = vld [vmem:[#allocation6 + $0x8e4] sm:$0xf]
    %v1924 = vld [vmem:[#allocation6 + $0x8e8] sm:$0xf]
    %v1925 = vld [vmem:[#allocation6 + $0x8ec] sm:$0xf]
    %v1926 = vld [vmem:[#allocation6 + $0x8f0] sm:$0xf]
    %v1927 = vld [vmem:[#allocation6 + $0x8f4] sm:$0xf]
    %v1928 = vld [vmem:[#allocation6 + $0x8f8] sm:$0xf]
    %v1929 = vld [vmem:[#allocation6 + $0x8fc] sm:$0xf]
    %v1930 = vld [vmem:[#allocation6 + $0x900] sm:$0xf]
    %v1931 = vld [vmem:[#allocation6 + $0x904] sm:$0xf]
    %v1932 = vld [vmem:[#allocation6 + $0x908] sm:$0xf]
    %v1933 = vld [vmem:[#allocation6 + $0x90c] sm:$0xf]
    %v1934 = vld [vmem:[#allocation6 + $0x910] sm:$0xf]
    %v1935 = vld [vmem:[#allocation6 + $0x914] sm:$0xf]
    %v1936 = vld [vmem:[#allocation6 + $0x918] sm:$0xf]
    %v1937 = vld [vmem:[#allocation6 + $0x91c] sm:$0xf]
    %v1938 = vld [vmem:[#allocation6 + $0x920] sm:$0xf]
    %v1939 = vld [vmem:[#allocation6 + $0x924] sm:$0xf]
    %v1940 = vld [vmem:[#allocation6 + $0x928] sm:$0xf]
    %v1941 = vld [vmem:[#allocation6 + $0x92c] sm:$0xf]
    %v1942 = vld [vmem:[#allocation6 + $0x930] sm:$0xf]
    %v1943 = vld [vmem:[#allocation6 + $0x934] sm:$0xf]
    %v1944 = vld [vmem:[#allocation6 + $0x938] sm:$0xf]
    %v1945 = vld [vmem:[#allocation6 + $0x93c] sm:$0xf]
    %v1946 = vld [vmem:[#allocation6 + $0x940] sm:$0xf]
    %v1947 = vld [vmem:[#allocation6 + $0x944] sm:$0xf]
    %v1948 = vld [vmem:[#allocation6 + $0x948] sm:$0xf]
    %v1949 = vld [vmem:[#allocation6 + $0x94c] sm:$0xf]
    %v1950 = vld [vmem:[#allocation6 + $0x950] sm:$0xf]
    %v1951 = vld [vmem:[#allocation6 + $0x954] sm:$0xf]
    %v1952 = vld [vmem:[#allocation6 + $0x958] sm:$0xf]
    %v1953 = vld [vmem:[#allocation6 + $0x95c] sm:$0xf]
    %v1954 = vld [vmem:[#allocation6 + $0x960] sm:$0xf]
    %v1955 = vld [vmem:[#allocation6 + $0x964] sm:$0xf]
    %v1956 = vld [vmem:[#allocation6 + $0x968] sm:$0xf]
    %v1957 = vld [vmem:[#allocation6 + $0x96c] sm:$0xf]
    %v1958 = vld [vmem:[#allocation6 + $0x970] sm:$0xf]
    %v1959 = vld [vmem:[#allocation6 + $0x974] sm:$0xf]
    %v1960 = vld [vmem:[#allocation6 + $0x978] sm:$0xf]
    %v1961 = vld [vmem:[#allocation6 + $0x97c] sm:$0xf]
    %v1962 = vld [vmem:[#allocation6 + $0x980] sm:$0xf]
    %v1963 = vld [vmem:[#allocation6 + $0x984] sm:$0xf]
    %v1964 = vld [vmem:[#allocation6 + $0x988] sm:$0xf]
    %v1965 = vld [vmem:[#allocation6 + $0x98c] sm:$0xf]
    %v1966 = vld [vmem:[#allocation6 + $0x990] sm:$0xf]
    %v1967 = vld [vmem:[#allocation6 + $0x994] sm:$0xf]
    %v1968 = vld [vmem:[#allocation6 + $0x998] sm:$0xf]
    %v1969 = vld [vmem:[#allocation6 + $0x99c] sm:$0xf]
    %v1970 = vld [vmem:[#allocation6 + $0x9a0] sm:$0xf]
    %v1971 = vld [vmem:[#allocation6 + $0x9a4] sm:$0xf]
    %v1972 = vld [vmem:[#allocation6 + $0x9a8] sm:$0xf]
    %v1973 = vld [vmem:[#allocation6 + $0x9ac] sm:$0xf]
    %v1974 = vld [vmem:[#allocation6 + $0x9b0] sm:$0xf]
    %v1975 = vld [vmem:[#allocation6 + $0x9b4] sm:$0xf]
    %v1976 = vld [vmem:[#allocation6 + $0x9b8] sm:$0xf]
    %v1977 = vld [vmem:[#allocation6 + $0x9bc] sm:$0xf]
    %v1978 = vld [vmem:[#allocation6 + $0x9c0] sm:$0xf]
    %v1979 = vld [vmem:[#allocation6 + $0x9c4] sm:$0xf]
    %v1980 = vld [vmem:[#allocation6 + $0x9c8] sm:$0xf]
    %v1981 = vld [vmem:[#allocation6 + $0x9cc] sm:$0xf]
    %v1982 = vld [vmem:[#allocation6 + $0x9d0] sm:$0xf]
    %v1983 = vld [vmem:[#allocation6 + $0x9d4] sm:$0xf]
    %v1984 = vld [vmem:[#allocation6 + $0x9d8] sm:$0xf]
    %v1985 = vld [vmem:[#allocation6 + $0x9dc] sm:$0xf]
    %v1986 = vld [vmem:[#allocation6 + $0x9e0] sm:$0xf]
    %v1987 = vld [vmem:[#allocation6 + $0x9e4] sm:$0xf]
    %v1988 = vld [vmem:[#allocation6 + $0x9e8] sm:$0xf]
    %v1989 = vld [vmem:[#allocation6 + $0x9ec] sm:$0xf]
    %v1990 = vld [vmem:[#allocation6 + $0x9f0] sm:$0xf]
    %v1991 = vld [vmem:[#allocation6 + $0x9f4] sm:$0xf]
    %v1992 = vld [vmem:[#allocation6 + $0x9f8] sm:$0xf]
    %v1993 = vld [vmem:[#allocation6 + $0x9fc] sm:$0xf]
    %v1994 = vld [vmem:[#allocation6 + $0xa00] sm:$0xf]
    %v1995 = vld [vmem:[#allocation6 + $0xa04] sm:$0xf]
    %v1996 = vld [vmem:[#allocation6 + $0xa08] sm:$0xf]
    %v1997 = vld [vmem:[#allocation6 + $0xa0c] sm:$0xf]
    %v1998 = vld [vmem:[#allocation6 + $0xa10] sm:$0xf]
    %v1999 = vld [vmem:[#allocation6 + $0xa14] sm:$0xf]
    %v2000 = vld [vmem:[#allocation6 + $0xa18] sm:$0xf]
    %v2001 = vld [vmem:[#allocation6 + $0xa1c] sm:$0xf]
    %v2002 = vld [vmem:[#allocation6 + $0xa20] sm:$0xf]
    %v2003 = vld [vmem:[#allocation6 + $0xa24] sm:$0xf]
    %v2004 = vld [vmem:[#allocation6 + $0xa28] sm:$0xf]
    %v2005 = vld [vmem:[#allocation6 + $0xa2c] sm:$0xf]
    %v2006 = vld [vmem:[#allocation6 + $0xa30] sm:$0xf]
    %v2007 = vld [vmem:[#allocation6 + $0xa34] sm:$0xf]
    %v2008 = vld [vmem:[#allocation6 + $0xa38] sm:$0xf]
    %v2009 = vld [vmem:[#allocation6 + $0xa3c] sm:$0xf]
    %v2010 = vld [vmem:[#allocation6 + $0xa40] sm:$0xf]
    %v2011 = vld [vmem:[#allocation6 + $0xa44] sm:$0xf]
    %v2012 = vld [vmem:[#allocation6 + $0xa48] sm:$0xf]
    %v2013 = vld [vmem:[#allocation6 + $0xa4c] sm:$0xf]
    %v2014 = vld [vmem:[#allocation6 + $0xa50] sm:$0xf]
    %v2015 = vld [vmem:[#allocation6 + $0xa54] sm:$0xf]
    %v2016 = vld [vmem:[#allocation6 + $0xa58] sm:$0xf]
    %v2017 = vld [vmem:[#allocation6 + $0xa5c] sm:$0xf]
    %v2018 = vld [vmem:[#allocation6 + $0xa60] sm:$0xf]
    %v2019 = vld [vmem:[#allocation6 + $0xa64] sm:$0xf]
    %v2020 = vld [vmem:[#allocation6 + $0xa68] sm:$0xf]
    %v2021 = vld [vmem:[#allocation6 + $0xa6c] sm:$0xf]
    %v2022 = vld [vmem:[#allocation6 + $0xa70] sm:$0xf]
    %v2023 = vld [vmem:[#allocation6 + $0xa74] sm:$0xf]
    %v2024 = vld [vmem:[#allocation6 + $0xa78] sm:$0xf]
    %v2025 = vld [vmem:[#allocation6 + $0xa7c] sm:$0xf]
    %v2026 = vld [vmem:[#allocation6 + $0xa80] sm:$0xf]
    %v2027 = vld [vmem:[#allocation6 + $0xa84] sm:$0xf]
    %v2028 = vld [vmem:[#allocation6 + $0xa88] sm:$0xf]
    %v2029 = vld [vmem:[#allocation6 + $0xa8c] sm:$0xf]
    %v2030 = vld [vmem:[#allocation6 + $0xa90] sm:$0xf]
    %v2031 = vld [vmem:[#allocation6 + $0xa94] sm:$0xf]
    %v2032 = vld [vmem:[#allocation6 + $0xa98] sm:$0xf]
    %v2033 = vld [vmem:[#allocation6 + $0xa9c] sm:$0xf]
    %v2034 = vld [vmem:[#allocation6 + $0xaa0] sm:$0xf]
    %v2035 = vld [vmem:[#allocation6 + $0xaa4] sm:$0xf]
    %v2036 = vld [vmem:[#allocation6 + $0xaa8] sm:$0xf]
    %v2037 = vld [vmem:[#allocation6 + $0xaac] sm:$0xf]
    %v2038 = vld [vmem:[#allocation6 + $0xab0] sm:$0xf]
    %v2039 = vld [vmem:[#allocation6 + $0xab4] sm:$0xf]
    %v2040 = vld [vmem:[#allocation6 + $0xab8] sm:$0xf]
    %v2041 = vld [vmem:[#allocation6 + $0xabc] sm:$0xf]
    %v2042 = vld [vmem:[#allocation6 + $0xac0] sm:$0xf]
    %v2043 = vld [vmem:[#allocation6 + $0xac4] sm:$0xf]
    %v2044 = vld [vmem:[#allocation6 + $0xac8] sm:$0xf]
    %v2045 = vld [vmem:[#allocation6 + $0xacc] sm:$0xf]
    %v2046 = vld [vmem:[#allocation6 + $0xad0] sm:$0xf]
    %v2047 = vld [vmem:[#allocation6 + $0xad4] sm:$0xf]
    %v2048 = vld [vmem:[#allocation6 + $0xad8] sm:$0xf]
    %v2049 = vld [vmem:[#allocation6 + $0xadc] sm:$0xf]
    %v2050 = vld [vmem:[#allocation6 + $0xae0] sm:$0xf]
    %v2051 = vld [vmem:[#allocation6 + $0xae4] sm:$0xf]
    %v2052 = vld [vmem:[#allocation6 + $0xae8] sm:$0xf]
    %v2053 = vld [vmem:[#allocation6 + $0xaec] sm:$0xf]
    %v2054 = vld [vmem:[#allocation6 + $0xaf0] sm:$0xf]
    %v2055 = vld [vmem:[#allocation6 + $0xaf4] sm:$0xf]
    %v2056 = vld [vmem:[#allocation6 + $0xaf8] sm:$0xf]
    %v2057 = vld [vmem:[#allocation6 + $0xafc] sm:$0xf]
    %v2058 = vld [vmem:[#allocation6 + $0xb00] sm:$0xf]
    %v2059 = vld [vmem:[#allocation6 + $0xb04] sm:$0xf]
    %v2060 = vld [vmem:[#allocation6 + $0xb08] sm:$0xf]
    %v2061 = vld [vmem:[#allocation6 + $0xb0c] sm:$0xf]
    %v2062 = vld [vmem:[#allocation6 + $0xb10] sm:$0xf]
    %v2063 = vld [vmem:[#allocation6 + $0xb14] sm:$0xf]
    %v2064 = vld [vmem:[#allocation6 + $0xb18] sm:$0xf]
    %v2065 = vld [vmem:[#allocation6 + $0xb1c] sm:$0xf]
    %v2066 = vld [vmem:[#allocation6 + $0xb20] sm:$0xf]
    %v2067 = vld [vmem:[#allocation6 + $0xb24] sm:$0xf]
    %v2068 = vld [vmem:[#allocation6 + $0xb28] sm:$0xf]
    %v2069 = vld [vmem:[#allocation6 + $0xb2c] sm:$0xf]
    %v2070 = vld [vmem:[#allocation6 + $0xb30] sm:$0xf]
    %v2071 = vld [vmem:[#allocation6 + $0xb34] sm:$0xf]
    %v2072 = vld [vmem:[#allocation6 + $0xb38] sm:$0xf]
    %v2073 = vld [vmem:[#allocation6 + $0xb3c] sm:$0xf]
    %v2074 = vld [vmem:[#allocation6 + $0xb40] sm:$0xf]
    %v2075 = vld [vmem:[#allocation6 + $0xb44] sm:$0xf]
    %v2076 = vld [vmem:[#allocation6 + $0xb48] sm:$0xf]
    %v2077 = vld [vmem:[#allocation6 + $0xb4c] sm:$0xf]
    %v2078 = vld [vmem:[#allocation6 + $0xb50] sm:$0xf]
    %v2079 = vld [vmem:[#allocation6 + $0xb54] sm:$0xf]
    %v2080 = vld [vmem:[#allocation6 + $0xb58] sm:$0xf]
    %v2081 = vld [vmem:[#allocation6 + $0xb5c] sm:$0xf]
    %v2082 = vld [vmem:[#allocation6 + $0xb60] sm:$0xf]
    %v2083 = vld [vmem:[#allocation6 + $0xb64] sm:$0xf]
    %v2084 = vld [vmem:[#allocation6 + $0xb68] sm:$0xf]
    %v2085 = vld [vmem:[#allocation6 + $0xb6c] sm:$0xf]
    %v2086 = vld [vmem:[#allocation6 + $0xb70] sm:$0xf]
    %v2087 = vld [vmem:[#allocation6 + $0xb74] sm:$0xf]
    %v2088 = vld [vmem:[#allocation6 + $0xb78] sm:$0xf]
    %v2089 = vld [vmem:[#allocation6 + $0xb7c] sm:$0xf]
    %v2090 = vld [vmem:[#allocation6 + $0xb80] sm:$0xf]
    %v2091 = vld [vmem:[#allocation6 + $0xb84] sm:$0xf]
    %v2092 = vld [vmem:[#allocation6 + $0xb88] sm:$0xf]
    %v2093 = vld [vmem:[#allocation6 + $0xb8c] sm:$0xf]
    %v2094 = vld [vmem:[#allocation6 + $0xb90] sm:$0xf]
    %v2095 = vld [vmem:[#allocation6 + $0xb94] sm:$0xf]
    %v2096 = vld [vmem:[#allocation6 + $0xb98] sm:$0xf]
    %v2097 = vld [vmem:[#allocation6 + $0xb9c] sm:$0xf]
    %v2098 = vld [vmem:[#allocation6 + $0xba0] sm:$0xf]
    %v2099 = vld [vmem:[#allocation6 + $0xba4] sm:$0xf]
    %v2100 = vld [vmem:[#allocation6 + $0xba8] sm:$0xf]
    %v2101 = vld [vmem:[#allocation6 + $0xbac] sm:$0xf]
    %v2102 = vld [vmem:[#allocation6 + $0xbb0] sm:$0xf]
    %v2103 = vld [vmem:[#allocation6 + $0xbb4] sm:$0xf]
    %v2104 = vld [vmem:[#allocation6 + $0xbb8] sm:$0xf]
    %v2105 = vld [vmem:[#allocation6 + $0xbbc] sm:$0xf]
    %v2106 = vld [vmem:[#allocation6 + $0xbc0] sm:$0xf]
    %v2107 = vld [vmem:[#allocation6 + $0xbc4] sm:$0xf]
    %v2108 = vld [vmem:[#allocation6 + $0xbc8] sm:$0xf]
    %v2109 = vld [vmem:[#allocation6 + $0xbcc] sm:$0xf]
    %v2110 = vld [vmem:[#allocation6 + $0xbd0] sm:$0xf]
    %v2111 = vld [vmem:[#allocation6 + $0xbd4] sm:$0xf]
    %v2112 = vld [vmem:[#allocation6 + $0xbd8] sm:$0xf]
    %v2113 = vld [vmem:[#allocation6 + $0xbdc] sm:$0xf]
    %v2114 = vld [vmem:[#allocation6 + $0xbe0] sm:$0xf]
    %v2115 = vld [vmem:[#allocation6 + $0xbe4] sm:$0xf]
    %v2116 = vld [vmem:[#allocation6 + $0xbe8] sm:$0xf]
    %v2117 = vld [vmem:[#allocation6 + $0xbec] sm:$0xf]
    %v2118 = vld [vmem:[#allocation6 + $0xbf0] sm:$0xf]
    %v2119 = vld [vmem:[#allocation6 + $0xbf4] sm:$0xf]
    %v2120 = vld [vmem:[#allocation6 + $0xbf8] sm:$0xf]
    %v2121 = vld [vmem:[#allocation6 + $0xbfc] sm:$0xf]
    %v2122 = vld [vmem:[#allocation6 + $0xc00] sm:$0xf]
    %v2123 = vld [vmem:[#allocation6 + $0xc04] sm:$0xf]
    %v2124 = vld [vmem:[#allocation6 + $0xc08] sm:$0xf]
    %v2125 = vld [vmem:[#allocation6 + $0xc0c] sm:$0xf]
    %v2126 = vld [vmem:[#allocation6 + $0xc10] sm:$0xf]
    %v2127 = vld [vmem:[#allocation6 + $0xc14] sm:$0xf]
    %v2128 = vld [vmem:[#allocation6 + $0xc18] sm:$0xf]
    %v2129 = vld [vmem:[#allocation6 + $0xc1c] sm:$0xf]
    %v2130 = vld [vmem:[#allocation6 + $0xc20] sm:$0xf]
    %v2131 = vld [vmem:[#allocation6 + $0xc24] sm:$0xf]
    %v2132 = vld [vmem:[#allocation6 + $0xc28] sm:$0xf]
    %v2133 = vld [vmem:[#allocation6 + $0xc2c] sm:$0xf]
    %v2134 = vld [vmem:[#allocation6 + $0xc30] sm:$0xf]
    %v2135 = vld [vmem:[#allocation6 + $0xc34] sm:$0xf]
    %v2136 = vld [vmem:[#allocation6 + $0xc38] sm:$0xf]
    %v2137 = vld [vmem:[#allocation6 + $0xc3c] sm:$0xf]
    %v2138 = vld [vmem:[#allocation6 + $0xc40] sm:$0xf]
    %v2139 = vld [vmem:[#allocation6 + $0xc44] sm:$0xf]
    %v2140 = vld [vmem:[#allocation6 + $0xc48] sm:$0xf]
    %v2141 = vld [vmem:[#allocation6 + $0xc4c] sm:$0xf]
    %v2142 = vld [vmem:[#allocation6 + $0xc50] sm:$0xf]
    %v2143 = vld [vmem:[#allocation6 + $0xc54] sm:$0xf]
    %v2144 = vld [vmem:[#allocation6 + $0xc58] sm:$0xf]
    %v2145 = vld [vmem:[#allocation6 + $0xc5c] sm:$0xf]
    %v2146 = vld [vmem:[#allocation6 + $0xc60] sm:$0xf]
    %v2147 = vld [vmem:[#allocation6 + $0xc64] sm:$0xf]
    %v2148 = vld [vmem:[#allocation6 + $0xc68] sm:$0xf]
    %v2149 = vld [vmem:[#allocation6 + $0xc6c] sm:$0xf]
    %v2150 = vld [vmem:[#allocation6 + $0xc70] sm:$0xf]
    %v2151 = vld [vmem:[#allocation6 + $0xc74] sm:$0xf]
    %v2152 = vld [vmem:[#allocation6 + $0xc78] sm:$0xf]
    %v2153 = vld [vmem:[#allocation6 + $0xc7c] sm:$0xf]
    %v2154 = vld [vmem:[#allocation6 + $0xc80] sm:$0xf]
    %v2155 = vld [vmem:[#allocation6 + $0xc84] sm:$0xf]
    %v2156 = vld [vmem:[#allocation6 + $0xc88] sm:$0xf]
    %v2157 = vld [vmem:[#allocation6 + $0xc8c] sm:$0xf]
    %v2158 = vld [vmem:[#allocation6 + $0xc90] sm:$0xf]
    %v2159 = vld [vmem:[#allocation6 + $0xc94] sm:$0xf]
    %v2160 = vld [vmem:[#allocation6 + $0xc98] sm:$0xf]
    %v2161 = vld [vmem:[#allocation6 + $0xc9c] sm:$0xf]
    %v2162 = vld [vmem:[#allocation6 + $0xca0] sm:$0xf]
    %v2163 = vld [vmem:[#allocation6 + $0xca4] sm:$0xf]
    %v2164 = vld [vmem:[#allocation6 + $0xca8] sm:$0xf]
    %v2165 = vld [vmem:[#allocation6 + $0xcac] sm:$0xf]
    %v2166 = vld [vmem:[#allocation6 + $0xcb0] sm:$0xf]
    %v2167 = vld [vmem:[#allocation6 + $0xcb4] sm:$0xf]
    %v2168 = vld [vmem:[#allocation6 + $0xcb8] sm:$0xf]
    %v2169 = vld [vmem:[#allocation6 + $0xcbc] sm:$0xf]
    %v2170 = vld [vmem:[#allocation6 + $0xcc0] sm:$0xf]
    %v2171 = vld [vmem:[#allocation6 + $0xcc4] sm:$0xf]
    %v2172 = vld [vmem:[#allocation6 + $0xcc8] sm:$0xf]
    %v2173 = vld [vmem:[#allocation6 + $0xccc] sm:$0xf]
    %v2174 = vld [vmem:[#allocation6 + $0xcd0] sm:$0xf]
    %v2175 = vld [vmem:[#allocation6 + $0xcd4] sm:$0xf]
    %v2176 = vld [vmem:[#allocation6 + $0xcd8] sm:$0xf]
    %v2177 = vld [vmem:[#allocation6 + $0xcdc] sm:$0xf]
    %v2178 = vld [vmem:[#allocation6 + $0xce0] sm:$0xf]
    %v2179 = vld [vmem:[#allocation6 + $0xce4] sm:$0xf]
    %v2180 = vld [vmem:[#allocation6 + $0xce8] sm:$0xf]
    %v2181 = vld [vmem:[#allocation6 + $0xcec] sm:$0xf]
    %v2182 = vld [vmem:[#allocation6 + $0xcf0] sm:$0xf]
    %v2183 = vld [vmem:[#allocation6 + $0xcf4] sm:$0xf]
    %v2184 = vld [vmem:[#allocation6 + $0xcf8] sm:$0xf]
    %v2185 = vld [vmem:[#allocation6 + $0xcfc] sm:$0xf]
    %v2186 = vld [vmem:[#allocation6 + $0xd00] sm:$0xf]
    %v2187 = vld [vmem:[#allocation6 + $0xd04] sm:$0xf]
    %v2188 = vld [vmem:[#allocation6 + $0xd08] sm:$0xf]
    %v2189 = vld [vmem:[#allocation6 + $0xd0c] sm:$0xf]
    %v2190 = vld [vmem:[#allocation6 + $0xd10] sm:$0xf]
    %v2191 = vld [vmem:[#allocation6 + $0xd14] sm:$0xf]
    %v2192 = vld [vmem:[#allocation6 + $0xd18] sm:$0xf]
    %v2193 = vld [vmem:[#allocation6 + $0xd1c] sm:$0xf]
    %v2194 = vld [vmem:[#allocation6 + $0xd20] sm:$0xf]
    %v2195 = vld [vmem:[#allocation6 + $0xd24] sm:$0xf]
    %v2196 = vld [vmem:[#allocation6 + $0xd28] sm:$0xf]
    %v2197 = vld [vmem:[#allocation6 + $0xd2c] sm:$0xf]
    %v2198 = vld [vmem:[#allocation6 + $0xd30] sm:$0xf]
    %v2199 = vld [vmem:[#allocation6 + $0xd34] sm:$0xf]
    %v2200 = vld [vmem:[#allocation6 + $0xd38] sm:$0xf]
    %v2201 = vld [vmem:[#allocation6 + $0xd3c] sm:$0xf]
    %v2202 = vld [vmem:[#allocation6 + $0xd40] sm:$0xf]
    %v2203 = vld [vmem:[#allocation6 + $0xd44] sm:$0xf]
    %v2204 = vld [vmem:[#allocation6 + $0xd48] sm:$0xf]
    %v2205 = vld [vmem:[#allocation6 + $0xd4c] sm:$0xf]
    %v2206 = vld [vmem:[#allocation6 + $0xd50] sm:$0xf]
    %v2207 = vld [vmem:[#allocation6 + $0xd54] sm:$0xf]
    %v2208 = vld [vmem:[#allocation6 + $0xd58] sm:$0xf]
    %v2209 = vld [vmem:[#allocation6 + $0xd5c] sm:$0xf]
    %v2210 = vld [vmem:[#allocation6 + $0xd60] sm:$0xf]
    %v2211 = vld [vmem:[#allocation6 + $0xd64] sm:$0xf]
    %v2212 = vld [vmem:[#allocation6 + $0xd68] sm:$0xf]
    %v2213 = vld [vmem:[#allocation6 + $0xd6c] sm:$0xf]
    %v2214 = vld [vmem:[#allocation6 + $0xd70] sm:$0xf]
    %v2215 = vld [vmem:[#allocation6 + $0xd74] sm:$0xf]
    %v2216 = vld [vmem:[#allocation6 + $0xd78] sm:$0xf]
    %v2217 = vld [vmem:[#allocation6 + $0xd7c] sm:$0xf]
    %v2218 = vld [vmem:[#allocation6 + $0xd80] sm:$0xf]
    %v2219 = vld [vmem:[#allocation6 + $0xd84] sm:$0xf]
    %v2220 = vld [vmem:[#allocation6 + $0xd88] sm:$0xf]
    %v2221 = vld [vmem:[#allocation6 + $0xd8c] sm:$0xf]
    %v2222 = vld [vmem:[#allocation6 + $0xd90] sm:$0xf]
    %v2223 = vld [vmem:[#allocation6 + $0xd94] sm:$0xf]
    %v2224 = vld [vmem:[#allocation6 + $0xd98] sm:$0xf]
    %v2225 = vld [vmem:[#allocation6 + $0xd9c] sm:$0xf]
    %v2226 = vld [vmem:[#allocation6 + $0xda0] sm:$0xf]
    %v2227 = vld [vmem:[#allocation6 + $0xda4] sm:$0xf]
    %v2228 = vld [vmem:[#allocation6 + $0xda8] sm:$0xf]
    %v2229 = vld [vmem:[#allocation6 + $0xdac] sm:$0xf]
    %v2230 = vld [vmem:[#allocation6 + $0xdb0] sm:$0xf]
    %v2231 = vld [vmem:[#allocation6 + $0xdb4] sm:$0xf]
    %v2232 = vld [vmem:[#allocation6 + $0xdb8] sm:$0xf]
    %v2233 = vld [vmem:[#allocation6 + $0xdbc] sm:$0xf]
    %v2234 = vld [vmem:[#allocation6 + $0xdc0] sm:$0xf]
    %v2235 = vld [vmem:[#allocation6 + $0xdc4] sm:$0xf]
    %v2236 = vld [vmem:[#allocation6 + $0xdc8] sm:$0xf]
    %v2237 = vld [vmem:[#allocation6 + $0xdcc] sm:$0xf]
    %v2238 = vld [vmem:[#allocation6 + $0xdd0] sm:$0xf]
    %v2239 = vld [vmem:[#allocation6 + $0xdd4] sm:$0xf]
    %v2240 = vld [vmem:[#allocation6 + $0xdd8] sm:$0xf]
    %v2241 = vld [vmem:[#allocation6 + $0xddc] sm:$0xf]
    %v2242 = vld [vmem:[#allocation6 + $0xde0] sm:$0xf]
    %v2243 = vld [vmem:[#allocation6 + $0xde4] sm:$0xf]
    %v2244 = vld [vmem:[#allocation6 + $0xde8] sm:$0xf]
    %v2245 = vld [vmem:[#allocation6 + $0xdec] sm:$0xf]
    %v2246 = vld [vmem:[#allocation6 + $0xdf0] sm:$0xf]
    %v2247 = vld [vmem:[#allocation6 + $0xdf4] sm:$0xf]
    %v2248 = vld [vmem:[#allocation6 + $0xdf8] sm:$0xf]
    %v2249 = vld [vmem:[#allocation6 + $0xdfc] sm:$0xf]
    %v2250 = vld [vmem:[#allocation6 + $0xe00] sm:$0xf]
    %v2251 = vld [vmem:[#allocation6 + $0xe04] sm:$0xf]
    %v2252 = vld [vmem:[#allocation6 + $0xe08] sm:$0xf]
    %v2253 = vld [vmem:[#allocation6 + $0xe0c] sm:$0xf]
    %v2254 = vld [vmem:[#allocation6 + $0xe10] sm:$0xf]
    %v2255 = vld [vmem:[#allocation6 + $0xe14] sm:$0xf]
    %v2256 = vld [vmem:[#allocation6 + $0xe18] sm:$0xf]
    %v2257 = vld [vmem:[#allocation6 + $0xe1c] sm:$0xf]
    %v2258 = vld [vmem:[#allocation6 + $0xe20] sm:$0xf]
    %v2259 = vld [vmem:[#allocation6 + $0xe24] sm:$0xf]
    %v2260 = vld [vmem:[#allocation6 + $0xe28] sm:$0xf]
    %v2261 = vld [vmem:[#allocation6 + $0xe2c] sm:$0xf]
    %v2262 = vld [vmem:[#allocation6 + $0xe30] sm:$0xf]
    %v2263 = vld [vmem:[#allocation6 + $0xe34] sm:$0xf]
    %v2264 = vld [vmem:[#allocation6 + $0xe38] sm:$0xf]
    %v2265 = vld [vmem:[#allocation6 + $0xe3c] sm:$0xf]
    %v2266 = vld [vmem:[#allocation6 + $0xe40] sm:$0xf]
    %v2267 = vld [vmem:[#allocation6 + $0xe44] sm:$0xf]
    %v2268 = vld [vmem:[#allocation6 + $0xe48] sm:$0xf]
    %v2269 = vld [vmem:[#allocation6 + $0xe4c] sm:$0xf]
    %v2270 = vld [vmem:[#allocation6 + $0xe50] sm:$0xf]
    %v2271 = vld [vmem:[#allocation6 + $0xe54] sm:$0xf]
    %v2272 = vld [vmem:[#allocation6 + $0xe58] sm:$0xf]
    %v2273 = vld [vmem:[#allocation6 + $0xe5c] sm:$0xf]
    %v2274 = vld [vmem:[#allocation6 + $0xe60] sm:$0xf]
    %v2275 = vld [vmem:[#allocation6 + $0xe64] sm:$0xf]
    %v2276 = vld [vmem:[#allocation6 + $0xe68] sm:$0xf]
    %v2277 = vld [vmem:[#allocation6 + $0xe6c] sm:$0xf]
    %v2278 = vld [vmem:[#allocation6 + $0xe70] sm:$0xf]
    %v2279 = vld [vmem:[#allocation6 + $0xe74] sm:$0xf]
    %v2280 = vld [vmem:[#allocation6 + $0xe78] sm:$0xf]
    %v2281 = vld [vmem:[#allocation6 + $0xe7c] sm:$0xf]
    %v2282 = vld [vmem:[#allocation6 + $0xe80] sm:$0xf]
    %v2283 = vld [vmem:[#allocation6 + $0xe84] sm:$0xf]
    %v2284 = vld [vmem:[#allocation6 + $0xe88] sm:$0xf]
    %v2285 = vld [vmem:[#allocation6 + $0xe8c] sm:$0xf]
    %v2286 = vld [vmem:[#allocation6 + $0xe90] sm:$0xf]
    %v2287 = vld [vmem:[#allocation6 + $0xe94] sm:$0xf]
    %v2288 = vld [vmem:[#allocation6 + $0xe98] sm:$0xf]
    %v2289 = vld [vmem:[#allocation6 + $0xe9c] sm:$0xf]
    %v2290 = vld [vmem:[#allocation6 + $0xea0] sm:$0xf]
    %v2291 = vld [vmem:[#allocation6 + $0xea4] sm:$0xf]
    %v2292 = vld [vmem:[#allocation6 + $0xea8] sm:$0xf]
    %v2293 = vld [vmem:[#allocation6 + $0xeac] sm:$0xf]
    %v2294 = vld [vmem:[#allocation6 + $0xeb0] sm:$0xf]
    %v2295 = vld [vmem:[#allocation6 + $0xeb4] sm:$0xf]
    %v2296 = vld [vmem:[#allocation6 + $0xeb8] sm:$0xf]
    %v2297 = vld [vmem:[#allocation6 + $0xebc] sm:$0xf]
    %v2298 = vld [vmem:[#allocation6 + $0xec0] sm:$0xf]
    %v2299 = vld [vmem:[#allocation6 + $0xec4] sm:$0xf]
    %v2300 = vld [vmem:[#allocation6 + $0xec8] sm:$0xf]
    %v2301 = vld [vmem:[#allocation6 + $0xecc] sm:$0xf]
    %v2302 = vld [vmem:[#allocation6 + $0xed0] sm:$0xf]
    %v2303 = vld [vmem:[#allocation6 + $0xed4] sm:$0xf]
    %v2304 = vld [vmem:[#allocation6 + $0xed8] sm:$0xf]
    %v2305 = vld [vmem:[#allocation6 + $0xedc] sm:$0xf]
    %v2306 = vld [vmem:[#allocation6 + $0xee0] sm:$0xf]
    %v2307 = vld [vmem:[#allocation6 + $0xee4] sm:$0xf]
    %v2308 = vld [vmem:[#allocation6 + $0xee8] sm:$0xf]
    %v2309 = vld [vmem:[#allocation6 + $0xeec] sm:$0xf]
    %v2310 = vld [vmem:[#allocation6 + $0xef0] sm:$0xf]
    %v2311 = vld [vmem:[#allocation6 + $0xef4] sm:$0xf]
    %v2312 = vld [vmem:[#allocation6 + $0xef8] sm:$0xf]
    %v2313 = vld [vmem:[#allocation6 + $0xefc] sm:$0xf]
    %v2314 = vld [vmem:[#allocation6 + $0xf00] sm:$0xf]
    %v2315 = vld [vmem:[#allocation6 + $0xf04] sm:$0xf]
    %v2316 = vld [vmem:[#allocation6 + $0xf08] sm:$0xf]
    %v2317 = vld [vmem:[#allocation6 + $0xf0c] sm:$0xf]
    %v2318 = vld [vmem:[#allocation6 + $0xf10] sm:$0xf]
    %v2319 = vld [vmem:[#allocation6 + $0xf14] sm:$0xf]
    %v2320 = vld [vmem:[#allocation6 + $0xf18] sm:$0xf]
    %v2321 = vld [vmem:[#allocation6 + $0xf1c] sm:$0xf]
    %v2322 = vld [vmem:[#allocation6 + $0xf20] sm:$0xf]
    %v2323 = vld [vmem:[#allocation6 + $0xf24] sm:$0xf]
    %v2324 = vld [vmem:[#allocation6 + $0xf28] sm:$0xf]
    %v2325 = vld [vmem:[#allocation6 + $0xf2c] sm:$0xf]
    %v2326 = vld [vmem:[#allocation6 + $0xf30] sm:$0xf]
    %v2327 = vld [vmem:[#allocation6 + $0xf34] sm:$0xf]
    %v2328 = vld [vmem:[#allocation6 + $0xf38] sm:$0xf]
    %v2329 = vld [vmem:[#allocation6 + $0xf3c] sm:$0xf]
    %v2330 = vld [vmem:[#allocation6 + $0xf40] sm:$0xf]
    %v2331 = vld [vmem:[#allocation6 + $0xf44] sm:$0xf]
    %v2332 = vld [vmem:[#allocation6 + $0xf48] sm:$0xf]
    %v2333 = vld [vmem:[#allocation6 + $0xf4c] sm:$0xf]
    %v2334 = vld [vmem:[#allocation6 + $0xf50] sm:$0xf]
    %v2335 = vld [vmem:[#allocation6 + $0xf54] sm:$0xf]
    %v2336 = vld [vmem:[#allocation6 + $0xf58] sm:$0xf]
    %v2337 = vld [vmem:[#allocation6 + $0xf5c] sm:$0xf]
    %v2338 = vld [vmem:[#allocation6 + $0xf60] sm:$0xf]
    %v2339 = vld [vmem:[#allocation6 + $0xf64] sm:$0xf]
    %v2340 = vld [vmem:[#allocation6 + $0xf68] sm:$0xf]
    %v2341 = vld [vmem:[#allocation6 + $0xf6c] sm:$0xf]
    %v2342 = vld [vmem:[#allocation6 + $0xf70] sm:$0xf]
    %v2343 = vld [vmem:[#allocation6 + $0xf74] sm:$0xf]
    %v2344 = vld [vmem:[#allocation6 + $0xf78] sm:$0xf]
    %v2345 = vld [vmem:[#allocation6 + $0xf7c] sm:$0xf]
    %v2346 = vld [vmem:[#allocation6 + $0xf80] sm:$0xf]
    %v2347 = vld [vmem:[#allocation6 + $0xf84] sm:$0xf]
    %v2348 = vld [vmem:[#allocation6 + $0xf88] sm:$0xf]
    %v2349 = vld [vmem:[#allocation6 + $0xf8c] sm:$0xf]
    %v2350 = vld [vmem:[#allocation6 + $0xf90] sm:$0xf]
    %v2351 = vld [vmem:[#allocation6 + $0xf94] sm:$0xf]
    %v2352 = vld [vmem:[#allocation6 + $0xf98] sm:$0xf]
    %v2353 = vld [vmem:[#allocation6 + $0xf9c] sm:$0xf]
    %v2354 = vld [vmem:[#allocation6 + $0xfa0] sm:$0xf]
    %v2355 = vld [vmem:[#allocation6 + $0xfa4] sm:$0xf]
    %v2356 = vld [vmem:[#allocation6 + $0xfa8] sm:$0xf]
    %v2357 = vld [vmem:[#allocation6 + $0xfac] sm:$0xf]
    %v2358 = vld [vmem:[#allocation6 + $0xfb0] sm:$0xf]
    %v2359 = vld [vmem:[#allocation6 + $0xfb4] sm:$0xf]
    %v2360 = vld [vmem:[#allocation6 + $0xfb8] sm:$0xf]
    %v2361 = vld [vmem:[#allocation6 + $0xfbc] sm:$0xf]
    %v2362 = vld [vmem:[#allocation6 + $0xfc0] sm:$0xf]
    %v2363 = vld [vmem:[#allocation6 + $0xfc4] sm:$0xf]
    %v2364 = vld [vmem:[#allocation6 + $0xfc8] sm:$0xf]
    %v2365 = vld [vmem:[#allocation6 + $0xfcc] sm:$0xf]
    %v2366 = vld [vmem:[#allocation6 + $0xfd0] sm:$0xf]
    %v2367 = vld [vmem:[#allocation6 + $0xfd4] sm:$0xf]
    %v2368 = vld [vmem:[#allocation6 + $0xfd8] sm:$0xf]
    %v2369 = vld [vmem:[#allocation6 + $0xfdc] sm:$0xf]
    %v2370 = vld [vmem:[#allocation6 + $0xfe0] sm:$0xf]
    %v2371 = vld [vmem:[#allocation6 + $0xfe4] sm:$0xf]
    %v2372 = vld [vmem:[#allocation6 + $0xfe8] sm:$0xf]
    %v2373 = vld [vmem:[#allocation6 + $0xfec] sm:$0xf]
    %v2374 = vld [vmem:[#allocation6 + $0xff0] sm:$0xf]
    %v2375 = vld [vmem:[#allocation6 + $0xff4] sm:$0xf]
    %v2376 = vld [vmem:[#allocation6 + $0xff8] sm:$0xf]
    %v2377 = vld [vmem:[#allocation6 + $0xffc] sm:$0xf]
    %v2378 = vld [vmem:[#allocation6 + $0x1000] sm:$0xf]
    %v2379 = vld [vmem:[#allocation6 + $0x1004] sm:$0xf]
    %v2380 = vld [vmem:[#allocation6 + $0x1008] sm:$0xf]
    %v2381 = vld [vmem:[#allocation6 + $0x100c] sm:$0xf]
    %v2382 = vld [vmem:[#allocation6 + $0x1010] sm:$0xf]
    %v2383 = vld [vmem:[#allocation6 + $0x1014] sm:$0xf]
    %v2384 = vld [vmem:[#allocation6 + $0x1018] sm:$0xf]
    %v2385 = vld [vmem:[#allocation6 + $0x101c] sm:$0xf]
    %v2386 = vld [vmem:[#allocation6 + $0x1020] sm:$0xf]
    %v2387 = vld [vmem:[#allocation6 + $0x1024] sm:$0xf]
    %v2388 = vld [vmem:[#allocation6 + $0x1028] sm:$0xf]
    %v2389 = vld [vmem:[#allocation6 + $0x102c] sm:$0xf]
    %v2390 = vld [vmem:[#allocation6 + $0x1030] sm:$0xf]
    %v2391 = vld [vmem:[#allocation6 + $0x1034] sm:$0xf]
    %v2392 = vld [vmem:[#allocation6 + $0x1038] sm:$0xf]
    %v2393 = vld [vmem:[#allocation6 + $0x103c] sm:$0xf]
    %v2394 = vld [vmem:[#allocation6 + $0x1040] sm:$0xf]
    %v2395 = vld [vmem:[#allocation6 + $0x1044] sm:$0xf]
    %v2396 = vld [vmem:[#allocation6 + $0x1048] sm:$0xf]
    %v2397 = vld [vmem:[#allocation6 + $0x104c] sm:$0xf]
    %v2398 = vld [vmem:[#allocation6 + $0x1050] sm:$0xf]
    %v2399 = vld [vmem:[#allocation6 + $0x1054] sm:$0xf]
    %v2400 = vld [vmem:[#allocation6 + $0x1058] sm:$0xf]
    %v2401 = vld [vmem:[#allocation6 + $0x105c] sm:$0xf]
    %v2402 = vld [vmem:[#allocation6 + $0x1060] sm:$0xf]
    %v2403 = vld [vmem:[#allocation6 + $0x1064] sm:$0xf]
    %v2404 = vld [vmem:[#allocation6 + $0x1068] sm:$0xf]
    %v2405 = vld [vmem:[#allocation6 + $0x106c] sm:$0xf]
    %v2406 = vld [vmem:[#allocation6 + $0x1070] sm:$0xf]
    %v2407 = vld [vmem:[#allocation6 + $0x1074] sm:$0xf]
    %v2408 = vld [vmem:[#allocation6 + $0x1078] sm:$0xf]
    %v2409 = vld [vmem:[#allocation6 + $0x107c] sm:$0xf]
    %v2410 = vld [vmem:[#allocation6 + $0x1080] sm:$0xf]
    %v2411 = vld [vmem:[#allocation6 + $0x1084] sm:$0xf]
    %v2412 = vld [vmem:[#allocation6 + $0x1088] sm:$0xf]
    %v2413 = vld [vmem:[#allocation6 + $0x108c] sm:$0xf]
    %v2414 = vld [vmem:[#allocation6 + $0x1090] sm:$0xf]
    %v2415 = vld [vmem:[#allocation6 + $0x1094] sm:$0xf]
    %v2416 = vld [vmem:[#allocation6 + $0x1098] sm:$0xf]
    %v2417 = vld [vmem:[#allocation6 + $0x109c] sm:$0xf]
    %v2418 = vld [vmem:[#allocation6 + $0x10a0] sm:$0xf]
    %v2419 = vld [vmem:[#allocation6 + $0x10a4] sm:$0xf]
    %v2420 = vld [vmem:[#allocation6 + $0x10a8] sm:$0xf]
    %v2421 = vld [vmem:[#allocation6 + $0x10ac] sm:$0xf]
    %v2422 = vld [vmem:[#allocation6 + $0x10b0] sm:$0xf]
    %v2423 = vld [vmem:[#allocation6 + $0x10b4] sm:$0xf]
    %v2424 = vld [vmem:[#allocation6 + $0x10b8] sm:$0xf]
    %v2425 = vld [vmem:[#allocation6 + $0x10bc] sm:$0xf]
    %v2426 = vld [vmem:[#allocation6 + $0x10c0] sm:$0xf]
    %v2427 = vld [vmem:[#allocation6 + $0x10c4] sm:$0xf]
    %v2428 = vld [vmem:[#allocation6 + $0x10c8] sm:$0xf]
    %v2429 = vld [vmem:[#allocation6 + $0x10cc] sm:$0xf]
    %v2430 = vld [vmem:[#allocation6 + $0x10d0] sm:$0xf]
    %v2431 = vld [vmem:[#allocation6 + $0x10d4] sm:$0xf]
    %v2432 = vld [vmem:[#allocation6 + $0x10d8] sm:$0xf]
    %v2433 = vld [vmem:[#allocation6 + $0x10dc] sm:$0xf]
    %v2434 = vld [vmem:[#allocation6 + $0x10e0] sm:$0xf]
    %v2435 = vld [vmem:[#allocation6 + $0x10e4] sm:$0xf]
    %v2436 = vld [vmem:[#allocation6 + $0x10e8] sm:$0xf]
    %v2437 = vld [vmem:[#allocation6 + $0x10ec] sm:$0xf]
    %v2438 = vld [vmem:[#allocation6 + $0x10f0] sm:$0xf]
    %v2439 = vld [vmem:[#allocation6 + $0x10f4] sm:$0xf]
    %v2440 = vld [vmem:[#allocation6 + $0x10f8] sm:$0xf]
    %v2441 = vld [vmem:[#allocation6 + $0x10fc] sm:$0xf]
    %v2442 = vld [vmem:[#allocation6 + $0x1100] sm:$0xf]
    %v2443 = vld [vmem:[#allocation6 + $0x1104] sm:$0xf]
    %v2444 = vld [vmem:[#allocation6 + $0x1108] sm:$0xf]
    %v2445 = vld [vmem:[#allocation6 + $0x110c] sm:$0xf]
    %v2446 = vld [vmem:[#allocation6 + $0x1110] sm:$0xf]
    %v2447 = vld [vmem:[#allocation6 + $0x1114] sm:$0xf]
    %v2448 = vld [vmem:[#allocation6 + $0x1118] sm:$0xf]
    %v2449 = vld [vmem:[#allocation6 + $0x111c] sm:$0xf]
    %v2450 = vld [vmem:[#allocation6 + $0x1120] sm:$0xf]
    %v2451 = vld [vmem:[#allocation6 + $0x1124] sm:$0xf]
    %v2452 = vld [vmem:[#allocation6 + $0x1128] sm:$0xf]
    %v2453 = vld [vmem:[#allocation6 + $0x112c] sm:$0xf]
    %v2454 = vld [vmem:[#allocation6 + $0x1130] sm:$0xf]
    %v2455 = vld [vmem:[#allocation6 + $0x1134] sm:$0xf]
    %v2456 = vld [vmem:[#allocation6 + $0x1138] sm:$0xf]
    %v2457 = vld [vmem:[#allocation6 + $0x113c] sm:$0xf]
    %v2458 = vld [vmem:[#allocation6 + $0x1140] sm:$0xf]
    %v2459 = vld [vmem:[#allocation6 + $0x1144] sm:$0xf]
    %v2460 = vld [vmem:[#allocation6 + $0x1148] sm:$0xf]
    %v2461 = vld [vmem:[#allocation6 + $0x114c] sm:$0xf]
    %v2462 = vld [vmem:[#allocation6 + $0x1150] sm:$0xf]
    %v2463 = vld [vmem:[#allocation6 + $0x1154] sm:$0xf]
    %v2464 = vld [vmem:[#allocation6 + $0x1158] sm:$0xf]
    %v2465 = vld [vmem:[#allocation6 + $0x115c] sm:$0xf]
    %v2466 = vld [vmem:[#allocation6 + $0x1160] sm:$0xf]
    %v2467 = vld [vmem:[#allocation6 + $0x1164] sm:$0xf]
    %v2468 = vld [vmem:[#allocation6 + $0x1168] sm:$0xf]
    %v2469 = vld [vmem:[#allocation6 + $0x116c] sm:$0xf]
    %v2470 = vld [vmem:[#allocation6 + $0x1170] sm:$0xf]
    %v2471 = vld [vmem:[#allocation6 + $0x1174] sm:$0xf]
    %v2472 = vld [vmem:[#allocation6 + $0x1178] sm:$0xf]
    %v2473 = vld [vmem:[#allocation6 + $0x117c] sm:$0xf]
    %v2474 = vld [vmem:[#allocation6 + $0x1180] sm:$0xf]
    %v2475 = vld [vmem:[#allocation6 + $0x1184] sm:$0xf]
    %v2476 = vld [vmem:[#allocation6 + $0x1188] sm:$0xf]
    %v2477 = vld [vmem:[#allocation6 + $0x118c] sm:$0xf]
    %v2478 = vld [vmem:[#allocation6 + $0x1190] sm:$0xf]
    %v2479 = vld [vmem:[#allocation6 + $0x1194] sm:$0xf]
    %v2480 = vld [vmem:[#allocation6 + $0x1198] sm:$0xf]
    %v2481 = vld [vmem:[#allocation6 + $0x119c] sm:$0xf]
    %v2482 = vld [vmem:[#allocation6 + $0x11a0] sm:$0xf]
    %v2483 = vld [vmem:[#allocation6 + $0x11a4] sm:$0xf]
    %v2484 = vld [vmem:[#allocation6 + $0x11a8] sm:$0xf]
    %v2485 = vld [vmem:[#allocation6 + $0x11ac] sm:$0xf]
    %v2486 = vld [vmem:[#allocation6 + $0x11b0] sm:$0xf]
    %v2487 = vld [vmem:[#allocation6 + $0x11b4] sm:$0xf]
    %v2488 = vld [vmem:[#allocation6 + $0x11b8] sm:$0xf]
    %v2489 = vld [vmem:[#allocation6 + $0x11bc] sm:$0xf]
    %v2490 = vld [vmem:[#allocation6 + $0x11c0] sm:$0xf]
    %v2491 = vld [vmem:[#allocation6 + $0x11c4] sm:$0xf]
    %v2492 = vld [vmem:[#allocation6 + $0x11c8] sm:$0xf]
    %v2493 = vld [vmem:[#allocation6 + $0x11cc] sm:$0xf]
    %v2494 = vld [vmem:[#allocation6 + $0x11d0] sm:$0xf]
    %v2495 = vld [vmem:[#allocation6 + $0x11d4] sm:$0xf]
    %v2496 = vld [vmem:[#allocation6 + $0x11d8] sm:$0xf]
    %v2497 = vld [vmem:[#allocation6 + $0x11dc] sm:$0xf]
    %v2498 = vld [vmem:[#allocation6 + $0x11e0] sm:$0xf]
    %v2499 = vld [vmem:[#allocation6 + $0x11e4] sm:$0xf]
    %v2500 = vld [vmem:[#allocation6 + $0x11e8] sm:$0xf]
    %v2501 = vld [vmem:[#allocation6 + $0x11ec] sm:$0xf]
    %v2502 = vld [vmem:[#allocation6 + $0x11f0] sm:$0xf]
    %v2503 = vld [vmem:[#allocation6 + $0x11f4] sm:$0xf]
    %v2504 = vld [vmem:[#allocation6 + $0x11f8] sm:$0xf]
    %v2505 = vld [vmem:[#allocation6 + $0x11fc] sm:$0xf]
    %v2506 = vld [vmem:[#allocation6 + $0x1200] sm:$0xf]
    %v2507 = vld [vmem:[#allocation6 + $0x1204] sm:$0xf]
    %v2508 = vld [vmem:[#allocation6 + $0x1208] sm:$0xf]
    %v2509 = vld [vmem:[#allocation6 + $0x120c] sm:$0xf]
    %v2510 = vld [vmem:[#allocation6 + $0x1210] sm:$0xf]
    %v2511 = vld [vmem:[#allocation6 + $0x1214] sm:$0xf]
    %v2512 = vld [vmem:[#allocation6 + $0x1218] sm:$0xf]
    %v2513 = vld [vmem:[#allocation6 + $0x121c] sm:$0xf]
    %v2514 = vld [vmem:[#allocation6 + $0x1220] sm:$0xf]
    %v2515 = vld [vmem:[#allocation6 + $0x1224] sm:$0xf]
    %v2516 = vld [vmem:[#allocation6 + $0x1228] sm:$0xf]
    %v2517 = vld [vmem:[#allocation6 + $0x122c] sm:$0xf]
    %v2518 = vld [vmem:[#allocation6 + $0x1230] sm:$0xf]
    %v2519 = vld [vmem:[#allocation6 + $0x1234] sm:$0xf]
    %v2520 = vld [vmem:[#allocation6 + $0x1238] sm:$0xf]
    %v2521 = vld [vmem:[#allocation6 + $0x123c] sm:$0xf]
    %v2522 = vld [vmem:[#allocation6 + $0x1240] sm:$0xf]
    %v2523 = vld [vmem:[#allocation6 + $0x1244] sm:$0xf]
    %v2524 = vld [vmem:[#allocation6 + $0x1248] sm:$0xf]
    %v2525 = vld [vmem:[#allocation6 + $0x124c] sm:$0xf]
    %v2526 = vld [vmem:[#allocation6 + $0x1250] sm:$0xf]
    %v2527 = vld [vmem:[#allocation6 + $0x1254] sm:$0xf]
    %v2528 = vld [vmem:[#allocation6 + $0x1258] sm:$0xf]
    %v2529 = vld [vmem:[#allocation6 + $0x125c] sm:$0xf]
    %v2530 = vld [vmem:[#allocation6 + $0x1260] sm:$0xf]
    %v2531 = vld [vmem:[#allocation6 + $0x1264] sm:$0xf]
    %v2532 = vld [vmem:[#allocation6 + $0x1268] sm:$0xf]
    %v2533 = vld [vmem:[#allocation6 + $0x126c] sm:$0xf]
    %v2534 = vld [vmem:[#allocation6 + $0x1270] sm:$0xf]
    %v2535 = vld [vmem:[#allocation6 + $0x1274] sm:$0xf]
    %v2536 = vld [vmem:[#allocation6 + $0x1278] sm:$0xf]
    %v2537 = vld [vmem:[#allocation6 + $0x127c] sm:$0xf]
    %v2538 = vld [vmem:[#allocation6 + $0x1280] sm:$0xf]
    %v2539 = vld [vmem:[#allocation6 + $0x1284] sm:$0xf]
    %v2540 = vld [vmem:[#allocation6 + $0x1288] sm:$0xf]
    %v2541 = vld [vmem:[#allocation6 + $0x128c] sm:$0xf]
    %v2542 = vld [vmem:[#allocation6 + $0x1290] sm:$0xf]
    %v2543 = vld [vmem:[#allocation6 + $0x1294] sm:$0xf]
    %v2544 = vld [vmem:[#allocation6 + $0x1298] sm:$0xf]
    %v2545 = vld [vmem:[#allocation6 + $0x129c] sm:$0xf]
    %v2546 = vld [vmem:[#allocation6 + $0x12a0] sm:$0xf]
    %v2547 = vld [vmem:[#allocation6 + $0x12a4] sm:$0xf]
    %v2548 = vld [vmem:[#allocation6 + $0x12a8] sm:$0xf]
    %v2549 = vld [vmem:[#allocation6 + $0x12ac] sm:$0xf]
    %v2550 = vld [vmem:[#allocation6 + $0x12b0] sm:$0xf]
    %v2551 = vld [vmem:[#allocation6 + $0x12b4] sm:$0xf]
    %v2552 = vld [vmem:[#allocation6 + $0x12b8] sm:$0xf]
    %v2553 = vld [vmem:[#allocation6 + $0x12bc] sm:$0xf]
    %v2554 = vld [vmem:[#allocation6 + $0x12c0] sm:$0xf]
    %v2555 = vld [vmem:[#allocation6 + $0x12c4] sm:$0xf]
    %v2556 = vld [vmem:[#allocation6 + $0x12c8] sm:$0xf]
    %v2557 = vld [vmem:[#allocation6 + $0x12cc] sm:$0xf]
    %v2558 = vld [vmem:[#allocation6 + $0x12d0] sm:$0xf]
    %v2559 = vld [vmem:[#allocation6 + $0x12d4] sm:$0xf]
    %v2560 = vld [vmem:[#allocation6 + $0x12d8] sm:$0xf]
    %v2561 = vld [vmem:[#allocation6 + $0x12dc] sm:$0xf]
    %v2562 = vld [vmem:[#allocation6 + $0x12e0] sm:$0xf]
    %v2563 = vld [vmem:[#allocation6 + $0x12e4] sm:$0xf]
    %v2564 = vld [vmem:[#allocation6 + $0x12e8] sm:$0xf]
    %v2565 = vld [vmem:[#allocation6 + $0x12ec] sm:$0xf]
    %v2566 = vld [vmem:[#allocation6 + $0x12f0] sm:$0xf]
    %v2567 = vld [vmem:[#allocation6 + $0x12f4] sm:$0xf]
    %v2568 = vld [vmem:[#allocation6 + $0x12f8] sm:$0xf]
    %v2569 = vld [vmem:[#allocation6 + $0x12fc] sm:$0xf]
    %v2570 = vld [vmem:[#allocation6 + $0x1300] sm:$0xf]
    %v2571 = vld [vmem:[#allocation6 + $0x1304] sm:$0xf]
    %v2572 = vld [vmem:[#allocation6 + $0x1308] sm:$0xf]
    %v2573 = vld [vmem:[#allocation6 + $0x130c] sm:$0xf]
    %v2574 = vld [vmem:[#allocation6 + $0x1310] sm:$0xf]
    %v2575 = vld [vmem:[#allocation6 + $0x1314] sm:$0xf]
    %v2576 = vld [vmem:[#allocation6 + $0x1318] sm:$0xf]
    %v2577 = vld [vmem:[#allocation6 + $0x131c] sm:$0xf]
    %v2578 = vld [vmem:[#allocation6 + $0x1320] sm:$0xf]
    %v2579 = vld [vmem:[#allocation6 + $0x1324] sm:$0xf]
    %v2580 = vld [vmem:[#allocation6 + $0x1328] sm:$0xf]
    %v2581 = vld [vmem:[#allocation6 + $0x132c] sm:$0xf]
    %v2582 = vld [vmem:[#allocation6 + $0x1330] sm:$0xf]
    %v2583 = vld [vmem:[#allocation6 + $0x1334] sm:$0xf]
    %v2584 = vld [vmem:[#allocation6 + $0x1338] sm:$0xf]
    %v2585 = vld [vmem:[#allocation6 + $0x133c] sm:$0xf]
    %v2586 = vld [vmem:[#allocation6 + $0x1340] sm:$0xf]
    %v2587 = vld [vmem:[#allocation6 + $0x1344] sm:$0xf]
    %v2588 = vld [vmem:[#allocation6 + $0x1348] sm:$0xf]
    %v2589 = vld [vmem:[#allocation6 + $0x134c] sm:$0xf]
    %v2590 = vld [vmem:[#allocation6 + $0x1350] sm:$0xf]
    %v2591 = vld [vmem:[#allocation6 + $0x1354] sm:$0xf]
    %v2592 = vld [vmem:[#allocation6 + $0x1358] sm:$0xf]
    %v2593 = vld [vmem:[#allocation6 + $0x135c] sm:$0xf]
    %v2594 = vld [vmem:[#allocation6 + $0x1360] sm:$0xf]
    %v2595 = vld [vmem:[#allocation6 + $0x1364] sm:$0xf]
    %v2596 = vld [vmem:[#allocation6 + $0x1368] sm:$0xf]
    %v2597 = vld [vmem:[#allocation6 + $0x136c] sm:$0xf]
    %v2598 = vld [vmem:[#allocation6 + $0x1370] sm:$0xf]
    %v2599 = vld [vmem:[#allocation6 + $0x1374] sm:$0xf]
    %v2600 = vld [vmem:[#allocation6 + $0x1378] sm:$0xf]
    %v2601 = vld [vmem:[#allocation6 + $0x137c] sm:$0xf]
    %v2602 = vld [vmem:[#allocation6 + $0x1380] sm:$0xf]
    %v2603 = vld [vmem:[#allocation6 + $0x1384] sm:$0xf]
    %v2604 = vld [vmem:[#allocation6 + $0x1388] sm:$0xf]
    %v2605 = vld [vmem:[#allocation6 + $0x138c] sm:$0xf]
    %v2606 = vld [vmem:[#allocation6 + $0x1390] sm:$0xf]
    %v2607 = vld [vmem:[#allocation6 + $0x1394] sm:$0xf]
    %v2608 = vld [vmem:[#allocation6 + $0x1398] sm:$0xf]
    %v2609 = vld [vmem:[#allocation6 + $0x139c] sm:$0xf]
    %v2610 = vld [vmem:[#allocation6 + $0x13a0] sm:$0xf]
    %v2611 = vld [vmem:[#allocation6 + $0x13a4] sm:$0xf]
    %v2612 = vld [vmem:[#allocation6 + $0x13a8] sm:$0xf]
    %v2613 = vld [vmem:[#allocation6 + $0x13ac] sm:$0xf]
    %v2614 = vld [vmem:[#allocation6 + $0x13b0] sm:$0xf]
    %v2615 = vld [vmem:[#allocation6 + $0x13b4] sm:$0xf]
    %v2616 = vld [vmem:[#allocation6 + $0x13b8] sm:$0xf]
    %v2617 = vld [vmem:[#allocation6 + $0x13bc] sm:$0xf]
    %v2618 = vld [vmem:[#allocation6 + $0x13c0] sm:$0xf]
    %v2619 = vld [vmem:[#allocation6 + $0x13c4] sm:$0xf]
    %v2620 = vld [vmem:[#allocation6 + $0x13c8] sm:$0xf]
    %v2621 = vld [vmem:[#allocation6 + $0x13cc] sm:$0xf]
    %v2622 = vld [vmem:[#allocation6 + $0x13d0] sm:$0xf]
    %v2623 = vld [vmem:[#allocation6 + $0x13d4] sm:$0xf]
    %v2624 = vld [vmem:[#allocation6 + $0x13d8] sm:$0xf]
    %v2625 = vld [vmem:[#allocation6 + $0x13dc] sm:$0xf]
    %v2626 = vld [vmem:[#allocation6 + $0x13e0] sm:$0xf]
    %v2627 = vld [vmem:[#allocation6 + $0x13e4] sm:$0xf]
    %v2628 = vld [vmem:[#allocation6 + $0x13e8] sm:$0xf]
    %v2629 = vld [vmem:[#allocation6 + $0x13ec] sm:$0xf]
    %v2630 = vld [vmem:[#allocation6 + $0x13f0] sm:$0xf]
    %v2631 = vld [vmem:[#allocation6 + $0x13f4] sm:$0xf]
    %v2632 = vld [vmem:[#allocation6 + $0x13f8] sm:$0xf]
    %v2633 = vld [vmem:[#allocation6 + $0x13fc] sm:$0xf]
    %v2634 = vld [vmem:[#allocation6 + $0x1400] sm:$0xf]
    %v2635 = vld [vmem:[#allocation6 + $0x1404] sm:$0xf]
    %v2636 = vld [vmem:[#allocation6 + $0x1408] sm:$0xf]
    %v2637 = vld [vmem:[#allocation6 + $0x140c] sm:$0xf]
    %v2638 = vld [vmem:[#allocation6 + $0x1410] sm:$0xf]
    %v2639 = vld [vmem:[#allocation6 + $0x1414] sm:$0xf]
    %v2640 = vld [vmem:[#allocation6 + $0x1418] sm:$0xf]
    %v2641 = vld [vmem:[#allocation6 + $0x141c] sm:$0xf]
    %v2642 = vld [vmem:[#allocation6 + $0x1420] sm:$0xf]
    %v2643 = vld [vmem:[#allocation6 + $0x1424] sm:$0xf]
    %v2644 = vld [vmem:[#allocation6 + $0x1428] sm:$0xf]
    %v2645 = vld [vmem:[#allocation6 + $0x142c] sm:$0xf]
    %v2646 = vld [vmem:[#allocation6 + $0x1430] sm:$0xf]
    %v2647 = vld [vmem:[#allocation6 + $0x1434] sm:$0xf]
    %v2648 = vld [vmem:[#allocation6 + $0x1438] sm:$0xf]
    %v2649 = vld [vmem:[#allocation6 + $0x143c] sm:$0xf]
    %v2650 = vld [vmem:[#allocation6 + $0x1440] sm:$0xf]
    %v2651 = vld [vmem:[#allocation6 + $0x1444] sm:$0xf]
    %v2652 = vld [vmem:[#allocation6 + $0x1448] sm:$0xf]
    %v2653 = vld [vmem:[#allocation6 + $0x144c] sm:$0xf]
    %v2654 = vld [vmem:[#allocation6 + $0x1450] sm:$0xf]
    %v2655 = vld [vmem:[#allocation6 + $0x1454] sm:$0xf]
    %v2656 = vld [vmem:[#allocation6 + $0x1458] sm:$0xf]
    %v2657 = vld [vmem:[#allocation6 + $0x145c] sm:$0xf]
    %v2658 = vld [vmem:[#allocation6 + $0x1460] sm:$0xf]
    %v2659 = vld [vmem:[#allocation6 + $0x1464] sm:$0xf]
    %v2660 = vld [vmem:[#allocation6 + $0x1468] sm:$0xf]
    %v2661 = vld [vmem:[#allocation6 + $0x146c] sm:$0xf]
    %v2662 = vld [vmem:[#allocation6 + $0x1470] sm:$0xf]
    %v2663 = vld [vmem:[#allocation6 + $0x1474] sm:$0xf]
    %v2664 = vld [vmem:[#allocation6 + $0x1478] sm:$0xf]
    %v2665 = vld [vmem:[#allocation6 + $0x147c] sm:$0xf]
    %v2666 = vld [vmem:[#allocation6 + $0x1480] sm:$0xf]
    %v2667 = vld [vmem:[#allocation6 + $0x1484] sm:$0xf]
    %v2668 = vld [vmem:[#allocation6 + $0x1488] sm:$0xf]
    %v2669 = vld [vmem:[#allocation6 + $0x148c] sm:$0xf]
    %v2670 = vld [vmem:[#allocation6 + $0x1490] sm:$0xf]
    %v2671 = vld [vmem:[#allocation6 + $0x1494] sm:$0xf]
    %v2672 = vld [vmem:[#allocation6 + $0x1498] sm:$0xf]
    %v2673 = vld [vmem:[#allocation6 + $0x149c] sm:$0xf]
    %v2674 = vld [vmem:[#allocation6 + $0x14a0] sm:$0xf]
    %v2675 = vld [vmem:[#allocation6 + $0x14a4] sm:$0xf]
    %v2676 = vld [vmem:[#allocation6 + $0x14a8] sm:$0xf]
    %v2677 = vld [vmem:[#allocation6 + $0x14ac] sm:$0xf]
    %v2678 = vld [vmem:[#allocation6 + $0x14b0] sm:$0xf]
    %v2679 = vld [vmem:[#allocation6 + $0x14b4] sm:$0xf]
    %v2680 = vld [vmem:[#allocation6 + $0x14b8] sm:$0xf]
    %v2681 = vld [vmem:[#allocation6 + $0x14bc] sm:$0xf]
    %v2682 = vld [vmem:[#allocation6 + $0x14c0] sm:$0xf]
    %v2683 = vld [vmem:[#allocation6 + $0x14c4] sm:$0xf]
    %v2684 = vld [vmem:[#allocation6 + $0x14c8] sm:$0xf]
    %v2685 = vld [vmem:[#allocation6 + $0x14cc] sm:$0xf]
    %v2686 = vld [vmem:[#allocation6 + $0x14d0] sm:$0xf]
    %v2687 = vld [vmem:[#allocation6 + $0x14d4] sm:$0xf]
    %v2688 = vld [vmem:[#allocation6 + $0x14d8] sm:$0xf]
    %v2689 = vld [vmem:[#allocation6 + $0x14dc] sm:$0xf]
    %v2690 = vld [vmem:[#allocation6 + $0x14e0] sm:$0xf]
    %v2691 = vld [vmem:[#allocation6 + $0x14e4] sm:$0xf]
    %v2692 = vld [vmem:[#allocation6 + $0x14e8] sm:$0xf]
    %v2693 = vld [vmem:[#allocation6 + $0x14ec] sm:$0xf]
    %v2694 = vld [vmem:[#allocation6 + $0x14f0] sm:$0xf]
    %v2695 = vld [vmem:[#allocation6 + $0x14f4] sm:$0xf]
    %v2696 = vld [vmem:[#allocation6 + $0x14f8] sm:$0xf]
    %v2697 = vld [vmem:[#allocation6 + $0x14fc] sm:$0xf]
    %v2698 = vld [vmem:[#allocation6 + $0x1500] sm:$0xf]
    %v2699 = vld [vmem:[#allocation6 + $0x1504] sm:$0xf]
    %v2700 = vld [vmem:[#allocation6 + $0x1508] sm:$0xf]
    %v2701 = vld [vmem:[#allocation6 + $0x150c] sm:$0xf]
    %v2702 = vld [vmem:[#allocation6 + $0x1510] sm:$0xf]
    %v2703 = vld [vmem:[#allocation6 + $0x1514] sm:$0xf]
    %v2704 = vld [vmem:[#allocation6 + $0x1518] sm:$0xf]
    %v2705 = vld [vmem:[#allocation6 + $0x151c] sm:$0xf]
    %v2706 = vld [vmem:[#allocation6 + $0x1520] sm:$0xf]
    %v2707 = vld [vmem:[#allocation6 + $0x1524] sm:$0xf]
    %v2708 = vld [vmem:[#allocation6 + $0x1528] sm:$0xf]
    %v2709 = vld [vmem:[#allocation6 + $0x152c] sm:$0xf]
    %v2710 = vld [vmem:[#allocation6 + $0x1530] sm:$0xf]
    %v2711 = vld [vmem:[#allocation6 + $0x1534] sm:$0xf]
    %v2712 = vld [vmem:[#allocation6 + $0x1538] sm:$0xf]
    %v2713 = vld [vmem:[#allocation6 + $0x153c] sm:$0xf]
    %v2714 = vld [vmem:[#allocation6 + $0x1540] sm:$0xf]
    %v2715 = vld [vmem:[#allocation6 + $0x1544] sm:$0xf]
    %v2716 = vld [vmem:[#allocation6 + $0x1548] sm:$0xf]
    %v2717 = vld [vmem:[#allocation6 + $0x154c] sm:$0xf]
    %v2718 = vld [vmem:[#allocation6 + $0x1550] sm:$0xf]
    %v2719 = vld [vmem:[#allocation6 + $0x1554] sm:$0xf]
    %v2720 = vld [vmem:[#allocation6 + $0x1558] sm:$0xf]
    %v2721 = vld [vmem:[#allocation6 + $0x155c] sm:$0xf]
    %v2722 = vld [vmem:[#allocation6 + $0x1560] sm:$0xf]
    %v2723 = vld [vmem:[#allocation6 + $0x1564] sm:$0xf]
    %v2724 = vld [vmem:[#allocation6 + $0x1568] sm:$0xf]
    %v2725 = vld [vmem:[#allocation6 + $0x156c] sm:$0xf]
    %v2726 = vld [vmem:[#allocation6 + $0x1570] sm:$0xf]
    %v2727 = vld [vmem:[#allocation6 + $0x1574] sm:$0xf]
    %v2728 = vld [vmem:[#allocation6 + $0x1578] sm:$0xf]
    %v2729 = vld [vmem:[#allocation6 + $0x157c] sm:$0xf]
    %v2730 = vld [vmem:[#allocation6 + $0x1580] sm:$0xf]
    %v2731 = vld [vmem:[#allocation6 + $0x1584] sm:$0xf]
    %v2732 = vld [vmem:[#allocation6 + $0x1588] sm:$0xf]
    %v2733 = vld [vmem:[#allocation6 + $0x158c] sm:$0xf]
    %v2734 = vld [vmem:[#allocation6 + $0x1590] sm:$0xf]
    %v2735 = vld [vmem:[#allocation6 + $0x1594] sm:$0xf]
    %v2736 = vld [vmem:[#allocation6 + $0x1598] sm:$0xf]
    %v2737 = vld [vmem:[#allocation6 + $0x159c] sm:$0xf]
    %v2738 = vld [vmem:[#allocation6 + $0x15a0] sm:$0xf]
    %v2739 = vld [vmem:[#allocation6 + $0x15a4] sm:$0xf]
    %v2740 = vld [vmem:[#allocation6 + $0x15a8] sm:$0xf]
    %v2741 = vld [vmem:[#allocation6 + $0x15ac] sm:$0xf]
    %v2742 = vld [vmem:[#allocation6 + $0x15b0] sm:$0xf]
    %v2743 = vld [vmem:[#allocation6 + $0x15b4] sm:$0xf]
    %v2744 = vld [vmem:[#allocation6 + $0x15b8] sm:$0xf]
    %v2745 = vld [vmem:[#allocation6 + $0x15bc] sm:$0xf]
    %v2746 = vld [vmem:[#allocation6 + $0x15c0] sm:$0xf]
    %v2747 = vld [vmem:[#allocation6 + $0x15c4] sm:$0xf]
    %v2748 = vld [vmem:[#allocation6 + $0x15c8] sm:$0xf]
    %v2749 = vld [vmem:[#allocation6 + $0x15cc] sm:$0xf]
    %v2750 = vld [vmem:[#allocation6 + $0x15d0] sm:$0xf]
    %v2751 = vld [vmem:[#allocation6 + $0x15d4] sm:$0xf]
    %v2752 = vld [vmem:[#allocation6 + $0x15d8] sm:$0xf]
    %v2753 = vld [vmem:[#allocation6 + $0x15dc] sm:$0xf]
    %v2754 = vld [vmem:[#allocation6 + $0x15e0] sm:$0xf]
    %v2755 = vld [vmem:[#allocation6 + $0x15e4] sm:$0xf]
    %v2756 = vld [vmem:[#allocation6 + $0x15e8] sm:$0xf]
    %v2757 = vld [vmem:[#allocation6 + $0x15ec] sm:$0xf]
    %v2758 = vld [vmem:[#allocation6 + $0x15f0] sm:$0xf]
    %v2759 = vld [vmem:[#allocation6 + $0x15f4] sm:$0xf]
    %v2760 = vld [vmem:[#allocation6 + $0x15f8] sm:$0xf]
    %v2761 = vld [vmem:[#allocation6 + $0x15fc] sm:$0xf]
    %v2762 = vld [vmem:[#allocation6 + $0x1600] sm:$0xf]
    %v2763 = vld [vmem:[#allocation6 + $0x1604] sm:$0xf]
    %v2764 = vld [vmem:[#allocation6 + $0x1608] sm:$0xf]
    %v2765 = vld [vmem:[#allocation6 + $0x160c] sm:$0xf]
    %v2766 = vld [vmem:[#allocation6 + $0x1610] sm:$0xf]
    %v2767 = vld [vmem:[#allocation6 + $0x1614] sm:$0xf]
    %v2768 = vld [vmem:[#allocation6 + $0x1618] sm:$0xf]
    %v2769 = vld [vmem:[#allocation6 + $0x161c] sm:$0xf]
    %v2770 = vld [vmem:[#allocation6 + $0x1620] sm:$0xf]
    %v2771 = vld [vmem:[#allocation6 + $0x1624] sm:$0xf]
    %v2772 = vld [vmem:[#allocation6 + $0x1628] sm:$0xf]
    %v2773 = vld [vmem:[#allocation6 + $0x162c] sm:$0xf]
    %v2774 = vld [vmem:[#allocation6 + $0x1630] sm:$0xf]
    %v2775 = vld [vmem:[#allocation6 + $0x1634] sm:$0xf]
    %v2776 = vld [vmem:[#allocation6 + $0x1638] sm:$0xf]
    %v2777 = vld [vmem:[#allocation6 + $0x163c] sm:$0xf]
    %v2778 = vld [vmem:[#allocation6 + $0x1640] sm:$0xf]
    %v2779 = vld [vmem:[#allocation6 + $0x1644] sm:$0xf]
    %v2780 = vld [vmem:[#allocation6 + $0x1648] sm:$0xf]
    %v2781 = vld [vmem:[#allocation6 + $0x164c] sm:$0xf]
    %v2782 = vld [vmem:[#allocation6 + $0x1650] sm:$0xf]
    %v2783 = vld [vmem:[#allocation6 + $0x1654] sm:$0xf]
    %v2784 = vld [vmem:[#allocation6 + $0x1658] sm:$0xf]
    %v2785 = vld [vmem:[#allocation6 + $0x165c] sm:$0xf]
    %v2786 = vld [vmem:[#allocation6 + $0x1660] sm:$0xf]
    %v2787 = vld [vmem:[#allocation6 + $0x1664] sm:$0xf]
    %v2788 = vld [vmem:[#allocation6 + $0x1668] sm:$0xf]
    %v2789 = vld [vmem:[#allocation6 + $0x166c] sm:$0xf]
    %v2790 = vld [vmem:[#allocation6 + $0x1670] sm:$0xf]
    %v2791 = vld [vmem:[#allocation6 + $0x1674] sm:$0xf]
    %v2792 = vld [vmem:[#allocation6 + $0x1678] sm:$0xf]
    %v2793 = vld [vmem:[#allocation6 + $0x167c] sm:$0xf]
    %v2794 = vld [vmem:[#allocation6 + $0x1680] sm:$0xf]
    %v2795 = vld [vmem:[#allocation6 + $0x1684] sm:$0xf]
    %v2796 = vld [vmem:[#allocation6 + $0x1688] sm:$0xf]
    %v2797 = vld [vmem:[#allocation6 + $0x168c] sm:$0xf]
    %v2798 = vld [vmem:[#allocation6 + $0x1690] sm:$0xf]
    %v2799 = vld [vmem:[#allocation6 + $0x1694] sm:$0xf]
    %v2800 = vld [vmem:[#allocation6 + $0x1698] sm:$0xf]
    %v2801 = vld [vmem:[#allocation6 + $0x169c] sm:$0xf]
    %v2802 = vld [vmem:[#allocation6 + $0x16a0] sm:$0xf]
    %v2803 = vld [vmem:[#allocation6 + $0x16a4] sm:$0xf]
    %v2804 = vld [vmem:[#allocation6 + $0x16a8] sm:$0xf]
    %v2805 = vld [vmem:[#allocation6 + $0x16ac] sm:$0xf]
    %v2806 = vld [vmem:[#allocation6 + $0x16b0] sm:$0xf]
    %v2807 = vld [vmem:[#allocation6 + $0x16b4] sm:$0xf]
    %v2808 = vld [vmem:[#allocation6 + $0x16b8] sm:$0xf]
    %v2809 = vld [vmem:[#allocation6 + $0x16bc] sm:$0xf]
    %v2810 = vld [vmem:[#allocation6 + $0x16c0] sm:$0xf]
    %v2811 = vld [vmem:[#allocation6 + $0x16c4] sm:$0xf]
    %v2812 = vld [vmem:[#allocation6 + $0x16c8] sm:$0xf]
    %v2813 = vld [vmem:[#allocation6 + $0x16cc] sm:$0xf]
    %v2814 = vld [vmem:[#allocation6 + $0x16d0] sm:$0xf]
    %v2815 = vld [vmem:[#allocation6 + $0x16d4] sm:$0xf]
    %v2816 = vld [vmem:[#allocation6 + $0x16d8] sm:$0xf]
    %v2817 = vld [vmem:[#allocation6 + $0x16dc] sm:$0xf]
    %v2818 = vld [vmem:[#allocation6 + $0x16e0] sm:$0xf]
    %v2819 = vld [vmem:[#allocation6 + $0x16e4] sm:$0xf]
    %v2820 = vld [vmem:[#allocation6 + $0x16e8] sm:$0xf]
    %v2821 = vld [vmem:[#allocation6 + $0x16ec] sm:$0xf]
    %v2822 = vld [vmem:[#allocation6 + $0x16f0] sm:$0xf]
    %v2823 = vld [vmem:[#allocation6 + $0x16f4] sm:$0xf]
    %v2824 = vld [vmem:[#allocation6 + $0x16f8] sm:$0xf]
    %v2825 = vld [vmem:[#allocation6 + $0x16fc] sm:$0xf]
    %v2826 = vld [vmem:[#allocation6 + $0x1700] sm:$0xf]
    %v2827 = vld [vmem:[#allocation6 + $0x1704] sm:$0xf]
    %v2828 = vld [vmem:[#allocation6 + $0x1708] sm:$0xf]
    %v2829 = vld [vmem:[#allocation6 + $0x170c] sm:$0xf]
    %v2830 = vld [vmem:[#allocation6 + $0x1710] sm:$0xf]
    %v2831 = vld [vmem:[#allocation6 + $0x1714] sm:$0xf]
    %v2832 = vld [vmem:[#allocation6 + $0x1718] sm:$0xf]
    %v2833 = vld [vmem:[#allocation6 + $0x171c] sm:$0xf]
    %v2834 = vld [vmem:[#allocation6 + $0x1720] sm:$0xf]
    %v2835 = vld [vmem:[#allocation6 + $0x1724] sm:$0xf]
    %v2836 = vld [vmem:[#allocation6 + $0x1728] sm:$0xf]
    %v2837 = vld [vmem:[#allocation6 + $0x172c] sm:$0xf]
    %v2838 = vld [vmem:[#allocation6 + $0x1730] sm:$0xf]
    %v2839 = vld [vmem:[#allocation6 + $0x1734] sm:$0xf]
    %v2840 = vld [vmem:[#allocation6 + $0x1738] sm:$0xf]
    %v2841 = vld [vmem:[#allocation6 + $0x173c] sm:$0xf]
    %v2842 = vld [vmem:[#allocation6 + $0x1740] sm:$0xf]
    %v2843 = vld [vmem:[#allocation6 + $0x1744] sm:$0xf]
    %v2844 = vld [vmem:[#allocation6 + $0x1748] sm:$0xf]
    %v2845 = vld [vmem:[#allocation6 + $0x174c] sm:$0xf]
    %v2846 = vld [vmem:[#allocation6 + $0x1750] sm:$0xf]
    %v2847 = vld [vmem:[#allocation6 + $0x1754] sm:$0xf]
    %v2848 = vld [vmem:[#allocation6 + $0x1758] sm:$0xf]
    %v2849 = vld [vmem:[#allocation6 + $0x175c] sm:$0xf]
    %v2850 = vld [vmem:[#allocation6 + $0x1760] sm:$0xf]
    %v2851 = vld [vmem:[#allocation6 + $0x1764] sm:$0xf]
    %v2852 = vld [vmem:[#allocation6 + $0x1768] sm:$0xf]
    %v2853 = vld [vmem:[#allocation6 + $0x176c] sm:$0xf]
    %v2854 = vld [vmem:[#allocation6 + $0x1770] sm:$0xf]
    %v2855 = vld [vmem:[#allocation6 + $0x1774] sm:$0xf]
    %v2856 = vld [vmem:[#allocation6 + $0x1778] sm:$0xf]
    %v2857 = vld [vmem:[#allocation6 + $0x177c] sm:$0xf]
    %v2858 = vld [vmem:[#allocation6 + $0x1780] sm:$0xf]
    %v2859 = vld [vmem:[#allocation6 + $0x1784] sm:$0xf]
    %v2860 = vld [vmem:[#allocation6 + $0x1788] sm:$0xf]
    %v2861 = vld [vmem:[#allocation6 + $0x178c] sm:$0xf]
    %v2862 = vld [vmem:[#allocation6 + $0x1790] sm:$0xf]
    %v2863 = vld [vmem:[#allocation6 + $0x1794] sm:$0xf]
    %v2864 = vld [vmem:[#allocation6 + $0x1798] sm:$0xf]
    %v2865 = vld [vmem:[#allocation6 + $0x179c] sm:$0xf]
    %v2866 = vld [vmem:[#allocation6 + $0x17a0] sm:$0xf]
    %v2867 = vld [vmem:[#allocation6 + $0x17a4] sm:$0xf]
    %v2868 = vld [vmem:[#allocation6 + $0x17a8] sm:$0xf]
    %v2869 = vld [vmem:[#allocation6 + $0x17ac] sm:$0xf]
    %v2870 = vld [vmem:[#allocation6 + $0x17b0] sm:$0xf]
    %v2871 = vld [vmem:[#allocation6 + $0x17b4] sm:$0xf]
    %v2872 = vld [vmem:[#allocation6 + $0x17b8] sm:$0xf]
    %v2873 = vld [vmem:[#allocation6 + $0x17bc] sm:$0xf]
    %v2874 = vld [vmem:[#allocation6 + $0x17c0] sm:$0xf]
    %v2875 = vld [vmem:[#allocation6 + $0x17c4] sm:$0xf]
    %v2876 = vld [vmem:[#allocation6 + $0x17c8] sm:$0xf]
    %v2877 = vld [vmem:[#allocation6 + $0x17cc] sm:$0xf]
    %v2878 = vld [vmem:[#allocation6 + $0x17d0] sm:$0xf]
    %v2879 = vld [vmem:[#allocation6 + $0x17d4] sm:$0xf]
    %v2880 = vld [vmem:[#allocation6 + $0x17d8] sm:$0xf]
    %v2881 = vld [vmem:[#allocation6 + $0x17dc] sm:$0xf]
    %v2882 = vld [vmem:[#allocation6 + $0x17e0] sm:$0xf]
    %v2883 = vld [vmem:[#allocation6 + $0x17e4] sm:$0xf]
    %v2884 = vld [vmem:[#allocation6 + $0x17e8] sm:$0xf]
    %v2885 = vld [vmem:[#allocation6 + $0x17ec] sm:$0xf]
    %v2886 = vld [vmem:[#allocation6 + $0x17f0] sm:$0xf]
    %v2887 = vld [vmem:[#allocation6 + $0x17f4] sm:$0xf]
    %v2888 = vld [vmem:[#allocation6 + $0x17f8] sm:$0xf]
    %v2889 = vld [vmem:[#allocation6 + $0x17fc] sm:$0xf]
    %v2890 = vld [vmem:[#allocation8] sm:$0x1]
    %v2892 = vlaneseq
    %v2893 = vshrl.u32 %v2892, 7
    %v2894 = vsub.s32 0, %v2893
    %v2895 = vrot.slane %v2890, %v2894
    %v4433 = vunpack.c.l.b16 %v1354
    %v4434 = vunpack.c.l.b16 %v1355
    %v4435 = vunpack.c.l.b16 %v1356
    %v4436 = vunpack.c.l.b16 %v1357
    %v4437 = vunpack.c.l.b16 %v1358
    %v4438 = vunpack.c.l.b16 %v1359
    %v4439 = vunpack.c.l.b16 %v1360
    %v4440 = vunpack.c.l.b16 %v1361
    %v4441 = vunpack.c.l.b16 %v1362
    %v4442 = vunpack.c.l.b16 %v1363
    %v4443 = vunpack.c.l.b16 %v1364
    %v4444 = vunpack.c.l.b16 %v1365
    %v4445 = vunpack.c.l.b16 %v1366
    %v4446 = vunpack.c.l.b16 %v1367
    %v4447 = vunpack.c.l.b16 %v1368
    %v4448 = vunpack.c.l.b16 %v1369
    %v4449 = vunpack.c.l.b16 %v1370
    %v4450 = vunpack.c.l.b16 %v1371
    %v4451 = vunpack.c.l.b16 %v1372
    %v4452 = vunpack.c.l.b16 %v1373
    %v4453 = vunpack.c.l.b16 %v1374
    %v4454 = vunpack.c.l.b16 %v1375
    %v4455 = vunpack.c.l.b16 %v1376
    %v4456 = vunpack.c.l.b16 %v1377
    %v4457 = vunpack.c.l.b16 %v1378
    %v4458 = vunpack.c.l.b16 %v1379
    %v4459 = vunpack.c.l.b16 %v1380
    %v4460 = vunpack.c.l.b16 %v1381
    %v4461 = vunpack.c.l.b16 %v1382
    %v4462 = vunpack.c.l.b16 %v1383
    %v4463 = vunpack.c.l.b16 %v1384
    %v4464 = vunpack.c.l.b16 %v1385
    %v4465 = vunpack.c.l.b16 %v1386
    %v4466 = vunpack.c.l.b16 %v1387
    %v4467 = vunpack.c.l.b16 %v1388
    %v4468 = vunpack.c.l.b16 %v1389
    %v4469 = vunpack.c.l.b16 %v1390
    %v4470 = vunpack.c.l.b16 %v1391
    %v4471 = vunpack.c.l.b16 %v1392
    %v4472 = vunpack.c.l.b16 %v1393
    %v4473 = vunpack.c.l.b16 %v1394
    %v4474 = vunpack.c.l.b16 %v1395
    %v4475 = vunpack.c.l.b16 %v1396
    %v4476 = vunpack.c.l.b16 %v1397
    %v4477 = vunpack.c.l.b16 %v1398
    %v4478 = vunpack.c.l.b16 %v1399
    %v4479 = vunpack.c.l.b16 %v1400
    %v4480 = vunpack.c.l.b16 %v1401
    %v4481 = vunpack.c.l.b16 %v1402
    %v4482 = vunpack.c.l.b16 %v1403
    %v4483 = vunpack.c.l.b16 %v1404
    %v4484 = vunpack.c.l.b16 %v1405
    %v4485 = vunpack.c.l.b16 %v1406
    %v4486 = vunpack.c.l.b16 %v1407
    %v4487 = vunpack.c.l.b16 %v1408
    %v4488 = vunpack.c.l.b16 %v1409
    %v4489 = vunpack.c.l.b16 %v1410
    %v4490 = vunpack.c.l.b16 %v1411
    %v4491 = vunpack.c.l.b16 %v1412
    %v4492 = vunpack.c.l.b16 %v1413
    %v4493 = vunpack.c.l.b16 %v1414
    %v4494 = vunpack.c.l.b16 %v1415
    %v4495 = vunpack.c.l.b16 %v1416
    %v4496 = vunpack.c.l.b16 %v1417
    %v4497 = vunpack.c.l.b16 %v1418
    %v4498 = vunpack.c.l.b16 %v1419
    %v4499 = vunpack.c.l.b16 %v1420
    %v4500 = vunpack.c.l.b16 %v1421
    %v4501 = vunpack.c.l.b16 %v1422
    %v4502 = vunpack.c.l.b16 %v1423
    %v4503 = vunpack.c.l.b16 %v1424
    %v4504 = vunpack.c.l.b16 %v1425
    %v4505 = vunpack.c.l.b16 %v1426
    %v4506 = vunpack.c.l.b16 %v1427
    %v4507 = vunpack.c.l.b16 %v1428
    %v4508 = vunpack.c.l.b16 %v1429
    %v4509 = vunpack.c.l.b16 %v1430
    %v4510 = vunpack.c.l.b16 %v1431
    %v4511 = vunpack.c.l.b16 %v1432
    %v4512 = vunpack.c.l.b16 %v1433
    %v4513 = vunpack.c.l.b16 %v1434
    %v4514 = vunpack.c.l.b16 %v1435
    %v4515 = vunpack.c.l.b16 %v1436
    %v4516 = vunpack.c.l.b16 %v1437
    %v4517 = vunpack.c.l.b16 %v1438
    %v4518 = vunpack.c.l.b16 %v1439
    %v4519 = vunpack.c.l.b16 %v1440
    %v4520 = vunpack.c.l.b16 %v1441
    %v4521 = vunpack.c.l.b16 %v1442
    %v4522 = vunpack.c.l.b16 %v1443
    %v4523 = vunpack.c.l.b16 %v1444
    %v4524 = vunpack.c.l.b16 %v1445
    %v4525 = vunpack.c.l.b16 %v1446
    %v4526 = vunpack.c.l.b16 %v1447
    %v4527 = vunpack.c.l.b16 %v1448
    %v4528 = vunpack.c.l.b16 %v1449
    %v4529 = vunpack.c.l.b16 %v1450
    %v4530 = vunpack.c.l.b16 %v1451
    %v4531 = vunpack.c.l.b16 %v1452
    %v4532 = vunpack.c.l.b16 %v1453
    %v4533 = vunpack.c.l.b16 %v1454
    %v4534 = vunpack.c.l.b16 %v1455
    %v4535 = vunpack.c.l.b16 %v1456
    %v4536 = vunpack.c.l.b16 %v1457
    %v4537 = vunpack.c.l.b16 %v1458
    %v4538 = vunpack.c.l.b16 %v1459
    %v4539 = vunpack.c.l.b16 %v1460
    %v4540 = vunpack.c.l.b16 %v1461
    %v4541 = vunpack.c.l.b16 %v1462
    %v4542 = vunpack.c.l.b16 %v1463
    %v4543 = vunpack.c.l.b16 %v1464
    %v4544 = vunpack.c.l.b16 %v1465
    %v4545 = vunpack.c.l.b16 %v1466
    %v4546 = vunpack.c.l.b16 %v1467
    %v4547 = vunpack.c.l.b16 %v1468
    %v4548 = vunpack.c.l.b16 %v1469
    %v4549 = vunpack.c.l.b16 %v1470
    %v4550 = vunpack.c.l.b16 %v1471
    %v4551 = vunpack.c.l.b16 %v1472
    %v4552 = vunpack.c.l.b16 %v1473
    %v4553 = vunpack.c.l.b16 %v1474
    %v4554 = vunpack.c.l.b16 %v1475
    %v4555 = vunpack.c.l.b16 %v1476
    %v4556 = vunpack.c.l.b16 %v1477
    %v4557 = vunpack.c.l.b16 %v1478
    %v4558 = vunpack.c.l.b16 %v1479
    %v4559 = vunpack.c.l.b16 %v1480
    %v4560 = vunpack.c.l.b16 %v1481
    %v4561 = vunpack.c.l.b16 %v1482
    %v4562 = vunpack.c.l.b16 %v1483
    %v4563 = vunpack.c.l.b16 %v1484
    %v4564 = vunpack.c.l.b16 %v1485
    %v4565 = vunpack.c.l.b16 %v1486
    %v4566 = vunpack.c.l.b16 %v1487
    %v4567 = vunpack.c.l.b16 %v1488
    %v4568 = vunpack.c.l.b16 %v1489
    %v4569 = vunpack.c.l.b16 %v1490
    %v4570 = vunpack.c.l.b16 %v1491
    %v4571 = vunpack.c.l.b16 %v1492
    %v4572 = vunpack.c.l.b16 %v1493
    %v4573 = vunpack.c.l.b16 %v1494
    %v4574 = vunpack.c.l.b16 %v1495
    %v4575 = vunpack.c.l.b16 %v1496
    %v4576 = vunpack.c.l.b16 %v1497
    %v4577 = vunpack.c.l.b16 %v1498
    %v4578 = vunpack.c.l.b16 %v1499
    %v4579 = vunpack.c.l.b16 %v1500
    %v4580 = vunpack.c.l.b16 %v1501
    %v4581 = vunpack.c.l.b16 %v1502
    %v4582 = vunpack.c.l.b16 %v1503
    %v4583 = vunpack.c.l.b16 %v1504
    %v4584 = vunpack.c.l.b16 %v1505
    %v4585 = vunpack.c.l.b16 %v1506
    %v4586 = vunpack.c.l.b16 %v1507
    %v4587 = vunpack.c.l.b16 %v1508
    %v4588 = vunpack.c.l.b16 %v1509
    %v4589 = vunpack.c.l.b16 %v1510
    %v4590 = vunpack.c.l.b16 %v1511
    %v4591 = vunpack.c.l.b16 %v1512
    %v4592 = vunpack.c.l.b16 %v1513
    %v4593 = vunpack.c.l.b16 %v1514
    %v4594 = vunpack.c.l.b16 %v1515
    %v4595 = vunpack.c.l.b16 %v1516
    %v4596 = vunpack.c.l.b16 %v1517
    %v4597 = vunpack.c.l.b16 %v1518
    %v4598 = vunpack.c.l.b16 %v1519
    %v4599 = vunpack.c.l.b16 %v1520
    %v4600 = vunpack.c.l.b16 %v1521
    %v4601 = vunpack.c.l.b16 %v1522
    %v4602 = vunpack.c.l.b16 %v1523
    %v4603 = vunpack.c.l.b16 %v1524
    %v4604 = vunpack.c.l.b16 %v1525
    %v4605 = vunpack.c.l.b16 %v1526
    %v4606 = vunpack.c.l.b16 %v1527
    %v4607 = vunpack.c.l.b16 %v1528
    %v4608 = vunpack.c.l.b16 %v1529
    %v4609 = vunpack.c.l.b16 %v1530
    %v4610 = vunpack.c.l.b16 %v1531
    %v4611 = vunpack.c.l.b16 %v1532
    %v4612 = vunpack.c.l.b16 %v1533
    %v4613 = vunpack.c.l.b16 %v1534
    %v4614 = vunpack.c.l.b16 %v1535
    %v4615 = vunpack.c.l.b16 %v1536
    %v4616 = vunpack.c.l.b16 %v1537
    %v4617 = vunpack.c.l.b16 %v1538
    %v4618 = vunpack.c.l.b16 %v1539
    %v4619 = vunpack.c.l.b16 %v1540
    %v4620 = vunpack.c.l.b16 %v1541
    %v4621 = vunpack.c.l.b16 %v1542
    %v4622 = vunpack.c.l.b16 %v1543
    %v4623 = vunpack.c.l.b16 %v1544
    %v4624 = vunpack.c.l.b16 %v1545
    %v4625 = vunpack.c.l.b16 %v1546
    %v4626 = vunpack.c.l.b16 %v1547
    %v4627 = vunpack.c.l.b16 %v1548
    %v4628 = vunpack.c.l.b16 %v1549
    %v4629 = vunpack.c.l.b16 %v1550
    %v4630 = vunpack.c.l.b16 %v1551
    %v4631 = vunpack.c.l.b16 %v1552
    %v4632 = vunpack.c.l.b16 %v1553
    %v4633 = vunpack.c.l.b16 %v1554
    %v4634 = vunpack.c.l.b16 %v1555
    %v4635 = vunpack.c.l.b16 %v1556
    %v4636 = vunpack.c.l.b16 %v1557
    %v4637 = vunpack.c.l.b16 %v1558
    %v4638 = vunpack.c.l.b16 %v1559
    %v4639 = vunpack.c.l.b16 %v1560
    %v4640 = vunpack.c.l.b16 %v1561
    %v4641 = vunpack.c.l.b16 %v1562
    %v4642 = vunpack.c.l.b16 %v1563
    %v4643 = vunpack.c.l.b16 %v1564
    %v4644 = vunpack.c.l.b16 %v1565
    %v4645 = vunpack.c.l.b16 %v1566
    %v4646 = vunpack.c.l.b16 %v1567
    %v4647 = vunpack.c.l.b16 %v1568
    %v4648 = vunpack.c.l.b16 %v1569
    %v4649 = vunpack.c.l.b16 %v1570
    %v4650 = vunpack.c.l.b16 %v1571
    %v4651 = vunpack.c.l.b16 %v1572
    %v4652 = vunpack.c.l.b16 %v1573
    %v4653 = vunpack.c.l.b16 %v1574
    %v4654 = vunpack.c.l.b16 %v1575
    %v4655 = vunpack.c.l.b16 %v1576
    %v4656 = vunpack.c.l.b16 %v1577
    %v4657 = vunpack.c.l.b16 %v1578
    %v4658 = vunpack.c.l.b16 %v1579
    %v4659 = vunpack.c.l.b16 %v1580
    %v4660 = vunpack.c.l.b16 %v1581
    %v4661 = vunpack.c.l.b16 %v1582
    %v4662 = vunpack.c.l.b16 %v1583
    %v4663 = vunpack.c.l.b16 %v1584
    %v4664 = vunpack.c.l.b16 %v1585
    %v4665 = vunpack.c.l.b16 %v1586
    %v4666 = vunpack.c.l.b16 %v1587
    %v4667 = vunpack.c.l.b16 %v1588
    %v4668 = vunpack.c.l.b16 %v1589
    %v4669 = vunpack.c.l.b16 %v1590
    %v4670 = vunpack.c.l.b16 %v1591
    %v4671 = vunpack.c.l.b16 %v1592
    %v4672 = vunpack.c.l.b16 %v1593
    %v4673 = vunpack.c.l.b16 %v1594
    %v4674 = vunpack.c.l.b16 %v1595
    %v4675 = vunpack.c.l.b16 %v1596
    %v4676 = vunpack.c.l.b16 %v1597
    %v4677 = vunpack.c.l.b16 %v1598
    %v4678 = vunpack.c.l.b16 %v1599
    %v4679 = vunpack.c.l.b16 %v1600
    %v4680 = vunpack.c.l.b16 %v1601
    %v4681 = vunpack.c.l.b16 %v1602
    %v4682 = vunpack.c.l.b16 %v1603
    %v4683 = vunpack.c.l.b16 %v1604
    %v4684 = vunpack.c.l.b16 %v1605
    %v4685 = vunpack.c.l.b16 %v1606
    %v4686 = vunpack.c.l.b16 %v1607
    %v4687 = vunpack.c.l.b16 %v1608
    %v4688 = vunpack.c.l.b16 %v1609
    %v4689 = vunpack.c.l.b16 %v1610
    %v4690 = vunpack.c.l.b16 %v1611
    %v4691 = vunpack.c.l.b16 %v1612
    %v4692 = vunpack.c.l.b16 %v1613
    %v4693 = vunpack.c.l.b16 %v1614
    %v4694 = vunpack.c.l.b16 %v1615
    %v4695 = vunpack.c.l.b16 %v1616
    %v4696 = vunpack.c.l.b16 %v1617
    %v4697 = vunpack.c.l.b16 %v1618
    %v4698 = vunpack.c.l.b16 %v1619
    %v4699 = vunpack.c.l.b16 %v1620
    %v4700 = vunpack.c.l.b16 %v1621
    %v4701 = vunpack.c.l.b16 %v1622
    %v4702 = vunpack.c.l.b16 %v1623
    %v4703 = vunpack.c.l.b16 %v1624
    %v4704 = vunpack.c.l.b16 %v1625
    %v4705 = vunpack.c.l.b16 %v1626
    %v4706 = vunpack.c.l.b16 %v1627
    %v4707 = vunpack.c.l.b16 %v1628
    %v4708 = vunpack.c.l.b16 %v1629
    %v4709 = vunpack.c.l.b16 %v1630
    %v4710 = vunpack.c.l.b16 %v1631
    %v4711 = vunpack.c.l.b16 %v1632
    %v4712 = vunpack.c.l.b16 %v1633
    %v4713 = vunpack.c.l.b16 %v1634
    %v4714 = vunpack.c.l.b16 %v1635
    %v4715 = vunpack.c.l.b16 %v1636
    %v4716 = vunpack.c.l.b16 %v1637
    %v4717 = vunpack.c.l.b16 %v1638
    %v4718 = vunpack.c.l.b16 %v1639
    %v4719 = vunpack.c.l.b16 %v1640
    %v4720 = vunpack.c.l.b16 %v1641
    %v4721 = vunpack.c.l.b16 %v1642
    %v4722 = vunpack.c.l.b16 %v1643
    %v4723 = vunpack.c.l.b16 %v1644
    %v4724 = vunpack.c.l.b16 %v1645
    %v4725 = vunpack.c.l.b16 %v1646
    %v4726 = vunpack.c.l.b16 %v1647
    %v4727 = vunpack.c.l.b16 %v1648
    %v4728 = vunpack.c.l.b16 %v1649
    %v4729 = vunpack.c.l.b16 %v1650
    %v4730 = vunpack.c.l.b16 %v1651
    %v4731 = vunpack.c.l.b16 %v1652
    %v4732 = vunpack.c.l.b16 %v1653
    %v4733 = vunpack.c.l.b16 %v1654
    %v4734 = vunpack.c.l.b16 %v1655
    %v4735 = vunpack.c.l.b16 %v1656
    %v4736 = vunpack.c.l.b16 %v1657
    %v4737 = vunpack.c.l.b16 %v1658
    %v4738 = vunpack.c.l.b16 %v1659
    %v4739 = vunpack.c.l.b16 %v1660
    %v4740 = vunpack.c.l.b16 %v1661
    %v4741 = vunpack.c.l.b16 %v1662
    %v4742 = vunpack.c.l.b16 %v1663
    %v4743 = vunpack.c.l.b16 %v1664
    %v4744 = vunpack.c.l.b16 %v1665
    %v4745 = vunpack.c.l.b16 %v1666
    %v4746 = vunpack.c.l.b16 %v1667
    %v4747 = vunpack.c.l.b16 %v1668
    %v4748 = vunpack.c.l.b16 %v1669
    %v4749 = vunpack.c.l.b16 %v1670
    %v4750 = vunpack.c.l.b16 %v1671
    %v4751 = vunpack.c.l.b16 %v1672
    %v4752 = vunpack.c.l.b16 %v1673
    %v4753 = vunpack.c.l.b16 %v1674
    %v4754 = vunpack.c.l.b16 %v1675
    %v4755 = vunpack.c.l.b16 %v1676
    %v4756 = vunpack.c.l.b16 %v1677
    %v4757 = vunpack.c.l.b16 %v1678
    %v4758 = vunpack.c.l.b16 %v1679
    %v4759 = vunpack.c.l.b16 %v1680
    %v4760 = vunpack.c.l.b16 %v1681
    %v4761 = vunpack.c.l.b16 %v1682
    %v4762 = vunpack.c.l.b16 %v1683
    %v4763 = vunpack.c.l.b16 %v1684
    %v4764 = vunpack.c.l.b16 %v1685
    %v4765 = vunpack.c.l.b16 %v1686
    %v4766 = vunpack.c.l.b16 %v1687
    %v4767 = vunpack.c.l.b16 %v1688
    %v4768 = vunpack.c.l.b16 %v1689
    %v4769 = vunpack.c.l.b16 %v1690
    %v4770 = vunpack.c.l.b16 %v1691
    %v4771 = vunpack.c.l.b16 %v1692
    %v4772 = vunpack.c.l.b16 %v1693
    %v4773 = vunpack.c.l.b16 %v1694
    %v4774 = vunpack.c.l.b16 %v1695
    %v4775 = vunpack.c.l.b16 %v1696
    %v4776 = vunpack.c.l.b16 %v1697
    %v4777 = vunpack.c.l.b16 %v1698
    %v4778 = vunpack.c.l.b16 %v1699
    %v4779 = vunpack.c.l.b16 %v1700
    %v4780 = vunpack.c.l.b16 %v1701
    %v4781 = vunpack.c.l.b16 %v1702
    %v4782 = vunpack.c.l.b16 %v1703
    %v4783 = vunpack.c.l.b16 %v1704
    %v4784 = vunpack.c.l.b16 %v1705
    %v4785 = vunpack.c.l.b16 %v1706
    %v4786 = vunpack.c.l.b16 %v1707
    %v4787 = vunpack.c.l.b16 %v1708
    %v4788 = vunpack.c.l.b16 %v1709
    %v4789 = vunpack.c.l.b16 %v1710
    %v4790 = vunpack.c.l.b16 %v1711
    %v4791 = vunpack.c.l.b16 %v1712
    %v4792 = vunpack.c.l.b16 %v1713
    %v4793 = vunpack.c.l.b16 %v1714
    %v4794 = vunpack.c.l.b16 %v1715
    %v4795 = vunpack.c.l.b16 %v1716
    %v4796 = vunpack.c.l.b16 %v1717
    %v4797 = vunpack.c.l.b16 %v1718
    %v4798 = vunpack.c.l.b16 %v1719
    %v4799 = vunpack.c.l.b16 %v1720
    %v4800 = vunpack.c.l.b16 %v1721
    %v4801 = vunpack.c.l.b16 %v1722
    %v4802 = vunpack.c.l.b16 %v1723
    %v4803 = vunpack.c.l.b16 %v1724
    %v4804 = vunpack.c.l.b16 %v1725
    %v4805 = vunpack.c.l.b16 %v1726
    %v4806 = vunpack.c.l.b16 %v1727
    %v4807 = vunpack.c.l.b16 %v1728
    %v4808 = vunpack.c.l.b16 %v1729
    %v4809 = vunpack.c.l.b16 %v1730
    %v4810 = vunpack.c.l.b16 %v1731
    %v4811 = vunpack.c.l.b16 %v1732
    %v4812 = vunpack.c.l.b16 %v1733
    %v4813 = vunpack.c.l.b16 %v1734
    %v4814 = vunpack.c.l.b16 %v1735
    %v4815 = vunpack.c.l.b16 %v1736
    %v4816 = vunpack.c.l.b16 %v1737
    %v4817 = vunpack.c.l.b16 %v1738
    %v4818 = vunpack.c.l.b16 %v1739
    %v4819 = vunpack.c.l.b16 %v1740
    %v4820 = vunpack.c.l.b16 %v1741
    %v4821 = vunpack.c.l.b16 %v1742
    %v4822 = vunpack.c.l.b16 %v1743
    %v4823 = vunpack.c.l.b16 %v1744
    %v4824 = vunpack.c.l.b16 %v1745
    %v4825 = vunpack.c.l.b16 %v1746
    %v4826 = vunpack.c.l.b16 %v1747
    %v4827 = vunpack.c.l.b16 %v1748
    %v4828 = vunpack.c.l.b16 %v1749
    %v4829 = vunpack.c.l.b16 %v1750
    %v4830 = vunpack.c.l.b16 %v1751
    %v4831 = vunpack.c.l.b16 %v1752
    %v4832 = vunpack.c.l.b16 %v1753
    %v4833 = vunpack.c.l.b16 %v1754
    %v4834 = vunpack.c.l.b16 %v1755
    %v4835 = vunpack.c.l.b16 %v1756
    %v4836 = vunpack.c.l.b16 %v1757
    %v4837 = vunpack.c.l.b16 %v1758
    %v4838 = vunpack.c.l.b16 %v1759
    %v4839 = vunpack.c.l.b16 %v1760
    %v4840 = vunpack.c.l.b16 %v1761
    %v4841 = vunpack.c.l.b16 %v1762
    %v4842 = vunpack.c.l.b16 %v1763
    %v4843 = vunpack.c.l.b16 %v1764
    %v4844 = vunpack.c.l.b16 %v1765
    %v4845 = vunpack.c.l.b16 %v1766
    %v4846 = vunpack.c.l.b16 %v1767
    %v4847 = vunpack.c.l.b16 %v1768
    %v4848 = vunpack.c.l.b16 %v1769
    %v4849 = vunpack.c.l.b16 %v1770
    %v4850 = vunpack.c.l.b16 %v1771
    %v4851 = vunpack.c.l.b16 %v1772
    %v4852 = vunpack.c.l.b16 %v1773
    %v4853 = vunpack.c.l.b16 %v1774
    %v4854 = vunpack.c.l.b16 %v1775
    %v4855 = vunpack.c.l.b16 %v1776
    %v4856 = vunpack.c.l.b16 %v1777
    %v4857 = vunpack.c.l.b16 %v1778
    %v4858 = vunpack.c.l.b16 %v1779
    %v4859 = vunpack.c.l.b16 %v1780
    %v4860 = vunpack.c.l.b16 %v1781
    %v4861 = vunpack.c.l.b16 %v1782
    %v4862 = vunpack.c.l.b16 %v1783
    %v4863 = vunpack.c.l.b16 %v1784
    %v4864 = vunpack.c.l.b16 %v1785
    %v4865 = vunpack.c.l.b16 %v1786
    %v4866 = vunpack.c.l.b16 %v1787
    %v4867 = vunpack.c.l.b16 %v1788
    %v4868 = vunpack.c.l.b16 %v1789
    %v4869 = vunpack.c.l.b16 %v1790
    %v4870 = vunpack.c.l.b16 %v1791
    %v4871 = vunpack.c.l.b16 %v1792
    %v4872 = vunpack.c.l.b16 %v1793
    %v4873 = vunpack.c.l.b16 %v1794
    %v4874 = vunpack.c.l.b16 %v1795
    %v4875 = vunpack.c.l.b16 %v1796
    %v4876 = vunpack.c.l.b16 %v1797
    %v4877 = vunpack.c.l.b16 %v1798
    %v4878 = vunpack.c.l.b16 %v1799
    %v4879 = vunpack.c.l.b16 %v1800
    %v4880 = vunpack.c.l.b16 %v1801
    %v4881 = vunpack.c.l.b16 %v1802
    %v4882 = vunpack.c.l.b16 %v1803
    %v4883 = vunpack.c.l.b16 %v1804
    %v4884 = vunpack.c.l.b16 %v1805
    %v4885 = vunpack.c.l.b16 %v1806
    %v4886 = vunpack.c.l.b16 %v1807
    %v4887 = vunpack.c.l.b16 %v1808
    %v4888 = vunpack.c.l.b16 %v1809
    %v4889 = vunpack.c.l.b16 %v1810
    %v4890 = vunpack.c.l.b16 %v1811
    %v4891 = vunpack.c.l.b16 %v1812
    %v4892 = vunpack.c.l.b16 %v1813
    %v4893 = vunpack.c.l.b16 %v1814
    %v4894 = vunpack.c.l.b16 %v1815
    %v4895 = vunpack.c.l.b16 %v1816
    %v4896 = vunpack.c.l.b16 %v1817
    %v4897 = vunpack.c.l.b16 %v1818
    %v4898 = vunpack.c.l.b16 %v1819
    %v4899 = vunpack.c.l.b16 %v1820
    %v4900 = vunpack.c.l.b16 %v1821
    %v4901 = vunpack.c.l.b16 %v1822
    %v4902 = vunpack.c.l.b16 %v1823
    %v4903 = vunpack.c.l.b16 %v1824
    %v4904 = vunpack.c.l.b16 %v1825
    %v4905 = vunpack.c.l.b16 %v1826
    %v4906 = vunpack.c.l.b16 %v1827
    %v4907 = vunpack.c.l.b16 %v1828
    %v4908 = vunpack.c.l.b16 %v1829
    %v4909 = vunpack.c.l.b16 %v1830
    %v4910 = vunpack.c.l.b16 %v1831
    %v4911 = vunpack.c.l.b16 %v1832
    %v4912 = vunpack.c.l.b16 %v1833
    %v4913 = vunpack.c.l.b16 %v1834
    %v4914 = vunpack.c.l.b16 %v1835
    %v4915 = vunpack.c.l.b16 %v1836
    %v4916 = vunpack.c.l.b16 %v1837
    %v4917 = vunpack.c.l.b16 %v1838
    %v4918 = vunpack.c.l.b16 %v1839
    %v4919 = vunpack.c.l.b16 %v1840
    %v4920 = vunpack.c.l.b16 %v1841
    %v4921 = vunpack.c.l.b16 %v1842
    %v4922 = vunpack.c.l.b16 %v1843
    %v4923 = vunpack.c.l.b16 %v1844
    %v4924 = vunpack.c.l.b16 %v1845
    %v4925 = vunpack.c.l.b16 %v1846
    %v4926 = vunpack.c.l.b16 %v1847
    %v4927 = vunpack.c.l.b16 %v1848
    %v4928 = vunpack.c.l.b16 %v1849
    %v4929 = vunpack.c.l.b16 %v1850
    %v4930 = vunpack.c.l.b16 %v1851
    %v4931 = vunpack.c.l.b16 %v1852
    %v4932 = vunpack.c.l.b16 %v1853
    %v4933 = vunpack.c.l.b16 %v1854
    %v4934 = vunpack.c.l.b16 %v1855
    %v4935 = vunpack.c.l.b16 %v1856
    %v4936 = vunpack.c.l.b16 %v1857
    %v4937 = vunpack.c.l.b16 %v1858
    %v4938 = vunpack.c.l.b16 %v1859
    %v4939 = vunpack.c.l.b16 %v1860
    %v4940 = vunpack.c.l.b16 %v1861
    %v4941 = vunpack.c.l.b16 %v1862
    %v4942 = vunpack.c.l.b16 %v1863
    %v4943 = vunpack.c.l.b16 %v1864
    %v4944 = vunpack.c.l.b16 %v1865
    %v4945 = vunpack.c.l.b16 %v1866
    %v4946 = vunpack.c.l.b16 %v1867
    %v4947 = vunpack.c.l.b16 %v1868
    %v4948 = vunpack.c.l.b16 %v1869
    %v4949 = vunpack.c.l.b16 %v1870
    %v4950 = vunpack.c.l.b16 %v1871
    %v4951 = vunpack.c.l.b16 %v1872
    %v4952 = vunpack.c.l.b16 %v1873
    %v4953 = vunpack.c.l.b16 %v1874
    %v4954 = vunpack.c.l.b16 %v1875
    %v4955 = vunpack.c.l.b16 %v1876
    %v4956 = vunpack.c.l.b16 %v1877
    %v4957 = vunpack.c.l.b16 %v1878
    %v4958 = vunpack.c.l.b16 %v1879
    %v4959 = vunpack.c.l.b16 %v1880
    %v4960 = vunpack.c.l.b16 %v1881
    %v4961 = vunpack.c.l.b16 %v1882
    %v4962 = vunpack.c.l.b16 %v1883
    %v4963 = vunpack.c.l.b16 %v1884
    %v4964 = vunpack.c.l.b16 %v1885
    %v4965 = vunpack.c.l.b16 %v1886
    %v4966 = vunpack.c.l.b16 %v1887
    %v4967 = vunpack.c.l.b16 %v1888
    %v4968 = vunpack.c.l.b16 %v1889
    %v4969 = vunpack.c.l.b16 %v1890
    %v4970 = vunpack.c.l.b16 %v1891
    %v4971 = vunpack.c.l.b16 %v1892
    %v4972 = vunpack.c.l.b16 %v1893
    %v4973 = vunpack.c.l.b16 %v1894
    %v4974 = vunpack.c.l.b16 %v1895
    %v4975 = vunpack.c.l.b16 %v1896
    %v4976 = vunpack.c.l.b16 %v1897
    %v4977 = vunpack.c.l.b16 %v1898
    %v4978 = vunpack.c.l.b16 %v1899
    %v4979 = vunpack.c.l.b16 %v1900
    %v4980 = vunpack.c.l.b16 %v1901
    %v4981 = vunpack.c.l.b16 %v1902
    %v4982 = vunpack.c.l.b16 %v1903
    %v4983 = vunpack.c.l.b16 %v1904
    %v4984 = vunpack.c.l.b16 %v1905
    %v4985 = vunpack.c.l.b16 %v1906
    %v4986 = vunpack.c.l.b16 %v1907
    %v4987 = vunpack.c.l.b16 %v1908
    %v4988 = vunpack.c.l.b16 %v1909
    %v4989 = vunpack.c.l.b16 %v1910
    %v4990 = vunpack.c.l.b16 %v1911
    %v4991 = vunpack.c.l.b16 %v1912
    %v4992 = vunpack.c.l.b16 %v1913
    %v4993 = vunpack.c.l.b16 %v1914
    %v4994 = vunpack.c.l.b16 %v1915
    %v4995 = vunpack.c.l.b16 %v1916
    %v4996 = vunpack.c.l.b16 %v1917
    %v4997 = vunpack.c.l.b16 %v1918
    %v4998 = vunpack.c.l.b16 %v1919
    %v4999 = vunpack.c.l.b16 %v1920
    %v5000 = vunpack.c.l.b16 %v1921
    %v5001 = vunpack.c.l.b16 %v1922
    %v5002 = vunpack.c.l.b16 %v1923
    %v5003 = vunpack.c.l.b16 %v1924
    %v5004 = vunpack.c.l.b16 %v1925
    %v5005 = vunpack.c.l.b16 %v1926
    %v5006 = vunpack.c.l.b16 %v1927
    %v5007 = vunpack.c.l.b16 %v1928
    %v5008 = vunpack.c.l.b16 %v1929
    %v5009 = vunpack.c.l.b16 %v1930
    %v5010 = vunpack.c.l.b16 %v1931
    %v5011 = vunpack.c.l.b16 %v1932
    %v5012 = vunpack.c.l.b16 %v1933
    %v5013 = vunpack.c.l.b16 %v1934
    %v5014 = vunpack.c.l.b16 %v1935
    %v5015 = vunpack.c.l.b16 %v1936
    %v5016 = vunpack.c.l.b16 %v1937
    %v5017 = vunpack.c.l.b16 %v1938
    %v5018 = vunpack.c.l.b16 %v1939
    %v5019 = vunpack.c.l.b16 %v1940
    %v5020 = vunpack.c.l.b16 %v1941
    %v5021 = vunpack.c.l.b16 %v1942
    %v5022 = vunpack.c.l.b16 %v1943
    %v5023 = vunpack.c.l.b16 %v1944
    %v5024 = vunpack.c.l.b16 %v1945
    %v5025 = vunpack.c.l.b16 %v1946
    %v5026 = vunpack.c.l.b16 %v1947
    %v5027 = vunpack.c.l.b16 %v1948
    %v5028 = vunpack.c.l.b16 %v1949
    %v5029 = vunpack.c.l.b16 %v1950
    %v5030 = vunpack.c.l.b16 %v1951
    %v5031 = vunpack.c.l.b16 %v1952
    %v5032 = vunpack.c.l.b16 %v1953
    %v5033 = vunpack.c.l.b16 %v1954
    %v5034 = vunpack.c.l.b16 %v1955
    %v5035 = vunpack.c.l.b16 %v1956
    %v5036 = vunpack.c.l.b16 %v1957
    %v5037 = vunpack.c.l.b16 %v1958
    %v5038 = vunpack.c.l.b16 %v1959
    %v5039 = vunpack.c.l.b16 %v1960
    %v5040 = vunpack.c.l.b16 %v1961
    %v5041 = vunpack.c.l.b16 %v1962
    %v5042 = vunpack.c.l.b16 %v1963
    %v5043 = vunpack.c.l.b16 %v1964
    %v5044 = vunpack.c.l.b16 %v1965
    %v5045 = vunpack.c.l.b16 %v1966
    %v5046 = vunpack.c.l.b16 %v1967
    %v5047 = vunpack.c.l.b16 %v1968
    %v5048 = vunpack.c.l.b16 %v1969
    %v5049 = vunpack.c.l.b16 %v1970
    %v5050 = vunpack.c.l.b16 %v1971
    %v5051 = vunpack.c.l.b16 %v1972
    %v5052 = vunpack.c.l.b16 %v1973
    %v5053 = vunpack.c.l.b16 %v1974
    %v5054 = vunpack.c.l.b16 %v1975
    %v5055 = vunpack.c.l.b16 %v1976
    %v5056 = vunpack.c.l.b16 %v1977
    %v5057 = vunpack.c.l.b16 %v1978
    %v5058 = vunpack.c.l.b16 %v1979
    %v5059 = vunpack.c.l.b16 %v1980
    %v5060 = vunpack.c.l.b16 %v1981
    %v5061 = vunpack.c.l.b16 %v1982
    %v5062 = vunpack.c.l.b16 %v1983
    %v5063 = vunpack.c.l.b16 %v1984
    %v5064 = vunpack.c.l.b16 %v1985
    %v5065 = vunpack.c.l.b16 %v1986
    %v5066 = vunpack.c.l.b16 %v1987
    %v5067 = vunpack.c.l.b16 %v1988
    %v5068 = vunpack.c.l.b16 %v1989
    %v5069 = vunpack.c.l.b16 %v1990
    %v5070 = vunpack.c.l.b16 %v1991
    %v5071 = vunpack.c.l.b16 %v1992
    %v5072 = vunpack.c.l.b16 %v1993
    %v5073 = vunpack.c.l.b16 %v1994
    %v5074 = vunpack.c.l.b16 %v1995
    %v5075 = vunpack.c.l.b16 %v1996
    %v5076 = vunpack.c.l.b16 %v1997
    %v5077 = vunpack.c.l.b16 %v1998
    %v5078 = vunpack.c.l.b16 %v1999
    %v5079 = vunpack.c.l.b16 %v2000
    %v5080 = vunpack.c.l.b16 %v2001
    %v5081 = vunpack.c.l.b16 %v2002
    %v5082 = vunpack.c.l.b16 %v2003
    %v5083 = vunpack.c.l.b16 %v2004
    %v5084 = vunpack.c.l.b16 %v2005
    %v5085 = vunpack.c.l.b16 %v2006
    %v5086 = vunpack.c.l.b16 %v2007
    %v5087 = vunpack.c.l.b16 %v2008
    %v5088 = vunpack.c.l.b16 %v2009
    %v5089 = vunpack.c.l.b16 %v2010
    %v5090 = vunpack.c.l.b16 %v2011
    %v5091 = vunpack.c.l.b16 %v2012
    %v5092 = vunpack.c.l.b16 %v2013
    %v5093 = vunpack.c.l.b16 %v2014
    %v5094 = vunpack.c.l.b16 %v2015
    %v5095 = vunpack.c.l.b16 %v2016
    %v5096 = vunpack.c.l.b16 %v2017
    %v5097 = vunpack.c.l.b16 %v2018
    %v5098 = vunpack.c.l.b16 %v2019
    %v5099 = vunpack.c.l.b16 %v2020
    %v5100 = vunpack.c.l.b16 %v2021
    %v5101 = vunpack.c.l.b16 %v2022
    %v5102 = vunpack.c.l.b16 %v2023
    %v5103 = vunpack.c.l.b16 %v2024
    %v5104 = vunpack.c.l.b16 %v2025
    %v5105 = vunpack.c.l.b16 %v2026
    %v5106 = vunpack.c.l.b16 %v2027
    %v5107 = vunpack.c.l.b16 %v2028
    %v5108 = vunpack.c.l.b16 %v2029
    %v5109 = vunpack.c.l.b16 %v2030
    %v5110 = vunpack.c.l.b16 %v2031
    %v5111 = vunpack.c.l.b16 %v2032
    %v5112 = vunpack.c.l.b16 %v2033
    %v5113 = vunpack.c.l.b16 %v2034
    %v5114 = vunpack.c.l.b16 %v2035
    %v5115 = vunpack.c.l.b16 %v2036
    %v5116 = vunpack.c.l.b16 %v2037
    %v5117 = vunpack.c.l.b16 %v2038
    %v5118 = vunpack.c.l.b16 %v2039
    %v5119 = vunpack.c.l.b16 %v2040
    %v5120 = vunpack.c.l.b16 %v2041
    %v5121 = vunpack.c.l.b16 %v2042
    %v5122 = vunpack.c.l.b16 %v2043
    %v5123 = vunpack.c.l.b16 %v2044
    %v5124 = vunpack.c.l.b16 %v2045
    %v5125 = vunpack.c.l.b16 %v2046
    %v5126 = vunpack.c.l.b16 %v2047
    %v5127 = vunpack.c.l.b16 %v2048
    %v5128 = vunpack.c.l.b16 %v2049
    %v5129 = vunpack.c.l.b16 %v2050
    %v5130 = vunpack.c.l.b16 %v2051
    %v5131 = vunpack.c.l.b16 %v2052
    %v5132 = vunpack.c.l.b16 %v2053
    %v5133 = vunpack.c.l.b16 %v2054
    %v5134 = vunpack.c.l.b16 %v2055
    %v5135 = vunpack.c.l.b16 %v2056
    %v5136 = vunpack.c.l.b16 %v2057
    %v5137 = vunpack.c.l.b16 %v2058
    %v5138 = vunpack.c.l.b16 %v2059
    %v5139 = vunpack.c.l.b16 %v2060
    %v5140 = vunpack.c.l.b16 %v2061
    %v5141 = vunpack.c.l.b16 %v2062
    %v5142 = vunpack.c.l.b16 %v2063
    %v5143 = vunpack.c.l.b16 %v2064
    %v5144 = vunpack.c.l.b16 %v2065
    %v5145 = vunpack.c.l.b16 %v2066
    %v5146 = vunpack.c.l.b16 %v2067
    %v5147 = vunpack.c.l.b16 %v2068
    %v5148 = vunpack.c.l.b16 %v2069
    %v5149 = vunpack.c.l.b16 %v2070
    %v5150 = vunpack.c.l.b16 %v2071
    %v5151 = vunpack.c.l.b16 %v2072
    %v5152 = vunpack.c.l.b16 %v2073
    %v5153 = vunpack.c.l.b16 %v2074
    %v5154 = vunpack.c.l.b16 %v2075
    %v5155 = vunpack.c.l.b16 %v2076
    %v5156 = vunpack.c.l.b16 %v2077
    %v5157 = vunpack.c.l.b16 %v2078
    %v5158 = vunpack.c.l.b16 %v2079
    %v5159 = vunpack.c.l.b16 %v2080
    %v5160 = vunpack.c.l.b16 %v2081
    %v5161 = vunpack.c.l.b16 %v2082
    %v5162 = vunpack.c.l.b16 %v2083
    %v5163 = vunpack.c.l.b16 %v2084
    %v5164 = vunpack.c.l.b16 %v2085
    %v5165 = vunpack.c.l.b16 %v2086
    %v5166 = vunpack.c.l.b16 %v2087
    %v5167 = vunpack.c.l.b16 %v2088
    %v5168 = vunpack.c.l.b16 %v2089
    %v5169 = vunpack.c.l.b16 %v2090
    %v5170 = vunpack.c.l.b16 %v2091
    %v5171 = vunpack.c.l.b16 %v2092
    %v5172 = vunpack.c.l.b16 %v2093
    %v5173 = vunpack.c.l.b16 %v2094
    %v5174 = vunpack.c.l.b16 %v2095
    %v5175 = vunpack.c.l.b16 %v2096
    %v5176 = vunpack.c.l.b16 %v2097
    %v5177 = vunpack.c.l.b16 %v2098
    %v5178 = vunpack.c.l.b16 %v2099
    %v5179 = vunpack.c.l.b16 %v2100
    %v5180 = vunpack.c.l.b16 %v2101
    %v5181 = vunpack.c.l.b16 %v2102
    %v5182 = vunpack.c.l.b16 %v2103
    %v5183 = vunpack.c.l.b16 %v2104
    %v5184 = vunpack.c.l.b16 %v2105
    %v5185 = vunpack.c.l.b16 %v2106
    %v5186 = vunpack.c.l.b16 %v2107
    %v5187 = vunpack.c.l.b16 %v2108
    %v5188 = vunpack.c.l.b16 %v2109
    %v5189 = vunpack.c.l.b16 %v2110
    %v5190 = vunpack.c.l.b16 %v2111
    %v5191 = vunpack.c.l.b16 %v2112
    %v5192 = vunpack.c.l.b16 %v2113
    %v5193 = vunpack.c.l.b16 %v2114
    %v5194 = vunpack.c.l.b16 %v2115
    %v5195 = vunpack.c.l.b16 %v2116
    %v5196 = vunpack.c.l.b16 %v2117
    %v5197 = vunpack.c.l.b16 %v2118
    %v5198 = vunpack.c.l.b16 %v2119
    %v5199 = vunpack.c.l.b16 %v2120
    %v5200 = vunpack.c.l.b16 %v2121
    %v5201 = vunpack.c.l.b16 %v2122
    %v5202 = vunpack.c.l.b16 %v2123
    %v5203 = vunpack.c.l.b16 %v2124
    %v5204 = vunpack.c.l.b16 %v2125
    %v5205 = vunpack.c.l.b16 %v2126
    %v5206 = vunpack.c.l.b16 %v2127
    %v5207 = vunpack.c.l.b16 %v2128
    %v5208 = vunpack.c.l.b16 %v2129
    %v5209 = vunpack.c.l.b16 %v2130
    %v5210 = vunpack.c.l.b16 %v2131
    %v5211 = vunpack.c.l.b16 %v2132
    %v5212 = vunpack.c.l.b16 %v2133
    %v5213 = vunpack.c.l.b16 %v2134
    %v5214 = vunpack.c.l.b16 %v2135
    %v5215 = vunpack.c.l.b16 %v2136
    %v5216 = vunpack.c.l.b16 %v2137
    %v5217 = vunpack.c.l.b16 %v2138
    %v5218 = vunpack.c.l.b16 %v2139
    %v5219 = vunpack.c.l.b16 %v2140
    %v5220 = vunpack.c.l.b16 %v2141
    %v5221 = vunpack.c.l.b16 %v2142
    %v5222 = vunpack.c.l.b16 %v2143
    %v5223 = vunpack.c.l.b16 %v2144
    %v5224 = vunpack.c.l.b16 %v2145
    %v5225 = vunpack.c.l.b16 %v2146
    %v5226 = vunpack.c.l.b16 %v2147
    %v5227 = vunpack.c.l.b16 %v2148
    %v5228 = vunpack.c.l.b16 %v2149
    %v5229 = vunpack.c.l.b16 %v2150
    %v5230 = vunpack.c.l.b16 %v2151
    %v5231 = vunpack.c.l.b16 %v2152
    %v5232 = vunpack.c.l.b16 %v2153
    %v5233 = vunpack.c.l.b16 %v2154
    %v5234 = vunpack.c.l.b16 %v2155
    %v5235 = vunpack.c.l.b16 %v2156
    %v5236 = vunpack.c.l.b16 %v2157
    %v5237 = vunpack.c.l.b16 %v2158
    %v5238 = vunpack.c.l.b16 %v2159
    %v5239 = vunpack.c.l.b16 %v2160
    %v5240 = vunpack.c.l.b16 %v2161
    %v5241 = vunpack.c.l.b16 %v2162
    %v5242 = vunpack.c.l.b16 %v2163
    %v5243 = vunpack.c.l.b16 %v2164
    %v5244 = vunpack.c.l.b16 %v2165
    %v5245 = vunpack.c.l.b16 %v2166
    %v5246 = vunpack.c.l.b16 %v2167
    %v5247 = vunpack.c.l.b16 %v2168
    %v5248 = vunpack.c.l.b16 %v2169
    %v5249 = vunpack.c.l.b16 %v2170
    %v5250 = vunpack.c.l.b16 %v2171
    %v5251 = vunpack.c.l.b16 %v2172
    %v5252 = vunpack.c.l.b16 %v2173
    %v5253 = vunpack.c.l.b16 %v2174
    %v5254 = vunpack.c.l.b16 %v2175
    %v5255 = vunpack.c.l.b16 %v2176
    %v5256 = vunpack.c.l.b16 %v2177
    %v5257 = vunpack.c.l.b16 %v2178
    %v5258 = vunpack.c.l.b16 %v2179
    %v5259 = vunpack.c.l.b16 %v2180
    %v5260 = vunpack.c.l.b16 %v2181
    %v5261 = vunpack.c.l.b16 %v2182
    %v5262 = vunpack.c.l.b16 %v2183
    %v5263 = vunpack.c.l.b16 %v2184
    %v5264 = vunpack.c.l.b16 %v2185
    %v5265 = vunpack.c.l.b16 %v2186
    %v5266 = vunpack.c.l.b16 %v2187
    %v5267 = vunpack.c.l.b16 %v2188
    %v5268 = vunpack.c.l.b16 %v2189
    %v5269 = vunpack.c.l.b16 %v2190
    %v5270 = vunpack.c.l.b16 %v2191
    %v5271 = vunpack.c.l.b16 %v2192
    %v5272 = vunpack.c.l.b16 %v2193
    %v5273 = vunpack.c.l.b16 %v2194
    %v5274 = vunpack.c.l.b16 %v2195
    %v5275 = vunpack.c.l.b16 %v2196
    %v5276 = vunpack.c.l.b16 %v2197
    %v5277 = vunpack.c.l.b16 %v2198
    %v5278 = vunpack.c.l.b16 %v2199
    %v5279 = vunpack.c.l.b16 %v2200
    %v5280 = vunpack.c.l.b16 %v2201
    %v5281 = vunpack.c.l.b16 %v2202
    %v5282 = vunpack.c.l.b16 %v2203
    %v5283 = vunpack.c.l.b16 %v2204
    %v5284 = vunpack.c.l.b16 %v2205
    %v5285 = vunpack.c.l.b16 %v2206
    %v5286 = vunpack.c.l.b16 %v2207
    %v5287 = vunpack.c.l.b16 %v2208
    %v5288 = vunpack.c.l.b16 %v2209
    %v5289 = vunpack.c.l.b16 %v2210
    %v5290 = vunpack.c.l.b16 %v2211
    %v5291 = vunpack.c.l.b16 %v2212
    %v5292 = vunpack.c.l.b16 %v2213
    %v5293 = vunpack.c.l.b16 %v2214
    %v5294 = vunpack.c.l.b16 %v2215
    %v5295 = vunpack.c.l.b16 %v2216
    %v5296 = vunpack.c.l.b16 %v2217
    %v5297 = vunpack.c.l.b16 %v2218
    %v5298 = vunpack.c.l.b16 %v2219
    %v5299 = vunpack.c.l.b16 %v2220
    %v5300 = vunpack.c.l.b16 %v2221
    %v5301 = vunpack.c.l.b16 %v2222
    %v5302 = vunpack.c.l.b16 %v2223
    %v5303 = vunpack.c.l.b16 %v2224
    %v5304 = vunpack.c.l.b16 %v2225
    %v5305 = vunpack.c.l.b16 %v2226
    %v5306 = vunpack.c.l.b16 %v2227
    %v5307 = vunpack.c.l.b16 %v2228
    %v5308 = vunpack.c.l.b16 %v2229
    %v5309 = vunpack.c.l.b16 %v2230
    %v5310 = vunpack.c.l.b16 %v2231
    %v5311 = vunpack.c.l.b16 %v2232
    %v5312 = vunpack.c.l.b16 %v2233
    %v5313 = vunpack.c.l.b16 %v2234
    %v5314 = vunpack.c.l.b16 %v2235
    %v5315 = vunpack.c.l.b16 %v2236
    %v5316 = vunpack.c.l.b16 %v2237
    %v5317 = vunpack.c.l.b16 %v2238
    %v5318 = vunpack.c.l.b16 %v2239
    %v5319 = vunpack.c.l.b16 %v2240
    %v5320 = vunpack.c.l.b16 %v2241
    %v5321 = vunpack.c.l.b16 %v2242
    %v5322 = vunpack.c.l.b16 %v2243
    %v5323 = vunpack.c.l.b16 %v2244
    %v5324 = vunpack.c.l.b16 %v2245
    %v5325 = vunpack.c.l.b16 %v2246
    %v5326 = vunpack.c.l.b16 %v2247
    %v5327 = vunpack.c.l.b16 %v2248
    %v5328 = vunpack.c.l.b16 %v2249
    %v5329 = vunpack.c.l.b16 %v2250
    %v5330 = vunpack.c.l.b16 %v2251
    %v5331 = vunpack.c.l.b16 %v2252
    %v5332 = vunpack.c.l.b16 %v2253
    %v5333 = vunpack.c.l.b16 %v2254
    %v5334 = vunpack.c.l.b16 %v2255
    %v5335 = vunpack.c.l.b16 %v2256
    %v5336 = vunpack.c.l.b16 %v2257
    %v5337 = vunpack.c.l.b16 %v2258
    %v5338 = vunpack.c.l.b16 %v2259
    %v5339 = vunpack.c.l.b16 %v2260
    %v5340 = vunpack.c.l.b16 %v2261
    %v5341 = vunpack.c.l.b16 %v2262
    %v5342 = vunpack.c.l.b16 %v2263
    %v5343 = vunpack.c.l.b16 %v2264
    %v5344 = vunpack.c.l.b16 %v2265
    %v5345 = vunpack.c.l.b16 %v2266
    %v5346 = vunpack.c.l.b16 %v2267
    %v5347 = vunpack.c.l.b16 %v2268
    %v5348 = vunpack.c.l.b16 %v2269
    %v5349 = vunpack.c.l.b16 %v2270
    %v5350 = vunpack.c.l.b16 %v2271
    %v5351 = vunpack.c.l.b16 %v2272
    %v5352 = vunpack.c.l.b16 %v2273
    %v5353 = vunpack.c.l.b16 %v2274
    %v5354 = vunpack.c.l.b16 %v2275
    %v5355 = vunpack.c.l.b16 %v2276
    %v5356 = vunpack.c.l.b16 %v2277
    %v5357 = vunpack.c.l.b16 %v2278
    %v5358 = vunpack.c.l.b16 %v2279
    %v5359 = vunpack.c.l.b16 %v2280
    %v5360 = vunpack.c.l.b16 %v2281
    %v5361 = vunpack.c.l.b16 %v2282
    %v5362 = vunpack.c.l.b16 %v2283
    %v5363 = vunpack.c.l.b16 %v2284
    %v5364 = vunpack.c.l.b16 %v2285
    %v5365 = vunpack.c.l.b16 %v2286
    %v5366 = vunpack.c.l.b16 %v2287
    %v5367 = vunpack.c.l.b16 %v2288
    %v5368 = vunpack.c.l.b16 %v2289
    %v5369 = vunpack.c.l.b16 %v2290
    %v5370 = vunpack.c.l.b16 %v2291
    %v5371 = vunpack.c.l.b16 %v2292
    %v5372 = vunpack.c.l.b16 %v2293
    %v5373 = vunpack.c.l.b16 %v2294
    %v5374 = vunpack.c.l.b16 %v2295
    %v5375 = vunpack.c.l.b16 %v2296
    %v5376 = vunpack.c.l.b16 %v2297
    %v5377 = vunpack.c.l.b16 %v2298
    %v5378 = vunpack.c.l.b16 %v2299
    %v5379 = vunpack.c.l.b16 %v2300
    %v5380 = vunpack.c.l.b16 %v2301
    %v5381 = vunpack.c.l.b16 %v2302
    %v5382 = vunpack.c.l.b16 %v2303
    %v5383 = vunpack.c.l.b16 %v2304
    %v5384 = vunpack.c.l.b16 %v2305
    %v5385 = vunpack.c.l.b16 %v2306
    %v5386 = vunpack.c.l.b16 %v2307
    %v5387 = vunpack.c.l.b16 %v2308
    %v5388 = vunpack.c.l.b16 %v2309
    %v5389 = vunpack.c.l.b16 %v2310
    %v5390 = vunpack.c.l.b16 %v2311
    %v5391 = vunpack.c.l.b16 %v2312
    %v5392 = vunpack.c.l.b16 %v2313
    %v5393 = vunpack.c.l.b16 %v2314
    %v5394 = vunpack.c.l.b16 %v2315
    %v5395 = vunpack.c.l.b16 %v2316
    %v5396 = vunpack.c.l.b16 %v2317
    %v5397 = vunpack.c.l.b16 %v2318
    %v5398 = vunpack.c.l.b16 %v2319
    %v5399 = vunpack.c.l.b16 %v2320
    %v5400 = vunpack.c.l.b16 %v2321
    %v5401 = vunpack.c.l.b16 %v2322
    %v5402 = vunpack.c.l.b16 %v2323
    %v5403 = vunpack.c.l.b16 %v2324
    %v5404 = vunpack.c.l.b16 %v2325
    %v5405 = vunpack.c.l.b16 %v2326
    %v5406 = vunpack.c.l.b16 %v2327
    %v5407 = vunpack.c.l.b16 %v2328
    %v5408 = vunpack.c.l.b16 %v2329
    %v5409 = vunpack.c.l.b16 %v2330
    %v5410 = vunpack.c.l.b16 %v2331
    %v5411 = vunpack.c.l.b16 %v2332
    %v5412 = vunpack.c.l.b16 %v2333
    %v5413 = vunpack.c.l.b16 %v2334
    %v5414 = vunpack.c.l.b16 %v2335
    %v5415 = vunpack.c.l.b16 %v2336
    %v5416 = vunpack.c.l.b16 %v2337
    %v5417 = vunpack.c.l.b16 %v2338
    %v5418 = vunpack.c.l.b16 %v2339
    %v5419 = vunpack.c.l.b16 %v2340
    %v5420 = vunpack.c.l.b16 %v2341
    %v5421 = vunpack.c.l.b16 %v2342
    %v5422 = vunpack.c.l.b16 %v2343
    %v5423 = vunpack.c.l.b16 %v2344
    %v5424 = vunpack.c.l.b16 %v2345
    %v5425 = vunpack.c.l.b16 %v2346
    %v5426 = vunpack.c.l.b16 %v2347
    %v5427 = vunpack.c.l.b16 %v2348
    %v5428 = vunpack.c.l.b16 %v2349
    %v5429 = vunpack.c.l.b16 %v2350
    %v5430 = vunpack.c.l.b16 %v2351
    %v5431 = vunpack.c.l.b16 %v2352
    %v5432 = vunpack.c.l.b16 %v2353
    %v5433 = vunpack.c.l.b16 %v2354
    %v5434 = vunpack.c.l.b16 %v2355
    %v5435 = vunpack.c.l.b16 %v2356
    %v5436 = vunpack.c.l.b16 %v2357
    %v5437 = vunpack.c.l.b16 %v2358
    %v5438 = vunpack.c.l.b16 %v2359
    %v5439 = vunpack.c.l.b16 %v2360
    %v5440 = vunpack.c.l.b16 %v2361
    %v5441 = vunpack.c.l.b16 %v2362
    %v5442 = vunpack.c.l.b16 %v2363
    %v5443 = vunpack.c.l.b16 %v2364
    %v5444 = vunpack.c.l.b16 %v2365
    %v5445 = vunpack.c.l.b16 %v2366
    %v5446 = vunpack.c.l.b16 %v2367
    %v5447 = vunpack.c.l.b16 %v2368
    %v5448 = vunpack.c.l.b16 %v2369
    %v5449 = vunpack.c.l.b16 %v2370
    %v5450 = vunpack.c.l.b16 %v2371
    %v5451 = vunpack.c.l.b16 %v2372
    %v5452 = vunpack.c.l.b16 %v2373
    %v5453 = vunpack.c.l.b16 %v2374
    %v5454 = vunpack.c.l.b16 %v2375
    %v5455 = vunpack.c.l.b16 %v2376
    %v5456 = vunpack.c.l.b16 %v2377
    %v5457 = vunpack.c.l.b16 %v2378
    %v5458 = vunpack.c.l.b16 %v2379
    %v5459 = vunpack.c.l.b16 %v2380
    %v5460 = vunpack.c.l.b16 %v2381
    %v5461 = vunpack.c.l.b16 %v2382
    %v5462 = vunpack.c.l.b16 %v2383
    %v5463 = vunpack.c.l.b16 %v2384
    %v5464 = vunpack.c.l.b16 %v2385
    %v5465 = vunpack.c.l.b16 %v2386
    %v5466 = vunpack.c.l.b16 %v2387
    %v5467 = vunpack.c.l.b16 %v2388
    %v5468 = vunpack.c.l.b16 %v2389
    %v5469 = vunpack.c.l.b16 %v2390
    %v5470 = vunpack.c.l.b16 %v2391
    %v5471 = vunpack.c.l.b16 %v2392
    %v5472 = vunpack.c.l.b16 %v2393
    %v5473 = vunpack.c.l.b16 %v2394
    %v5474 = vunpack.c.l.b16 %v2395
    %v5475 = vunpack.c.l.b16 %v2396
    %v5476 = vunpack.c.l.b16 %v2397
    %v5477 = vunpack.c.l.b16 %v2398
    %v5478 = vunpack.c.l.b16 %v2399
    %v5479 = vunpack.c.l.b16 %v2400
    %v5480 = vunpack.c.l.b16 %v2401
    %v5481 = vunpack.c.l.b16 %v2402
    %v5482 = vunpack.c.l.b16 %v2403
    %v5483 = vunpack.c.l.b16 %v2404
    %v5484 = vunpack.c.l.b16 %v2405
    %v5485 = vunpack.c.l.b16 %v2406
    %v5486 = vunpack.c.l.b16 %v2407
    %v5487 = vunpack.c.l.b16 %v2408
    %v5488 = vunpack.c.l.b16 %v2409
    %v5489 = vunpack.c.l.b16 %v2410
    %v5490 = vunpack.c.l.b16 %v2411
    %v5491 = vunpack.c.l.b16 %v2412
    %v5492 = vunpack.c.l.b16 %v2413
    %v5493 = vunpack.c.l.b16 %v2414
    %v5494 = vunpack.c.l.b16 %v2415
    %v5495 = vunpack.c.l.b16 %v2416
    %v5496 = vunpack.c.l.b16 %v2417
    %v5497 = vunpack.c.l.b16 %v2418
    %v5498 = vunpack.c.l.b16 %v2419
    %v5499 = vunpack.c.l.b16 %v2420
    %v5500 = vunpack.c.l.b16 %v2421
    %v5501 = vunpack.c.l.b16 %v2422
    %v5502 = vunpack.c.l.b16 %v2423
    %v5503 = vunpack.c.l.b16 %v2424
    %v5504 = vunpack.c.l.b16 %v2425
    %v5505 = vunpack.c.l.b16 %v2426
    %v5506 = vunpack.c.l.b16 %v2427
    %v5507 = vunpack.c.l.b16 %v2428
    %v5508 = vunpack.c.l.b16 %v2429
    %v5509 = vunpack.c.l.b16 %v2430
    %v5510 = vunpack.c.l.b16 %v2431
    %v5511 = vunpack.c.l.b16 %v2432
    %v5512 = vunpack.c.l.b16 %v2433
    %v5513 = vunpack.c.l.b16 %v2434
    %v5514 = vunpack.c.l.b16 %v2435
    %v5515 = vunpack.c.l.b16 %v2436
    %v5516 = vunpack.c.l.b16 %v2437
    %v5517 = vunpack.c.l.b16 %v2438
    %v5518 = vunpack.c.l.b16 %v2439
    %v5519 = vunpack.c.l.b16 %v2440
    %v5520 = vunpack.c.l.b16 %v2441
    %v5521 = vunpack.c.l.b16 %v2442
    %v5522 = vunpack.c.l.b16 %v2443
    %v5523 = vunpack.c.l.b16 %v2444
    %v5524 = vunpack.c.l.b16 %v2445
    %v5525 = vunpack.c.l.b16 %v2446
    %v5526 = vunpack.c.l.b16 %v2447
    %v5527 = vunpack.c.l.b16 %v2448
    %v5528 = vunpack.c.l.b16 %v2449
    %v5529 = vunpack.c.l.b16 %v2450
    %v5530 = vunpack.c.l.b16 %v2451
    %v5531 = vunpack.c.l.b16 %v2452
    %v5532 = vunpack.c.l.b16 %v2453
    %v5533 = vunpack.c.l.b16 %v2454
    %v5534 = vunpack.c.l.b16 %v2455
    %v5535 = vunpack.c.l.b16 %v2456
    %v5536 = vunpack.c.l.b16 %v2457
    %v5537 = vunpack.c.l.b16 %v2458
    %v5538 = vunpack.c.l.b16 %v2459
    %v5539 = vunpack.c.l.b16 %v2460
    %v5540 = vunpack.c.l.b16 %v2461
    %v5541 = vunpack.c.l.b16 %v2462
    %v5542 = vunpack.c.l.b16 %v2463
    %v5543 = vunpack.c.l.b16 %v2464
    %v5544 = vunpack.c.l.b16 %v2465
    %v5545 = vunpack.c.l.b16 %v2466
    %v5546 = vunpack.c.l.b16 %v2467
    %v5547 = vunpack.c.l.b16 %v2468
    %v5548 = vunpack.c.l.b16 %v2469
    %v5549 = vunpack.c.l.b16 %v2470
    %v5550 = vunpack.c.l.b16 %v2471
    %v5551 = vunpack.c.l.b16 %v2472
    %v5552 = vunpack.c.l.b16 %v2473
    %v5553 = vunpack.c.l.b16 %v2474
    %v5554 = vunpack.c.l.b16 %v2475
    %v5555 = vunpack.c.l.b16 %v2476
    %v5556 = vunpack.c.l.b16 %v2477
    %v5557 = vunpack.c.l.b16 %v2478
    %v5558 = vunpack.c.l.b16 %v2479
    %v5559 = vunpack.c.l.b16 %v2480
    %v5560 = vunpack.c.l.b16 %v2481
    %v5561 = vunpack.c.l.b16 %v2482
    %v5562 = vunpack.c.l.b16 %v2483
    %v5563 = vunpack.c.l.b16 %v2484
    %v5564 = vunpack.c.l.b16 %v2485
    %v5565 = vunpack.c.l.b16 %v2486
    %v5566 = vunpack.c.l.b16 %v2487
    %v5567 = vunpack.c.l.b16 %v2488
    %v5568 = vunpack.c.l.b16 %v2489
    %v5569 = vunpack.c.l.b16 %v2490
    %v5570 = vunpack.c.l.b16 %v2491
    %v5571 = vunpack.c.l.b16 %v2492
    %v5572 = vunpack.c.l.b16 %v2493
    %v5573 = vunpack.c.l.b16 %v2494
    %v5574 = vunpack.c.l.b16 %v2495
    %v5575 = vunpack.c.l.b16 %v2496
    %v5576 = vunpack.c.l.b16 %v2497
    %v5577 = vunpack.c.l.b16 %v2498
    %v5578 = vunpack.c.l.b16 %v2499
    %v5579 = vunpack.c.l.b16 %v2500
    %v5580 = vunpack.c.l.b16 %v2501
    %v5581 = vunpack.c.l.b16 %v2502
    %v5582 = vunpack.c.l.b16 %v2503
    %v5583 = vunpack.c.l.b16 %v2504
    %v5584 = vunpack.c.l.b16 %v2505
    %v5585 = vunpack.c.l.b16 %v2506
    %v5586 = vunpack.c.l.b16 %v2507
    %v5587 = vunpack.c.l.b16 %v2508
    %v5588 = vunpack.c.l.b16 %v2509
    %v5589 = vunpack.c.l.b16 %v2510
    %v5590 = vunpack.c.l.b16 %v2511
    %v5591 = vunpack.c.l.b16 %v2512
    %v5592 = vunpack.c.l.b16 %v2513
    %v5593 = vunpack.c.l.b16 %v2514
    %v5594 = vunpack.c.l.b16 %v2515
    %v5595 = vunpack.c.l.b16 %v2516
    %v5596 = vunpack.c.l.b16 %v2517
    %v5597 = vunpack.c.l.b16 %v2518
    %v5598 = vunpack.c.l.b16 %v2519
    %v5599 = vunpack.c.l.b16 %v2520
    %v5600 = vunpack.c.l.b16 %v2521
    %v5601 = vunpack.c.l.b16 %v2522
    %v5602 = vunpack.c.l.b16 %v2523
    %v5603 = vunpack.c.l.b16 %v2524
    %v5604 = vunpack.c.l.b16 %v2525
    %v5605 = vunpack.c.l.b16 %v2526
    %v5606 = vunpack.c.l.b16 %v2527
    %v5607 = vunpack.c.l.b16 %v2528
    %v5608 = vunpack.c.l.b16 %v2529
    %v5609 = vunpack.c.l.b16 %v2530
    %v5610 = vunpack.c.l.b16 %v2531
    %v5611 = vunpack.c.l.b16 %v2532
    %v5612 = vunpack.c.l.b16 %v2533
    %v5613 = vunpack.c.l.b16 %v2534
    %v5614 = vunpack.c.l.b16 %v2535
    %v5615 = vunpack.c.l.b16 %v2536
    %v5616 = vunpack.c.l.b16 %v2537
    %v5617 = vunpack.c.l.b16 %v2538
    %v5618 = vunpack.c.l.b16 %v2539
    %v5619 = vunpack.c.l.b16 %v2540
    %v5620 = vunpack.c.l.b16 %v2541
    %v5621 = vunpack.c.l.b16 %v2542
    %v5622 = vunpack.c.l.b16 %v2543
    %v5623 = vunpack.c.l.b16 %v2544
    %v5624 = vunpack.c.l.b16 %v2545
    %v5625 = vunpack.c.l.b16 %v2546
    %v5626 = vunpack.c.l.b16 %v2547
    %v5627 = vunpack.c.l.b16 %v2548
    %v5628 = vunpack.c.l.b16 %v2549
    %v5629 = vunpack.c.l.b16 %v2550
    %v5630 = vunpack.c.l.b16 %v2551
    %v5631 = vunpack.c.l.b16 %v2552
    %v5632 = vunpack.c.l.b16 %v2553
    %v5633 = vunpack.c.l.b16 %v2554
    %v5634 = vunpack.c.l.b16 %v2555
    %v5635 = vunpack.c.l.b16 %v2556
    %v5636 = vunpack.c.l.b16 %v2557
    %v5637 = vunpack.c.l.b16 %v2558
    %v5638 = vunpack.c.l.b16 %v2559
    %v5639 = vunpack.c.l.b16 %v2560
    %v5640 = vunpack.c.l.b16 %v2561
    %v5641 = vunpack.c.l.b16 %v2562
    %v5642 = vunpack.c.l.b16 %v2563
    %v5643 = vunpack.c.l.b16 %v2564
    %v5644 = vunpack.c.l.b16 %v2565
    %v5645 = vunpack.c.l.b16 %v2566
    %v5646 = vunpack.c.l.b16 %v2567
    %v5647 = vunpack.c.l.b16 %v2568
    %v5648 = vunpack.c.l.b16 %v2569
    %v5649 = vunpack.c.l.b16 %v2570
    %v5650 = vunpack.c.l.b16 %v2571
    %v5651 = vunpack.c.l.b16 %v2572
    %v5652 = vunpack.c.l.b16 %v2573
    %v5653 = vunpack.c.l.b16 %v2574
    %v5654 = vunpack.c.l.b16 %v2575
    %v5655 = vunpack.c.l.b16 %v2576
    %v5656 = vunpack.c.l.b16 %v2577
    %v5657 = vunpack.c.l.b16 %v2578
    %v5658 = vunpack.c.l.b16 %v2579
    %v5659 = vunpack.c.l.b16 %v2580
    %v5660 = vunpack.c.l.b16 %v2581
    %v5661 = vunpack.c.l.b16 %v2582
    %v5662 = vunpack.c.l.b16 %v2583
    %v5663 = vunpack.c.l.b16 %v2584
    %v5664 = vunpack.c.l.b16 %v2585
    %v5665 = vunpack.c.l.b16 %v2586
    %v5666 = vunpack.c.l.b16 %v2587
    %v5667 = vunpack.c.l.b16 %v2588
    %v5668 = vunpack.c.l.b16 %v2589
    %v5669 = vunpack.c.l.b16 %v2590
    %v5670 = vunpack.c.l.b16 %v2591
    %v5671 = vunpack.c.l.b16 %v2592
    %v5672 = vunpack.c.l.b16 %v2593
    %v5673 = vunpack.c.l.b16 %v2594
    %v5674 = vunpack.c.l.b16 %v2595
    %v5675 = vunpack.c.l.b16 %v2596
    %v5676 = vunpack.c.l.b16 %v2597
    %v5677 = vunpack.c.l.b16 %v2598
    %v5678 = vunpack.c.l.b16 %v2599
    %v5679 = vunpack.c.l.b16 %v2600
    %v5680 = vunpack.c.l.b16 %v2601
    %v5681 = vunpack.c.l.b16 %v2602
    %v5682 = vunpack.c.l.b16 %v2603
    %v5683 = vunpack.c.l.b16 %v2604
    %v5684 = vunpack.c.l.b16 %v2605
    %v5685 = vunpack.c.l.b16 %v2606
    %v5686 = vunpack.c.l.b16 %v2607
    %v5687 = vunpack.c.l.b16 %v2608
    %v5688 = vunpack.c.l.b16 %v2609
    %v5689 = vunpack.c.l.b16 %v2610
    %v5690 = vunpack.c.l.b16 %v2611
    %v5691 = vunpack.c.l.b16 %v2612
    %v5692 = vunpack.c.l.b16 %v2613
    %v5693 = vunpack.c.l.b16 %v2614
    %v5694 = vunpack.c.l.b16 %v2615
    %v5695 = vunpack.c.l.b16 %v2616
    %v5696 = vunpack.c.l.b16 %v2617
    %v5697 = vunpack.c.l.b16 %v2618
    %v5698 = vunpack.c.l.b16 %v2619
    %v5699 = vunpack.c.l.b16 %v2620
    %v5700 = vunpack.c.l.b16 %v2621
    %v5701 = vunpack.c.l.b16 %v2622
    %v5702 = vunpack.c.l.b16 %v2623
    %v5703 = vunpack.c.l.b16 %v2624
    %v5704 = vunpack.c.l.b16 %v2625
    %v5705 = vunpack.c.l.b16 %v2626
    %v5706 = vunpack.c.l.b16 %v2627
    %v5707 = vunpack.c.l.b16 %v2628
    %v5708 = vunpack.c.l.b16 %v2629
    %v5709 = vunpack.c.l.b16 %v2630
    %v5710 = vunpack.c.l.b16 %v2631
    %v5711 = vunpack.c.l.b16 %v2632
    %v5712 = vunpack.c.l.b16 %v2633
    %v5713 = vunpack.c.l.b16 %v2634
    %v5714 = vunpack.c.l.b16 %v2635
    %v5715 = vunpack.c.l.b16 %v2636
    %v5716 = vunpack.c.l.b16 %v2637
    %v5717 = vunpack.c.l.b16 %v2638
    %v5718 = vunpack.c.l.b16 %v2639
    %v5719 = vunpack.c.l.b16 %v2640
    %v5720 = vunpack.c.l.b16 %v2641
    %v5721 = vunpack.c.l.b16 %v2642
    %v5722 = vunpack.c.l.b16 %v2643
    %v5723 = vunpack.c.l.b16 %v2644
    %v5724 = vunpack.c.l.b16 %v2645
    %v5725 = vunpack.c.l.b16 %v2646
    %v5726 = vunpack.c.l.b16 %v2647
    %v5727 = vunpack.c.l.b16 %v2648
    %v5728 = vunpack.c.l.b16 %v2649
    %v5729 = vunpack.c.l.b16 %v2650
    %v5730 = vunpack.c.l.b16 %v2651
    %v5731 = vunpack.c.l.b16 %v2652
    %v5732 = vunpack.c.l.b16 %v2653
    %v5733 = vunpack.c.l.b16 %v2654
    %v5734 = vunpack.c.l.b16 %v2655
    %v5735 = vunpack.c.l.b16 %v2656
    %v5736 = vunpack.c.l.b16 %v2657
    %v5737 = vunpack.c.l.b16 %v2658
    %v5738 = vunpack.c.l.b16 %v2659
    %v5739 = vunpack.c.l.b16 %v2660
    %v5740 = vunpack.c.l.b16 %v2661
    %v5741 = vunpack.c.l.b16 %v2662
    %v5742 = vunpack.c.l.b16 %v2663
    %v5743 = vunpack.c.l.b16 %v2664
    %v5744 = vunpack.c.l.b16 %v2665
    %v5745 = vunpack.c.l.b16 %v2666
    %v5746 = vunpack.c.l.b16 %v2667
    %v5747 = vunpack.c.l.b16 %v2668
    %v5748 = vunpack.c.l.b16 %v2669
    %v5749 = vunpack.c.l.b16 %v2670
    %v5750 = vunpack.c.l.b16 %v2671
    %v5751 = vunpack.c.l.b16 %v2672
    %v5752 = vunpack.c.l.b16 %v2673
    %v5753 = vunpack.c.l.b16 %v2674
    %v5754 = vunpack.c.l.b16 %v2675
    %v5755 = vunpack.c.l.b16 %v2676
    %v5756 = vunpack.c.l.b16 %v2677
    %v5757 = vunpack.c.l.b16 %v2678
    %v5758 = vunpack.c.l.b16 %v2679
    %v5759 = vunpack.c.l.b16 %v2680
    %v5760 = vunpack.c.l.b16 %v2681
    %v5761 = vunpack.c.l.b16 %v2682
    %v5762 = vunpack.c.l.b16 %v2683
    %v5763 = vunpack.c.l.b16 %v2684
    %v5764 = vunpack.c.l.b16 %v2685
    %v5765 = vunpack.c.l.b16 %v2686
    %v5766 = vunpack.c.l.b16 %v2687
    %v5767 = vunpack.c.l.b16 %v2688
    %v5768 = vunpack.c.l.b16 %v2689
    %v5769 = vunpack.c.l.b16 %v2690
    %v5770 = vunpack.c.l.b16 %v2691
    %v5771 = vunpack.c.l.b16 %v2692
    %v5772 = vunpack.c.l.b16 %v2693
    %v5773 = vunpack.c.l.b16 %v2694
    %v5774 = vunpack.c.l.b16 %v2695
    %v5775 = vunpack.c.l.b16 %v2696
    %v5776 = vunpack.c.l.b16 %v2697
    %v5777 = vunpack.c.l.b16 %v2698
    %v5778 = vunpack.c.l.b16 %v2699
    %v5779 = vunpack.c.l.b16 %v2700
    %v5780 = vunpack.c.l.b16 %v2701
    %v5781 = vunpack.c.l.b16 %v2702
    %v5782 = vunpack.c.l.b16 %v2703
    %v5783 = vunpack.c.l.b16 %v2704
    %v5784 = vunpack.c.l.b16 %v2705
    %v5785 = vunpack.c.l.b16 %v2706
    %v5786 = vunpack.c.l.b16 %v2707
    %v5787 = vunpack.c.l.b16 %v2708
    %v5788 = vunpack.c.l.b16 %v2709
    %v5789 = vunpack.c.l.b16 %v2710
    %v5790 = vunpack.c.l.b16 %v2711
    %v5791 = vunpack.c.l.b16 %v2712
    %v5792 = vunpack.c.l.b16 %v2713
    %v5793 = vunpack.c.l.b16 %v2714
    %v5794 = vunpack.c.l.b16 %v2715
    %v5795 = vunpack.c.l.b16 %v2716
    %v5796 = vunpack.c.l.b16 %v2717
    %v5797 = vunpack.c.l.b16 %v2718
    %v5798 = vunpack.c.l.b16 %v2719
    %v5799 = vunpack.c.l.b16 %v2720
    %v5800 = vunpack.c.l.b16 %v2721
    %v5801 = vunpack.c.l.b16 %v2722
    %v5802 = vunpack.c.l.b16 %v2723
    %v5803 = vunpack.c.l.b16 %v2724
    %v5804 = vunpack.c.l.b16 %v2725
    %v5805 = vunpack.c.l.b16 %v2726
    %v5806 = vunpack.c.l.b16 %v2727
    %v5807 = vunpack.c.l.b16 %v2728
    %v5808 = vunpack.c.l.b16 %v2729
    %v5809 = vunpack.c.l.b16 %v2730
    %v5810 = vunpack.c.l.b16 %v2731
    %v5811 = vunpack.c.l.b16 %v2732
    %v5812 = vunpack.c.l.b16 %v2733
    %v5813 = vunpack.c.l.b16 %v2734
    %v5814 = vunpack.c.l.b16 %v2735
    %v5815 = vunpack.c.l.b16 %v2736
    %v5816 = vunpack.c.l.b16 %v2737
    %v5817 = vunpack.c.l.b16 %v2738
    %v5818 = vunpack.c.l.b16 %v2739
    %v5819 = vunpack.c.l.b16 %v2740
    %v5820 = vunpack.c.l.b16 %v2741
    %v5821 = vunpack.c.l.b16 %v2742
    %v5822 = vunpack.c.l.b16 %v2743
    %v5823 = vunpack.c.l.b16 %v2744
    %v5824 = vunpack.c.l.b16 %v2745
    %v5825 = vunpack.c.l.b16 %v2746
    %v5826 = vunpack.c.l.b16 %v2747
    %v5827 = vunpack.c.l.b16 %v2748
    %v5828 = vunpack.c.l.b16 %v2749
    %v5829 = vunpack.c.l.b16 %v2750
    %v5830 = vunpack.c.l.b16 %v2751
    %v5831 = vunpack.c.l.b16 %v2752
    %v5832 = vunpack.c.l.b16 %v2753
    %v5833 = vunpack.c.l.b16 %v2754
    %v5834 = vunpack.c.l.b16 %v2755
    %v5835 = vunpack.c.l.b16 %v2756
    %v5836 = vunpack.c.l.b16 %v2757
    %v5837 = vunpack.c.l.b16 %v2758
    %v5838 = vunpack.c.l.b16 %v2759
    %v5839 = vunpack.c.l.b16 %v2760
    %v5840 = vunpack.c.l.b16 %v2761
    %v5841 = vunpack.c.l.b16 %v2762
    %v5842 = vunpack.c.l.b16 %v2763
    %v5843 = vunpack.c.l.b16 %v2764
    %v5844 = vunpack.c.l.b16 %v2765
    %v5845 = vunpack.c.l.b16 %v2766
    %v5846 = vunpack.c.l.b16 %v2767
    %v5847 = vunpack.c.l.b16 %v2768
    %v5848 = vunpack.c.l.b16 %v2769
    %v5849 = vunpack.c.l.b16 %v2770
    %v5850 = vunpack.c.l.b16 %v2771
    %v5851 = vunpack.c.l.b16 %v2772
    %v5852 = vunpack.c.l.b16 %v2773
    %v5853 = vunpack.c.l.b16 %v2774
    %v5854 = vunpack.c.l.b16 %v2775
    %v5855 = vunpack.c.l.b16 %v2776
    %v5856 = vunpack.c.l.b16 %v2777
    %v5857 = vunpack.c.l.b16 %v2778
    %v5858 = vunpack.c.l.b16 %v2779
    %v5859 = vunpack.c.l.b16 %v2780
    %v5860 = vunpack.c.l.b16 %v2781
    %v5861 = vunpack.c.l.b16 %v2782
    %v5862 = vunpack.c.l.b16 %v2783
    %v5863 = vunpack.c.l.b16 %v2784
    %v5864 = vunpack.c.l.b16 %v2785
    %v5865 = vunpack.c.l.b16 %v2786
    %v5866 = vunpack.c.l.b16 %v2787
    %v5867 = vunpack.c.l.b16 %v2788
    %v5868 = vunpack.c.l.b16 %v2789
    %v5869 = vunpack.c.l.b16 %v2790
    %v5870 = vunpack.c.l.b16 %v2791
    %v5871 = vunpack.c.l.b16 %v2792
    %v5872 = vunpack.c.l.b16 %v2793
    %v5873 = vunpack.c.l.b16 %v2794
    %v5874 = vunpack.c.l.b16 %v2795
    %v5875 = vunpack.c.l.b16 %v2796
    %v5876 = vunpack.c.l.b16 %v2797
    %v5877 = vunpack.c.l.b16 %v2798
    %v5878 = vunpack.c.l.b16 %v2799
    %v5879 = vunpack.c.l.b16 %v2800
    %v5880 = vunpack.c.l.b16 %v2801
    %v5881 = vunpack.c.l.b16 %v2802
    %v5882 = vunpack.c.l.b16 %v2803
    %v5883 = vunpack.c.l.b16 %v2804
    %v5884 = vunpack.c.l.b16 %v2805
    %v5885 = vunpack.c.l.b16 %v2806
    %v5886 = vunpack.c.l.b16 %v2807
    %v5887 = vunpack.c.l.b16 %v2808
    %v5888 = vunpack.c.l.b16 %v2809
    %v5889 = vunpack.c.l.b16 %v2810
    %v5890 = vunpack.c.l.b16 %v2811
    %v5891 = vunpack.c.l.b16 %v2812
    %v5892 = vunpack.c.l.b16 %v2813
    %v5893 = vunpack.c.l.b16 %v2814
    %v5894 = vunpack.c.l.b16 %v2815
    %v5895 = vunpack.c.l.b16 %v2816
    %v5896 = vunpack.c.l.b16 %v2817
    %v5897 = vunpack.c.l.b16 %v2818
    %v5898 = vunpack.c.l.b16 %v2819
    %v5899 = vunpack.c.l.b16 %v2820
    %v5900 = vunpack.c.l.b16 %v2821
    %v5901 = vunpack.c.l.b16 %v2822
    %v5902 = vunpack.c.l.b16 %v2823
    %v5903 = vunpack.c.l.b16 %v2824
    %v5904 = vunpack.c.l.b16 %v2825
    %v5905 = vunpack.c.l.b16 %v2826
    %v5906 = vunpack.c.l.b16 %v2827
    %v5907 = vunpack.c.l.b16 %v2828
    %v5908 = vunpack.c.l.b16 %v2829
    %v5909 = vunpack.c.l.b16 %v2830
    %v5910 = vunpack.c.l.b16 %v2831
    %v5911 = vunpack.c.l.b16 %v2832
    %v5912 = vunpack.c.l.b16 %v2833
    %v5913 = vunpack.c.l.b16 %v2834
    %v5914 = vunpack.c.l.b16 %v2835
    %v5915 = vunpack.c.l.b16 %v2836
    %v5916 = vunpack.c.l.b16 %v2837
    %v5917 = vunpack.c.l.b16 %v2838
    %v5918 = vunpack.c.l.b16 %v2839
    %v5919 = vunpack.c.l.b16 %v2840
    %v5920 = vunpack.c.l.b16 %v2841
    %v5921 = vunpack.c.l.b16 %v2842
    %v5922 = vunpack.c.l.b16 %v2843
    %v5923 = vunpack.c.l.b16 %v2844
    %v5924 = vunpack.c.l.b16 %v2845
    %v5925 = vunpack.c.l.b16 %v2846
    %v5926 = vunpack.c.l.b16 %v2847
    %v5927 = vunpack.c.l.b16 %v2848
    %v5928 = vunpack.c.l.b16 %v2849
    %v5929 = vunpack.c.l.b16 %v2850
    %v5930 = vunpack.c.l.b16 %v2851
    %v5931 = vunpack.c.l.b16 %v2852
    %v5932 = vunpack.c.l.b16 %v2853
    %v5933 = vunpack.c.l.b16 %v2854
    %v5934 = vunpack.c.l.b16 %v2855
    %v5935 = vunpack.c.l.b16 %v2856
    %v5936 = vunpack.c.l.b16 %v2857
    %v5937 = vunpack.c.l.b16 %v2858
    %v5938 = vunpack.c.l.b16 %v2859
    %v5939 = vunpack.c.l.b16 %v2860
    %v5940 = vunpack.c.l.b16 %v2861
    %v5941 = vunpack.c.l.b16 %v2862
    %v5942 = vunpack.c.l.b16 %v2863
    %v5943 = vunpack.c.l.b16 %v2864
    %v5944 = vunpack.c.l.b16 %v2865
    %v5945 = vunpack.c.l.b16 %v2866
    %v5946 = vunpack.c.l.b16 %v2867
    %v5947 = vunpack.c.l.b16 %v2868
    %v5948 = vunpack.c.l.b16 %v2869
    %v5949 = vunpack.c.l.b16 %v2870
    %v5950 = vunpack.c.l.b16 %v2871
    %v5951 = vunpack.c.l.b16 %v2872
    %v5952 = vunpack.c.l.b16 %v2873
    %v5953 = vunpack.c.l.b16 %v2874
    %v5954 = vunpack.c.l.b16 %v2875
    %v5955 = vunpack.c.l.b16 %v2876
    %v5956 = vunpack.c.l.b16 %v2877
    %v5957 = vunpack.c.l.b16 %v2878
    %v5958 = vunpack.c.l.b16 %v2879
    %v5959 = vunpack.c.l.b16 %v2880
    %v5960 = vunpack.c.l.b16 %v2881
    %v5961 = vunpack.c.l.b16 %v2882
    %v5962 = vunpack.c.l.b16 %v2883
    %v5963 = vunpack.c.l.b16 %v2884
    %v5964 = vunpack.c.l.b16 %v2885
    %v5965 = vunpack.c.l.b16 %v2886
    %v5966 = vunpack.c.l.b16 %v2887
    %v5967 = vunpack.c.l.b16 %v2888
    %v5968 = vunpack.c.l.b16 %v2889
    %v5969 = vpack.c.b16 %v4434, %v4433
    %v5970 = vpack.c.b16 %v4436, %v4435
    %v5971 = vpack.c.b16 %v4438, %v4437
    %v5972 = vpack.c.b16 %v4440, %v4439
    %v5973 = vpack.c.b16 %v4442, %v4441
    %v5974 = vpack.c.b16 %v4444, %v4443
    %v5975 = vpack.c.b16 %v4446, %v4445
    %v5976 = vpack.c.b16 %v4448, %v4447
    %v5977 = vpack.c.b16 %v4450, %v4449
    %v5978 = vpack.c.b16 %v4452, %v4451
    %v5979 = vpack.c.b16 %v4454, %v4453
    %v5980 = vpack.c.b16 %v4456, %v4455
    %v5981 = vpack.c.b16 %v4458, %v4457
    %v5982 = vpack.c.b16 %v4460, %v4459
    %v5983 = vpack.c.b16 %v4462, %v4461
    %v5984 = vpack.c.b16 %v4464, %v4463
    %v5985 = vpack.c.b16 %v4466, %v4465
    %v5986 = vpack.c.b16 %v4468, %v4467
    %v5987 = vpack.c.b16 %v4470, %v4469
    %v5988 = vpack.c.b16 %v4472, %v4471
    %v5989 = vpack.c.b16 %v4474, %v4473
    %v5990 = vpack.c.b16 %v4476, %v4475
    %v5991 = vpack.c.b16 %v4478, %v4477
    %v5992 = vpack.c.b16 %v4480, %v4479
    %v5993 = vpack.c.b16 %v4482, %v4481
    %v5994 = vpack.c.b16 %v4484, %v4483
    %v5995 = vpack.c.b16 %v4486, %v4485
    %v5996 = vpack.c.b16 %v4488, %v4487
    %v5997 = vpack.c.b16 %v4490, %v4489
    %v5998 = vpack.c.b16 %v4492, %v4491
    %v5999 = vpack.c.b16 %v4494, %v4493
    %v6000 = vpack.c.b16 %v4496, %v4495
    %v6001 = vpack.c.b16 %v4498, %v4497
    %v6002 = vpack.c.b16 %v4500, %v4499
    %v6003 = vpack.c.b16 %v4502, %v4501
    %v6004 = vpack.c.b16 %v4504, %v4503
    %v6005 = vpack.c.b16 %v4506, %v4505
    %v6006 = vpack.c.b16 %v4508, %v4507
    %v6007 = vpack.c.b16 %v4510, %v4509
    %v6008 = vpack.c.b16 %v4512, %v4511
    %v6009 = vpack.c.b16 %v4514, %v4513
    %v6010 = vpack.c.b16 %v4516, %v4515
    %v6011 = vpack.c.b16 %v4518, %v4517
    %v6012 = vpack.c.b16 %v4520, %v4519
    %v6013 = vpack.c.b16 %v4522, %v4521
    %v6014 = vpack.c.b16 %v4524, %v4523
    %v6015 = vpack.c.b16 %v4526, %v4525
    %v6016 = vpack.c.b16 %v4528, %v4527
    %v6017 = vpack.c.b16 %v4530, %v4529
    %v6018 = vpack.c.b16 %v4532, %v4531
    %v6019 = vpack.c.b16 %v4534, %v4533
    %v6020 = vpack.c.b16 %v4536, %v4535
    %v6021 = vpack.c.b16 %v4538, %v4537
    %v6022 = vpack.c.b16 %v4540, %v4539
    %v6023 = vpack.c.b16 %v4542, %v4541
    %v6024 = vpack.c.b16 %v4544, %v4543
    %v6025 = vpack.c.b16 %v4546, %v4545
    %v6026 = vpack.c.b16 %v4548, %v4547
    %v6027 = vpack.c.b16 %v4550, %v4549
    %v6028 = vpack.c.b16 %v4552, %v4551
    %v6029 = vpack.c.b16 %v4554, %v4553
    %v6030 = vpack.c.b16 %v4556, %v4555
    %v6031 = vpack.c.b16 %v4558, %v4557
    %v6032 = vpack.c.b16 %v4560, %v4559
    %v6033 = vpack.c.b16 %v4562, %v4561
    %v6034 = vpack.c.b16 %v4564, %v4563
    %v6035 = vpack.c.b16 %v4566, %v4565
    %v6036 = vpack.c.b16 %v4568, %v4567
    %v6037 = vpack.c.b16 %v4570, %v4569
    %v6038 = vpack.c.b16 %v4572, %v4571
    %v6039 = vpack.c.b16 %v4574, %v4573
    %v6040 = vpack.c.b16 %v4576, %v4575
    %v6041 = vpack.c.b16 %v4578, %v4577
    %v6042 = vpack.c.b16 %v4580, %v4579
    %v6043 = vpack.c.b16 %v4582, %v4581
    %v6044 = vpack.c.b16 %v4584, %v4583
    %v6045 = vpack.c.b16 %v4586, %v4585
    %v6046 = vpack.c.b16 %v4588, %v4587
    %v6047 = vpack.c.b16 %v4590, %v4589
    %v6048 = vpack.c.b16 %v4592, %v4591
    %v6049 = vpack.c.b16 %v4594, %v4593
    %v6050 = vpack.c.b16 %v4596, %v4595
    %v6051 = vpack.c.b16 %v4598, %v4597
    %v6052 = vpack.c.b16 %v4600, %v4599
    %v6053 = vpack.c.b16 %v4602, %v4601
    %v6054 = vpack.c.b16 %v4604, %v4603
    %v6055 = vpack.c.b16 %v4606, %v4605
    %v6056 = vpack.c.b16 %v4608, %v4607
    %v6057 = vpack.c.b16 %v4610, %v4609
    %v6058 = vpack.c.b16 %v4612, %v4611
    %v6059 = vpack.c.b16 %v4614, %v4613
    %v6060 = vpack.c.b16 %v4616, %v4615
    %v6061 = vpack.c.b16 %v4618, %v4617
    %v6062 = vpack.c.b16 %v4620, %v4619
    %v6063 = vpack.c.b16 %v4622, %v4621
    %v6064 = vpack.c.b16 %v4624, %v4623
    %v6065 = vpack.c.b16 %v4626, %v4625
    %v6066 = vpack.c.b16 %v4628, %v4627
    %v6067 = vpack.c.b16 %v4630, %v4629
    %v6068 = vpack.c.b16 %v4632, %v4631
    %v6069 = vpack.c.b16 %v4634, %v4633
    %v6070 = vpack.c.b16 %v4636, %v4635
    %v6071 = vpack.c.b16 %v4638, %v4637
    %v6072 = vpack.c.b16 %v4640, %v4639
    %v6073 = vpack.c.b16 %v4642, %v4641
    %v6074 = vpack.c.b16 %v4644, %v4643
    %v6075 = vpack.c.b16 %v4646, %v4645
    %v6076 = vpack.c.b16 %v4648, %v4647
    %v6077 = vpack.c.b16 %v4650, %v4649
    %v6078 = vpack.c.b16 %v4652, %v4651
    %v6079 = vpack.c.b16 %v4654, %v4653
    %v6080 = vpack.c.b16 %v4656, %v4655
    %v6081 = vpack.c.b16 %v4658, %v4657
    %v6082 = vpack.c.b16 %v4660, %v4659
    %v6083 = vpack.c.b16 %v4662, %v4661
    %v6084 = vpack.c.b16 %v4664, %v4663
    %v6085 = vpack.c.b16 %v4666, %v4665
    %v6086 = vpack.c.b16 %v4668, %v4667
    %v6087 = vpack.c.b16 %v4670, %v4669
    %v6088 = vpack.c.b16 %v4672, %v4671
    %v6089 = vpack.c.b16 %v4674, %v4673
    %v6090 = vpack.c.b16 %v4676, %v4675
    %v6091 = vpack.c.b16 %v4678, %v4677
    %v6092 = vpack.c.b16 %v4680, %v4679
    %v6093 = vpack.c.b16 %v4682, %v4681
    %v6094 = vpack.c.b16 %v4684, %v4683
    %v6095 = vpack.c.b16 %v4686, %v4685
    %v6096 = vpack.c.b16 %v4688, %v4687
    %v6097 = vpack.c.b16 %v4690, %v4689
    %v6098 = vpack.c.b16 %v4692, %v4691
    %v6099 = vpack.c.b16 %v4694, %v4693
    %v6100 = vpack.c.b16 %v4696, %v4695
    %v6101 = vpack.c.b16 %v4698, %v4697
    %v6102 = vpack.c.b16 %v4700, %v4699
    %v6103 = vpack.c.b16 %v4702, %v4701
    %v6104 = vpack.c.b16 %v4704, %v4703
    %v6105 = vpack.c.b16 %v4706, %v4705
    %v6106 = vpack.c.b16 %v4708, %v4707
    %v6107 = vpack.c.b16 %v4710, %v4709
    %v6108 = vpack.c.b16 %v4712, %v4711
    %v6109 = vpack.c.b16 %v4714, %v4713
    %v6110 = vpack.c.b16 %v4716, %v4715
    %v6111 = vpack.c.b16 %v4718, %v4717
    %v6112 = vpack.c.b16 %v4720, %v4719
    %v6113 = vpack.c.b16 %v4722, %v4721
    %v6114 = vpack.c.b16 %v4724, %v4723
    %v6115 = vpack.c.b16 %v4726, %v4725
    %v6116 = vpack.c.b16 %v4728, %v4727
    %v6117 = vpack.c.b16 %v4730, %v4729
    %v6118 = vpack.c.b16 %v4732, %v4731
    %v6119 = vpack.c.b16 %v4734, %v4733
    %v6120 = vpack.c.b16 %v4736, %v4735
    %v6121 = vpack.c.b16 %v4738, %v4737
    %v6122 = vpack.c.b16 %v4740, %v4739
    %v6123 = vpack.c.b16 %v4742, %v4741
    %v6124 = vpack.c.b16 %v4744, %v4743
    %v6125 = vpack.c.b16 %v4746, %v4745
    %v6126 = vpack.c.b16 %v4748, %v4747
    %v6127 = vpack.c.b16 %v4750, %v4749
    %v6128 = vpack.c.b16 %v4752, %v4751
    %v6129 = vpack.c.b16 %v4754, %v4753
    %v6130 = vpack.c.b16 %v4756, %v4755
    %v6131 = vpack.c.b16 %v4758, %v4757
    %v6132 = vpack.c.b16 %v4760, %v4759
    %v6133 = vpack.c.b16 %v4762, %v4761
    %v6134 = vpack.c.b16 %v4764, %v4763
    %v6135 = vpack.c.b16 %v4766, %v4765
    %v6136 = vpack.c.b16 %v4768, %v4767
    %v6137 = vpack.c.b16 %v4770, %v4769
    %v6138 = vpack.c.b16 %v4772, %v4771
    %v6139 = vpack.c.b16 %v4774, %v4773
    %v6140 = vpack.c.b16 %v4776, %v4775
    %v6141 = vpack.c.b16 %v4778, %v4777
    %v6142 = vpack.c.b16 %v4780, %v4779
    %v6143 = vpack.c.b16 %v4782, %v4781
    %v6144 = vpack.c.b16 %v4784, %v4783
    %v6145 = vpack.c.b16 %v4786, %v4785
    %v6146 = vpack.c.b16 %v4788, %v4787
    %v6147 = vpack.c.b16 %v4790, %v4789
    %v6148 = vpack.c.b16 %v4792, %v4791
    %v6149 = vpack.c.b16 %v4794, %v4793
    %v6150 = vpack.c.b16 %v4796, %v4795
    %v6151 = vpack.c.b16 %v4798, %v4797
    %v6152 = vpack.c.b16 %v4800, %v4799
    %v6153 = vpack.c.b16 %v4802, %v4801
    %v6154 = vpack.c.b16 %v4804, %v4803
    %v6155 = vpack.c.b16 %v4806, %v4805
    %v6156 = vpack.c.b16 %v4808, %v4807
    %v6157 = vpack.c.b16 %v4810, %v4809
    %v6158 = vpack.c.b16 %v4812, %v4811
    %v6159 = vpack.c.b16 %v4814, %v4813
    %v6160 = vpack.c.b16 %v4816, %v4815
    %v6161 = vpack.c.b16 %v4818, %v4817
    %v6162 = vpack.c.b16 %v4820, %v4819
    %v6163 = vpack.c.b16 %v4822, %v4821
    %v6164 = vpack.c.b16 %v4824, %v4823
    %v6165 = vpack.c.b16 %v4826, %v4825
    %v6166 = vpack.c.b16 %v4828, %v4827
    %v6167 = vpack.c.b16 %v4830, %v4829
    %v6168 = vpack.c.b16 %v4832, %v4831
    %v6169 = vpack.c.b16 %v4834, %v4833
    %v6170 = vpack.c.b16 %v4836, %v4835
    %v6171 = vpack.c.b16 %v4838, %v4837
    %v6172 = vpack.c.b16 %v4840, %v4839
    %v6173 = vpack.c.b16 %v4842, %v4841
    %v6174 = vpack.c.b16 %v4844, %v4843
    %v6175 = vpack.c.b16 %v4846, %v4845
    %v6176 = vpack.c.b16 %v4848, %v4847
    %v6177 = vpack.c.b16 %v4850, %v4849
    %v6178 = vpack.c.b16 %v4852, %v4851
    %v6179 = vpack.c.b16 %v4854, %v4853
    %v6180 = vpack.c.b16 %v4856, %v4855
    %v6181 = vpack.c.b16 %v4858, %v4857
    %v6182 = vpack.c.b16 %v4860, %v4859
    %v6183 = vpack.c.b16 %v4862, %v4861
    %v6184 = vpack.c.b16 %v4864, %v4863
    %v6185 = vpack.c.b16 %v4866, %v4865
    %v6186 = vpack.c.b16 %v4868, %v4867
    %v6187 = vpack.c.b16 %v4870, %v4869
    %v6188 = vpack.c.b16 %v4872, %v4871
    %v6189 = vpack.c.b16 %v4874, %v4873
    %v6190 = vpack.c.b16 %v4876, %v4875
    %v6191 = vpack.c.b16 %v4878, %v4877
    %v6192 = vpack.c.b16 %v4880, %v4879
    %v6193 = vpack.c.b16 %v4882, %v4881
    %v6194 = vpack.c.b16 %v4884, %v4883
    %v6195 = vpack.c.b16 %v4886, %v4885
    %v6196 = vpack.c.b16 %v4888, %v4887
    %v6197 = vpack.c.b16 %v4890, %v4889
    %v6198 = vpack.c.b16 %v4892, %v4891
    %v6199 = vpack.c.b16 %v4894, %v4893
    %v6200 = vpack.c.b16 %v4896, %v4895
    %v6201 = vpack.c.b16 %v4898, %v4897
    %v6202 = vpack.c.b16 %v4900, %v4899
    %v6203 = vpack.c.b16 %v4902, %v4901
    %v6204 = vpack.c.b16 %v4904, %v4903
    %v6205 = vpack.c.b16 %v4906, %v4905
    %v6206 = vpack.c.b16 %v4908, %v4907
    %v6207 = vpack.c.b16 %v4910, %v4909
    %v6208 = vpack.c.b16 %v4912, %v4911
    %v6209 = vpack.c.b16 %v4914, %v4913
    %v6210 = vpack.c.b16 %v4916, %v4915
    %v6211 = vpack.c.b16 %v4918, %v4917
    %v6212 = vpack.c.b16 %v4920, %v4919
    %v6213 = vpack.c.b16 %v4922, %v4921
    %v6214 = vpack.c.b16 %v4924, %v4923
    %v6215 = vpack.c.b16 %v4926, %v4925
    %v6216 = vpack.c.b16 %v4928, %v4927
    %v6217 = vpack.c.b16 %v4930, %v4929
    %v6218 = vpack.c.b16 %v4932, %v4931
    %v6219 = vpack.c.b16 %v4934, %v4933
    %v6220 = vpack.c.b16 %v4936, %v4935
    %v6221 = vpack.c.b16 %v4938, %v4937
    %v6222 = vpack.c.b16 %v4940, %v4939
    %v6223 = vpack.c.b16 %v4942, %v4941
    %v6224 = vpack.c.b16 %v4944, %v4943
    %v6225 = vpack.c.b16 %v4946, %v4945
    %v6226 = vpack.c.b16 %v4948, %v4947
    %v6227 = vpack.c.b16 %v4950, %v4949
    %v6228 = vpack.c.b16 %v4952, %v4951
    %v6229 = vpack.c.b16 %v4954, %v4953
    %v6230 = vpack.c.b16 %v4956, %v4955
    %v6231 = vpack.c.b16 %v4958, %v4957
    %v6232 = vpack.c.b16 %v4960, %v4959
    %v6233 = vpack.c.b16 %v4962, %v4961
    %v6234 = vpack.c.b16 %v4964, %v4963
    %v6235 = vpack.c.b16 %v4966, %v4965
    %v6236 = vpack.c.b16 %v4968, %v4967
    %v6237 = vpack.c.b16 %v4970, %v4969
    %v6238 = vpack.c.b16 %v4972, %v4971
    %v6239 = vpack.c.b16 %v4974, %v4973
    %v6240 = vpack.c.b16 %v4976, %v4975
    %v6241 = vpack.c.b16 %v4978, %v4977
    %v6242 = vpack.c.b16 %v4980, %v4979
    %v6243 = vpack.c.b16 %v4982, %v4981
    %v6244 = vpack.c.b16 %v4984, %v4983
    %v6245 = vpack.c.b16 %v4986, %v4985
    %v6246 = vpack.c.b16 %v4988, %v4987
    %v6247 = vpack.c.b16 %v4990, %v4989
    %v6248 = vpack.c.b16 %v4992, %v4991
    %v6249 = vpack.c.b16 %v4994, %v4993
    %v6250 = vpack.c.b16 %v4996, %v4995
    %v6251 = vpack.c.b16 %v4998, %v4997
    %v6252 = vpack.c.b16 %v5000, %v4999
    %v6253 = vpack.c.b16 %v5002, %v5001
    %v6254 = vpack.c.b16 %v5004, %v5003
    %v6255 = vpack.c.b16 %v5006, %v5005
    %v6256 = vpack.c.b16 %v5008, %v5007
    %v6257 = vpack.c.b16 %v5010, %v5009
    %v6258 = vpack.c.b16 %v5012, %v5011
    %v6259 = vpack.c.b16 %v5014, %v5013
    %v6260 = vpack.c.b16 %v5016, %v5015
    %v6261 = vpack.c.b16 %v5018, %v5017
    %v6262 = vpack.c.b16 %v5020, %v5019
    %v6263 = vpack.c.b16 %v5022, %v5021
    %v6264 = vpack.c.b16 %v5024, %v5023
    %v6265 = vpack.c.b16 %v5026, %v5025
    %v6266 = vpack.c.b16 %v5028, %v5027
    %v6267 = vpack.c.b16 %v5030, %v5029
    %v6268 = vpack.c.b16 %v5032, %v5031
    %v6269 = vpack.c.b16 %v5034, %v5033
    %v6270 = vpack.c.b16 %v5036, %v5035
    %v6271 = vpack.c.b16 %v5038, %v5037
    %v6272 = vpack.c.b16 %v5040, %v5039
    %v6273 = vpack.c.b16 %v5042, %v5041
    %v6274 = vpack.c.b16 %v5044, %v5043
    %v6275 = vpack.c.b16 %v5046, %v5045
    %v6276 = vpack.c.b16 %v5048, %v5047
    %v6277 = vpack.c.b16 %v5050, %v5049
    %v6278 = vpack.c.b16 %v5052, %v5051
    %v6279 = vpack.c.b16 %v5054, %v5053
    %v6280 = vpack.c.b16 %v5056, %v5055
    %v6281 = vpack.c.b16 %v5058, %v5057
    %v6282 = vpack.c.b16 %v5060, %v5059
    %v6283 = vpack.c.b16 %v5062, %v5061
    %v6284 = vpack.c.b16 %v5064, %v5063
    %v6285 = vpack.c.b16 %v5066, %v5065
    %v6286 = vpack.c.b16 %v5068, %v5067
    %v6287 = vpack.c.b16 %v5070, %v5069
    %v6288 = vpack.c.b16 %v5072, %v5071
    %v6289 = vpack.c.b16 %v5074, %v5073
    %v6290 = vpack.c.b16 %v5076, %v5075
    %v6291 = vpack.c.b16 %v5078, %v5077
    %v6292 = vpack.c.b16 %v5080, %v5079
    %v6293 = vpack.c.b16 %v5082, %v5081
    %v6294 = vpack.c.b16 %v5084, %v5083
    %v6295 = vpack.c.b16 %v5086, %v5085
    %v6296 = vpack.c.b16 %v5088, %v5087
    %v6297 = vpack.c.b16 %v5090, %v5089
    %v6298 = vpack.c.b16 %v5092, %v5091
    %v6299 = vpack.c.b16 %v5094, %v5093
    %v6300 = vpack.c.b16 %v5096, %v5095
    %v6301 = vpack.c.b16 %v5098, %v5097
    %v6302 = vpack.c.b16 %v5100, %v5099
    %v6303 = vpack.c.b16 %v5102, %v5101
    %v6304 = vpack.c.b16 %v5104, %v5103
    %v6305 = vpack.c.b16 %v5106, %v5105
    %v6306 = vpack.c.b16 %v5108, %v5107
    %v6307 = vpack.c.b16 %v5110, %v5109
    %v6308 = vpack.c.b16 %v5112, %v5111
    %v6309 = vpack.c.b16 %v5114, %v5113
    %v6310 = vpack.c.b16 %v5116, %v5115
    %v6311 = vpack.c.b16 %v5118, %v5117
    %v6312 = vpack.c.b16 %v5120, %v5119
    %v6313 = vpack.c.b16 %v5122, %v5121
    %v6314 = vpack.c.b16 %v5124, %v5123
    %v6315 = vpack.c.b16 %v5126, %v5125
    %v6316 = vpack.c.b16 %v5128, %v5127
    %v6317 = vpack.c.b16 %v5130, %v5129
    %v6318 = vpack.c.b16 %v5132, %v5131
    %v6319 = vpack.c.b16 %v5134, %v5133
    %v6320 = vpack.c.b16 %v5136, %v5135
    %v6321 = vpack.c.b16 %v5138, %v5137
    %v6322 = vpack.c.b16 %v5140, %v5139
    %v6323 = vpack.c.b16 %v5142, %v5141
    %v6324 = vpack.c.b16 %v5144, %v5143
    %v6325 = vpack.c.b16 %v5146, %v5145
    %v6326 = vpack.c.b16 %v5148, %v5147
    %v6327 = vpack.c.b16 %v5150, %v5149
    %v6328 = vpack.c.b16 %v5152, %v5151
    %v6329 = vpack.c.b16 %v5154, %v5153
    %v6330 = vpack.c.b16 %v5156, %v5155
    %v6331 = vpack.c.b16 %v5158, %v5157
    %v6332 = vpack.c.b16 %v5160, %v5159
    %v6333 = vpack.c.b16 %v5162, %v5161
    %v6334 = vpack.c.b16 %v5164, %v5163
    %v6335 = vpack.c.b16 %v5166, %v5165
    %v6336 = vpack.c.b16 %v5168, %v5167
    %v6337 = vpack.c.b16 %v5170, %v5169
    %v6338 = vpack.c.b16 %v5172, %v5171
    %v6339 = vpack.c.b16 %v5174, %v5173
    %v6340 = vpack.c.b16 %v5176, %v5175
    %v6341 = vpack.c.b16 %v5178, %v5177
    %v6342 = vpack.c.b16 %v5180, %v5179
    %v6343 = vpack.c.b16 %v5182, %v5181
    %v6344 = vpack.c.b16 %v5184, %v5183
    %v6345 = vpack.c.b16 %v5186, %v5185
    %v6346 = vpack.c.b16 %v5188, %v5187
    %v6347 = vpack.c.b16 %v5190, %v5189
    %v6348 = vpack.c.b16 %v5192, %v5191
    %v6349 = vpack.c.b16 %v5194, %v5193
    %v6350 = vpack.c.b16 %v5196, %v5195
    %v6351 = vpack.c.b16 %v5198, %v5197
    %v6352 = vpack.c.b16 %v5200, %v5199
    %v6353 = vpack.c.b16 %v5202, %v5201
    %v6354 = vpack.c.b16 %v5204, %v5203
    %v6355 = vpack.c.b16 %v5206, %v5205
    %v6356 = vpack.c.b16 %v5208, %v5207
    %v6357 = vpack.c.b16 %v5210, %v5209
    %v6358 = vpack.c.b16 %v5212, %v5211
    %v6359 = vpack.c.b16 %v5214, %v5213
    %v6360 = vpack.c.b16 %v5216, %v5215
    %v6361 = vpack.c.b16 %v5218, %v5217
    %v6362 = vpack.c.b16 %v5220, %v5219
    %v6363 = vpack.c.b16 %v5222, %v5221
    %v6364 = vpack.c.b16 %v5224, %v5223
    %v6365 = vpack.c.b16 %v5226, %v5225
    %v6366 = vpack.c.b16 %v5228, %v5227
    %v6367 = vpack.c.b16 %v5230, %v5229
    %v6368 = vpack.c.b16 %v5232, %v5231
    %v6369 = vpack.c.b16 %v5234, %v5233
    %v6370 = vpack.c.b16 %v5236, %v5235
    %v6371 = vpack.c.b16 %v5238, %v5237
    %v6372 = vpack.c.b16 %v5240, %v5239
    %v6373 = vpack.c.b16 %v5242, %v5241
    %v6374 = vpack.c.b16 %v5244, %v5243
    %v6375 = vpack.c.b16 %v5246, %v5245
    %v6376 = vpack.c.b16 %v5248, %v5247
    %v6377 = vpack.c.b16 %v5250, %v5249
    %v6378 = vpack.c.b16 %v5252, %v5251
    %v6379 = vpack.c.b16 %v5254, %v5253
    %v6380 = vpack.c.b16 %v5256, %v5255
    %v6381 = vpack.c.b16 %v5258, %v5257
    %v6382 = vpack.c.b16 %v5260, %v5259
    %v6383 = vpack.c.b16 %v5262, %v5261
    %v6384 = vpack.c.b16 %v5264, %v5263
    %v6385 = vpack.c.b16 %v5266, %v5265
    %v6386 = vpack.c.b16 %v5268, %v5267
    %v6387 = vpack.c.b16 %v5270, %v5269
    %v6388 = vpack.c.b16 %v5272, %v5271
    %v6389 = vpack.c.b16 %v5274, %v5273
    %v6390 = vpack.c.b16 %v5276, %v5275
    %v6391 = vpack.c.b16 %v5278, %v5277
    %v6392 = vpack.c.b16 %v5280, %v5279
    %v6393 = vpack.c.b16 %v5282, %v5281
    %v6394 = vpack.c.b16 %v5284, %v5283
    %v6395 = vpack.c.b16 %v5286, %v5285
    %v6396 = vpack.c.b16 %v5288, %v5287
    %v6397 = vpack.c.b16 %v5290, %v5289
    %v6398 = vpack.c.b16 %v5292, %v5291
    %v6399 = vpack.c.b16 %v5294, %v5293
    %v6400 = vpack.c.b16 %v5296, %v5295
    %v6401 = vpack.c.b16 %v5298, %v5297
    %v6402 = vpack.c.b16 %v5300, %v5299
    %v6403 = vpack.c.b16 %v5302, %v5301
    %v6404 = vpack.c.b16 %v5304, %v5303
    %v6405 = vpack.c.b16 %v5306, %v5305
    %v6406 = vpack.c.b16 %v5308, %v5307
    %v6407 = vpack.c.b16 %v5310, %v5309
    %v6408 = vpack.c.b16 %v5312, %v5311
    %v6409 = vpack.c.b16 %v5314, %v5313
    %v6410 = vpack.c.b16 %v5316, %v5315
    %v6411 = vpack.c.b16 %v5318, %v5317
    %v6412 = vpack.c.b16 %v5320, %v5319
    %v6413 = vpack.c.b16 %v5322, %v5321
    %v6414 = vpack.c.b16 %v5324, %v5323
    %v6415 = vpack.c.b16 %v5326, %v5325
    %v6416 = vpack.c.b16 %v5328, %v5327
    %v6417 = vpack.c.b16 %v5330, %v5329
    %v6418 = vpack.c.b16 %v5332, %v5331
    %v6419 = vpack.c.b16 %v5334, %v5333
    %v6420 = vpack.c.b16 %v5336, %v5335
    %v6421 = vpack.c.b16 %v5338, %v5337
    %v6422 = vpack.c.b16 %v5340, %v5339
    %v6423 = vpack.c.b16 %v5342, %v5341
    %v6424 = vpack.c.b16 %v5344, %v5343
    %v6425 = vpack.c.b16 %v5346, %v5345
    %v6426 = vpack.c.b16 %v5348, %v5347
    %v6427 = vpack.c.b16 %v5350, %v5349
    %v6428 = vpack.c.b16 %v5352, %v5351
    %v6429 = vpack.c.b16 %v5354, %v5353
    %v6430 = vpack.c.b16 %v5356, %v5355
    %v6431 = vpack.c.b16 %v5358, %v5357
    %v6432 = vpack.c.b16 %v5360, %v5359
    %v6433 = vpack.c.b16 %v5362, %v5361
    %v6434 = vpack.c.b16 %v5364, %v5363
    %v6435 = vpack.c.b16 %v5366, %v5365
    %v6436 = vpack.c.b16 %v5368, %v5367
    %v6437 = vpack.c.b16 %v5370, %v5369
    %v6438 = vpack.c.b16 %v5372, %v5371
    %v6439 = vpack.c.b16 %v5374, %v5373
    %v6440 = vpack.c.b16 %v5376, %v5375
    %v6441 = vpack.c.b16 %v5378, %v5377
    %v6442 = vpack.c.b16 %v5380, %v5379
    %v6443 = vpack.c.b16 %v5382, %v5381
    %v6444 = vpack.c.b16 %v5384, %v5383
    %v6445 = vpack.c.b16 %v5386, %v5385
    %v6446 = vpack.c.b16 %v5388, %v5387
    %v6447 = vpack.c.b16 %v5390, %v5389
    %v6448 = vpack.c.b16 %v5392, %v5391
    %v6449 = vpack.c.b16 %v5394, %v5393
    %v6450 = vpack.c.b16 %v5396, %v5395
    %v6451 = vpack.c.b16 %v5398, %v5397
    %v6452 = vpack.c.b16 %v5400, %v5399
    %v6453 = vpack.c.b16 %v5402, %v5401
    %v6454 = vpack.c.b16 %v5404, %v5403
    %v6455 = vpack.c.b16 %v5406, %v5405
    %v6456 = vpack.c.b16 %v5408, %v5407
    %v6457 = vpack.c.b16 %v5410, %v5409
    %v6458 = vpack.c.b16 %v5412, %v5411
    %v6459 = vpack.c.b16 %v5414, %v5413
    %v6460 = vpack.c.b16 %v5416, %v5415
    %v6461 = vpack.c.b16 %v5418, %v5417
    %v6462 = vpack.c.b16 %v5420, %v5419
    %v6463 = vpack.c.b16 %v5422, %v5421
    %v6464 = vpack.c.b16 %v5424, %v5423
    %v6465 = vpack.c.b16 %v5426, %v5425
    %v6466 = vpack.c.b16 %v5428, %v5427
    %v6467 = vpack.c.b16 %v5430, %v5429
    %v6468 = vpack.c.b16 %v5432, %v5431
    %v6469 = vpack.c.b16 %v5434, %v5433
    %v6470 = vpack.c.b16 %v5436, %v5435
    %v6471 = vpack.c.b16 %v5438, %v5437
    %v6472 = vpack.c.b16 %v5440, %v5439
    %v6473 = vpack.c.b16 %v5442, %v5441
    %v6474 = vpack.c.b16 %v5444, %v5443
    %v6475 = vpack.c.b16 %v5446, %v5445
    %v6476 = vpack.c.b16 %v5448, %v5447
    %v6477 = vpack.c.b16 %v5450, %v5449
    %v6478 = vpack.c.b16 %v5452, %v5451
    %v6479 = vpack.c.b16 %v5454, %v5453
    %v6480 = vpack.c.b16 %v5456, %v5455
    %v6481 = vpack.c.b16 %v5458, %v5457
    %v6482 = vpack.c.b16 %v5460, %v5459
    %v6483 = vpack.c.b16 %v5462, %v5461
    %v6484 = vpack.c.b16 %v5464, %v5463
    %v6485 = vpack.c.b16 %v5466, %v5465
    %v6486 = vpack.c.b16 %v5468, %v5467
    %v6487 = vpack.c.b16 %v5470, %v5469
    %v6488 = vpack.c.b16 %v5472, %v5471
    %v6489 = vpack.c.b16 %v5474, %v5473
    %v6490 = vpack.c.b16 %v5476, %v5475
    %v6491 = vpack.c.b16 %v5478, %v5477
    %v6492 = vpack.c.b16 %v5480, %v5479
    %v6493 = vpack.c.b16 %v5482, %v5481
    %v6494 = vpack.c.b16 %v5484, %v5483
    %v6495 = vpack.c.b16 %v5486, %v5485
    %v6496 = vpack.c.b16 %v5488, %v5487
    %v6497 = vpack.c.b16 %v5490, %v5489
    %v6498 = vpack.c.b16 %v5492, %v5491
    %v6499 = vpack.c.b16 %v5494, %v5493
    %v6500 = vpack.c.b16 %v5496, %v5495
    %v6501 = vpack.c.b16 %v5498, %v5497
    %v6502 = vpack.c.b16 %v5500, %v5499
    %v6503 = vpack.c.b16 %v5502, %v5501
    %v6504 = vpack.c.b16 %v5504, %v5503
    %v6505 = vpack.c.b16 %v5506, %v5505
    %v6506 = vpack.c.b16 %v5508, %v5507
    %v6507 = vpack.c.b16 %v5510, %v5509
    %v6508 = vpack.c.b16 %v5512, %v5511
    %v6509 = vpack.c.b16 %v5514, %v5513
    %v6510 = vpack.c.b16 %v5516, %v5515
    %v6511 = vpack.c.b16 %v5518, %v5517
    %v6512 = vpack.c.b16 %v5520, %v5519
    %v6513 = vpack.c.b16 %v5522, %v5521
    %v6514 = vpack.c.b16 %v5524, %v5523
    %v6515 = vpack.c.b16 %v5526, %v5525
    %v6516 = vpack.c.b16 %v5528, %v5527
    %v6517 = vpack.c.b16 %v5530, %v5529
    %v6518 = vpack.c.b16 %v5532, %v5531
    %v6519 = vpack.c.b16 %v5534, %v5533
    %v6520 = vpack.c.b16 %v5536, %v5535
    %v6521 = vpack.c.b16 %v5538, %v5537
    %v6522 = vpack.c.b16 %v5540, %v5539
    %v6523 = vpack.c.b16 %v5542, %v5541
    %v6524 = vpack.c.b16 %v5544, %v5543
    %v6525 = vpack.c.b16 %v5546, %v5545
    %v6526 = vpack.c.b16 %v5548, %v5547
    %v6527 = vpack.c.b16 %v5550, %v5549
    %v6528 = vpack.c.b16 %v5552, %v5551
    %v6529 = vpack.c.b16 %v5554, %v5553
    %v6530 = vpack.c.b16 %v5556, %v5555
    %v6531 = vpack.c.b16 %v5558, %v5557
    %v6532 = vpack.c.b16 %v5560, %v5559
    %v6533 = vpack.c.b16 %v5562, %v5561
    %v6534 = vpack.c.b16 %v5564, %v5563
    %v6535 = vpack.c.b16 %v5566, %v5565
    %v6536 = vpack.c.b16 %v5568, %v5567
    %v6537 = vpack.c.b16 %v5570, %v5569
    %v6538 = vpack.c.b16 %v5572, %v5571
    %v6539 = vpack.c.b16 %v5574, %v5573
    %v6540 = vpack.c.b16 %v5576, %v5575
    %v6541 = vpack.c.b16 %v5578, %v5577
    %v6542 = vpack.c.b16 %v5580, %v5579
    %v6543 = vpack.c.b16 %v5582, %v5581
    %v6544 = vpack.c.b16 %v5584, %v5583
    %v6545 = vpack.c.b16 %v5586, %v5585
    %v6546 = vpack.c.b16 %v5588, %v5587
    %v6547 = vpack.c.b16 %v5590, %v5589
    %v6548 = vpack.c.b16 %v5592, %v5591
    %v6549 = vpack.c.b16 %v5594, %v5593
    %v6550 = vpack.c.b16 %v5596, %v5595
    %v6551 = vpack.c.b16 %v5598, %v5597
    %v6552 = vpack.c.b16 %v5600, %v5599
    %v6553 = vpack.c.b16 %v5602, %v5601
    %v6554 = vpack.c.b16 %v5604, %v5603
    %v6555 = vpack.c.b16 %v5606, %v5605
    %v6556 = vpack.c.b16 %v5608, %v5607
    %v6557 = vpack.c.b16 %v5610, %v5609
    %v6558 = vpack.c.b16 %v5612, %v5611
    %v6559 = vpack.c.b16 %v5614, %v5613
    %v6560 = vpack.c.b16 %v5616, %v5615
    %v6561 = vpack.c.b16 %v5618, %v5617
    %v6562 = vpack.c.b16 %v5620, %v5619
    %v6563 = vpack.c.b16 %v5622, %v5621
    %v6564 = vpack.c.b16 %v5624, %v5623
    %v6565 = vpack.c.b16 %v5626, %v5625
    %v6566 = vpack.c.b16 %v5628, %v5627
    %v6567 = vpack.c.b16 %v5630, %v5629
    %v6568 = vpack.c.b16 %v5632, %v5631
    %v6569 = vpack.c.b16 %v5634, %v5633
    %v6570 = vpack.c.b16 %v5636, %v5635
    %v6571 = vpack.c.b16 %v5638, %v5637
    %v6572 = vpack.c.b16 %v5640, %v5639
    %v6573 = vpack.c.b16 %v5642, %v5641
    %v6574 = vpack.c.b16 %v5644, %v5643
    %v6575 = vpack.c.b16 %v5646, %v5645
    %v6576 = vpack.c.b16 %v5648, %v5647
    %v6577 = vpack.c.b16 %v5650, %v5649
    %v6578 = vpack.c.b16 %v5652, %v5651
    %v6579 = vpack.c.b16 %v5654, %v5653
    %v6580 = vpack.c.b16 %v5656, %v5655
    %v6581 = vpack.c.b16 %v5658, %v5657
    %v6582 = vpack.c.b16 %v5660, %v5659
    %v6583 = vpack.c.b16 %v5662, %v5661
    %v6584 = vpack.c.b16 %v5664, %v5663
    %v6585 = vpack.c.b16 %v5666, %v5665
    %v6586 = vpack.c.b16 %v5668, %v5667
    %v6587 = vpack.c.b16 %v5670, %v5669
    %v6588 = vpack.c.b16 %v5672, %v5671
    %v6589 = vpack.c.b16 %v5674, %v5673
    %v6590 = vpack.c.b16 %v5676, %v5675
    %v6591 = vpack.c.b16 %v5678, %v5677
    %v6592 = vpack.c.b16 %v5680, %v5679
    %v6593 = vpack.c.b16 %v5682, %v5681
    %v6594 = vpack.c.b16 %v5684, %v5683
    %v6595 = vpack.c.b16 %v5686, %v5685
    %v6596 = vpack.c.b16 %v5688, %v5687
    %v6597 = vpack.c.b16 %v5690, %v5689
    %v6598 = vpack.c.b16 %v5692, %v5691
    %v6599 = vpack.c.b16 %v5694, %v5693
    %v6600 = vpack.c.b16 %v5696, %v5695
    %v6601 = vpack.c.b16 %v5698, %v5697
    %v6602 = vpack.c.b16 %v5700, %v5699
    %v6603 = vpack.c.b16 %v5702, %v5701
    %v6604 = vpack.c.b16 %v5704, %v5703
    %v6605 = vpack.c.b16 %v5706, %v5705
    %v6606 = vpack.c.b16 %v5708, %v5707
    %v6607 = vpack.c.b16 %v5710, %v5709
    %v6608 = vpack.c.b16 %v5712, %v5711
    %v6609 = vpack.c.b16 %v5714, %v5713
    %v6610 = vpack.c.b16 %v5716, %v5715
    %v6611 = vpack.c.b16 %v5718, %v5717
    %v6612 = vpack.c.b16 %v5720, %v5719
    %v6613 = vpack.c.b16 %v5722, %v5721
    %v6614 = vpack.c.b16 %v5724, %v5723
    %v6615 = vpack.c.b16 %v5726, %v5725
    %v6616 = vpack.c.b16 %v5728, %v5727
    %v6617 = vpack.c.b16 %v5730, %v5729
    %v6618 = vpack.c.b16 %v5732, %v5731
    %v6619 = vpack.c.b16 %v5734, %v5733
    %v6620 = vpack.c.b16 %v5736, %v5735
    %v6621 = vpack.c.b16 %v5738, %v5737
    %v6622 = vpack.c.b16 %v5740, %v5739
    %v6623 = vpack.c.b16 %v5742, %v5741
    %v6624 = vpack.c.b16 %v5744, %v5743
    %v6625 = vpack.c.b16 %v5746, %v5745
    %v6626 = vpack.c.b16 %v5748, %v5747
    %v6627 = vpack.c.b16 %v5750, %v5749
    %v6628 = vpack.c.b16 %v5752, %v5751
    %v6629 = vpack.c.b16 %v5754, %v5753
    %v6630 = vpack.c.b16 %v5756, %v5755
    %v6631 = vpack.c.b16 %v5758, %v5757
    %v6632 = vpack.c.b16 %v5760, %v5759
    %v6633 = vpack.c.b16 %v5762, %v5761
    %v6634 = vpack.c.b16 %v5764, %v5763
    %v6635 = vpack.c.b16 %v5766, %v5765
    %v6636 = vpack.c.b16 %v5768, %v5767
    %v6637 = vpack.c.b16 %v5770, %v5769
    %v6638 = vpack.c.b16 %v5772, %v5771
    %v6639 = vpack.c.b16 %v5774, %v5773
    %v6640 = vpack.c.b16 %v5776, %v5775
    %v6641 = vpack.c.b16 %v5778, %v5777
    %v6642 = vpack.c.b16 %v5780, %v5779
    %v6643 = vpack.c.b16 %v5782, %v5781
    %v6644 = vpack.c.b16 %v5784, %v5783
    %v6645 = vpack.c.b16 %v5786, %v5785
    %v6646 = vpack.c.b16 %v5788, %v5787
    %v6647 = vpack.c.b16 %v5790, %v5789
    %v6648 = vpack.c.b16 %v5792, %v5791
    %v6649 = vpack.c.b16 %v5794, %v5793
    %v6650 = vpack.c.b16 %v5796, %v5795
    %v6651 = vpack.c.b16 %v5798, %v5797
    %v6652 = vpack.c.b16 %v5800, %v5799
    %v6653 = vpack.c.b16 %v5802, %v5801
    %v6654 = vpack.c.b16 %v5804, %v5803
    %v6655 = vpack.c.b16 %v5806, %v5805
    %v6656 = vpack.c.b16 %v5808, %v5807
    %v6657 = vpack.c.b16 %v5810, %v5809
    %v6658 = vpack.c.b16 %v5812, %v5811
    %v6659 = vpack.c.b16 %v5814, %v5813
    %v6660 = vpack.c.b16 %v5816, %v5815
    %v6661 = vpack.c.b16 %v5818, %v5817
    %v6662 = vpack.c.b16 %v5820, %v5819
    %v6663 = vpack.c.b16 %v5822, %v5821
    %v6664 = vpack.c.b16 %v5824, %v5823
    %v6665 = vpack.c.b16 %v5826, %v5825
    %v6666 = vpack.c.b16 %v5828, %v5827
    %v6667 = vpack.c.b16 %v5830, %v5829
    %v6668 = vpack.c.b16 %v5832, %v5831
    %v6669 = vpack.c.b16 %v5834, %v5833
    %v6670 = vpack.c.b16 %v5836, %v5835
    %v6671 = vpack.c.b16 %v5838, %v5837
    %v6672 = vpack.c.b16 %v5840, %v5839
    %v6673 = vpack.c.b16 %v5842, %v5841
    %v6674 = vpack.c.b16 %v5844, %v5843
    %v6675 = vpack.c.b16 %v5846, %v5845
    %v6676 = vpack.c.b16 %v5848, %v5847
    %v6677 = vpack.c.b16 %v5850, %v5849
    %v6678 = vpack.c.b16 %v5852, %v5851
    %v6679 = vpack.c.b16 %v5854, %v5853
    %v6680 = vpack.c.b16 %v5856, %v5855
    %v6681 = vpack.c.b16 %v5858, %v5857
    %v6682 = vpack.c.b16 %v5860, %v5859
    %v6683 = vpack.c.b16 %v5862, %v5861
    %v6684 = vpack.c.b16 %v5864, %v5863
    %v6685 = vpack.c.b16 %v5866, %v5865
    %v6686 = vpack.c.b16 %v5868, %v5867
    %v6687 = vpack.c.b16 %v5870, %v5869
    %v6688 = vpack.c.b16 %v5872, %v5871
    %v6689 = vpack.c.b16 %v5874, %v5873
    %v6690 = vpack.c.b16 %v5876, %v5875
    %v6691 = vpack.c.b16 %v5878, %v5877
    %v6692 = vpack.c.b16 %v5880, %v5879
    %v6693 = vpack.c.b16 %v5882, %v5881
    %v6694 = vpack.c.b16 %v5884, %v5883
    %v6695 = vpack.c.b16 %v5886, %v5885
    %v6696 = vpack.c.b16 %v5888, %v5887
    %v6697 = vpack.c.b16 %v5890, %v5889
    %v6698 = vpack.c.b16 %v5892, %v5891
    %v6699 = vpack.c.b16 %v5894, %v5893
    %v6700 = vpack.c.b16 %v5896, %v5895
    %v6701 = vpack.c.b16 %v5898, %v5897
    %v6702 = vpack.c.b16 %v5900, %v5899
    %v6703 = vpack.c.b16 %v5902, %v5901
    %v6704 = vpack.c.b16 %v5904, %v5903
    %v6705 = vpack.c.b16 %v5906, %v5905
    %v6706 = vpack.c.b16 %v5908, %v5907
    %v6707 = vpack.c.b16 %v5910, %v5909
    %v6708 = vpack.c.b16 %v5912, %v5911
    %v6709 = vpack.c.b16 %v5914, %v5913
    %v6710 = vpack.c.b16 %v5916, %v5915
    %v6711 = vpack.c.b16 %v5918, %v5917
    %v6712 = vpack.c.b16 %v5920, %v5919
    %v6713 = vpack.c.b16 %v5922, %v5921
    %v6714 = vpack.c.b16 %v5924, %v5923
    %v6715 = vpack.c.b16 %v5926, %v5925
    %v6716 = vpack.c.b16 %v5928, %v5927
    %v6717 = vpack.c.b16 %v5930, %v5929
    %v6718 = vpack.c.b16 %v5932, %v5931
    %v6719 = vpack.c.b16 %v5934, %v5933
    %v6720 = vpack.c.b16 %v5936, %v5935
    %v6721 = vpack.c.b16 %v5938, %v5937
    %v6722 = vpack.c.b16 %v5940, %v5939
    %v6723 = vpack.c.b16 %v5942, %v5941
    %v6724 = vpack.c.b16 %v5944, %v5943
    %v6725 = vpack.c.b16 %v5946, %v5945
    %v6726 = vpack.c.b16 %v5948, %v5947
    %v6727 = vpack.c.b16 %v5950, %v5949
    %v6728 = vpack.c.b16 %v5952, %v5951
    %v6729 = vpack.c.b16 %v5954, %v5953
    %v6730 = vpack.c.b16 %v5956, %v5955
    %v6731 = vpack.c.b16 %v5958, %v5957
    %v6732 = vpack.c.b16 %v5960, %v5959
    %v6733 = vpack.c.b16 %v5962, %v5961
    %v6734 = vpack.c.b16 %v5964, %v5963
    %v6735 = vpack.c.b16 %v5966, %v5965
    %v6736 = vpack.c.b16 %v5968, %v5967
    %7505 = vmatprep.subr.bf16.mxu0 0
    %7506 = vmatpush1.bf16.msra.mxu0 %v5969
    %7507 = vmatprep.subr.bf16.mxu0 0
    %7508 = vmatpush1.bf16.msra.mxu0 %v5970
    %7509 = vmatprep.subr.bf16.mxu0 0
    %7510 = vmatpush1.bf16.msra.mxu0 %v5971
    %7511 = vmatprep.subr.bf16.mxu0 0
    %7512 = vmatpush1.bf16.msra.mxu0 %v5972
    %7513 = vmatprep.subr.bf16.mxu0 0
    %7514 = vmatpush1.bf16.msra.mxu0 %v5973
    %7515 = vmatprep.subr.bf16.mxu0 0
    %7516 = vmatpush1.bf16.msra.mxu0 %v5974
    %7517 = vmatprep.subr.bf16.mxu0 0
    %7518 = vmatpush1.bf16.msra.mxu0 %v5975
    %7519 = vmatprep.subr.bf16.mxu0 0
    %7520 = vmatpush1.bf16.msra.mxu0 %v5976
    %7521 = vmatprep.subr.bf16.mxu0 0
    %7522 = vmatpush1.bf16.msra.mxu0 %v5977
    %7523 = vmatprep.subr.bf16.mxu0 0
    %7524 = vmatpush1.bf16.msra.mxu0 %v5978
    %7525 = vmatprep.subr.bf16.mxu0 0
    %7526 = vmatpush1.bf16.msra.mxu0 %v5979
    %7527 = vmatprep.subr.bf16.mxu0 0
    %7528 = vmatpush1.bf16.msra.mxu0 %v5980
    %7529 = vmatprep.subr.bf16.mxu0 0
    %7530 = vmatpush1.bf16.msra.mxu0 %v5981
    %7531 = vmatprep.subr.bf16.mxu0 0
    %7532 = vmatpush1.bf16.msra.mxu0 %v5982
    %7533 = vmatprep.subr.bf16.mxu0 0
    %7534 = vmatpush1.bf16.msra.mxu0 %v5983
    %7535 = vmatprep.subr.bf16.mxu0 0
    %7536 = vmatpush1.bf16.msra.mxu0 %v5984
    %7537 = vmatprep.mubr.bf16.mxu0 %v1259
    %7538 = vmatmul.mubr.bf16.gmra.mrb[0].mxu0 %v1258
    %v7539 = vpop.f32.mrb[0].mxu0
    %v7540 = vadd.f32 %v2895, %v7539
    %v7541 = vpop.f32.mrb[0].mxu0
    %v7542 = vpop.f32.mrb[0].mxu0
    %v7543 = vpop.f32.mrb[0].mxu0
    %7544 = vdwg.mxu0
    %7545 = vmatprep.subr.bf16.mxu0 0
    %7546 = vmatpush1.bf16.msra.mxu0 %v5985
    %7547 = vmatprep.subr.bf16.mxu0 0
    %7548 = vmatpush1.bf16.msra.mxu0 %v5986
    %7549 = vmatprep.subr.bf16.mxu0 0
    %7550 = vmatpush1.bf16.msra.mxu0 %v5987
    %7551 = vmatprep.subr.bf16.mxu0 0
    %7552 = vmatpush1.bf16.msra.mxu0 %v5988
    %7553 = vmatprep.subr.bf16.mxu0 0
    %7554 = vmatpush1.bf16.msra.mxu0 %v5989
    %7555 = vmatprep.subr.bf16.mxu0 0
    %7556 = vmatpush1.bf16.msra.mxu0 %v5990
    %7557 = vmatprep.subr.bf16.mxu0 0
    %7558 = vmatpush1.bf16.msra.mxu0 %v5991
    %7559 = vmatprep.subr.bf16.mxu0 0
    %7560 = vmatpush1.bf16.msra.mxu0 %v5992
    %7561 = vmatprep.subr.bf16.mxu0 0
    %7562 = vmatpush1.bf16.msra.mxu0 %v5993
    %7563 = vmatprep.subr.bf16.mxu0 0
    %7564 = vmatpush1.bf16.msra.mxu0 %v5994
    %7565 = vmatprep.subr.bf16.mxu0 0
    %7566 = vmatpush1.bf16.msra.mxu0 %v5995
    %7567 = vmatprep.subr.bf16.mxu0 0
    %7568 = vmatpush1.bf16.msra.mxu0 %v5996
    %7569 = vmatprep.subr.bf16.mxu0 0
    %7570 = vmatpush1.bf16.msra.mxu0 %v5997
    %7571 = vmatprep.subr.bf16.mxu0 0
    %7572 = vmatpush1.bf16.msra.mxu0 %v5998
    %7573 = vmatprep.subr.bf16.mxu0 0
    %7574 = vmatpush1.bf16.msra.mxu0 %v5999
    %7575 = vmatprep.subr.bf16.mxu0 0
    %7576 = vmatpush1.bf16.msra.mxu0 %v6000
    %7577 = vmatprep.mubr.bf16.mxu0 %v1261
    %7578 = vmatmul.mubr.bf16.gmra.mrb[0].mxu0 %v1260
    %v7579 = vpop.f32.mrb[0].mxu0
    %v7580 = vadd.f32 %v7540, %v7579
    %v7581 = vpop.f32.mrb[0].mxu0
    %v7582 = vpop.f32.mrb[0].mxu0
    %v7583 = vpop.f32.mrb[0].mxu0
    %7584 = vdwg.mxu0
    %7585 = vmatprep.subr.bf16.mxu0 0
    %7586 = vmatpush1.bf16.msra.mxu0 %v6001
    %7587 = vmatprep.subr.bf16.mxu0 0
    %7588 = vmatpush1.bf16.msra.mxu0 %v6002
    %7589 = vmatprep.subr.bf16.mxu0 0
    %7590 = vmatpush1.bf16.msra.mxu0 %v6003
    %7591 = vmatprep.subr.bf16.mxu0 0
    %7592 = vmatpush1.bf16.msra.mxu0 %v6004
    %7593 = vmatprep.subr.bf16.mxu0 0
    %7594 = vmatpush1.bf16.msra.mxu0 %v6005
    %7595 = vmatprep.subr.bf16.mxu0 0
    %7596 = vmatpush1.bf16.msra.mxu0 %v6006
    %7597 = vmatprep.subr.bf16.mxu0 0
    %7598 = vmatpush1.bf16.msra.mxu0 %v6007
    %7599 = vmatprep.subr.bf16.mxu0 0
    %7600 = vmatpush1.bf16.msra.mxu0 %v6008
    %7601 = vmatprep.subr.bf16.mxu0 0
    %7602 = vmatpush1.bf16.msra.mxu0 %v6009
    %7603 = vmatprep.subr.bf16.mxu0 0
    %7604 = vmatpush1.bf16.msra.mxu0 %v6010
    %7605 = vmatprep.subr.bf16.mxu0 0
    %7606 = vmatpush1.bf16.msra.mxu0 %v6011
    %7607 = vmatprep.subr.bf16.mxu0 0
    %7608 = vmatpush1.bf16.msra.mxu0 %v6012
    %7609 = vmatprep.subr.bf16.mxu0 0
    %7610 = vmatpush1.bf16.msra.mxu0 %v6013
    %7611 = vmatprep.subr.bf16.mxu0 0
    %7612 = vmatpush1.bf16.msra.mxu0 %v6014
    %7613 = vmatprep.subr.bf16.mxu0 0
    %7614 = vmatpush1.bf16.msra.mxu0 %v6015
    %7615 = vmatprep.subr.bf16.mxu0 0
    %7616 = vmatpush1.bf16.msra.mxu0 %v6016
    %7617 = vmatprep.mubr.bf16.mxu0 %v1263
    %7618 = vmatmul.mubr.bf16.gmra.mrb[0].mxu0 %v1262
    %v7619 = vpop.f32.mrb[0].mxu0
    %v7620 = vadd.f32 %v7580, %v7619
    %v7621 = vpop.f32.mrb[0].mxu0
    %v7622 = vpop.f32.mrb[0].mxu0
    %v7623 = vpop.f32.mrb[0].mxu0
    %7624 = vdwg.mxu0
    %7625 = vmatprep.subr.bf16.mxu0 0
    %7626 = vmatpush1.bf16.msra.mxu0 %v6017
    %7627 = vmatprep.subr.bf16.mxu0 0
    %7628 = vmatpush1.bf16.msra.mxu0 %v6018
    %7629 = vmatprep.subr.bf16.mxu0 0
    %7630 = vmatpush1.bf16.msra.mxu0 %v6019
    %7631 = vmatprep.subr.bf16.mxu0 0
    %7632 = vmatpush1.bf16.msra.mxu0 %v6020
    %7633 = vmatprep.subr.bf16.mxu0 0
    %7634 = vmatpush1.bf16.msra.mxu0 %v6021
    %7635 = vmatprep.subr.bf16.mxu0 0
    %7636 = vmatpush1.bf16.msra.mxu0 %v6022
    %7637 = vmatprep.subr.bf16.mxu0 0
    %7638 = vmatpush1.bf16.msra.mxu0 %v6023
    %7639 = vmatprep.subr.bf16.mxu0 0
    %7640 = vmatpush1.bf16.msra.mxu0 %v6024
    %7641 = vmatprep.subr.bf16.mxu0 0
    %7642 = vmatpush1.bf16.msra.mxu0 %v6025
    %7643 = vmatprep.subr.bf16.mxu0 0
    %7644 = vmatpush1.bf16.msra.mxu0 %v6026
    %7645 = vmatprep.subr.bf16.mxu0 0
    %7646 = vmatpush1.bf16.msra.mxu0 %v6027
    %7647 = vmatprep.subr.bf16.mxu0 0
    %7648 = vmatpush1.bf16.msra.mxu0 %v6028
    %7649 = vmatprep.subr.bf16.mxu0 0
    %7650 = vmatpush1.bf16.msra.mxu0 %v6029
    %7651 = vmatprep.subr.bf16.mxu0 0
    %7652 = vmatpush1.bf16.msra.mxu0 %v6030
    %7653 = vmatprep.subr.bf16.mxu0 0
    %7654 = vmatpush1.bf16.msra.mxu0 %v6031
    %7655 = vmatprep.subr.bf16.mxu0 0
    %7656 = vmatpush1.bf16.msra.mxu0 %v6032
    %7657 = vmatprep.mubr.bf16.mxu0 %v1265
    %7658 = vmatmul.mubr.bf16.gmra.mrb[0].mxu0 %v1264
    %v7659 = vpop.f32.mrb[0].mxu0
    %v7660 = vadd.f32 %v7620, %v7659
    %v7661 = vpop.f32.mrb[0].mxu0
    %v7662 = vpop.f32.mrb[0].mxu0
    %v7663 = vpop.f32.mrb[0].mxu0
    %7664 = vdwg.mxu0
    %7665 = vmatprep.subr.bf16.mxu0 0
    %7666 = vmatpush1.bf16.msra.mxu0 %v6033
    %7667 = vmatprep.subr.bf16.mxu0 0
    %7668 = vmatpush1.bf16.msra.mxu0 %v6034
    %7669 = vmatprep.subr.bf16.mxu0 0
    %7670 = vmatpush1.bf16.msra.mxu0 %v6035
    %7671 = vmatprep.subr.bf16.mxu0 0
    %7672 = vmatpush1.bf16.msra.mxu0 %v6036
    %7673 = vmatprep.subr.bf16.mxu0 0
    %7674 = vmatpush1.bf16.msra.mxu0 %v6037
    %7675 = vmatprep.subr.bf16.mxu0 0
    %7676 = vmatpush1.bf16.msra.mxu0 %v6038
    %7677 = vmatprep.subr.bf16.mxu0 0
    %7678 = vmatpush1.bf16.msra.mxu0 %v6039
    %7679 = vmatprep.subr.bf16.mxu0 0
    %7680 = vmatpush1.bf16.msra.mxu0 %v6040
    %7681 = vmatprep.subr.bf16.mxu0 0
    %7682 = vmatpush1.bf16.msra.mxu0 %v6041
    %7683 = vmatprep.subr.bf16.mxu0 0
    %7684 = vmatpush1.bf16.msra.mxu0 %v6042
    %7685 = vmatprep.subr.bf16.mxu0 0
    %7686 = vmatpush1.bf16.msra.mxu0 %v6043
    %7687 = vmatprep.subr.bf16.mxu0 0
    %7688 = vmatpush1.bf16.msra.mxu0 %v6044
    %7689 = vmatprep.subr.bf16.mxu0 0
    %7690 = vmatpush1.bf16.msra.mxu0 %v6045
    %7691 = vmatprep.subr.bf16.mxu0 0
    %7692 = vmatpush1.bf16.msra.mxu0 %v6046
    %7693 = vmatprep.subr.bf16.mxu0 0
    %7694 = vmatpush1.bf16.msra.mxu0 %v6047
    %7695 = vmatprep.subr.bf16.mxu0 0
    %7696 = vmatpush1.bf16.msra.mxu0 %v6048
    %7697 = vmatprep.mubr.bf16.mxu0 %v1267
    %7698 = vmatmul.mubr.bf16.gmra.mrb[0].mxu0 %v1266
    %v7699 = vpop.f32.mrb[0].mxu0
    %v7700 = vadd.f32 %v7660, %v7699
    %v7701 = vpop.f32.mrb[0].mxu0
    %v7702 = vpop.f32.mrb[0].mxu0
    %v7703 = vpop.f32.mrb[0].mxu0
    %7704 = vdwg.mxu0
    %7705 = vmatprep.subr.bf16.mxu0 0
    %7706 = vmatpush1.bf16.msra.mxu0 %v6049
    %7707 = vmatprep.subr.bf16.mxu0 0
    %7708 = vmatpush1.bf16.msra.mxu0 %v6050
    %7709 = vmatprep.subr.bf16.mxu0 0
    %7710 = vmatpush1.bf16.msra.mxu0 %v6051
    %7711 = vmatprep.subr.bf16.mxu0 0
    %7712 = vmatpush1.bf16.msra.mxu0 %v6052
    %7713 = vmatprep.subr.bf16.mxu0 0
    %7714 = vmatpush1.bf16.msra.mxu0 %v6053
    %7715 = vmatprep.subr.bf16.mxu0 0
    %7716 = vmatpush1.bf16.msra.mxu0 %v6054
    %7717 = vmatprep.subr.bf16.mxu0 0
    %7718 = vmatpush1.bf16.msra.mxu0 %v6055
    %7719 = vmatprep.subr.bf16.mxu0 0
    %7720 = vmatpush1.bf16.msra.mxu0 %v6056
    %7721 = vmatprep.subr.bf16.mxu0 0
    %7722 = vmatpush1.bf16.msra.mxu0 %v6057
    %7723 = vmatprep.subr.bf16.mxu0 0
    %7724 = vmatpush1.bf16.msra.mxu0 %v6058
    %7725 = vmatprep.subr.bf16.mxu0 0
    %7726 = vmatpush1.bf16.msra.mxu0 %v6059
    %7727 = vmatprep.subr.bf16.mxu0 0
    %7728 = vmatpush1.bf16.msra.mxu0 %v6060
    %7729 = vmatprep.subr.bf16.mxu0 0
    %7730 = vmatpush1.bf16.msra.mxu0 %v6061
    %7731 = vmatprep.subr.bf16.mxu0 0
    %7732 = vmatpush1.bf16.msra.mxu0 %v6062
    %7733 = vmatprep.subr.bf16.mxu0 0
    %7734 = vmatpush1.bf16.msra.mxu0 %v6063
    %7735 = vmatprep.subr.bf16.mxu0 0
    %7736 = vmatpush1.bf16.msra.mxu0 %v6064
    %7737 = vmatprep.mubr.bf16.mxu0 %v1269
    %7738 = vmatmul.mubr.bf16.gmra.mrb[0].mxu0 %v1268
    %v7739 = vpop.f32.mrb[0].mxu0
    %v7740 = vadd.f32 %v7700, %v7739
    %v7741 = vpop.f32.mrb[0].mxu0
    %v7742 = vpop.f32.mrb[0].mxu0
    %v7743 = vpop.f32.mrb[0].mxu0
    %7744 = vdwg.mxu0
    %7745 = vmatprep.subr.bf16.mxu0 0
    %7746 = vmatpush1.bf16.msra.mxu0 %v6065
    %7747 = vmatprep.subr.bf16.mxu0 0
    %7748 = vmatpush1.bf16.msra.mxu0 %v6066
    %7749 = vmatprep.subr.bf16.mxu0 0
    %7750 = vmatpush1.bf16.msra.mxu0 %v6067
    %7751 = vmatprep.subr.bf16.mxu0 0
    %7752 = vmatpush1.bf16.msra.mxu0 %v6068
    %7753 = vmatprep.subr.bf16.mxu0 0
    %7754 = vmatpush1.bf16.msra.mxu0 %v6069
    %7755 = vmatprep.subr.bf16.mxu0 0
    %7756 = vmatpush1.bf16.msra.mxu0 %v6070
    %7757 = vmatprep.subr.bf16.mxu0 0
    %7758 = vmatpush1.bf16.msra.mxu0 %v6071
    %7759 = vmatprep.subr.bf16.mxu0 0
    %7760 = vmatpush1.bf16.msra.mxu0 %v6072
    %7761 = vmatprep.subr.bf16.mxu0 0
    %7762 = vmatpush1.bf16.msra.mxu0 %v6073
    %7763 = vmatprep.subr.bf16.mxu0 0
    %7764 = vmatpush1.bf16.msra.mxu0 %v6074
    %7765 = vmatprep.subr.bf16.mxu0 0
    %7766 = vmatpush1.bf16.msra.mxu0 %v6075
    %7767 = vmatprep.subr.bf16.mxu0 0
    %7768 = vmatpush1.bf16.msra.mxu0 %v6076
    %7769 = vmatprep.subr.bf16.mxu0 0
    %7770 = vmatpush1.bf16.msra.mxu0 %v6077
    %7771 = vmatprep.subr.bf16.mxu0 0
    %7772 = vmatpush1.bf16.msra.mxu0 %v6078
    %7773 = vmatprep.subr.bf16.mxu0 0
    %7774 = vmatpush1.bf16.msra.mxu0 %v6079
    %7775 = vmatprep.subr.bf16.mxu0 0
    %7776 = vmatpush1.bf16.msra.mxu0 %v6080
    %7777 = vmatprep.mubr.bf16.mxu0 %v1271
    %7778 = vmatmul.mubr.bf16.gmra.mrb[0].mxu0 %v1270
    %v7779 = vpop.f32.mrb[0].mxu0
    %v7780 = vadd.f32 %v7740, %v7779
    %v7781 = vpop.f32.mrb[0].mxu0
    %v7782 = vpop.f32.mrb[0].mxu0
    %v7783 = vpop.f32.mrb[0].mxu0
    %7784 = vdwg.mxu0
    %7785 = vmatprep.subr.bf16.mxu0 0
    %7786 = vmatpush1.bf16.msra.mxu0 %v6081
    %7787 = vmatprep.subr.bf16.mxu0 0
    %7788 = vmatpush1.bf16.msra.mxu0 %v6082
    %7789 = vmatprep.subr.bf16.mxu0 0
    %7790 = vmatpush1.bf16.msra.mxu0 %v6083
    %7791 = vmatprep.subr.bf16.mxu0 0
    %7792 = vmatpush1.bf16.msra.mxu0 %v6084
    %7793 = vmatprep.subr.bf16.mxu0 0
    %7794 = vmatpush1.bf16.msra.mxu0 %v6085
    %7795 = vmatprep.subr.bf16.mxu0 0
    %7796 = vmatpush1.bf16.msra.mxu0 %v6086
    %7797 = vmatprep.subr.bf16.mxu0 0
    %7798 = vmatpush1.bf16.msra.mxu0 %v6087
    %7799 = vmatprep.subr.bf16.mxu0 0
    %7800 = vmatpush1.bf16.msra.mxu0 %v6088
    %7801 = vmatprep.subr.bf16.mxu0 0
    %7802 = vmatpush1.bf16.msra.mxu0 %v6089
    %7803 = vmatprep.subr.bf16.mxu0 0
    %7804 = vmatpush1.bf16.msra.mxu0 %v6090
    %7805 = vmatprep.subr.bf16.mxu0 0
    %7806 = vmatpush1.bf16.msra.mxu0 %v6091
    %7807 = vmatprep.subr.bf16.mxu0 0
    %7808 = vmatpush1.bf16.msra.mxu0 %v6092
    %7809 = vmatprep.subr.bf16.mxu0 0
    %7810 = vmatpush1.bf16.msra.mxu0 %v6093
    %7811 = vmatprep.subr.bf16.mxu0 0
    %7812 = vmatpush1.bf16.msra.mxu0 %v6094
    %7813 = vmatprep.subr.bf16.mxu0 0
    %7814 = vmatpush1.bf16.msra.mxu0 %v6095
    %7815 = vmatprep.subr.bf16.mxu0 0
    %7816 = vmatpush1.bf16.msra.mxu0 %v6096
    %7817 = vmatprep.mubr.bf16.mxu0 %v1273
    %7818 = vmatmul.mubr.bf16.gmra.mrb[0].mxu0 %v1272
    %v7819 = vpop.f32.mrb[0].mxu0
    %v7820 = vadd.f32 %v7780, %v7819
    %v7821 = vpop.f32.mrb[0].mxu0
    %v7822 = vpop.f32.mrb[0].mxu0
    %v7823 = vpop.f32.mrb[0].mxu0
    %7824 = vdwg.mxu0
    %7825 = vmatprep.subr.bf16.mxu0 0
    %7826 = vmatpush1.bf16.msra.mxu0 %v6097
    %7827 = vmatprep.subr.bf16.mxu0 0
    %7828 = vmatpush1.bf16.msra.mxu0 %v6098
    %7829 = vmatprep.subr.bf16.mxu0 0
    %7830 = vmatpush1.bf16.msra.mxu0 %v6099
    %7831 = vmatprep.subr.bf16.mxu0 0
    %7832 = vmatpush1.bf16.msra.mxu0 %v6100
    %7833 = vmatprep.subr.bf16.mxu0 0
    %7834 = vmatpush1.bf16.msra.mxu0 %v6101
    %7835 = vmatprep.subr.bf16.mxu0 0
    %7836 = vmatpush1.bf16.msra.mxu0 %v6102
    %7837 = vmatprep.subr.bf16.mxu0 0
    %7838 = vmatpush1.bf16.msra.mxu0 %v6103
    %7839 = vmatprep.subr.bf16.mxu0 0
    %7840 = vmatpush1.bf16.msra.mxu0 %v6104
    %7841 = vmatprep.subr.bf16.mxu0 0
    %7842 = vmatpush1.bf16.msra.mxu0 %v6105
    %7843 = vmatprep.subr.bf16.mxu0 0
    %7844 = vmatpush1.bf16.msra.mxu0 %v6106
    %7845 = vmatprep.subr.bf16.mxu0 0
    %7846 = vmatpush1.bf16.msra.mxu0 %v6107
    %7847 = vmatprep.subr.bf16.mxu0 0
    %7848 = vmatpush1.bf16.msra.mxu0 %v6108
    %7849 = vmatprep.subr.bf16.mxu0 0
    %7850 = vmatpush1.bf16.msra.mxu0 %v6109
    %7851 = vmatprep.subr.bf16.mxu0 0
    %7852 = vmatpush1.bf16.msra.mxu0 %v6110
    %7853 = vmatprep.subr.bf16.mxu0 0
    %7854 = vmatpush1.bf16.msra.mxu0 %v6111
    %7855 = vmatprep.subr.bf16.mxu0 0
    %7856 = vmatpush1.bf16.msra.mxu0 %v6112
    %7857 = vmatprep.mubr.bf16.mxu0 %v1275
    %7858 = vmatmul.mubr.bf16.gmra.mrb[0].mxu0 %v1274
    %v7859 = vpop.f32.mrb[0].mxu0
    %v7860 = vadd.f32 %v7820, %v7859
    %v7861 = vpop.f32.mrb[0].mxu0
    %v7862 = vpop.f32.mrb[0].mxu0
    %v7863 = vpop.f32.mrb[0].mxu0
    %7864 = vdwg.mxu0
    %7865 = vmatprep.subr.bf16.mxu0 0
    %7866 = vmatpush1.bf16.msra.mxu0 %v6113
    %7867 = vmatprep.subr.bf16.mxu0 0
    %7868 = vmatpush1.bf16.msra.mxu0 %v6114
    %7869 = vmatprep.subr.bf16.mxu0 0
    %7870 = vmatpush1.bf16.msra.mxu0 %v6115
    %7871 = vmatprep.subr.bf16.mxu0 0
    %7872 = vmatpush1.bf16.msra.mxu0 %v6116
    %7873 = vmatprep.subr.bf16.mxu0 0
    %7874 = vmatpush1.bf16.msra.mxu0 %v6117
    %7875 = vmatprep.subr.bf16.mxu0 0
    %7876 = vmatpush1.bf16.msra.mxu0 %v6118
    %7877 = vmatprep.subr.bf16.mxu0 0
    %7878 = vmatpush1.bf16.msra.mxu0 %v6119
    %7879 = vmatprep.subr.bf16.mxu0 0
    %7880 = vmatpush1.bf16.msra.mxu0 %v6120
    %7881 = vmatprep.subr.bf16.mxu0 0
    %7882 = vmatpush1.bf16.msra.mxu0 %v6121
    %7883 = vmatprep.subr.bf16.mxu0 0
    %7884 = vmatpush1.bf16.msra.mxu0 %v6122
    %7885 = vmatprep.subr.bf16.mxu0 0
    %7886 = vmatpush1.bf16.msra.mxu0 %v6123
    %7887 = vmatprep.subr.bf16.mxu0 0
    %7888 = vmatpush1.bf16.msra.mxu0 %v6124
    %7889 = vmatprep.subr.bf16.mxu0 0
    %7890 = vmatpush1.bf16.msra.mxu0 %v6125
    %7891 = vmatprep.subr.bf16.mxu0 0
    %7892 = vmatpush1.bf16.msra.mxu0 %v6126
    %7893 = vmatprep.subr.bf16.mxu0 0
    %7894 = vmatpush1.bf16.msra.mxu0 %v6127
    %7895 = vmatprep.subr.bf16.mxu0 0
    %7896 = vmatpush1.bf16.msra.mxu0 %v6128
    %7897 = vmatprep.mubr.bf16.mxu0 %v1277
    %7898 = vmatmul.mubr.bf16.gmra.mrb[0].mxu0 %v1276
    %v7899 = vpop.f32.mrb[0].mxu0
    %v7900 = vadd.f32 %v7860, %v7899
    %v7901 = vpop.f32.mrb[0].mxu0
    %v7902 = vpop.f32.mrb[0].mxu0
    %v7903 = vpop.f32.mrb[0].mxu0
    %7904 = vdwg.mxu0
    %7905 = vmatprep.subr.bf16.mxu0 0
    %7906 = vmatpush1.bf16.msra.mxu0 %v6129
    %7907 = vmatprep.subr.bf16.mxu0 0
    %7908 = vmatpush1.bf16.msra.mxu0 %v6130
    %7909 = vmatprep.subr.bf16.mxu0 0
    %7910 = vmatpush1.bf16.msra.mxu0 %v6131
    %7911 = vmatprep.subr.bf16.mxu0 0
    %7912 = vmatpush1.bf16.msra.mxu0 %v6132
    %7913 = vmatprep.subr.bf16.mxu0 0
    %7914 = vmatpush1.bf16.msra.mxu0 %v6133
    %7915 = vmatprep.subr.bf16.mxu0 0
    %7916 = vmatpush1.bf16.msra.mxu0 %v6134
    %7917 = vmatprep.subr.bf16.mxu0 0
    %7918 = vmatpush1.bf16.msra.mxu0 %v6135
    %7919 = vmatprep.subr.bf16.mxu0 0
    %7920 = vmatpush1.bf16.msra.mxu0 %v6136
    %7921 = vmatprep.subr.bf16.mxu0 0
    %7922 = vmatpush1.bf16.msra.mxu0 %v6137
    %7923 = vmatprep.subr.bf16.mxu0 0
    %7924 = vmatpush1.bf16.msra.mxu0 %v6138
    %7925 = vmatprep.subr.bf16.mxu0 0
    %7926 = vmatpush1.bf16.msra.mxu0 %v6139
    %7927 = vmatprep.subr.bf16.mxu0 0
    %7928 = vmatpush1.bf16.msra.mxu0 %v6140
    %7929 = vmatprep.subr.bf16.mxu0 0
    %7930 = vmatpush1.bf16.msra.mxu0 %v6141
    %7931 = vmatprep.subr.bf16.mxu0 0
    %7932 = vmatpush1.bf16.msra.mxu0 %v6142
    %7933 = vmatprep.subr.bf16.mxu0 0
    %7934 = vmatpush1.bf16.msra.mxu0 %v6143
    %7935 = vmatprep.subr.bf16.mxu0 0
    %7936 = vmatpush1.bf16.msra.mxu0 %v6144
    %7937 = vmatprep.mubr.bf16.mxu0 %v1279
    %7938 = vmatmul.mubr.bf16.gmra.mrb[0].mxu0 %v1278
    %v7939 = vpop.f32.mrb[0].mxu0
    %v7940 = vadd.f32 %v7900, %v7939
    %v7941 = vpop.f32.mrb[0].mxu0
    %v7942 = vpop.f32.mrb[0].mxu0
    %v7943 = vpop.f32.mrb[0].mxu0
    %7944 = vdwg.mxu0
    %7945 = vmatprep.subr.bf16.mxu0 0
    %7946 = vmatpush1.bf16.msra.mxu0 %v6145
    %7947 = vmatprep.subr.bf16.mxu0 0
    %7948 = vmatpush1.bf16.msra.mxu0 %v6146
    %7949 = vmatprep.subr.bf16.mxu0 0
    %7950 = vmatpush1.bf16.msra.mxu0 %v6147
    %7951 = vmatprep.subr.bf16.mxu0 0
    %7952 = vmatpush1.bf16.msra.mxu0 %v6148
    %7953 = vmatprep.subr.bf16.mxu0 0
    %7954 = vmatpush1.bf16.msra.mxu0 %v6149
    %7955 = vmatprep.subr.bf16.mxu0 0
    %7956 = vmatpush1.bf16.msra.mxu0 %v6150
    %7957 = vmatprep.subr.bf16.mxu0 0
    %7958 = vmatpush1.bf16.msra.mxu0 %v6151
    %7959 = vmatprep.subr.bf16.mxu0 0
    %7960 = vmatpush1.bf16.msra.mxu0 %v6152
    %7961 = vmatprep.subr.bf16.mxu0 0
    %7962 = vmatpush1.bf16.msra.mxu0 %v6153
    %7963 = vmatprep.subr.bf16.mxu0 0
    %7964 = vmatpush1.bf16.msra.mxu0 %v6154
    %7965 = vmatprep.subr.bf16.mxu0 0
    %7966 = vmatpush1.bf16.msra.mxu0 %v6155
    %7967 = vmatprep.subr.bf16.mxu0 0
    %7968 = vmatpush1.bf16.msra.mxu0 %v6156
    %7969 = vmatprep.subr.bf16.mxu0 0
    %7970 = vmatpush1.bf16.msra.mxu0 %v6157
    %7971 = vmatprep.subr.bf16.mxu0 0
    %7972 = vmatpush1.bf16.msra.mxu0 %v6158
    %7973 = vmatprep.subr.bf16.mxu0 0
    %7974 = vmatpush1.bf16.msra.mxu0 %v6159
    %7975 = vmatprep.subr.bf16.mxu0 0
    %7976 = vmatpush1.bf16.msra.mxu0 %v6160
    %7977 = vmatprep.mubr.bf16.mxu0 %v1281
    %7978 = vmatmul.mubr.bf16.gmra.mrb[0].mxu0 %v1280
    %v7979 = vpop.f32.mrb[0].mxu0
    %v7980 = vadd.f32 %v7940, %v7979
    %v7981 = vpop.f32.mrb[0].mxu0
    %v7982 = vpop.f32.mrb[0].mxu0
    %v7983 = vpop.f32.mrb[0].mxu0
    %7984 = vdwg.mxu0
    %7985 = vmatprep.subr.bf16.mxu0 0
    %7986 = vmatpush1.bf16.msra.mxu0 %v6161
    %7987 = vmatprep.subr.bf16.mxu0 0
    %7988 = vmatpush1.bf16.msra.mxu0 %v6162
    %7989 = vmatprep.subr.bf16.mxu0 0
    %7990 = vmatpush1.bf16.msra.mxu0 %v6163
    %7991 = vmatprep.subr.bf16.mxu0 0
    %7992 = vmatpush1.bf16.msra.mxu0 %v6164
    %7993 = vmatprep.subr.bf16.mxu0 0
    %7994 = vmatpush1.bf16.msra.mxu0 %v6165
    %7995 = vmatprep.subr.bf16.mxu0 0
    %7996 = vmatpush1.bf16.msra.mxu0 %v6166
    %7997 = vmatprep.subr.bf16.mxu0 0
    %7998 = vmatpush1.bf16.msra.mxu0 %v6167
    %7999 = vmatprep.subr.bf16.mxu0 0
    %8000 = vmatpush1.bf16.msra.mxu0 %v6168
    %8001 = vmatprep.subr.bf16.mxu0 0
    %8002 = vmatpush1.bf16.msra.mxu0 %v6169
    %8003 = vmatprep.subr.bf16.mxu0 0
    %8004 = vmatpush1.bf16.msra.mxu0 %v6170
    %8005 = vmatprep.subr.bf16.mxu0 0
    %8006 = vmatpush1.bf16.msra.mxu0 %v6171
    %8007 = vmatprep.subr.bf16.mxu0 0
    %8008 = vmatpush1.bf16.msra.mxu0 %v6172
    %8009 = vmatprep.subr.bf16.mxu0 0
    %8010 = vmatpush1.bf16.msra.mxu0 %v6173
    %8011 = vmatprep.subr.bf16.mxu0 0
    %8012 = vmatpush1.bf16.msra.mxu0 %v6174
    %8013 = vmatprep.subr.bf16.mxu0 0
    %8014 = vmatpush1.bf16.msra.mxu0 %v6175
    %8015 = vmatprep.subr.bf16.mxu0 0
    %8016 = vmatpush1.bf16.msra.mxu0 %v6176
    %8017 = vmatprep.mubr.bf16.mxu0 %v1283
    %8018 = vmatmul.mubr.bf16.gmra.mrb[0].mxu0 %v1282
    %v8019 = vpop.f32.mrb[0].mxu0
    %v8020 = vadd.f32 %v7980, %v8019
    %v8021 = vpop.f32.mrb[0].mxu0
    %v8022 = vpop.f32.mrb[0].mxu0
    %v8023 = vpop.f32.mrb[0].mxu0
    %8024 = vdwg.mxu0
    %8025 = vmatprep.subr.bf16.mxu0 0
    %8026 = vmatpush1.bf16.msra.mxu0 %v6177
    %8027 = vmatprep.subr.bf16.mxu0 0
    %8028 = vmatpush1.bf16.msra.mxu0 %v6178
    %8029 = vmatprep.subr.bf16.mxu0 0
    %8030 = vmatpush1.bf16.msra.mxu0 %v6179
    %8031 = vmatprep.subr.bf16.mxu0 0
    %8032 = vmatpush1.bf16.msra.mxu0 %v6180
    %8033 = vmatprep.subr.bf16.mxu0 0
    %8034 = vmatpush1.bf16.msra.mxu0 %v6181
    %8035 = vmatprep.subr.bf16.mxu0 0
    %8036 = vmatpush1.bf16.msra.mxu0 %v6182
    %8037 = vmatprep.subr.bf16.mxu0 0
    %8038 = vmatpush1.bf16.msra.mxu0 %v6183
    %8039 = vmatprep.subr.bf16.mxu0 0
    %8040 = vmatpush1.bf16.msra.mxu0 %v6184
    %8041 = vmatprep.subr.bf16.mxu0 0
    %8042 = vmatpush1.bf16.msra.mxu0 %v6185
    %8043 = vmatprep.subr.bf16.mxu0 0
    %8044 = vmatpush1.bf16.msra.mxu0 %v6186
    %8045 = vmatprep.subr.bf16.mxu0 0
    %8046 = vmatpush1.bf16.msra.mxu0 %v6187
    %8047 = vmatprep.subr.bf16.mxu0 0
    %8048 = vmatpush1.bf16.msra.mxu0 %v6188
    %8049 = vmatprep.subr.bf16.mxu0 0
    %8050 = vmatpush1.bf16.msra.mxu0 %v6189
    %8051 = vmatprep.subr.bf16.mxu0 0
    %8052 = vmatpush1.bf16.msra.mxu0 %v6190
    %8053 = vmatprep.subr.bf16.mxu0 0
    %8054 = vmatpush1.bf16.msra.mxu0 %v6191
    %8055 = vmatprep.subr.bf16.mxu0 0
    %8056 = vmatpush1.bf16.msra.mxu0 %v6192
    %8057 = vmatprep.mubr.bf16.mxu0 %v1285
    %8058 = vmatmul.mubr.bf16.gmra.mrb[0].mxu0 %v1284
    %v8059 = vpop.f32.mrb[0].mxu0
    %v8060 = vadd.f32 %v8020, %v8059
    %v8061 = vpop.f32.mrb[0].mxu0
    %v8062 = vpop.f32.mrb[0].mxu0
    %v8063 = vpop.f32.mrb[0].mxu0
    %8064 = vdwg.mxu0
    %8065 = vmatprep.subr.bf16.mxu0 0
    %8066 = vmatpush1.bf16.msra.mxu0 %v6193
    %8067 = vmatprep.subr.bf16.mxu0 0
    %8068 = vmatpush1.bf16.msra.mxu0 %v6194
    %8069 = vmatprep.subr.bf16.mxu0 0
    %8070 = vmatpush1.bf16.msra.mxu0 %v6195
    %8071 = vmatprep.subr.bf16.mxu0 0
    %8072 = vmatpush1.bf16.msra.mxu0 %v6196
    %8073 = vmatprep.subr.bf16.mxu0 0
    %8074 = vmatpush1.bf16.msra.mxu0 %v6197
    %8075 = vmatprep.subr.bf16.mxu0 0
    %8076 = vmatpush1.bf16.msra.mxu0 %v6198
    %8077 = vmatprep.subr.bf16.mxu0 0
    %8078 = vmatpush1.bf16.msra.mxu0 %v6199
    %8079 = vmatprep.subr.bf16.mxu0 0
    %8080 = vmatpush1.bf16.msra.mxu0 %v6200
    %8081 = vmatprep.subr.bf16.mxu0 0
    %8082 = vmatpush1.bf16.msra.mxu0 %v6201
    %8083 = vmatprep.subr.bf16.mxu0 0
    %8084 = vmatpush1.bf16.msra.mxu0 %v6202
    %8085 = vmatprep.subr.bf16.mxu0 0
    %8086 = vmatpush1.bf16.msra.mxu0 %v6203
    %8087 = vmatprep.subr.bf16.mxu0 0
    %8088 = vmatpush1.bf16.msra.mxu0 %v6204
    %8089 = vmatprep.subr.bf16.mxu0 0
    %8090 = vmatpush1.bf16.msra.mxu0 %v6205
    %8091 = vmatprep.subr.bf16.mxu0 0
    %8092 = vmatpush1.bf16.msra.mxu0 %v6206
    %8093 = vmatprep.subr.bf16.mxu0 0
    %8094 = vmatpush1.bf16.msra.mxu0 %v6207
    %8095 = vmatprep.subr.bf16.mxu0 0
    %8096 = vmatpush1.bf16.msra.mxu0 %v6208
    %8097 = vmatprep.mubr.bf16.mxu0 %v1287
    %8098 = vmatmul.mubr.bf16.gmra.mrb[0].mxu0 %v1286
    %v8099 = vpop.f32.mrb[0].mxu0
    %v8100 = vadd.f32 %v8060, %v8099
    %v8101 = vpop.f32.mrb[0].mxu0
    %v8102 = vpop.f32.mrb[0].mxu0
    %v8103 = vpop.f32.mrb[0].mxu0
    %8104 = vdwg.mxu0
    %8105 = vmatprep.subr.bf16.mxu0 0
    %8106 = vmatpush1.bf16.msra.mxu0 %v6209
    %8107 = vmatprep.subr.bf16.mxu0 0
    %8108 = vmatpush1.bf16.msra.mxu0 %v6210
    %8109 = vmatprep.subr.bf16.mxu0 0
    %8110 = vmatpush1.bf16.msra.mxu0 %v6211
    %8111 = vmatprep.subr.bf16.mxu0 0
    %8112 = vmatpush1.bf16.msra.mxu0 %v6212
    %8113 = vmatprep.subr.bf16.mxu0 0
    %8114 = vmatpush1.bf16.msra.mxu0 %v6213
    %8115 = vmatprep.subr.bf16.mxu0 0
    %8116 = vmatpush1.bf16.msra.mxu0 %v6214
    %8117 = vmatprep.subr.bf16.mxu0 0
    %8118 = vmatpush1.bf16.msra.mxu0 %v6215
    %8119 = vmatprep.subr.bf16.mxu0 0
    %8120 = vmatpush1.bf16.msra.mxu0 %v6216
    %8121 = vmatprep.subr.bf16.mxu0 0
    %8122 = vmatpush1.bf16.msra.mxu0 %v6217
    %8123 = vmatprep.subr.bf16.mxu0 0
    %8124 = vmatpush1.bf16.msra.mxu0 %v6218
    %8125 = vmatprep.subr.bf16.mxu0 0
    %8126 = vmatpush1.bf16.msra.mxu0 %v6219
    %8127 = vmatprep.subr.bf16.mxu0 0
    %8128 = vmatpush1.bf16.msra.mxu0 %v6220
    %8129 = vmatprep.subr.bf16.mxu0 0
    %8130 = vmatpush1.bf16.msra.mxu0 %v6221
    %8131 = vmatprep.subr.bf16.mxu0 0
    %8132 = vmatpush1.bf16.msra.mxu0 %v6222
    %8133 = vmatprep.subr.bf16.mxu0 0
    %8134 = vmatpush1.bf16.msra.mxu0 %v6223
    %8135 = vmatprep.subr.bf16.mxu0 0
    %8136 = vmatpush1.bf16.msra.mxu0 %v6224
    %8137 = vmatprep.mubr.bf16.mxu0 %v1289
    %8138 = vmatmul.mubr.bf16.gmra.mrb[0].mxu0 %v1288
    %v8139 = vpop.f32.mrb[0].mxu0
    %v8140 = vadd.f32 %v8100, %v8139
    %v8141 = vpop.f32.mrb[0].mxu0
    %v8142 = vpop.f32.mrb[0].mxu0
    %v8143 = vpop.f32.mrb[0].mxu0
    %8144 = vdwg.mxu0
    %8145 = vmatprep.subr.bf16.mxu0 0
    %8146 = vmatpush1.bf16.msra.mxu0 %v6225
    %8147 = vmatprep.subr.bf16.mxu0 0
    %8148 = vmatpush1.bf16.msra.mxu0 %v6226
    %8149 = vmatprep.subr.bf16.mxu0 0
    %8150 = vmatpush1.bf16.msra.mxu0 %v6227
    %8151 = vmatprep.subr.bf16.mxu0 0
    %8152 = vmatpush1.bf16.msra.mxu0 %v6228
    %8153 = vmatprep.subr.bf16.mxu0 0
    %8154 = vmatpush1.bf16.msra.mxu0 %v6229
    %8155 = vmatprep.subr.bf16.mxu0 0
    %8156 = vmatpush1.bf16.msra.mxu0 %v6230
    %8157 = vmatprep.subr.bf16.mxu0 0
    %8158 = vmatpush1.bf16.msra.mxu0 %v6231
    %8159 = vmatprep.subr.bf16.mxu0 0
    %8160 = vmatpush1.bf16.msra.mxu0 %v6232
    %8161 = vmatprep.subr.bf16.mxu0 0
    %8162 = vmatpush1.bf16.msra.mxu0 %v6233
    %8163 = vmatprep.subr.bf16.mxu0 0
    %8164 = vmatpush1.bf16.msra.mxu0 %v6234
    %8165 = vmatprep.subr.bf16.mxu0 0
    %8166 = vmatpush1.bf16.msra.mxu0 %v6235
    %8167 = vmatprep.subr.bf16.mxu0 0
    %8168 = vmatpush1.bf16.msra.mxu0 %v6236
    %8169 = vmatprep.subr.bf16.mxu0 0
    %8170 = vmatpush1.bf16.msra.mxu0 %v6237
    %8171 = vmatprep.subr.bf16.mxu0 0
    %8172 = vmatpush1.bf16.msra.mxu0 %v6238
    %8173 = vmatprep.subr.bf16.mxu0 0
    %8174 = vmatpush1.bf16.msra.mxu0 %v6239
    %8175 = vmatprep.subr.bf16.mxu0 0
    %8176 = vmatpush1.bf16.msra.mxu0 %v6240
    %8177 = vmatprep.mubr.bf16.mxu0 %v1291
    %8178 = vmatmul.mubr.bf16.gmra.mrb[0].mxu0 %v1290
    %v8179 = vpop.f32.mrb[0].mxu0
    %v8180 = vadd.f32 %v8140, %v8179
    %v8181 = vpop.f32.mrb[0].mxu0
    %v8182 = vpop.f32.mrb[0].mxu0
    %v8183 = vpop.f32.mrb[0].mxu0
    %8184 = vdwg.mxu0
    %8185 = vmatprep.subr.bf16.mxu0 0
    %8186 = vmatpush1.bf16.msra.mxu0 %v6241
    %8187 = vmatprep.subr.bf16.mxu0 0
    %8188 = vmatpush1.bf16.msra.mxu0 %v6242
    %8189 = vmatprep.subr.bf16.mxu0 0
    %8190 = vmatpush1.bf16.msra.mxu0 %v6243
    %8191 = vmatprep.subr.bf16.mxu0 0
    %8192 = vmatpush1.bf16.msra.mxu0 %v6244
    %8193 = vmatprep.subr.bf16.mxu0 0
    %8194 = vmatpush1.bf16.msra.mxu0 %v6245
    %8195 = vmatprep.subr.bf16.mxu0 0
    %8196 = vmatpush1.bf16.msra.mxu0 %v6246
    %8197 = vmatprep.subr.bf16.mxu0 0
    %8198 = vmatpush1.bf16.msra.mxu0 %v6247
    %8199 = vmatprep.subr.bf16.mxu0 0
    %8200 = vmatpush1.bf16.msra.mxu0 %v6248
    %8201 = vmatprep.subr.bf16.mxu0 0
    %8202 = vmatpush1.bf16.msra.mxu0 %v6249
    %8203 = vmatprep.subr.bf16.mxu0 0
    %8204 = vmatpush1.bf16.msra.mxu0 %v6250
    %8205 = vmatprep.subr.bf16.mxu0 0
    %8206 = vmatpush1.bf16.msra.mxu0 %v6251
    %8207 = vmatprep.subr.bf16.mxu0 0
    %8208 = vmatpush1.bf16.msra.mxu0 %v6252
    %8209 = vmatprep.subr.bf16.mxu0 0
    %8210 = vmatpush1.bf16.msra.mxu0 %v6253
    %8211 = vmatprep.subr.bf16.mxu0 0
    %8212 = vmatpush1.bf16.msra.mxu0 %v6254
    %8213 = vmatprep.subr.bf16.mxu0 0
    %8214 = vmatpush1.bf16.msra.mxu0 %v6255
    %8215 = vmatprep.subr.bf16.mxu0 0
    %8216 = vmatpush1.bf16.msra.mxu0 %v6256
    %8217 = vmatprep.mubr.bf16.mxu0 %v1293
    %8218 = vmatmul.mubr.bf16.gmra.mrb[0].mxu0 %v1292
    %v8219 = vpop.f32.mrb[0].mxu0
    %v8220 = vadd.f32 %v8180, %v8219
    %v8221 = vpop.f32.mrb[0].mxu0
    %v8222 = vpop.f32.mrb[0].mxu0
    %v8223 = vpop.f32.mrb[0].mxu0
    %8224 = vdwg.mxu0
    %8225 = vmatprep.subr.bf16.mxu0 0
    %8226 = vmatpush1.bf16.msra.mxu0 %v6257
    %8227 = vmatprep.subr.bf16.mxu0 0
    %8228 = vmatpush1.bf16.msra.mxu0 %v6258
    %8229 = vmatprep.subr.bf16.mxu0 0
    %8230 = vmatpush1.bf16.msra.mxu0 %v6259
    %8231 = vmatprep.subr.bf16.mxu0 0
    %8232 = vmatpush1.bf16.msra.mxu0 %v6260
    %8233 = vmatprep.subr.bf16.mxu0 0
    %8234 = vmatpush1.bf16.msra.mxu0 %v6261
    %8235 = vmatprep.subr.bf16.mxu0 0
    %8236 = vmatpush1.bf16.msra.mxu0 %v6262
    %8237 = vmatprep.subr.bf16.mxu0 0
    %8238 = vmatpush1.bf16.msra.mxu0 %v6263
    %8239 = vmatprep.subr.bf16.mxu0 0
    %8240 = vmatpush1.bf16.msra.mxu0 %v6264
    %8241 = vmatprep.subr.bf16.mxu0 0
    %8242 = vmatpush1.bf16.msra.mxu0 %v6265
    %8243 = vmatprep.subr.bf16.mxu0 0
    %8244 = vmatpush1.bf16.msra.mxu0 %v6266
    %8245 = vmatprep.subr.bf16.mxu0 0
    %8246 = vmatpush1.bf16.msra.mxu0 %v6267
    %8247 = vmatprep.subr.bf16.mxu0 0
    %8248 = vmatpush1.bf16.msra.mxu0 %v6268
    %8249 = vmatprep.subr.bf16.mxu0 0
    %8250 = vmatpush1.bf16.msra.mxu0 %v6269
    %8251 = vmatprep.subr.bf16.mxu0 0
    %8252 = vmatpush1.bf16.msra.mxu0 %v6270
    %8253 = vmatprep.subr.bf16.mxu0 0
    %8254 = vmatpush1.bf16.msra.mxu0 %v6271
    %8255 = vmatprep.subr.bf16.mxu0 0
    %8256 = vmatpush1.bf16.msra.mxu0 %v6272
    %8257 = vmatprep.mubr.bf16.mxu0 %v1295
    %8258 = vmatmul.mubr.bf16.gmra.mrb[0].mxu0 %v1294
    %v8259 = vpop.f32.mrb[0].mxu0
    %v8260 = vadd.f32 %v8220, %v8259
    %v8261 = vpop.f32.mrb[0].mxu0
    %v8262 = vpop.f32.mrb[0].mxu0
    %v8263 = vpop.f32.mrb[0].mxu0
    %8264 = vdwg.mxu0
    %8265 = vmatprep.subr.bf16.mxu0 0
    %8266 = vmatpush1.bf16.msra.mxu0 %v6273
    %8267 = vmatprep.subr.bf16.mxu0 0
    %8268 = vmatpush1.bf16.msra.mxu0 %v6274
    %8269 = vmatprep.subr.bf16.mxu0 0
    %8270 = vmatpush1.bf16.msra.mxu0 %v6275
    %8271 = vmatprep.subr.bf16.mxu0 0
    %8272 = vmatpush1.bf16.msra.mxu0 %v6276
    %8273 = vmatprep.subr.bf16.mxu0 0
    %8274 = vmatpush1.bf16.msra.mxu0 %v6277
    %8275 = vmatprep.subr.bf16.mxu0 0
    %8276 = vmatpush1.bf16.msra.mxu0 %v6278
    %8277 = vmatprep.subr.bf16.mxu0 0
    %8278 = vmatpush1.bf16.msra.mxu0 %v6279
    %8279 = vmatprep.subr.bf16.mxu0 0
    %8280 = vmatpush1.bf16.msra.mxu0 %v6280
    %8281 = vmatprep.subr.bf16.mxu0 0
    %8282 = vmatpush1.bf16.msra.mxu0 %v6281
    %8283 = vmatprep.subr.bf16.mxu0 0
    %8284 = vmatpush1.bf16.msra.mxu0 %v6282
    %8285 = vmatprep.subr.bf16.mxu0 0
    %8286 = vmatpush1.bf16.msra.mxu0 %v6283
    %8287 = vmatprep.subr.bf16.mxu0 0
    %8288 = vmatpush1.bf16.msra.mxu0 %v6284
    %8289 = vmatprep.subr.bf16.mxu0 0
    %8290 = vmatpush1.bf16.msra.mxu0 %v6285
    %8291 = vmatprep.subr.bf16.mxu0 0
    %8292 = vmatpush1.bf16.msra.mxu0 %v6286
    %8293 = vmatprep.subr.bf16.mxu0 0
    %8294 = vmatpush1.bf16.msra.mxu0 %v6287
    %8295 = vmatprep.subr.bf16.mxu0 0
    %8296 = vmatpush1.bf16.msra.mxu0 %v6288
    %8297 = vmatprep.mubr.bf16.mxu0 %v1297
    %8298 = vmatmul.mubr.bf16.gmra.mrb[0].mxu0 %v1296
    %v8299 = vpop.f32.mrb[0].mxu0
    %v8300 = vadd.f32 %v8260, %v8299
    %v8301 = vpop.f32.mrb[0].mxu0
    %v8302 = vpop.f32.mrb[0].mxu0
    %v8303 = vpop.f32.mrb[0].mxu0
    %8304 = vdwg.mxu0
    %8305 = vmatprep.subr.bf16.mxu0 0
    %8306 = vmatpush1.bf16.msra.mxu0 %v6289
    %8307 = vmatprep.subr.bf16.mxu0 0
    %8308 = vmatpush1.bf16.msra.mxu0 %v6290
    %8309 = vmatprep.subr.bf16.mxu0 0
    %8310 = vmatpush1.bf16.msra.mxu0 %v6291
    %8311 = vmatprep.subr.bf16.mxu0 0
    %8312 = vmatpush1.bf16.msra.mxu0 %v6292
    %8313 = vmatprep.subr.bf16.mxu0 0
    %8314 = vmatpush1.bf16.msra.mxu0 %v6293
    %8315 = vmatprep.subr.bf16.mxu0 0
    %8316 = vmatpush1.bf16.msra.mxu0 %v6294
    %8317 = vmatprep.subr.bf16.mxu0 0
    %8318 = vmatpush1.bf16.msra.mxu0 %v6295
    %8319 = vmatprep.subr.bf16.mxu0 0
    %8320 = vmatpush1.bf16.msra.mxu0 %v6296
    %8321 = vmatprep.subr.bf16.mxu0 0
    %8322 = vmatpush1.bf16.msra.mxu0 %v6297
    %8323 = vmatprep.subr.bf16.mxu0 0
    %8324 = vmatpush1.bf16.msra.mxu0 %v6298
    %8325 = vmatprep.subr.bf16.mxu0 0
    %8326 = vmatpush1.bf16.msra.mxu0 %v6299
    %8327 = vmatprep.subr.bf16.mxu0 0
    %8328 = vmatpush1.bf16.msra.mxu0 %v6300
    %8329 = vmatprep.subr.bf16.mxu0 0
    %8330 = vmatpush1.bf16.msra.mxu0 %v6301
    %8331 = vmatprep.subr.bf16.mxu0 0
    %8332 = vmatpush1.bf16.msra.mxu0 %v6302
    %8333 = vmatprep.subr.bf16.mxu0 0
    %8334 = vmatpush1.bf16.msra.mxu0 %v6303
    %8335 = vmatprep.subr.bf16.mxu0 0
    %8336 = vmatpush1.bf16.msra.mxu0 %v6304
    %8337 = vmatprep.mubr.bf16.mxu0 %v1299
    %8338 = vmatmul.mubr.bf16.gmra.mrb[0].mxu0 %v1298
    %v8339 = vpop.f32.mrb[0].mxu0
    %v8340 = vadd.f32 %v8300, %v8339
    %v8341 = vpop.f32.mrb[0].mxu0
    %v8342 = vpop.f32.mrb[0].mxu0
    %v8343 = vpop.f32.mrb[0].mxu0
    %8344 = vdwg.mxu0
    %8345 = vmatprep.subr.bf16.mxu0 0
    %8346 = vmatpush1.bf16.msra.mxu0 %v6305
    %8347 = vmatprep.subr.bf16.mxu0 0
    %8348 = vmatpush1.bf16.msra.mxu0 %v6306
    %8349 = vmatprep.subr.bf16.mxu0 0
    %8350 = vmatpush1.bf16.msra.mxu0 %v6307
    %8351 = vmatprep.subr.bf16.mxu0 0
    %8352 = vmatpush1.bf16.msra.mxu0 %v6308
    %8353 = vmatprep.subr.bf16.mxu0 0
    %8354 = vmatpush1.bf16.msra.mxu0 %v6309
    %8355 = vmatprep.subr.bf16.mxu0 0
    %8356 = vmatpush1.bf16.msra.mxu0 %v6310
    %8357 = vmatprep.subr.bf16.mxu0 0
    %8358 = vmatpush1.bf16.msra.mxu0 %v6311
    %8359 = vmatprep.subr.bf16.mxu0 0
    %8360 = vmatpush1.bf16.msra.mxu0 %v6312
    %8361 = vmatprep.subr.bf16.mxu0 0
    %8362 = vmatpush1.bf16.msra.mxu0 %v6313
    %8363 = vmatprep.subr.bf16.mxu0 0
    %8364 = vmatpush1.bf16.msra.mxu0 %v6314
    %8365 = vmatprep.subr.bf16.mxu0 0
    %8366 = vmatpush1.bf16.msra.mxu0 %v6315
    %8367 = vmatprep.subr.bf16.mxu0 0
    %8368 = vmatpush1.bf16.msra.mxu0 %v6316
    %8369 = vmatprep.subr.bf16.mxu0 0
    %8370 = vmatpush1.bf16.msra.mxu0 %v6317
    %8371 = vmatprep.subr.bf16.mxu0 0
    %8372 = vmatpush1.bf16.msra.mxu0 %v6318
    %8373 = vmatprep.subr.bf16.mxu0 0
    %8374 = vmatpush1.bf16.msra.mxu0 %v6319
    %8375 = vmatprep.subr.bf16.mxu0 0
    %8376 = vmatpush1.bf16.msra.mxu0 %v6320
    %8377 = vmatprep.mubr.bf16.mxu0 %v1301
    %8378 = vmatmul.mubr.bf16.gmra.mrb[0].mxu0 %v1300
    %v8379 = vpop.f32.mrb[0].mxu0
    %v8380 = vadd.f32 %v8340, %v8379
    %v8381 = vpop.f32.mrb[0].mxu0
    %v8382 = vpop.f32.mrb[0].mxu0
    %v8383 = vpop.f32.mrb[0].mxu0
    %8384 = vdwg.mxu0
    %8385 = vmatprep.subr.bf16.mxu0 0
    %8386 = vmatpush1.bf16.msra.mxu0 %v6321
    %8387 = vmatprep.subr.bf16.mxu0 0
    %8388 = vmatpush1.bf16.msra.mxu0 %v6322
    %8389 = vmatprep.subr.bf16.mxu0 0
    %8390 = vmatpush1.bf16.msra.mxu0 %v6323
    %8391 = vmatprep.subr.bf16.mxu0 0
    %8392 = vmatpush1.bf16.msra.mxu0 %v6324
    %8393 = vmatprep.subr.bf16.mxu0 0
    %8394 = vmatpush1.bf16.msra.mxu0 %v6325
    %8395 = vmatprep.subr.bf16.mxu0 0
    %8396 = vmatpush1.bf16.msra.mxu0 %v6326
    %8397 = vmatprep.subr.bf16.mxu0 0
    %8398 = vmatpush1.bf16.msra.mxu0 %v6327
    %8399 = vmatprep.subr.bf16.mxu0 0
    %8400 = vmatpush1.bf16.msra.mxu0 %v6328
    %8401 = vmatprep.subr.bf16.mxu0 0
    %8402 = vmatpush1.bf16.msra.mxu0 %v6329
    %8403 = vmatprep.subr.bf16.mxu0 0
    %8404 = vmatpush1.bf16.msra.mxu0 %v6330
    %8405 = vmatprep.subr.bf16.mxu0 0
    %8406 = vmatpush1.bf16.msra.mxu0 %v6331
    %8407 = vmatprep.subr.bf16.mxu0 0
    %8408 = vmatpush1.bf16.msra.mxu0 %v6332
    %8409 = vmatprep.subr.bf16.mxu0 0
    %8410 = vmatpush1.bf16.msra.mxu0 %v6333
    %8411 = vmatprep.subr.bf16.mxu0 0
    %8412 = vmatpush1.bf16.msra.mxu0 %v6334
    %8413 = vmatprep.subr.bf16.mxu0 0
    %8414 = vmatpush1.bf16.msra.mxu0 %v6335
    %8415 = vmatprep.subr.bf16.mxu0 0
    %8416 = vmatpush1.bf16.msra.mxu0 %v6336
    %8417 = vmatprep.mubr.bf16.mxu0 %v1303
    %8418 = vmatmul.mubr.bf16.gmra.mrb[0].mxu0 %v1302
    %v8419 = vpop.f32.mrb[0].mxu0
    %v8420 = vadd.f32 %v8380, %v8419
    %v8421 = vpop.f32.mrb[0].mxu0
    %v8422 = vpop.f32.mrb[0].mxu0
    %v8423 = vpop.f32.mrb[0].mxu0
    %8424 = vdwg.mxu0
    %8425 = vmatprep.subr.bf16.mxu0 0
    %8426 = vmatpush1.bf16.msra.mxu0 %v6337
    %8427 = vmatprep.subr.bf16.mxu0 0
    %8428 = vmatpush1.bf16.msra.mxu0 %v6338
    %8429 = vmatprep.subr.bf16.mxu0 0
    %8430 = vmatpush1.bf16.msra.mxu0 %v6339
    %8431 = vmatprep.subr.bf16.mxu0 0
    %8432 = vmatpush1.bf16.msra.mxu0 %v6340
    %8433 = vmatprep.subr.bf16.mxu0 0
    %8434 = vmatpush1.bf16.msra.mxu0 %v6341
    %8435 = vmatprep.subr.bf16.mxu0 0
    %8436 = vmatpush1.bf16.msra.mxu0 %v6342
    %8437 = vmatprep.subr.bf16.mxu0 0
    %8438 = vmatpush1.bf16.msra.mxu0 %v6343
    %8439 = vmatprep.subr.bf16.mxu0 0
    %8440 = vmatpush1.bf16.msra.mxu0 %v6344
    %8441 = vmatprep.subr.bf16.mxu0 0
    %8442 = vmatpush1.bf16.msra.mxu0 %v6345
    %8443 = vmatprep.subr.bf16.mxu0 0
    %8444 = vmatpush1.bf16.msra.mxu0 %v6346
    %8445 = vmatprep.subr.bf16.mxu0 0
    %8446 = vmatpush1.bf16.msra.mxu0 %v6347
    %8447 = vmatprep.subr.bf16.mxu0 0
    %8448 = vmatpush1.bf16.msra.mxu0 %v6348
    %8449 = vmatprep.subr.bf16.mxu0 0
    %8450 = vmatpush1.bf16.msra.mxu0 %v6349
    %8451 = vmatprep.subr.bf16.mxu0 0
    %8452 = vmatpush1.bf16.msra.mxu0 %v6350
    %8453 = vmatprep.subr.bf16.mxu0 0
    %8454 = vmatpush1.bf16.msra.mxu0 %v6351
    %8455 = vmatprep.subr.bf16.mxu0 0
    %8456 = vmatpush1.bf16.msra.mxu0 %v6352
    %8457 = vmatprep.mubr.bf16.mxu0 %v1305
    %8458 = vmatmul.mubr.bf16.gmra.mrb[0].mxu0 %v1304
    %v8459 = vpop.f32.mrb[0].mxu0
    %v8460 = vadd.f32 %v8420, %v8459
    %v8461 = vpop.f32.mrb[0].mxu0
    %v8462 = vpop.f32.mrb[0].mxu0
    %v8463 = vpop.f32.mrb[0].mxu0
    %8464 = vdwg.mxu0
    %8465 = vmatprep.subr.bf16.mxu0 0
    %8466 = vmatpush1.bf16.msra.mxu0 %v6353
    %8467 = vmatprep.subr.bf16.mxu0 0
    %8468 = vmatpush1.bf16.msra.mxu0 %v6354
    %8469 = vmatprep.subr.bf16.mxu0 0
    %8470 = vmatpush1.bf16.msra.mxu0 %v6355
    %8471 = vmatprep.subr.bf16.mxu0 0
    %8472 = vmatpush1.bf16.msra.mxu0 %v6356
    %8473 = vmatprep.subr.bf16.mxu0 0
    %8474 = vmatpush1.bf16.msra.mxu0 %v6357
    %8475 = vmatprep.subr.bf16.mxu0 0
    %8476 = vmatpush1.bf16.msra.mxu0 %v6358
    %8477 = vmatprep.subr.bf16.mxu0 0
    %8478 = vmatpush1.bf16.msra.mxu0 %v6359
    %8479 = vmatprep.subr.bf16.mxu0 0
    %8480 = vmatpush1.bf16.msra.mxu0 %v6360
    %8481 = vmatprep.subr.bf16.mxu0 0
    %8482 = vmatpush1.bf16.msra.mxu0 %v6361
    %8483 = vmatprep.subr.bf16.mxu0 0
    %8484 = vmatpush1.bf16.msra.mxu0 %v6362
    %8485 = vmatprep.subr.bf16.mxu0 0
    %8486 = vmatpush1.bf16.msra.mxu0 %v6363
    %8487 = vmatprep.subr.bf16.mxu0 0
    %8488 = vmatpush1.bf16.msra.mxu0 %v6364
    %8489 = vmatprep.subr.bf16.mxu0 0
    %8490 = vmatpush1.bf16.msra.mxu0 %v6365
    %8491 = vmatprep.subr.bf16.mxu0 0
    %8492 = vmatpush1.bf16.msra.mxu0 %v6366
    %8493 = vmatprep.subr.bf16.mxu0 0
    %8494 = vmatpush1.bf16.msra.mxu0 %v6367
    %8495 = vmatprep.subr.bf16.mxu0 0
    %8496 = vmatpush1.bf16.msra.mxu0 %v6368
    %8497 = vmatprep.mubr.bf16.mxu0 %v1307
    %8498 = vmatmul.mubr.bf16.gmra.mrb[0].mxu0 %v1306
    %v8499 = vpop.f32.mrb[0].mxu0
    %v8500 = vadd.f32 %v8460, %v8499
    %v8501 = vpop.f32.mrb[0].mxu0
    %v8502 = vpop.f32.mrb[0].mxu0
    %v8503 = vpop.f32.mrb[0].mxu0
    %8504 = vdwg.mxu0
    %8505 = vmatprep.subr.bf16.mxu0 0
    %8506 = vmatpush1.bf16.msra.mxu0 %v6369
    %8507 = vmatprep.subr.bf16.mxu0 0
    %8508 = vmatpush1.bf16.msra.mxu0 %v6370
    %8509 = vmatprep.subr.bf16.mxu0 0
    %8510 = vmatpush1.bf16.msra.mxu0 %v6371
    %8511 = vmatprep.subr.bf16.mxu0 0
    %8512 = vmatpush1.bf16.msra.mxu0 %v6372
    %8513 = vmatprep.subr.bf16.mxu0 0
    %8514 = vmatpush1.bf16.msra.mxu0 %v6373
    %8515 = vmatprep.subr.bf16.mxu0 0
    %8516 = vmatpush1.bf16.msra.mxu0 %v6374
    %8517 = vmatprep.subr.bf16.mxu0 0
    %8518 = vmatpush1.bf16.msra.mxu0 %v6375
    %8519 = vmatprep.subr.bf16.mxu0 0
    %8520 = vmatpush1.bf16.msra.mxu0 %v6376
    %8521 = vmatprep.subr.bf16.mxu0 0
    %8522 = vmatpush1.bf16.msra.mxu0 %v6377
    %8523 = vmatprep.subr.bf16.mxu0 0
    %8524 = vmatpush1.bf16.msra.mxu0 %v6378
    %8525 = vmatprep.subr.bf16.mxu0 0
    %8526 = vmatpush1.bf16.msra.mxu0 %v6379
    %8527 = vmatprep.subr.bf16.mxu0 0
    %8528 = vmatpush1.bf16.msra.mxu0 %v6380
    %8529 = vmatprep.subr.bf16.mxu0 0
    %8530 = vmatpush1.bf16.msra.mxu0 %v6381
    %8531 = vmatprep.subr.bf16.mxu0 0
    %8532 = vmatpush1.bf16.msra.mxu0 %v6382
    %8533 = vmatprep.subr.bf16.mxu0 0
    %8534 = vmatpush1.bf16.msra.mxu0 %v6383
    %8535 = vmatprep.subr.bf16.mxu0 0
    %8536 = vmatpush1.bf16.msra.mxu0 %v6384
    %8537 = vmatprep.mubr.bf16.mxu0 %v1309
    %8538 = vmatmul.mubr.bf16.gmra.mrb[0].mxu0 %v1308
    %v8539 = vpop.f32.mrb[0].mxu0
    %v8540 = vadd.f32 %v8500, %v8539
    %v8541 = vpop.f32.mrb[0].mxu0
    %v8542 = vpop.f32.mrb[0].mxu0
    %v8543 = vpop.f32.mrb[0].mxu0
    %8544 = vdwg.mxu0
    %8545 = vmatprep.subr.bf16.mxu0 0
    %8546 = vmatpush1.bf16.msra.mxu0 %v6385
    %8547 = vmatprep.subr.bf16.mxu0 0
    %8548 = vmatpush1.bf16.msra.mxu0 %v6386
    %8549 = vmatprep.subr.bf16.mxu0 0
    %8550 = vmatpush1.bf16.msra.mxu0 %v6387
    %8551 = vmatprep.subr.bf16.mxu0 0
    %8552 = vmatpush1.bf16.msra.mxu0 %v6388
    %8553 = vmatprep.subr.bf16.mxu0 0
    %8554 = vmatpush1.bf16.msra.mxu0 %v6389
    %8555 = vmatprep.subr.bf16.mxu0 0
    %8556 = vmatpush1.bf16.msra.mxu0 %v6390
    %8557 = vmatprep.subr.bf16.mxu0 0
    %8558 = vmatpush1.bf16.msra.mxu0 %v6391
    %8559 = vmatprep.subr.bf16.mxu0 0
    %8560 = vmatpush1.bf16.msra.mxu0 %v6392
    %8561 = vmatprep.subr.bf16.mxu0 0
    %8562 = vmatpush1.bf16.msra.mxu0 %v6393
    %8563 = vmatprep.subr.bf16.mxu0 0
    %8564 = vmatpush1.bf16.msra.mxu0 %v6394
    %8565 = vmatprep.subr.bf16.mxu0 0
    %8566 = vmatpush1.bf16.msra.mxu0 %v6395
    %8567 = vmatprep.subr.bf16.mxu0 0
    %8568 = vmatpush1.bf16.msra.mxu0 %v6396
    %8569 = vmatprep.subr.bf16.mxu0 0
    %8570 = vmatpush1.bf16.msra.mxu0 %v6397
    %8571 = vmatprep.subr.bf16.mxu0 0
    %8572 = vmatpush1.bf16.msra.mxu0 %v6398
    %8573 = vmatprep.subr.bf16.mxu0 0
    %8574 = vmatpush1.bf16.msra.mxu0 %v6399
    %8575 = vmatprep.subr.bf16.mxu0 0
    %8576 = vmatpush1.bf16.msra.mxu0 %v6400
    %8577 = vmatprep.mubr.bf16.mxu0 %v1311
    %8578 = vmatmul.mubr.bf16.gmra.mrb[0].mxu0 %v1310
    %v8579 = vpop.f32.mrb[0].mxu0
    %v8580 = vadd.f32 %v8540, %v8579
    %v8581 = vpop.f32.mrb[0].mxu0
    %v8582 = vpop.f32.mrb[0].mxu0
    %v8583 = vpop.f32.mrb[0].mxu0
    %8584 = vdwg.mxu0
    %8585 = vmatprep.subr.bf16.mxu0 0
    %8586 = vmatpush1.bf16.msra.mxu0 %v6401
    %8587 = vmatprep.subr.bf16.mxu0 0
    %8588 = vmatpush1.bf16.msra.mxu0 %v6402
    %8589 = vmatprep.subr.bf16.mxu0 0
    %8590 = vmatpush1.bf16.msra.mxu0 %v6403
    %8591 = vmatprep.subr.bf16.mxu0 0
    %8592 = vmatpush1.bf16.msra.mxu0 %v6404
    %8593 = vmatprep.subr.bf16.mxu0 0
    %8594 = vmatpush1.bf16.msra.mxu0 %v6405
    %8595 = vmatprep.subr.bf16.mxu0 0
    %8596 = vmatpush1.bf16.msra.mxu0 %v6406
    %8597 = vmatprep.subr.bf16.mxu0 0
    %8598 = vmatpush1.bf16.msra.mxu0 %v6407
    %8599 = vmatprep.subr.bf16.mxu0 0
    %8600 = vmatpush1.bf16.msra.mxu0 %v6408
    %8601 = vmatprep.subr.bf16.mxu0 0
    %8602 = vmatpush1.bf16.msra.mxu0 %v6409
    %8603 = vmatprep.subr.bf16.mxu0 0
    %8604 = vmatpush1.bf16.msra.mxu0 %v6410
    %8605 = vmatprep.subr.bf16.mxu0 0
    %8606 = vmatpush1.bf16.msra.mxu0 %v6411
    %8607 = vmatprep.subr.bf16.mxu0 0
    %8608 = vmatpush1.bf16.msra.mxu0 %v6412
    %8609 = vmatprep.subr.bf16.mxu0 0
    %8610 = vmatpush1.bf16.msra.mxu0 %v6413
    %8611 = vmatprep.subr.bf16.mxu0 0
    %8612 = vmatpush1.bf16.msra.mxu0 %v6414
    %8613 = vmatprep.subr.bf16.mxu0 0
    %8614 = vmatpush1.bf16.msra.mxu0 %v6415
    %8615 = vmatprep.subr.bf16.mxu0 0
    %8616 = vmatpush1.bf16.msra.mxu0 %v6416
    %8617 = vmatprep.mubr.bf16.mxu0 %v1313
    %8618 = vmatmul.mubr.bf16.gmra.mrb[0].mxu0 %v1312
    %v8619 = vpop.f32.mrb[0].mxu0
    %v8620 = vadd.f32 %v8580, %v8619
    %v8621 = vpop.f32.mrb[0].mxu0
    %v8622 = vpop.f32.mrb[0].mxu0
    %v8623 = vpop.f32.mrb[0].mxu0
    %8624 = vdwg.mxu0
    %8625 = vmatprep.subr.bf16.mxu0 0
    %8626 = vmatpush1.bf16.msra.mxu0 %v6417
    %8627 = vmatprep.subr.bf16.mxu0 0
    %8628 = vmatpush1.bf16.msra.mxu0 %v6418
    %8629 = vmatprep.subr.bf16.mxu0 0
    %8630 = vmatpush1.bf16.msra.mxu0 %v6419
    %8631 = vmatprep.subr.bf16.mxu0 0
    %8632 = vmatpush1.bf16.msra.mxu0 %v6420
    %8633 = vmatprep.subr.bf16.mxu0 0
    %8634 = vmatpush1.bf16.msra.mxu0 %v6421
    %8635 = vmatprep.subr.bf16.mxu0 0
    %8636 = vmatpush1.bf16.msra.mxu0 %v6422
    %8637 = vmatprep.subr.bf16.mxu0 0
    %8638 = vmatpush1.bf16.msra.mxu0 %v6423
    %8639 = vmatprep.subr.bf16.mxu0 0
    %8640 = vmatpush1.bf16.msra.mxu0 %v6424
    %8641 = vmatprep.subr.bf16.mxu0 0
    %8642 = vmatpush1.bf16.msra.mxu0 %v6425
    %8643 = vmatprep.subr.bf16.mxu0 0
    %8644 = vmatpush1.bf16.msra.mxu0 %v6426
    %8645 = vmatprep.subr.bf16.mxu0 0
    %8646 = vmatpush1.bf16.msra.mxu0 %v6427
    %8647 = vmatprep.subr.bf16.mxu0 0
    %8648 = vmatpush1.bf16.msra.mxu0 %v6428
    %8649 = vmatprep.subr.bf16.mxu0 0
    %8650 = vmatpush1.bf16.msra.mxu0 %v6429
    %8651 = vmatprep.subr.bf16.mxu0 0
    %8652 = vmatpush1.bf16.msra.mxu0 %v6430
    %8653 = vmatprep.subr.bf16.mxu0 0
    %8654 = vmatpush1.bf16.msra.mxu0 %v6431
    %8655 = vmatprep.subr.bf16.mxu0 0
    %8656 = vmatpush1.bf16.msra.mxu0 %v6432
    %8657 = vmatprep.mubr.bf16.mxu0 %v1315
    %8658 = vmatmul.mubr.bf16.gmra.mrb[0].mxu0 %v1314
    %v8659 = vpop.f32.mrb[0].mxu0
    %v8660 = vadd.f32 %v8620, %v8659
    %v8661 = vpop.f32.mrb[0].mxu0
    %v8662 = vpop.f32.mrb[0].mxu0
    %v8663 = vpop.f32.mrb[0].mxu0
    %8664 = vdwg.mxu0
    %8665 = vmatprep.subr.bf16.mxu0 0
    %8666 = vmatpush1.bf16.msra.mxu0 %v6433
    %8667 = vmatprep.subr.bf16.mxu0 0
    %8668 = vmatpush1.bf16.msra.mxu0 %v6434
    %8669 = vmatprep.subr.bf16.mxu0 0
    %8670 = vmatpush1.bf16.msra.mxu0 %v6435
    %8671 = vmatprep.subr.bf16.mxu0 0
    %8672 = vmatpush1.bf16.msra.mxu0 %v6436
    %8673 = vmatprep.subr.bf16.mxu0 0
    %8674 = vmatpush1.bf16.msra.mxu0 %v6437
    %8675 = vmatprep.subr.bf16.mxu0 0
    %8676 = vmatpush1.bf16.msra.mxu0 %v6438
    %8677 = vmatprep.subr.bf16.mxu0 0
    %8678 = vmatpush1.bf16.msra.mxu0 %v6439
    %8679 = vmatprep.subr.bf16.mxu0 0
    %8680 = vmatpush1.bf16.msra.mxu0 %v6440
    %8681 = vmatprep.subr.bf16.mxu0 0
    %8682 = vmatpush1.bf16.msra.mxu0 %v6441
    %8683 = vmatprep.subr.bf16.mxu0 0
    %8684 = vmatpush1.bf16.msra.mxu0 %v6442
    %8685 = vmatprep.subr.bf16.mxu0 0
    %8686 = vmatpush1.bf16.msra.mxu0 %v6443
    %8687 = vmatprep.subr.bf16.mxu0 0
    %8688 = vmatpush1.bf16.msra.mxu0 %v6444
    %8689 = vmatprep.subr.bf16.mxu0 0
    %8690 = vmatpush1.bf16.msra.mxu0 %v6445
    %8691 = vmatprep.subr.bf16.mxu0 0
    %8692 = vmatpush1.bf16.msra.mxu0 %v6446
    %8693 = vmatprep.subr.bf16.mxu0 0
    %8694 = vmatpush1.bf16.msra.mxu0 %v6447
    %8695 = vmatprep.subr.bf16.mxu0 0
    %8696 = vmatpush1.bf16.msra.mxu0 %v6448
    %8697 = vmatprep.mubr.bf16.mxu0 %v1317
    %8698 = vmatmul.mubr.bf16.gmra.mrb[0].mxu0 %v1316
    %v8699 = vpop.f32.mrb[0].mxu0
    %v8700 = vadd.f32 %v8660, %v8699
    %v8701 = vpop.f32.mrb[0].mxu0
    %v8702 = vpop.f32.mrb[0].mxu0
    %v8703 = vpop.f32.mrb[0].mxu0
    %8704 = vdwg.mxu0
    %8705 = vmatprep.subr.bf16.mxu0 0
    %8706 = vmatpush1.bf16.msra.mxu0 %v6449
    %8707 = vmatprep.subr.bf16.mxu0 0
    %8708 = vmatpush1.bf16.msra.mxu0 %v6450
    %8709 = vmatprep.subr.bf16.mxu0 0
    %8710 = vmatpush1.bf16.msra.mxu0 %v6451
    %8711 = vmatprep.subr.bf16.mxu0 0
    %8712 = vmatpush1.bf16.msra.mxu0 %v6452
    %8713 = vmatprep.subr.bf16.mxu0 0
    %8714 = vmatpush1.bf16.msra.mxu0 %v6453
    %8715 = vmatprep.subr.bf16.mxu0 0
    %8716 = vmatpush1.bf16.msra.mxu0 %v6454
    %8717 = vmatprep.subr.bf16.mxu0 0
    %8718 = vmatpush1.bf16.msra.mxu0 %v6455
    %8719 = vmatprep.subr.bf16.mxu0 0
    %8720 = vmatpush1.bf16.msra.mxu0 %v6456
    %8721 = vmatprep.subr.bf16.mxu0 0
    %8722 = vmatpush1.bf16.msra.mxu0 %v6457
    %8723 = vmatprep.subr.bf16.mxu0 0
    %8724 = vmatpush1.bf16.msra.mxu0 %v6458
    %8725 = vmatprep.subr.bf16.mxu0 0
    %8726 = vmatpush1.bf16.msra.mxu0 %v6459
    %8727 = vmatprep.subr.bf16.mxu0 0
    %8728 = vmatpush1.bf16.msra.mxu0 %v6460
    %8729 = vmatprep.subr.bf16.mxu0 0
    %8730 = vmatpush1.bf16.msra.mxu0 %v6461
    %8731 = vmatprep.subr.bf16.mxu0 0
    %8732 = vmatpush1.bf16.msra.mxu0 %v6462
    %8733 = vmatprep.subr.bf16.mxu0 0
    %8734 = vmatpush1.bf16.msra.mxu0 %v6463
    %8735 = vmatprep.subr.bf16.mxu0 0
    %8736 = vmatpush1.bf16.msra.mxu0 %v6464
    %8737 = vmatprep.mubr.bf16.mxu0 %v1319
    %8738 = vmatmul.mubr.bf16.gmra.mrb[0].mxu0 %v1318
    %v8739 = vpop.f32.mrb[0].mxu0
    %v8740 = vadd.f32 %v8700, %v8739
    %v8741 = vpop.f32.mrb[0].mxu0
    %v8742 = vpop.f32.mrb[0].mxu0
    %v8743 = vpop.f32.mrb[0].mxu0
    %8744 = vdwg.mxu0
    %8745 = vmatprep.subr.bf16.mxu0 0
    %8746 = vmatpush1.bf16.msra.mxu0 %v6465
    %8747 = vmatprep.subr.bf16.mxu0 0
    %8748 = vmatpush1.bf16.msra.mxu0 %v6466
    %8749 = vmatprep.subr.bf16.mxu0 0
    %8750 = vmatpush1.bf16.msra.mxu0 %v6467
    %8751 = vmatprep.subr.bf16.mxu0 0
    %8752 = vmatpush1.bf16.msra.mxu0 %v6468
    %8753 = vmatprep.subr.bf16.mxu0 0
    %8754 = vmatpush1.bf16.msra.mxu0 %v6469
    %8755 = vmatprep.subr.bf16.mxu0 0
    %8756 = vmatpush1.bf16.msra.mxu0 %v6470
    %8757 = vmatprep.subr.bf16.mxu0 0
    %8758 = vmatpush1.bf16.msra.mxu0 %v6471
    %8759 = vmatprep.subr.bf16.mxu0 0
    %8760 = vmatpush1.bf16.msra.mxu0 %v6472
    %8761 = vmatprep.subr.bf16.mxu0 0
    %8762 = vmatpush1.bf16.msra.mxu0 %v6473
    %8763 = vmatprep.subr.bf16.mxu0 0
    %8764 = vmatpush1.bf16.msra.mxu0 %v6474
    %8765 = vmatprep.subr.bf16.mxu0 0
    %8766 = vmatpush1.bf16.msra.mxu0 %v6475
    %8767 = vmatprep.subr.bf16.mxu0 0
    %8768 = vmatpush1.bf16.msra.mxu0 %v6476
    %8769 = vmatprep.subr.bf16.mxu0 0
    %8770 = vmatpush1.bf16.msra.mxu0 %v6477
    %8771 = vmatprep.subr.bf16.mxu0 0
    %8772 = vmatpush1.bf16.msra.mxu0 %v6478
    %8773 = vmatprep.subr.bf16.mxu0 0
    %8774 = vmatpush1.bf16.msra.mxu0 %v6479
    %8775 = vmatprep.subr.bf16.mxu0 0
    %8776 = vmatpush1.bf16.msra.mxu0 %v6480
    %8777 = vmatprep.mubr.bf16.mxu0 %v1321
    %8778 = vmatmul.mubr.bf16.gmra.mrb[0].mxu0 %v1320
    %v8779 = vpop.f32.mrb[0].mxu0
    %v8780 = vadd.f32 %v8740, %v8779
    %v8781 = vpop.f32.mrb[0].mxu0
    %v8782 = vpop.f32.mrb[0].mxu0
    %v8783 = vpop.f32.mrb[0].mxu0
    %8784 = vdwg.mxu0
    %8785 = vmatprep.subr.bf16.mxu0 0
    %8786 = vmatpush1.bf16.msra.mxu0 %v6481
    %8787 = vmatprep.subr.bf16.mxu0 0
    %8788 = vmatpush1.bf16.msra.mxu0 %v6482
    %8789 = vmatprep.subr.bf16.mxu0 0
    %8790 = vmatpush1.bf16.msra.mxu0 %v6483
    %8791 = vmatprep.subr.bf16.mxu0 0
    %8792 = vmatpush1.bf16.msra.mxu0 %v6484
    %8793 = vmatprep.subr.bf16.mxu0 0
    %8794 = vmatpush1.bf16.msra.mxu0 %v6485
    %8795 = vmatprep.subr.bf16.mxu0 0
    %8796 = vmatpush1.bf16.msra.mxu0 %v6486
    %8797 = vmatprep.subr.bf16.mxu0 0
    %8798 = vmatpush1.bf16.msra.mxu0 %v6487
    %8799 = vmatprep.subr.bf16.mxu0 0
    %8800 = vmatpush1.bf16.msra.mxu0 %v6488
    %8801 = vmatprep.subr.bf16.mxu0 0
    %8802 = vmatpush1.bf16.msra.mxu0 %v6489
    %8803 = vmatprep.subr.bf16.mxu0 0
    %8804 = vmatpush1.bf16.msra.mxu0 %v6490
    %8805 = vmatprep.subr.bf16.mxu0 0
    %8806 = vmatpush1.bf16.msra.mxu0 %v6491
    %8807 = vmatprep.subr.bf16.mxu0 0
    %8808 = vmatpush1.bf16.msra.mxu0 %v6492
    %8809 = vmatprep.subr.bf16.mxu0 0
    %8810 = vmatpush1.bf16.msra.mxu0 %v6493
    %8811 = vmatprep.subr.bf16.mxu0 0
    %8812 = vmatpush1.bf16.msra.mxu0 %v6494
    %8813 = vmatprep.subr.bf16.mxu0 0
    %8814 = vmatpush1.bf16.msra.mxu0 %v6495
    %8815 = vmatprep.subr.bf16.mxu0 0
    %8816 = vmatpush1.bf16.msra.mxu0 %v6496
    %8817 = vmatprep.mubr.bf16.mxu0 %v1323
    %8818 = vmatmul.mubr.bf16.gmra.mrb[0].mxu0 %v1322
    %v8819 = vpop.f32.mrb[0].mxu0
    %v8820 = vadd.f32 %v8780, %v8819
    %v8821 = vpop.f32.mrb[0].mxu0
    %v8822 = vpop.f32.mrb[0].mxu0
    %v8823 = vpop.f32.mrb[0].mxu0
    %8824 = vdwg.mxu0
    %8825 = vmatprep.subr.bf16.mxu0 0
    %8826 = vmatpush1.bf16.msra.mxu0 %v6497
    %8827 = vmatprep.subr.bf16.mxu0 0
    %8828 = vmatpush1.bf16.msra.mxu0 %v6498
    %8829 = vmatprep.subr.bf16.mxu0 0
    %8830 = vmatpush1.bf16.msra.mxu0 %v6499
    %8831 = vmatprep.subr.bf16.mxu0 0
    %8832 = vmatpush1.bf16.msra.mxu0 %v6500
    %8833 = vmatprep.subr.bf16.mxu0 0
    %8834 = vmatpush1.bf16.msra.mxu0 %v6501
    %8835 = vmatprep.subr.bf16.mxu0 0
    %8836 = vmatpush1.bf16.msra.mxu0 %v6502
    %8837 = vmatprep.subr.bf16.mxu0 0
    %8838 = vmatpush1.bf16.msra.mxu0 %v6503
    %8839 = vmatprep.subr.bf16.mxu0 0
    %8840 = vmatpush1.bf16.msra.mxu0 %v6504
    %8841 = vmatprep.subr.bf16.mxu0 0
    %8842 = vmatpush1.bf16.msra.mxu0 %v6505
    %8843 = vmatprep.subr.bf16.mxu0 0
    %8844 = vmatpush1.bf16.msra.mxu0 %v6506
    %8845 = vmatprep.subr.bf16.mxu0 0
    %8846 = vmatpush1.bf16.msra.mxu0 %v6507
    %8847 = vmatprep.subr.bf16.mxu0 0
    %8848 = vmatpush1.bf16.msra.mxu0 %v6508
    %8849 = vmatprep.subr.bf16.mxu0 0
    %8850 = vmatpush1.bf16.msra.mxu0 %v6509
    %8851 = vmatprep.subr.bf16.mxu0 0
    %8852 = vmatpush1.bf16.msra.mxu0 %v6510
    %8853 = vmatprep.subr.bf16.mxu0 0
    %8854 = vmatpush1.bf16.msra.mxu0 %v6511
    %8855 = vmatprep.subr.bf16.mxu0 0
    %8856 = vmatpush1.bf16.msra.mxu0 %v6512
    %8857 = vmatprep.mubr.bf16.mxu0 %v1325
    %8858 = vmatmul.mubr.bf16.gmra.mrb[0].mxu0 %v1324
    %v8859 = vpop.f32.mrb[0].mxu0
    %v8860 = vadd.f32 %v8820, %v8859
    %v8861 = vpop.f32.mrb[0].mxu0
    %v8862 = vpop.f32.mrb[0].mxu0
    %v8863 = vpop.f32.mrb[0].mxu0
    %8864 = vdwg.mxu0
    %8865 = vmatprep.subr.bf16.mxu0 0
    %8866 = vmatpush1.bf16.msra.mxu0 %v6513
    %8867 = vmatprep.subr.bf16.mxu0 0
    %8868 = vmatpush1.bf16.msra.mxu0 %v6514
    %8869 = vmatprep.subr.bf16.mxu0 0
    %8870 = vmatpush1.bf16.msra.mxu0 %v6515
    %8871 = vmatprep.subr.bf16.mxu0 0
    %8872 = vmatpush1.bf16.msra.mxu0 %v6516
    %8873 = vmatprep.subr.bf16.mxu0 0
    %8874 = vmatpush1.bf16.msra.mxu0 %v6517
    %8875 = vmatprep.subr.bf16.mxu0 0
    %8876 = vmatpush1.bf16.msra.mxu0 %v6518
    %8877 = vmatprep.subr.bf16.mxu0 0
    %8878 = vmatpush1.bf16.msra.mxu0 %v6519
    %8879 = vmatprep.subr.bf16.mxu0 0
    %8880 = vmatpush1.bf16.msra.mxu0 %v6520
    %8881 = vmatprep.subr.bf16.mxu0 0
    %8882 = vmatpush1.bf16.msra.mxu0 %v6521
    %8883 = vmatprep.subr.bf16.mxu0 0
    %8884 = vmatpush1.bf16.msra.mxu0 %v6522
    %8885 = vmatprep.subr.bf16.mxu0 0
    %8886 = vmatpush1.bf16.msra.mxu0 %v6523
    %8887 = vmatprep.subr.bf16.mxu0 0
    %8888 = vmatpush1.bf16.msra.mxu0 %v6524
    %8889 = vmatprep.subr.bf16.mxu0 0
    %8890 = vmatpush1.bf16.msra.mxu0 %v6525
    %8891 = vmatprep.subr.bf16.mxu0 0
    %8892 = vmatpush1.bf16.msra.mxu0 %v6526
    %8893 = vmatprep.subr.bf16.mxu0 0
    %8894 = vmatpush1.bf16.msra.mxu0 %v6527
    %8895 = vmatprep.subr.bf16.mxu0 0
    %8896 = vmatpush1.bf16.msra.mxu0 %v6528
    %8897 = vmatprep.mubr.bf16.mxu0 %v1327
    %8898 = vmatmul.mubr.bf16.gmra.mrb[0].mxu0 %v1326
    %v8899 = vpop.f32.mrb[0].mxu0
    %v8900 = vadd.f32 %v8860, %v8899
    %v8901 = vpop.f32.mrb[0].mxu0
    %v8902 = vpop.f32.mrb[0].mxu0
    %v8903 = vpop.f32.mrb[0].mxu0
    %8904 = vdwg.mxu0
    %8905 = vmatprep.subr.bf16.mxu0 0
    %8906 = vmatpush1.bf16.msra.mxu0 %v6529
    %8907 = vmatprep.subr.bf16.mxu0 0
    %8908 = vmatpush1.bf16.msra.mxu0 %v6530
    %8909 = vmatprep.subr.bf16.mxu0 0
    %8910 = vmatpush1.bf16.msra.mxu0 %v6531
    %8911 = vmatprep.subr.bf16.mxu0 0
    %8912 = vmatpush1.bf16.msra.mxu0 %v6532
    %8913 = vmatprep.subr.bf16.mxu0 0
    %8914 = vmatpush1.bf16.msra.mxu0 %v6533
    %8915 = vmatprep.subr.bf16.mxu0 0
    %8916 = vmatpush1.bf16.msra.mxu0 %v6534
    %8917 = vmatprep.subr.bf16.mxu0 0
    %8918 = vmatpush1.bf16.msra.mxu0 %v6535
    %8919 = vmatprep.subr.bf16.mxu0 0
    %8920 = vmatpush1.bf16.msra.mxu0 %v6536
    %8921 = vmatprep.subr.bf16.mxu0 0
    %8922 = vmatpush1.bf16.msra.mxu0 %v6537
    %8923 = vmatprep.subr.bf16.mxu0 0
    %8924 = vmatpush1.bf16.msra.mxu0 %v6538
    %8925 = vmatprep.subr.bf16.mxu0 0
    %8926 = vmatpush1.bf16.msra.mxu0 %v6539
    %8927 = vmatprep.subr.bf16.mxu0 0
    %8928 = vmatpush1.bf16.msra.mxu0 %v6540
    %8929 = vmatprep.subr.bf16.mxu0 0
    %8930 = vmatpush1.bf16.msra.mxu0 %v6541
    %8931 = vmatprep.subr.bf16.mxu0 0
    %8932 = vmatpush1.bf16.msra.mxu0 %v6542
    %8933 = vmatprep.subr.bf16.mxu0 0
    %8934 = vmatpush1.bf16.msra.mxu0 %v6543
    %8935 = vmatprep.subr.bf16.mxu0 0
    %8936 = vmatpush1.bf16.msra.mxu0 %v6544
    %8937 = vmatprep.mubr.bf16.mxu0 %v1329
    %8938 = vmatmul.mubr.bf16.gmra.mrb[0].mxu0 %v1328
    %v8939 = vpop.f32.mrb[0].mxu0
    %v8940 = vadd.f32 %v8900, %v8939
    %v8941 = vpop.f32.mrb[0].mxu0
    %v8942 = vpop.f32.mrb[0].mxu0
    %v8943 = vpop.f32.mrb[0].mxu0
    %8944 = vdwg.mxu0
    %8945 = vmatprep.subr.bf16.mxu0 0
    %8946 = vmatpush1.bf16.msra.mxu0 %v6545
    %8947 = vmatprep.subr.bf16.mxu0 0
    %8948 = vmatpush1.bf16.msra.mxu0 %v6546
    %8949 = vmatprep.subr.bf16.mxu0 0
    %8950 = vmatpush1.bf16.msra.mxu0 %v6547
    %8951 = vmatprep.subr.bf16.mxu0 0
    %8952 = vmatpush1.bf16.msra.mxu0 %v6548
    %8953 = vmatprep.subr.bf16.mxu0 0
    %8954 = vmatpush1.bf16.msra.mxu0 %v6549
    %8955 = vmatprep.subr.bf16.mxu0 0
    %8956 = vmatpush1.bf16.msra.mxu0 %v6550
    %8957 = vmatprep.subr.bf16.mxu0 0
    %8958 = vmatpush1.bf16.msra.mxu0 %v6551
    %8959 = vmatprep.subr.bf16.mxu0 0
    %8960 = vmatpush1.bf16.msra.mxu0 %v6552
    %8961 = vmatprep.subr.bf16.mxu0 0
    %8962 = vmatpush1.bf16.msra.mxu0 %v6553
    %8963 = vmatprep.subr.bf16.mxu0 0
    %8964 = vmatpush1.bf16.msra.mxu0 %v6554
    %8965 = vmatprep.subr.bf16.mxu0 0
    %8966 = vmatpush1.bf16.msra.mxu0 %v6555
    %8967 = vmatprep.subr.bf16.mxu0 0
    %8968 = vmatpush1.bf16.msra.mxu0 %v6556
    %8969 = vmatprep.subr.bf16.mxu0 0
    %8970 = vmatpush1.bf16.msra.mxu0 %v6557
    %8971 = vmatprep.subr.bf16.mxu0 0
    %8972 = vmatpush1.bf16.msra.mxu0 %v6558
    %8973 = vmatprep.subr.bf16.mxu0 0
    %8974 = vmatpush1.bf16.msra.mxu0 %v6559
    %8975 = vmatprep.subr.bf16.mxu0 0
    %8976 = vmatpush1.bf16.msra.mxu0 %v6560
    %8977 = vmatprep.mubr.bf16.mxu0 %v1331
    %8978 = vmatmul.mubr.bf16.gmra.mrb[0].mxu0 %v1330
    %v8979 = vpop.f32.mrb[0].mxu0
    %v8980 = vadd.f32 %v8940, %v8979
    %v8981 = vpop.f32.mrb[0].mxu0
    %v8982 = vpop.f32.mrb[0].mxu0
    %v8983 = vpop.f32.mrb[0].mxu0
    %8984 = vdwg.mxu0
    %8985 = vmatprep.subr.bf16.mxu0 0
    %8986 = vmatpush1.bf16.msra.mxu0 %v6561
    %8987 = vmatprep.subr.bf16.mxu0 0
    %8988 = vmatpush1.bf16.msra.mxu0 %v6562
    %8989 = vmatprep.subr.bf16.mxu0 0
    %8990 = vmatpush1.bf16.msra.mxu0 %v6563
    %8991 = vmatprep.subr.bf16.mxu0 0
    %8992 = vmatpush1.bf16.msra.mxu0 %v6564
    %8993 = vmatprep.subr.bf16.mxu0 0
    %8994 = vmatpush1.bf16.msra.mxu0 %v6565
    %8995 = vmatprep.subr.bf16.mxu0 0
    %8996 = vmatpush1.bf16.msra.mxu0 %v6566
    %8997 = vmatprep.subr.bf16.mxu0 0
    %8998 = vmatpush1.bf16.msra.mxu0 %v6567
    %8999 = vmatprep.subr.bf16.mxu0 0
    %9000 = vmatpush1.bf16.msra.mxu0 %v6568
    %9001 = vmatprep.subr.bf16.mxu0 0
    %9002 = vmatpush1.bf16.msra.mxu0 %v6569
    %9003 = vmatprep.subr.bf16.mxu0 0
    %9004 = vmatpush1.bf16.msra.mxu0 %v6570
    %9005 = vmatprep.subr.bf16.mxu0 0
    %9006 = vmatpush1.bf16.msra.mxu0 %v6571
    %9007 = vmatprep.subr.bf16.mxu0 0
    %9008 = vmatpush1.bf16.msra.mxu0 %v6572
    %9009 = vmatprep.subr.bf16.mxu0 0
    %9010 = vmatpush1.bf16.msra.mxu0 %v6573
    %9011 = vmatprep.subr.bf16.mxu0 0
    %9012 = vmatpush1.bf16.msra.mxu0 %v6574
    %9013 = vmatprep.subr.bf16.mxu0 0
    %9014 = vmatpush1.bf16.msra.mxu0 %v6575
    %9015 = vmatprep.subr.bf16.mxu0 0
    %9016 = vmatpush1.bf16.msra.mxu0 %v6576
    %9017 = vmatprep.mubr.bf16.mxu0 %v1333
    %9018 = vmatmul.mubr.bf16.gmra.mrb[0].mxu0 %v1332
    %v9019 = vpop.f32.mrb[0].mxu0
    %v9020 = vadd.f32 %v8980, %v9019
    %v9021 = vpop.f32.mrb[0].mxu0
    %v9022 = vpop.f32.mrb[0].mxu0
    %v9023 = vpop.f32.mrb[0].mxu0
    %9024 = vdwg.mxu0
    %9025 = vmatprep.subr.bf16.mxu0 0
    %9026 = vmatpush1.bf16.msra.mxu0 %v6577
    %9027 = vmatprep.subr.bf16.mxu0 0
    %9028 = vmatpush1.bf16.msra.mxu0 %v6578
    %9029 = vmatprep.subr.bf16.mxu0 0
    %9030 = vmatpush1.bf16.msra.mxu0 %v6579
    %9031 = vmatprep.subr.bf16.mxu0 0
    %9032 = vmatpush1.bf16.msra.mxu0 %v6580
    %9033 = vmatprep.subr.bf16.mxu0 0
    %9034 = vmatpush1.bf16.msra.mxu0 %v6581
    %9035 = vmatprep.subr.bf16.mxu0 0
    %9036 = vmatpush1.bf16.msra.mxu0 %v6582
    %9037 = vmatprep.subr.bf16.mxu0 0
    %9038 = vmatpush1.bf16.msra.mxu0 %v6583
    %9039 = vmatprep.subr.bf16.mxu0 0
    %9040 = vmatpush1.bf16.msra.mxu0 %v6584
    %9041 = vmatprep.subr.bf16.mxu0 0
    %9042 = vmatpush1.bf16.msra.mxu0 %v6585
    %9043 = vmatprep.subr.bf16.mxu0 0
    %9044 = vmatpush1.bf16.msra.mxu0 %v6586
    %9045 = vmatprep.subr.bf16.mxu0 0
    %9046 = vmatpush1.bf16.msra.mxu0 %v6587
    %9047 = vmatprep.subr.bf16.mxu0 0
    %9048 = vmatpush1.bf16.msra.mxu0 %v6588
    %9049 = vmatprep.subr.bf16.mxu0 0
    %9050 = vmatpush1.bf16.msra.mxu0 %v6589
    %9051 = vmatprep.subr.bf16.mxu0 0
    %9052 = vmatpush1.bf16.msra.mxu0 %v6590
    %9053 = vmatprep.subr.bf16.mxu0 0
    %9054 = vmatpush1.bf16.msra.mxu0 %v6591
    %9055 = vmatprep.subr.bf16.mxu0 0
    %9056 = vmatpush1.bf16.msra.mxu0 %v6592
    %9057 = vmatprep.mubr.bf16.mxu0 %v1335
    %9058 = vmatmul.mubr.bf16.gmra.mrb[0].mxu0 %v1334
    %v9059 = vpop.f32.mrb[0].mxu0
    %v9060 = vadd.f32 %v9020, %v9059
    %v9061 = vpop.f32.mrb[0].mxu0
    %v9062 = vpop.f32.mrb[0].mxu0
    %v9063 = vpop.f32.mrb[0].mxu0
    %9064 = vdwg.mxu0
    %9065 = vmatprep.subr.bf16.mxu0 0
    %9066 = vmatpush1.bf16.msra.mxu0 %v6593
    %9067 = vmatprep.subr.bf16.mxu0 0
    %9068 = vmatpush1.bf16.msra.mxu0 %v6594
    %9069 = vmatprep.subr.bf16.mxu0 0
    %9070 = vmatpush1.bf16.msra.mxu0 %v6595
    %9071 = vmatprep.subr.bf16.mxu0 0
    %9072 = vmatpush1.bf16.msra.mxu0 %v6596
    %9073 = vmatprep.subr.bf16.mxu0 0
    %9074 = vmatpush1.bf16.msra.mxu0 %v6597
    %9075 = vmatprep.subr.bf16.mxu0 0
    %9076 = vmatpush1.bf16.msra.mxu0 %v6598
    %9077 = vmatprep.subr.bf16.mxu0 0
    %9078 = vmatpush1.bf16.msra.mxu0 %v6599
    %9079 = vmatprep.subr.bf16.mxu0 0
    %9080 = vmatpush1.bf16.msra.mxu0 %v6600
    %9081 = vmatprep.subr.bf16.mxu0 0
    %9082 = vmatpush1.bf16.msra.mxu0 %v6601
    %9083 = vmatprep.subr.bf16.mxu0 0
    %9084 = vmatpush1.bf16.msra.mxu0 %v6602
    %9085 = vmatprep.subr.bf16.mxu0 0
    %9086 = vmatpush1.bf16.msra.mxu0 %v6603
    %9087 = vmatprep.subr.bf16.mxu0 0
    %9088 = vmatpush1.bf16.msra.mxu0 %v6604
    %9089 = vmatprep.subr.bf16.mxu0 0
    %9090 = vmatpush1.bf16.msra.mxu0 %v6605
    %9091 = vmatprep.subr.bf16.mxu0 0
    %9092 = vmatpush1.bf16.msra.mxu0 %v6606
    %9093 = vmatprep.subr.bf16.mxu0 0
    %9094 = vmatpush1.bf16.msra.mxu0 %v6607
    %9095 = vmatprep.subr.bf16.mxu0 0
    %9096 = vmatpush1.bf16.msra.mxu0 %v6608
    %9097 = vmatprep.mubr.bf16.mxu0 %v1337
    %9098 = vmatmul.mubr.bf16.gmra.mrb[0].mxu0 %v1336
    %v9099 = vpop.f32.mrb[0].mxu0
    %v9100 = vadd.f32 %v9060, %v9099
    %v9101 = vpop.f32.mrb[0].mxu0
    %v9102 = vpop.f32.mrb[0].mxu0
    %v9103 = vpop.f32.mrb[0].mxu0
    %9104 = vdwg.mxu0
    %9105 = vmatprep.subr.bf16.mxu0 0
    %9106 = vmatpush1.bf16.msra.mxu0 %v6609
    %9107 = vmatprep.subr.bf16.mxu0 0
    %9108 = vmatpush1.bf16.msra.mxu0 %v6610
    %9109 = vmatprep.subr.bf16.mxu0 0
    %9110 = vmatpush1.bf16.msra.mxu0 %v6611
    %9111 = vmatprep.subr.bf16.mxu0 0
    %9112 = vmatpush1.bf16.msra.mxu0 %v6612
    %9113 = vmatprep.subr.bf16.mxu0 0
    %9114 = vmatpush1.bf16.msra.mxu0 %v6613
    %9115 = vmatprep.subr.bf16.mxu0 0
    %9116 = vmatpush1.bf16.msra.mxu0 %v6614
    %9117 = vmatprep.subr.bf16.mxu0 0
    %9118 = vmatpush1.bf16.msra.mxu0 %v6615
    %9119 = vmatprep.subr.bf16.mxu0 0
    %9120 = vmatpush1.bf16.msra.mxu0 %v6616
    %9121 = vmatprep.subr.bf16.mxu0 0
    %9122 = vmatpush1.bf16.msra.mxu0 %v6617
    %9123 = vmatprep.subr.bf16.mxu0 0
    %9124 = vmatpush1.bf16.msra.mxu0 %v6618
    %9125 = vmatprep.subr.bf16.mxu0 0
    %9126 = vmatpush1.bf16.msra.mxu0 %v6619
    %9127 = vmatprep.subr.bf16.mxu0 0
    %9128 = vmatpush1.bf16.msra.mxu0 %v6620
    %9129 = vmatprep.subr.bf16.mxu0 0
    %9130 = vmatpush1.bf16.msra.mxu0 %v6621
    %9131 = vmatprep.subr.bf16.mxu0 0
    %9132 = vmatpush1.bf16.msra.mxu0 %v6622
    %9133 = vmatprep.subr.bf16.mxu0 0
    %9134 = vmatpush1.bf16.msra.mxu0 %v6623
    %9135 = vmatprep.subr.bf16.mxu0 0
    %9136 = vmatpush1.bf16.msra.mxu0 %v6624
    %9137 = vmatprep.mubr.bf16.mxu0 %v1339
    %9138 = vmatmul.mubr.bf16.gmra.mrb[0].mxu0 %v1338
    %v9139 = vpop.f32.mrb[0].mxu0
    %v9140 = vadd.f32 %v9100, %v9139
    %v9141 = vpop.f32.mrb[0].mxu0
    %v9142 = vpop.f32.mrb[0].mxu0
    %v9143 = vpop.f32.mrb[0].mxu0
    %9144 = vdwg.mxu0
    %9145 = vmatprep.subr.bf16.mxu0 0
    %9146 = vmatpush1.bf16.msra.mxu0 %v6625
    %9147 = vmatprep.subr.bf16.mxu0 0
    %9148 = vmatpush1.bf16.msra.mxu0 %v6626
    %9149 = vmatprep.subr.bf16.mxu0 0
    %9150 = vmatpush1.bf16.msra.mxu0 %v6627
    %9151 = vmatprep.subr.bf16.mxu0 0
    %9152 = vmatpush1.bf16.msra.mxu0 %v6628
    %9153 = vmatprep.subr.bf16.mxu0 0
    %9154 = vmatpush1.bf16.msra.mxu0 %v6629
    %9155 = vmatprep.subr.bf16.mxu0 0
    %9156 = vmatpush1.bf16.msra.mxu0 %v6630
    %9157 = vmatprep.subr.bf16.mxu0 0
    %9158 = vmatpush1.bf16.msra.mxu0 %v6631
    %9159 = vmatprep.subr.bf16.mxu0 0
    %9160 = vmatpush1.bf16.msra.mxu0 %v6632
    %9161 = vmatprep.subr.bf16.mxu0 0
    %9162 = vmatpush1.bf16.msra.mxu0 %v6633
    %9163 = vmatprep.subr.bf16.mxu0 0
    %9164 = vmatpush1.bf16.msra.mxu0 %v6634
    %9165 = vmatprep.subr.bf16.mxu0 0
    %9166 = vmatpush1.bf16.msra.mxu0 %v6635
    %9167 = vmatprep.subr.bf16.mxu0 0
    %9168 = vmatpush1.bf16.msra.mxu0 %v6636
    %9169 = vmatprep.subr.bf16.mxu0 0
    %9170 = vmatpush1.bf16.msra.mxu0 %v6637
    %9171 = vmatprep.subr.bf16.mxu0 0
    %9172 = vmatpush1.bf16.msra.mxu0 %v6638
    %9173 = vmatprep.subr.bf16.mxu0 0
    %9174 = vmatpush1.bf16.msra.mxu0 %v6639
    %9175 = vmatprep.subr.bf16.mxu0 0
    %9176 = vmatpush1.bf16.msra.mxu0 %v6640
    %9177 = vmatprep.mubr.bf16.mxu0 %v1341
    %9178 = vmatmul.mubr.bf16.gmra.mrb[0].mxu0 %v1340
    %v9179 = vpop.f32.mrb[0].mxu0
    %v9180 = vadd.f32 %v9140, %v9179
    %v9181 = vpop.f32.mrb[0].mxu0
    %v9182 = vpop.f32.mrb[0].mxu0
    %v9183 = vpop.f32.mrb[0].mxu0
    %9184 = vdwg.mxu0
    %9185 = vmatprep.subr.bf16.mxu0 0
    %9186 = vmatpush1.bf16.msra.mxu0 %v6641
    %9187 = vmatprep.subr.bf16.mxu0 0
    %9188 = vmatpush1.bf16.msra.mxu0 %v6642
    %9189 = vmatprep.subr.bf16.mxu0 0
    %9190 = vmatpush1.bf16.msra.mxu0 %v6643
    %9191 = vmatprep.subr.bf16.mxu0 0
    %9192 = vmatpush1.bf16.msra.mxu0 %v6644
    %9193 = vmatprep.subr.bf16.mxu0 0
    %9194 = vmatpush1.bf16.msra.mxu0 %v6645
    %9195 = vmatprep.subr.bf16.mxu0 0
    %9196 = vmatpush1.bf16.msra.mxu0 %v6646
    %9197 = vmatprep.subr.bf16.mxu0 0
    %9198 = vmatpush1.bf16.msra.mxu0 %v6647
    %9199 = vmatprep.subr.bf16.mxu0 0
    %9200 = vmatpush1.bf16.msra.mxu0 %v6648
    %9201 = vmatprep.subr.bf16.mxu0 0
    %9202 = vmatpush1.bf16.msra.mxu0 %v6649
    %9203 = vmatprep.subr.bf16.mxu0 0
    %9204 = vmatpush1.bf16.msra.mxu0 %v6650
    %9205 = vmatprep.subr.bf16.mxu0 0
    %9206 = vmatpush1.bf16.msra.mxu0 %v6651
    %9207 = vmatprep.subr.bf16.mxu0 0
    %9208 = vmatpush1.bf16.msra.mxu0 %v6652
    %9209 = vmatprep.subr.bf16.mxu0 0
    %9210 = vmatpush1.bf16.msra.mxu0 %v6653
    %9211 = vmatprep.subr.bf16.mxu0 0
    %9212 = vmatpush1.bf16.msra.mxu0 %v6654
    %9213 = vmatprep.subr.bf16.mxu0 0
    %9214 = vmatpush1.bf16.msra.mxu0 %v6655
    %9215 = vmatprep.subr.bf16.mxu0 0
    %9216 = vmatpush1.bf16.msra.mxu0 %v6656
    %9217 = vmatprep.mubr.bf16.mxu0 %v1343
    %9218 = vmatmul.mubr.bf16.gmra.mrb[0].mxu0 %v1342
    %v9219 = vpop.f32.mrb[0].mxu0
    %v9220 = vadd.f32 %v9180, %v9219
    %v9221 = vpop.f32.mrb[0].mxu0
    %v9222 = vpop.f32.mrb[0].mxu0
    %v9223 = vpop.f32.mrb[0].mxu0
    %9224 = vdwg.mxu0
    %9225 = vmatprep.subr.bf16.mxu0 0
    %9226 = vmatpush1.bf16.msra.mxu0 %v6657
    %9227 = vmatprep.subr.bf16.mxu0 0
    %9228 = vmatpush1.bf16.msra.mxu0 %v6658
    %9229 = vmatprep.subr.bf16.mxu0 0
    %9230 = vmatpush1.bf16.msra.mxu0 %v6659
    %9231 = vmatprep.subr.bf16.mxu0 0
    %9232 = vmatpush1.bf16.msra.mxu0 %v6660
    %9233 = vmatprep.subr.bf16.mxu0 0
    %9234 = vmatpush1.bf16.msra.mxu0 %v6661
    %9235 = vmatprep.subr.bf16.mxu0 0
    %9236 = vmatpush1.bf16.msra.mxu0 %v6662
    %9237 = vmatprep.subr.bf16.mxu0 0
    %9238 = vmatpush1.bf16.msra.mxu0 %v6663
    %9239 = vmatprep.subr.bf16.mxu0 0
    %9240 = vmatpush1.bf16.msra.mxu0 %v6664
    %9241 = vmatprep.subr.bf16.mxu0 0
    %9242 = vmatpush1.bf16.msra.mxu0 %v6665
    %9243 = vmatprep.subr.bf16.mxu0 0
    %9244 = vmatpush1.bf16.msra.mxu0 %v6666
    %9245 = vmatprep.subr.bf16.mxu0 0
    %9246 = vmatpush1.bf16.msra.mxu0 %v6667
    %9247 = vmatprep.subr.bf16.mxu0 0
    %9248 = vmatpush1.bf16.msra.mxu0 %v6668
    %9249 = vmatprep.subr.bf16.mxu0 0
    %9250 = vmatpush1.bf16.msra.mxu0 %v6669
    %9251 = vmatprep.subr.bf16.mxu0 0
    %9252 = vmatpush1.bf16.msra.mxu0 %v6670
    %9253 = vmatprep.subr.bf16.mxu0 0
    %9254 = vmatpush1.bf16.msra.mxu0 %v6671
    %9255 = vmatprep.subr.bf16.mxu0 0
    %9256 = vmatpush1.bf16.msra.mxu0 %v6672
    %9257 = vmatprep.mubr.bf16.mxu0 %v1345
    %9258 = vmatmul.mubr.bf16.gmra.mrb[0].mxu0 %v1344
    %v9259 = vpop.f32.mrb[0].mxu0
    %v9260 = vadd.f32 %v9220, %v9259
    %v9261 = vpop.f32.mrb[0].mxu0
    %v9262 = vpop.f32.mrb[0].mxu0
    %v9263 = vpop.f32.mrb[0].mxu0
    %9264 = vdwg.mxu0
    %9265 = vmatprep.subr.bf16.mxu0 0
    %9266 = vmatpush1.bf16.msra.mxu0 %v6673
    %9267 = vmatprep.subr.bf16.mxu0 0
    %9268 = vmatpush1.bf16.msra.mxu0 %v6674
    %9269 = vmatprep.subr.bf16.mxu0 0
    %9270 = vmatpush1.bf16.msra.mxu0 %v6675
    %9271 = vmatprep.subr.bf16.mxu0 0
    %9272 = vmatpush1.bf16.msra.mxu0 %v6676
    %9273 = vmatprep.subr.bf16.mxu0 0
    %9274 = vmatpush1.bf16.msra.mxu0 %v6677
    %9275 = vmatprep.subr.bf16.mxu0 0
    %9276 = vmatpush1.bf16.msra.mxu0 %v6678
    %9277 = vmatprep.subr.bf16.mxu0 0
    %9278 = vmatpush1.bf16.msra.mxu0 %v6679
    %9279 = vmatprep.subr.bf16.mxu0 0
    %9280 = vmatpush1.bf16.msra.mxu0 %v6680
    %9281 = vmatprep.subr.bf16.mxu0 0
    %9282 = vmatpush1.bf16.msra.mxu0 %v6681
    %9283 = vmatprep.subr.bf16.mxu0 0
    %9284 = vmatpush1.bf16.msra.mxu0 %v6682
    %9285 = vmatprep.subr.bf16.mxu0 0
    %9286 = vmatpush1.bf16.msra.mxu0 %v6683
    %9287 = vmatprep.subr.bf16.mxu0 0
    %9288 = vmatpush1.bf16.msra.mxu0 %v6684
    %9289 = vmatprep.subr.bf16.mxu0 0
    %9290 = vmatpush1.bf16.msra.mxu0 %v6685
    %9291 = vmatprep.subr.bf16.mxu0 0
    %9292 = vmatpush1.bf16.msra.mxu0 %v6686
    %9293 = vmatprep.subr.bf16.mxu0 0
    %9294 = vmatpush1.bf16.msra.mxu0 %v6687
    %9295 = vmatprep.subr.bf16.mxu0 0
    %9296 = vmatpush1.bf16.msra.mxu0 %v6688
    %9297 = vmatprep.mubr.bf16.mxu0 %v1347
    %9298 = vmatmul.mubr.bf16.gmra.mrb[0].mxu0 %v1346
    %v9299 = vpop.f32.mrb[0].mxu0
    %v9300 = vadd.f32 %v9260, %v9299
    %v9301 = vpop.f32.mrb[0].mxu0
    %v9302 = vpop.f32.mrb[0].mxu0
    %v9303 = vpop.f32.mrb[0].mxu0
    %9304 = vdwg.mxu0
    %9305 = vmatprep.subr.bf16.mxu0 0
    %9306 = vmatpush1.bf16.msra.mxu0 %v6689
    %9307 = vmatprep.subr.bf16.mxu0 0
    %9308 = vmatpush1.bf16.msra.mxu0 %v6690
    %9309 = vmatprep.subr.bf16.mxu0 0
    %9310 = vmatpush1.bf16.msra.mxu0 %v6691
    %9311 = vmatprep.subr.bf16.mxu0 0
    %9312 = vmatpush1.bf16.msra.mxu0 %v6692
    %9313 = vmatprep.subr.bf16.mxu0 0
    %9314 = vmatpush1.bf16.msra.mxu0 %v6693
    %9315 = vmatprep.subr.bf16.mxu0 0
    %9316 = vmatpush1.bf16.msra.mxu0 %v6694
    %9317 = vmatprep.subr.bf16.mxu0 0
    %9318 = vmatpush1.bf16.msra.mxu0 %v6695
    %9319 = vmatprep.subr.bf16.mxu0 0
    %9320 = vmatpush1.bf16.msra.mxu0 %v6696
    %9321 = vmatprep.subr.bf16.mxu0 0
    %9322 = vmatpush1.bf16.msra.mxu0 %v6697
    %9323 = vmatprep.subr.bf16.mxu0 0
    %9324 = vmatpush1.bf16.msra.mxu0 %v6698
    %9325 = vmatprep.subr.bf16.mxu0 0
    %9326 = vmatpush1.bf16.msra.mxu0 %v6699
    %9327 = vmatprep.subr.bf16.mxu0 0
    %9328 = vmatpush1.bf16.msra.mxu0 %v6700
    %9329 = vmatprep.subr.bf16.mxu0 0
    %9330 = vmatpush1.bf16.msra.mxu0 %v6701
    %9331 = vmatprep.subr.bf16.mxu0 0
    %9332 = vmatpush1.bf16.msra.mxu0 %v6702
    %9333 = vmatprep.subr.bf16.mxu0 0
    %9334 = vmatpush1.bf16.msra.mxu0 %v6703
    %9335 = vmatprep.subr.bf16.mxu0 0
    %9336 = vmatpush1.bf16.msra.mxu0 %v6704
    %9337 = vmatprep.mubr.bf16.mxu0 %v1349
    %9338 = vmatmul.mubr.bf16.gmra.mrb[0].mxu0 %v1348
    %v9339 = vpop.f32.mrb[0].mxu0
    %v9340 = vadd.f32 %v9300, %v9339
    %v9341 = vpop.f32.mrb[0].mxu0
    %v9342 = vpop.f32.mrb[0].mxu0
    %v9343 = vpop.f32.mrb[0].mxu0
    %9344 = vdwg.mxu0
    %9345 = vmatprep.subr.bf16.mxu0 0
    %9346 = vmatpush1.bf16.msra.mxu0 %v6705
    %9347 = vmatprep.subr.bf16.mxu0 0
    %9348 = vmatpush1.bf16.msra.mxu0 %v6706
    %9349 = vmatprep.subr.bf16.mxu0 0
    %9350 = vmatpush1.bf16.msra.mxu0 %v6707
    %9351 = vmatprep.subr.bf16.mxu0 0
    %9352 = vmatpush1.bf16.msra.mxu0 %v6708
    %9353 = vmatprep.subr.bf16.mxu0 0
    %9354 = vmatpush1.bf16.msra.mxu0 %v6709
    %9355 = vmatprep.subr.bf16.mxu0 0
    %9356 = vmatpush1.bf16.msra.mxu0 %v6710
    %9357 = vmatprep.subr.bf16.mxu0 0
    %9358 = vmatpush1.bf16.msra.mxu0 %v6711
    %9359 = vmatprep.subr.bf16.mxu0 0
    %9360 = vmatpush1.bf16.msra.mxu0 %v6712
    %9361 = vmatprep.subr.bf16.mxu0 0
    %9362 = vmatpush1.bf16.msra.mxu0 %v6713
    %9363 = vmatprep.subr.bf16.mxu0 0
    %9364 = vmatpush1.bf16.msra.mxu0 %v6714
    %9365 = vmatprep.subr.bf16.mxu0 0
    %9366 = vmatpush1.bf16.msra.mxu0 %v6715
    %9367 = vmatprep.subr.bf16.mxu0 0
    %9368 = vmatpush1.bf16.msra.mxu0 %v6716
    %9369 = vmatprep.subr.bf16.mxu0 0
    %9370 = vmatpush1.bf16.msra.mxu0 %v6717
    %9371 = vmatprep.subr.bf16.mxu0 0
    %9372 = vmatpush1.bf16.msra.mxu0 %v6718
    %9373 = vmatprep.subr.bf16.mxu0 0
    %9374 = vmatpush1.bf16.msra.mxu0 %v6719
    %9375 = vmatprep.subr.bf16.mxu0 0
    %9376 = vmatpush1.bf16.msra.mxu0 %v6720
    %9377 = vmatprep.mubr.bf16.mxu0 %v1351
    %9378 = vmatmul.mubr.bf16.gmra.mrb[0].mxu0 %v1350
    %v9379 = vpop.f32.mrb[0].mxu0
    %v9380 = vadd.f32 %v9340, %v9379
    %v9381 = vpop.f32.mrb[0].mxu0
    %v9382 = vpop.f32.mrb[0].mxu0
    %v9383 = vpop.f32.mrb[0].mxu0
    %9384 = vdwg.mxu0
    %9385 = vmatprep.subr.bf16.mxu0 0
    %9386 = vmatpush1.bf16.msra.mxu0 %v6721
    %9387 = vmatprep.subr.bf16.mxu0 0
    %9388 = vmatpush1.bf16.msra.mxu0 %v6722
    %9389 = vmatprep.subr.bf16.mxu0 0
    %9390 = vmatpush1.bf16.msra.mxu0 %v6723
    %9391 = vmatprep.subr.bf16.mxu0 0
    %9392 = vmatpush1.bf16.msra.mxu0 %v6724
    %9393 = vmatprep.subr.bf16.mxu0 0
    %9394 = vmatpush1.bf16.msra.mxu0 %v6725
    %9395 = vmatprep.subr.bf16.mxu0 0
    %9396 = vmatpush1.bf16.msra.mxu0 %v6726
    %9397 = vmatprep.subr.bf16.mxu0 0
    %9398 = vmatpush1.bf16.msra.mxu0 %v6727
    %9399 = vmatprep.subr.bf16.mxu0 0
    %9400 = vmatpush1.bf16.msra.mxu0 %v6728
    %9401 = vmatprep.subr.bf16.mxu0 0
    %9402 = vmatpush1.bf16.msra.mxu0 %v6729
    %9403 = vmatprep.subr.bf16.mxu0 0
    %9404 = vmatpush1.bf16.msra.mxu0 %v6730
    %9405 = vmatprep.subr.bf16.mxu0 0
    %9406 = vmatpush1.bf16.msra.mxu0 %v6731
    %9407 = vmatprep.subr.bf16.mxu0 0
    %9408 = vmatpush1.bf16.msra.mxu0 %v6732
    %9409 = vmatprep.subr.bf16.mxu0 0
    %9410 = vmatpush1.bf16.msra.mxu0 %v6733
    %9411 = vmatprep.subr.bf16.mxu0 0
    %9412 = vmatpush1.bf16.msra.mxu0 %v6734
    %9413 = vmatprep.subr.bf16.mxu0 0
    %9414 = vmatpush1.bf16.msra.mxu0 %v6735
    %9415 = vmatprep.subr.bf16.mxu0 0
    %9416 = vmatpush1.bf16.msra.mxu0 %v6736
    %9417 = vmatprep.mubr.bf16.mxu0 %v1353
    %9418 = vmatmul.mubr.bf16.gmra.mrb[0].mxu0 %v1352
    %v9419 = vpop.f32.mrb[0].mxu0
    %v9420 = vadd.f32 %v9380, %v9419
    %v9421 = vpop.f32.mrb[0].mxu0
    %v9422 = vpop.f32.mrb[0].mxu0
    %v9423 = vpop.f32.mrb[0].mxu0
    %9424 = vdwg.mxu0
    %v9425 = vmax.f32 %v9420, 0.0
    %v9426 = vpack.c.bf16 %v9425, %v9425
    %v9427 = vld [vmem:[#allocation9] sm:$0xf]
    %v9428 = vld [vmem:[#allocation9 + $0x4] sm:$0xf]
    %v9429 = vld [vmem:[#allocation9 + $0x8] sm:$0xf]
    %v9430 = vld [vmem:[#allocation9 + $0xc] sm:$0xf]
    %v9431 = vld [vmem:[#allocation9 + $0x10] sm:$0xf]
    %v9432 = vld [vmem:[#allocation9 + $0x14] sm:$0xf]
    %v9433 = vld [vmem:[#allocation9 + $0x18] sm:$0xf]
    %v9434 = vld [vmem:[#allocation9 + $0x1c] sm:$0xf]
    %v9435 = vld [vmem:[#allocation9 + $0x20] sm:$0xf]
    %v9436 = vld [vmem:[#allocation9 + $0x24] sm:$0xf]
    %v9437 = vld [vmem:[#allocation9 + $0x28] sm:$0xf]
    %v9438 = vld [vmem:[#allocation9 + $0x2c] sm:$0xf]
    %v9439 = vld [vmem:[#allocation9 + $0x30] sm:$0xf]
    %v9440 = vld [vmem:[#allocation9 + $0x34] sm:$0xf]
    %v9441 = vld [vmem:[#allocation9 + $0x38] sm:$0xf]
    %v9442 = vld [vmem:[#allocation9 + $0x3c] sm:$0xf]
    %v9443 = vld [vmem:[#allocation11] sm:$0x1]
    %v9445 = vlaneseq
    %v9446 = vshrl.u32 %v9445, 7
    %v9447 = vsub.s32 0, %v9446
    %v9448 = vrot.slane %v9443, %v9447
    %v9466 = vunpack.c.l.b16 %v9427
    %v9467 = vunpack.c.l.b16 %v9428
    %v9468 = vunpack.c.l.b16 %v9429
    %v9469 = vunpack.c.l.b16 %v9430
    %v9470 = vunpack.c.l.b16 %v9431
    %v9471 = vunpack.c.l.b16 %v9432
    %v9472 = vunpack.c.l.b16 %v9433
    %v9473 = vunpack.c.l.b16 %v9434
    %v9474 = vunpack.c.l.b16 %v9435
    %v9475 = vunpack.c.l.b16 %v9436
    %v9476 = vunpack.c.l.b16 %v9437
    %v9477 = vunpack.c.l.b16 %v9438
    %v9478 = vunpack.c.l.b16 %v9439
    %v9479 = vunpack.c.l.b16 %v9440
    %v9480 = vunpack.c.l.b16 %v9441
    %v9481 = vunpack.c.l.b16 %v9442
    %v9482 = vpack.c.b16 %v9467, %v9466
    %v9483 = vpack.c.b16 %v9469, %v9468
    %v9484 = vpack.c.b16 %v9471, %v9470
    %v9485 = vpack.c.b16 %v9473, %v9472
    %v9486 = vpack.c.b16 %v9475, %v9474
    %v9487 = vpack.c.b16 %v9477, %v9476
    %v9488 = vpack.c.b16 %v9479, %v9478
    %v9489 = vpack.c.b16 %v9481, %v9480
    %9498 = vmatprep.subr.bf16.mxu0 0
    %9499 = vmatpush1.bf16.msra.mxu0 %v9482
    %9500 = vmatprep.subr.bf16.mxu0 0
    %9501 = vmatpush1.bf16.msra.mxu0 %v9483
    %9502 = vmatprep.subr.bf16.mxu0 0
    %9503 = vmatpush1.bf16.msra.mxu0 %v9484
    %9504 = vmatprep.subr.bf16.mxu0 0
    %9505 = vmatpush1.bf16.msra.mxu0 %v9485
    %9506 = vmatprep.subr.bf16.mxu0 0
    %9507 = vmatpush1.bf16.msra.mxu0 %v9486
    %9508 = vmatprep.subr.bf16.mxu0 0
    %9509 = vmatpush1.bf16.msra.mxu0 %v9487
    %9510 = vmatprep.subr.bf16.mxu0 0
    %9511 = vmatpush1.bf16.msra.mxu0 %v9488
    %9512 = vmatprep.subr.bf16.mxu0 0
    %9513 = vmatpush1.bf16.msra.mxu0 %v9489
    %9514 = vmatprep.subr.bf16.mxu0 0
    %9515 = vmatpush1.bf16.msra.mxu0 0
    %9516 = vmatprep.subr.bf16.mxu0 0
    %9517 = vmatpush1.bf16.msra.mxu0 0
    %9518 = vmatprep.subr.bf16.mxu0 0
    %9519 = vmatpush1.bf16.msra.mxu0 0
    %9520 = vmatprep.subr.bf16.mxu0 0
    %9521 = vmatpush1.bf16.msra.mxu0 0
    %9522 = vmatprep.subr.bf16.mxu0 0
    %9523 = vmatpush1.bf16.msra.mxu0 0
    %9524 = vmatprep.subr.bf16.mxu0 0
    %9525 = vmatpush1.bf16.msra.mxu0 0
    %9526 = vmatprep.subr.bf16.mxu0 0
    %9527 = vmatpush1.bf16.msra.mxu0 0
    %9528 = vmatprep.subr.bf16.mxu0 0
    %9529 = vmatpush1.bf16.msra.mxu0 0
    %9530 = vmatprep.mubr.bf16.mxu0 0
    %9531 = vmatmul.mubr.bf16.gmra.mrb[0].mxu0 %v9426
    %v9532 = vpop.f32.mrb[0].mxu0
    %v9533 = vadd.f32 %v9448, %v9532
    %v9534 = vpop.f32.mrb[0].mxu0
    %v9535 = vpop.f32.mrb[0].mxu0
    %v9536 = vpop.f32.mrb[0].mxu0
    %9537 = vdwg.mxu0
    %v9538 = vmax.f32 %v9533, 0.0
    %v9539 = vld [vmem:[#allocation12] sm:$0x1]
    %v9541 = vlaneseq
    %v9542 = vshrl.u32 %v9541, 7
    %v9543 = vsub.s32 0, %v9542
    %v9544 = vrot.slane %v9539, %v9543
    %v9546 = vmul.f32 %v9538, %v9544
    %9547 = vadd.xlane.f32.xlu0 %v9546
    %v9548 = vpop.xlane.xlu0 %9547
    %v9549 = vld [vmem:[#allocation2] sm:$0x1]
    %v9551 = vlaneseq
    %v9552 = vshrl.u32 %v9551, 7
    %v9553 = vsub.s32 0, %v9552
    %v9554 = vrot.slane %v9549, %v9553
    %v9556 = vadd.f32 %v9548, %v9554
    %v9557 = vmul.f32 %v9556, 1.442695
    %v9558 = vpow.pop %v9557
    %v9559 = vadd.f32 %v9558, 1.0
    %v9560 = vrcp.pop %v9559
    %v9561 = vsub.f32 1.0, %v9560
    %v9562 = vlaneseq
    %v9563 = vand.u32 %v9562, 127
    %vm9564 = vcmp.eq.s32.totalorder %v9563, 0
    %vm9565 = vcmp.eq.s32.totalorder %v9563, 1
    %9567 = vset.pattern.permute.xlu0 0
    %9568 = vperm.xlu0 %9567, %v9561
    %v9569 = vpop.permute.xlu0 %9568
    %v9571 = vsel %vm9565, %v9569, 0.0
    %9573 = vset.pattern.permute.xlu0 0
    %9574 = vperm.xlu0 %9573, %v9560
    %v9575 = vpop.permute.xlu0 %9574
    %v9577 = vsel %vm9564, %v9575, %v9571
    %9578 = vst [vmem:[#allocation14] sm:$0xff] %v9577
    // Predicated region
    $region54: #{tpu_custom_call.1} parent=1 // pred_check
      _
    $region55: #{tpu_custom_call.1} parent=1 // pred_check_branch
      %9580 = sbr.rel (0) target = $region57
    $region56: #{tpu_custom_call.1} parent=1 // pred_region
      %s9582 = ssub.s32 128, 32
      %9583 = vsyncadd [#allocation5], %s9582
      %s9584 = sshll.u32 [#allocation14], 4
      %s9585 = int_to_ptr.vmem [resolvable:$true] %s9584
      %9590 = dma.vmem_to_hbm [thread:$0]  %s9585, 32, %s7, [#allocation5], 32, 32, 2
    $region57: #{tpu_custom_call.1} parent=1 // pred_fallthru
      _
    // Predicated region
    $region58: #{tpu_custom_call.1} parent=1 // pred_check
      _
    $region59: #{tpu_custom_call.1} parent=1 // pred_check_branch
      %9592 = sbr.rel (0) target = $region61
    $region60: #{tpu_custom_call.1} parent=1 // pred_region
      %9593 = dma.done [#allocation5], 128
    $region61: #{tpu_custom_call.1} parent=1 // pred_fallthru
      _
    %9594 = vsyncpa [#allocation4], 1
    %9595 = vsyncpa [#allocation7], 1
    %9596 = vsyncpa [#allocation10], 1
    %9597 = vsyncpa [#allocation13], 1
    %9598 = vsyncpa [#allocation5], 1

</llo_original>
